<compile_context>
chip_gen: v7x
topology: tpu7x:2x2x1
jax: 0.10.0
libtpu: 0.0.40
codegen_flags: <defaults>
</compile_context>

<pallas_src>
import functools

import jax
import jax.numpy as jnp
from jax import lax
from jax.experimental import pallas as pl
from jax.experimental.pallas import tpu as pltpu

K = 4  # conv kernel size (both convs), per the PyTorch module
S = 2  # conv stride


# ---------------------------------------------------------------------------
# Fused kernel: TB batch samples per grid step, everything resident in VMEM.
# ---------------------------------------------------------------------------
def _dqn_kernel(p1_ref, w1_ref, b1_ref, w2_ref, b2_ref, wfc_ref, bfc_ref,
                wout_ref, bout_ref, o_ref, a1_ref, fcin_ref,
                *, tb, p1, ow1, oh2, ow2, fuse_taps):
    c1 = w1_ref.shape[1]            # conv1 out channels
    c2 = w2_ref.shape[1]            # conv2 out channels
    cdt = w1_ref.dtype              # matmul-operand (compute) dtype

    # ---- conv1: per-sample (P1, Cin*K*K) @ (Cin*K*K, C1) + bias, ReLU ----
    # Results land sample-major in a1_ref so conv2 can read one output
    # position across all TB samples with a single strided slice.
    for t in range(tb):
        a1 = jnp.dot(p1_ref[t].astype(cdt), w1_ref[...],
                     preferred_element_type=jnp.float32)
        a1_ref[pl.ds(t * p1, p1), :] = jnp.maximum(a1 + b1_ref[...], 0.0)

    # ---- conv2: one output position at a time, all TB samples at once ----
    # Each tap operand is a single (strided) ref read -- no staging copies.
    # With fuse_taps the 16 taps are lane-concatenated into a (TB, K*K*C1)
    # operand and conv2 is a single matmul per position; the (TB, C2) result
    # is stored directly at its flattened lane offset in the fc input buffer.
    for i2 in range(oh2):
        for j2 in range(ow2):
            base = (S * i2) * ow1 + S * j2
            taps = []
            for kh in range(K):
                for kw in range(K):
                    r = base + kh * ow1 + kw
                    idx = pl.ds(r, tb) if tb == 1 else pl.ds(r, tb, stride=p1)
                    taps.append(a1_ref[idx, :])                # (TB, C1)
            if fuse_taps:
                xp = jnp.concatenate(taps, axis=1).astype(cdt)  # (TB, K*K*C1)
                yp = jnp.dot(xp, w2_ref[...],
                             preferred_element_type=jnp.float32)
            else:  # conservative fallback: accumulate per-tap matmuls
                yp = jnp.zeros((tb, c2), jnp.float32)
                for tap_idx, piece in enumerate(taps):
                    yp = yp + jnp.dot(piece.astype(cdt),
                                      w2_ref[pl.ds(tap_idx * c1, c1), :],
                                      preferred_element_type=jnp.float32)
            yp = jnp.maximum(yp + b2_ref[...], 0.0)             # (TB, C2)
            p = i2 * ow2 + j2
            fcin_ref[:, pl.ds(p * c2, c2)] = yp

    # ---- fc: ONE (TB, P2*C2) @ (P2*C2, H) matmul + bias, ReLU -------------
    h = jnp.dot(fcin_ref[...].astype(cdt), wfc_ref[...],
                preferred_element_type=jnp.float32)
    h = jnp.maximum(h + bfc_ref[...], 0.0)

    # ---- out head: lane-dense (TB, 128) store ------------------------------
    q = jnp.dot(h.astype(cdt), wout_ref[...],
                preferred_element_type=jnp.float32)
    o_ref[0] = q + bout_ref[...]


# ---------------------------------------------------------------------------
# Wrapper-side glue
# ---------------------------------------------------------------------------
def im2col_nchw(x, k, s):
    """(N, C, H, W) -> (N, OH*OW, C*k*k); column order (c, kh, kw) matches
    PyTorch's Conv2d weight flatten (Cout, Cin*K*K)."""
    n, c, h, w = x.shape
    oh = (h - k) // s + 1
    ow = (w - k) // s + 1
    cols = []
    for kh in range(k):
        for kw in range(k):
            cols.append(x[:, :, kh:kh + s * oh:s, kw:kw + s * ow:s])
    patches = jnp.stack(cols, axis=-1)                         # (N, C, OH, OW, K*K)
    patches = patches.transpose(0, 2, 3, 1, 4).reshape(n, oh * ow, c * k * k)
    return patches, oh, ow


def prepare_params(params, input_size, compute_dtype=jnp.bfloat16):
    """One-time weight re-layout: pre-transpose / pre-permute / lane-pad and
    cast matmul weights to the compute dtype (biases stay f32).
    NOTE: assumes square inputs (as the PyTorch module does)."""
    c1, cin, _, _ = params["conv1_w"].shape
    c2 = params["conv2_w"].shape[0]
    hdim = params["fc_w"].shape[0]
    a = params["out_w"].shape[0]
    oh1 = (input_size - K) // S + 1
    oh2 = (oh1 - K) // S + 1
    ow2 = oh2
    npad = max(128, ((a + 127) // 128) * 128)   # lane-dense output width

    w1 = params["conv1_w"].reshape(c1, cin * K * K).T                     # (Cin*K*K, C1)
    w2 = params["conv2_w"].transpose(2, 3, 1, 0).reshape(K * K * c1, c2)  # rows (kh,kw,cin)
    wfc = (params["fc_w"].reshape(hdim, c2, oh2, ow2)
           .transpose(2, 3, 1, 0).reshape(oh2 * ow2 * c2, hdim))          # rows (oh,ow,c)
    wout = jnp.pad(params["out_w"].T, ((0, 0), (0, npad - a)))            # (H, 128)
    bout = jnp.pad(params["out_b"], (0, npad - a)).reshape(1, npad)
    f32 = jnp.float32
    return {
        "w1": w1.astype(compute_dtype), "b1": params["conv1_b"].reshape(1, c1).astype(f32),
        "w2": w2.astype(compute_dtype), "b2": params["conv2_b"].reshape(1, c2).astype(f32),
        "wfc": wfc.astype(compute_dtype), "bfc": params["fc_b"].reshape(1, hdim).astype(f32),
        "wout": wout.astype(compute_dtype), "bout": bout.astype(f32),
    }


def _choose_tb(n):
    """Samples per grid step: up to 8, but keep >= 2 grid steps so
    dimension_semantics=('parallel',) can shard the batch across v7x's 2 TCs."""
    tb = min(8, n)
    if n >= 2 and pl.cdiv(n, tb) < 2:
        tb = pl.cdiv(n, 2)
    return max(int(tb), 1)


@functools.partial(jax.jit, static_argnames=("num_actions", "single_buffer_weights",
                                             "fuse_conv2_taps"))
def dqn_forward(prepared, states, *, num_actions, single_buffer_weights=True,
                fuse_conv2_taps=True):
    """states: (N, Cin, H, W) float32 -> (N, num_actions) float32."""
    n = states.shape[0]
    cdt = prepared["w1"].dtype
    patches1, oh1, ow1 = im2col_nchw(states, K, S)   # conv1 im2col on raw input
    patches1 = patches1.astype(cdt)                  # halves DMA bytes in bf16 mode
    p1, ck2 = patches1.shape[1], patches1.shape[2]
    oh2 = (oh1 - K) // S + 1
    ow2 = (ow1 - K) // S + 1
    p2 = oh2 * ow2
    c1 = prepared["w1"].shape[1]
    c2 = prepared["w2"].shape[1]
    hdim = prepared["wfc"].shape[1]
    npad = prepared["wout"].shape[1]

    tb = _choose_tb(n)
    grid = int(pl.cdiv(n, tb))
    n_pad = grid * tb
    if n_pad != n:
        patches1 = jnp.pad(patches1, ((0, n_pad - n), (0, 0), (0, 0)))

    kernel = functools.partial(_dqn_kernel, tb=tb, p1=p1, ow1=ow1,
                               oh2=oh2, ow2=ow2, fuse_taps=fuse_conv2_taps)

    def wspec(shape):
        # Constant-index weight/bias blocks: single-buffer them to halve their
        # VMEM footprint (matters on v7x's 64 MiB VMEM at production sizes).
        if single_buffer_weights:
            return pl.BlockSpec(shape, lambda b: (0,) * len(shape),
                                pipeline_mode=pl.Buffered(1))
        return pl.BlockSpec(shape, lambda b: (0,) * len(shape))

    wbytes = sum(int(prepared[k].size) * int(prepared[k].dtype.itemsize)
                 for k in ("w1", "b1", "w2", "b2", "wfc", "bfc", "wout", "bout"))
    cost = pl.CostEstimate(
        flops=2 * n_pad * (p1 * ck2 * c1 + p2 * K * K * c1 * c2
                           + p2 * c2 * hdim + hdim * npad),
        transcendentals=0,
        bytes_accessed=int(patches1.size) * int(patches1.dtype.itemsize)
                       + wbytes + n_pad * npad * 4)

    # Output is (grid, TB, 128): the last two block dims equal the array dims
    # for ANY TB (keeps the (8,128) block rule) while every store stays a
    # lane-dense 128-wide slab; flattened back to (N, 128) below.
    qpad = pl.pallas_call(
        kernel,
        out_shape=jax.ShapeDtypeStruct((grid, tb, npad), jnp.float32),
        grid_spec=pltpu.PrefetchScalarGridSpec(
            num_scalar_prefetch=0,
            grid=(grid,),
            in_specs=[
                pl.BlockSpec((tb, p1, ck2), lambda b: (b, 0, 0)),  # per-step patches
                wspec((ck2, c1)), wspec((1, c1)),                  # w1, b1
                wspec((K * K * c1, c2)), wspec((1, c2)),           # w2, b2
                wspec((p2 * c2, hdim)), wspec((1, hdim)),          # wfc, bfc
                wspec((hdim, npad)), wspec((1, npad)),             # wout, bout (padded)
            ],
            out_specs=pl.BlockSpec((1, tb, npad), lambda b: (b, 0, 0)),
            scratch_shapes=[
                pltpu.VMEM((tb * p1, c1), jnp.float32),   # conv1 acts, sample-major
                pltpu.VMEM((tb, p2 * c2), jnp.float32),   # flattened fc input
            ],
        ),
        compiler_params=pltpu.CompilerParams(
            dimension_semantics=("parallel",),
            vmem_limit_bytes=32 * 1024 * 1024),
        cost_estimate=cost,
    )(patches1, prepared["w1"], prepared["b1"], prepared["w2"], prepared["b2"],
      prepared["wfc"], prepared["bfc"], prepared["wout"], prepared["bout"])
    return qpad.reshape(n_pad, npad)[:n, :num_actions]


# Preferred config first (single-buffered weights + fused-tap conv2 matmul);
# fall back to a conservative config if this Pallas/Mosaic version rejects it.
_CONFIGS = ((True, True), (False, False))


def run_forward(prepared, states, num_actions):
    err = None
    for single_buf, fuse in _CONFIGS:
        try:
            return jax.block_until_ready(
                dqn_forward(prepared, states, num_actions=num_actions,
                            single_buffer_weights=single_buf,
                            fuse_conv2_taps=fuse))
        except Exception as e:  # version-dependent lowering rejection
            err = e
    raise err


# ---------------------------------------------------------------------------
# Pure-JAX reference (for correctness check only)
# ---------------------------------------------------------------------------
def dqn_forward_ref(params, states):
    dn = lax.conv_dimension_numbers(states.shape, params["conv1_w"].shape,
                                    ("NCHW", "OIHW", "NCHW"))
    x = lax.conv_general_dilated(states, params["conv1_w"], (2, 2), "VALID",
                                 dimension_numbers=dn)
    x = jax.nn.relu(x + params["conv1_b"][None, :, None, None])
    dn2 = lax.conv_dimension_numbers(x.shape, params["conv2_w"].shape,
                                     ("NCHW", "OIHW", "NCHW"))
    x = lax.conv_general_dilated(x, params["conv2_w"], (2, 2), "VALID",
                                 dimension_numbers=dn2)
    x = jax.nn.relu(x + params["conv2_b"][None, :, None, None])
    x = x.reshape(x.shape[0], -1)
    x = jax.nn.relu(x @ params["fc_w"].T + params["fc_b"])
    return x @ params["out_w"].T + params["out_b"]


# ---------------------------------------------------------------------------
# Deterministic parameter init (shapes per DQN.__init__)
# ---------------------------------------------------------------------------
def init_params(key, in_channels, num_actions, input_size):
    s = input_size
    for k_ in (4, 4):
        s = int((s - k_) / 2 + 1)
    fc_in = 64 * s * s
    keys = jax.random.split(key, 8)

    def xavier(k, shape, fan_in, fan_out):
        lim = (6.0 / (fan_in + fan_out)) ** 0.5
        return jax.random.uniform(k, shape, jnp.float32, -lim, lim)

    return {
        "conv1_w": xavier(keys[0], (32, in_channels, 4, 4), in_channels * 16, 32 * 16),
        "conv1_b": jax.random.uniform(keys[1], (32,), jnp.float32, 0.1, 0.2),
        "conv2_w": xavier(keys[2], (64, 32, 4, 4), 32 * 16, 64 * 16),
        "conv2_b": jax.random.uniform(keys[3], (64,), jnp.float32, 0.1, 0.2),
        "fc_w": xavier(keys[4], (256, fc_in), fc_in, 256),
        "fc_b": jax.random.uniform(keys[5], (256,), jnp.float32, 0.1, 0.2),
        "out_w": xavier(keys[6], (num_actions, 256), 256, num_actions),
        "out_b": jax.random.uniform(keys[7], (num_actions,), jnp.float32, 0.1, 0.2),
    }


if __name__ == "__main__":
    # Small shapes consistent with DQN(in_channels=1, num_actions=4, input_size=16)
    batch, in_channels, num_actions, input_size = 4, 1, 4, 16

    key = jax.random.PRNGKey(0)
    pkey, xkey = jax.random.split(key)
    params = init_params(pkey, in_channels, num_actions, input_size)
    states = jax.random.normal(xkey, (batch, in_channels, input_size, input_size),
                               dtype=jnp.float32)

    ref = jax.block_until_ready(dqn_forward_ref(params, states))

    # f32 path: tight structural / weight-layout check against the reference.
    prep32 = prepare_params(params, input_size, compute_dtype=jnp.float32)
    out32 = run_forward(prep32, states, num_actions)
    assert out32.shape == (batch, num_actions), out32.shape
    assert jnp.allclose(out32, ref, atol=2e-4, rtol=2e-4), (out32, ref)

    # bf16 fast path (default): MXU-native operands with f32 accumulation.
    prep_bf16 = prepare_params(params, input_size, compute_dtype=jnp.bfloat16)
    out_bf16 = run_forward(prep_bf16, states, num_actions)
    assert out_bf16.shape == (batch, num_actions), out_bf16.shape
    assert jnp.allclose(out_bf16, ref, atol=5e-2, rtol=5e-2), (out_bf16, ref)

    print("KERNEL_OK")
</pallas_src>

<mosaic_0001>
module attributes {stable_mosaic.version = 11 : i64} {
  func.func @_dqn_kernel(%arg0: i32, %arg1: memref<2x49x16xf32, #tpu.memory_space<vmem>>, %arg2: memref<16x32xf32, #tpu.memory_space<vmem>>, %arg3: memref<1x32xf32, #tpu.memory_space<vmem>>, %arg4: memref<512x64xf32, #tpu.memory_space<vmem>>, %arg5: memref<1x64xf32, #tpu.memory_space<vmem>>, %arg6: memref<256x256xf32, #tpu.memory_space<vmem>>, %arg7: memref<1x256xf32, #tpu.memory_space<vmem>>, %arg8: memref<256x128xf32, #tpu.memory_space<vmem>>, %arg9: memref<1x128xf32, #tpu.memory_space<vmem>>, %arg10: memref<1x2x128xf32, #tpu.memory_space<vmem>>, %arg11: memref<98x32xf32, #tpu.memory_space<vmem>>, %arg12: memref<2x256xf32, #tpu.memory_space<vmem>>) attributes {dimension_semantics = [#tpu.dimension_semantics<parallel>], iteration_bounds = array<i64: 2>, scalar_prefetch = 0 : i64, scratch_operands = 2 : i64, tpu.core_type = #tpu.core_type<tc>, window_params = [{transform_indices = @transform_0, window_bounds = array<i64: 2, 49, 16>}, {pipeline_mode = #tpu.pipeline_mode<synchronous>, transform_indices = @transform_1, window_bounds = array<i64: 16, 32>}, {pipeline_mode = #tpu.pipeline_mode<synchronous>, transform_indices = @transform_2, window_bounds = array<i64: 1, 32>}, {pipeline_mode = #tpu.pipeline_mode<synchronous>, transform_indices = @transform_3, window_bounds = array<i64: 512, 64>}, {pipeline_mode = #tpu.pipeline_mode<synchronous>, transform_indices = @transform_4, window_bounds = array<i64: 1, 64>}, {pipeline_mode = #tpu.pipeline_mode<synchronous>, transform_indices = @transform_5, window_bounds = array<i64: 256, 256>}, {pipeline_mode = #tpu.pipeline_mode<synchronous>, transform_indices = @transform_6, window_bounds = array<i64: 1, 256>}, {pipeline_mode = #tpu.pipeline_mode<synchronous>, transform_indices = @transform_7, window_bounds = array<i64: 256, 128>}, {pipeline_mode = #tpu.pipeline_mode<synchronous>, transform_indices = @transform_8, window_bounds = array<i64: 1, 128>}, {transform_indices = @transform_9, window_bounds = array<i64: 1, 2, 128>}]} {
    %c0 = arith.constant 0 : index
    %c0_0 = arith.constant 0 : index
    %c0_1 = arith.constant 0 : index
    %0 = vector.load %arg1[%c0, %c0_0, %c0_1] : memref<2x49x16xf32, #tpu.memory_space<vmem>>, vector<1x49x16xf32>
    %1 = vector.shape_cast %0 : vector<1x49x16xf32> to vector<49x16xf32>
    %c0_2 = arith.constant 0 : index
    %c0_3 = arith.constant 0 : index
    %2 = vector.load %arg2[%c0_2, %c0_3] : memref<16x32xf32, #tpu.memory_space<vmem>>, vector<16x32xf32>
    %cst = arith.constant dense<0.000000e+00> : vector<49x32xf32>
    %3 = tpu.matmul %1, %2, %cst {dimension_numbers = #tpu.dot_dimension_numbers<[1], [0], [0], [1], [0, 0, 1, 1], [], []>} : vector<49x16xf32>, vector<16x32xf32>, vector<49x32xf32> -> vector<49x32xf32>
    %c0_4 = arith.constant 0 : index
    %c0_5 = arith.constant 0 : index
    %4 = vector.load %arg3[%c0_4, %c0_5] : memref<1x32xf32, #tpu.memory_space<vmem>>, vector<1x32xf32>
    %5 = vector.broadcast %4 : vector<1x32xf32> to vector<49x32xf32>
    %6 = arith.addf %3, %5 : vector<49x32xf32>
    %cst_6 = arith.constant 0.000000e+00 : f32
    %7 = vector.broadcast %cst_6 : f32 to vector<49x32xf32>
    %8 = arith.maximumf %6, %7 : vector<49x32xf32>
    %c0_7 = arith.constant 0 : index
    %c0_8 = arith.constant 0 : index
    %9 = vector.load %arg11[%c0_7, %c0_8] : memref<98x32xf32, #tpu.memory_space<vmem>>, vector<49x32xf32>
    tpu.vector_store %arg11[%c0_7, %c0_8], %8 {strides = array<i32>} : memref<98x32xf32, #tpu.memory_space<vmem>>, vector<49x32xf32>,
    %c1 = arith.constant 1 : index
    %c0_9 = arith.constant 0 : index
    %c0_10 = arith.constant 0 : index
    %10 = vector.load %arg1[%c1, %c0_9, %c0_10] : memref<2x49x16xf32, #tpu.memory_space<vmem>>, vector<1x49x16xf32>
    %11 = vector.shape_cast %10 : vector<1x49x16xf32> to vector<49x16xf32>
    %c0_11 = arith.constant 0 : index
    %c0_12 = arith.constant 0 : index
    %12 = vector.load %arg2[%c0_11, %c0_12] : memref<16x32xf32, #tpu.memory_space<vmem>>, vector<16x32xf32>
    %cst_13 = arith.constant dense<0.000000e+00> : vector<49x32xf32>
    %13 = tpu.matmul %11, %12, %cst_13 {dimension_numbers = #tpu.dot_dimension_numbers<[1], [0], [0], [1], [0, 0, 1, 1], [], []>} : vector<49x16xf32>, vector<16x32xf32>, vector<49x32xf32> -> vector<49x32xf32>
    %c0_14 = arith.constant 0 : index
    %c0_15 = arith.constant 0 : index
    %14 = vector.load %arg3[%c0_14, %c0_15] : memref<1x32xf32, #tpu.memory_space<vmem>>, vector<1x32xf32>
    %15 = vector.broadcast %14 : vector<1x32xf32> to vector<49x32xf32>
    %16 = arith.addf %13, %15 : vector<49x32xf32>
    %cst_16 = arith.constant 0.000000e+00 : f32
    %17 = vector.broadcast %cst_16 : f32 to vector<49x32xf32>
    %18 = arith.maximumf %16, %17 : vector<49x32xf32>
    %c49 = arith.constant 49 : index
    %c0_17 = arith.constant 0 : index
    %19 = vector.load %arg11[%c49, %c0_17] : memref<98x32xf32, #tpu.memory_space<vmem>>, vector<49x32xf32>
    tpu.vector_store %arg11[%c49, %c0_17], %18 {strides = array<i32>} : memref<98x32xf32, #tpu.memory_space<vmem>>, vector<49x32xf32>,
    %c0_18 = arith.constant 0 : index
    %c0_19 = arith.constant 0 : index
    %20 = tpu.strided_load %arg11[%c0_18, %c0_19] {strides = array<i32: 49, 1>} : memref<98x32xf32, #tpu.memory_space<vmem>>, vector<2x32xf32>
    %c1_20 = arith.constant 1 : index
    %c0_21 = arith.constant 0 : index
    %21 = tpu.strided_load %arg11[%c1_20, %c0_21] {strides = array<i32: 49, 1>} : memref<98x32xf32, #tpu.memory_space<vmem>>, vector<2x32xf32>
    %c2 = arith.constant 2 : index
    %c0_22 = arith.constant 0 : index
    %22 = tpu.strided_load %arg11[%c2, %c0_22] {strides = array<i32: 49, 1>} : memref<98x32xf32, #tpu.memory_space<vmem>>, vector<2x32xf32>
    %c3 = arith.constant 3 : index
    %c0_23 = arith.constant 0 : index
    %23 = tpu.strided_load %arg11[%c3, %c0_23] {strides = array<i32: 49, 1>} : memref<98x32xf32, #tpu.memory_space<vmem>>, vector<2x32xf32>
    %c7 = arith.constant 7 : index
    %c0_24 = arith.constant 0 : index
    %24 = tpu.strided_load %arg11[%c7, %c0_24] {strides = array<i32: 49, 1>} : memref<98x32xf32, #tpu.memory_space<vmem>>, vector<2x32xf32>
    %c8 = arith.constant 8 : index
    %c0_25 = arith.constant 0 : index
    %25 = tpu.strided_load %arg11[%c8, %c0_25] {strides = array<i32: 49, 1>} : memref<98x32xf32, #tpu.memory_space<vmem>>, vector<2x32xf32>
    %c9 = arith.constant 9 : index
    %c0_26 = arith.constant 0 : index
    %26 = tpu.strided_load %arg11[%c9, %c0_26] {strides = array<i32: 49, 1>} : memref<98x32xf32, #tpu.memory_space<vmem>>, vector<2x32xf32>
    %c10 = arith.constant 10 : index
    %c0_27 = arith.constant 0 : index
    %27 = tpu.strided_load %arg11[%c10, %c0_27] {strides = array<i32: 49, 1>} : memref<98x32xf32, #tpu.memory_space<vmem>>, vector<2x32xf32>
    %c14 = arith.constant 14 : index
    %c0_28 = arith.constant 0 : index
    %28 = tpu.strided_load %arg11[%c14, %c0_28] {strides = array<i32: 49, 1>} : memref<98x32xf32, #tpu.memory_space<vmem>>, vector<2x32xf32>
    %c15 = arith.constant 15 : index
    %c0_29 = arith.constant 0 : index
    %29 = tpu.strided_load %arg11[%c15, %c0_29] {strides = array<i32: 49, 1>} : memref<98x32xf32, #tpu.memory_space<vmem>>, vector<2x32xf32>
    %c16 = arith.constant 16 : index
    %c0_30 = arith.constant 0 : index
    %30 = tpu.strided_load %arg11[%c16, %c0_30] {strides = array<i32: 49, 1>} : memref<98x32xf32, #tpu.memory_space<vmem>>, vector<2x32xf32>
    %c17 = arith.constant 17 : index
    %c0_31 = arith.constant 0 : index
    %31 = tpu.strided_load %arg11[%c17, %c0_31] {strides = array<i32: 49, 1>} : memref<98x32xf32, #tpu.memory_space<vmem>>, vector<2x32xf32>
    %c21 = arith.constant 21 : index
    %c0_32 = arith.constant 0 : index
    %32 = tpu.strided_load %arg11[%c21, %c0_32] {strides = array<i32: 49, 1>} : memref<98x32xf32, #tpu.memory_space<vmem>>, vector<2x32xf32>
    %c22 = arith.constant 22 : index
    %c0_33 = arith.constant 0 : index
    %33 = tpu.strided_load %arg11[%c22, %c0_33] {strides = array<i32: 49, 1>} : memref<98x32xf32, #tpu.memory_space<vmem>>, vector<2x32xf32>
    %c23 = arith.constant 23 : index
    %c0_34 = arith.constant 0 : index
    %34 = tpu.strided_load %arg11[%c23, %c0_34] {strides = array<i32: 49, 1>} : memref<98x32xf32, #tpu.memory_space<vmem>>, vector<2x32xf32>
    %c24 = arith.constant 24 : index
    %c0_35 = arith.constant 0 : index
    %35 = tpu.strided_load %arg11[%c24, %c0_35] {strides = array<i32: 49, 1>} : memref<98x32xf32, #tpu.memory_space<vmem>>, vector<2x32xf32>
    %36 = tpu.concatenate %20, %21, %22, %23, %24, %25, %26, %27, %28, %29, %30, %31, %32, %33, %34, %35 in 1 : vector<2x32xf32>, vector<2x32xf32>, vector<2x32xf32>, vector<2x32xf32>, vector<2x32xf32>, vector<2x32xf32>, vector<2x32xf32>, vector<2x32xf32>, vector<2x32xf32>, vector<2x32xf32>, vector<2x32xf32>, vector<2x32xf32>, vector<2x32xf32>, vector<2x32xf32>, vector<2x32xf32>, vector<2x32xf32> -> vector<2x512xf32>
    %c0_36 = arith.constant 0 : index
    %c0_37 = arith.constant 0 : index
    %37 = vector.load %arg4[%c0_36, %c0_37] : memref<512x64xf32, #tpu.memory_space<vmem>>, vector<512x64xf32>
    %cst_38 = arith.constant dense<0.000000e+00> : vector<2x64xf32>
    %38 = tpu.matmul %36, %37, %cst_38 {dimension_numbers = #tpu.dot_dimension_numbers<[1], [0], [0], [1], [0, 0, 1, 1], [], []>} : vector<2x512xf32>, vector<512x64xf32>, vector<2x64xf32> -> vector<2x64xf32>
    %c0_39 = arith.constant 0 : index
    %c0_40 = arith.constant 0 : index
    %39 = vector.load %arg5[%c0_39, %c0_40] : memref<1x64xf32, #tpu.memory_space<vmem>>, vector<1x64xf32>
    %40 = vector.broadcast %39 : vector<1x64xf32> to vector<2x64xf32>
    %41 = arith.addf %38, %40 : vector<2x64xf32>
    %cst_41 = arith.constant 0.000000e+00 : f32
    %42 = vector.broadcast %cst_41 : f32 to vector<2x64xf32>
    %43 = arith.maximumf %41, %42 : vector<2x64xf32>
    %c0_42 = arith.constant 0 : index
    %c0_43 = arith.constant 0 : index
    %44 = vector.load %arg12[%c0_42, %c0_43] : memref<2x256xf32, #tpu.memory_space<vmem>>, vector<2x64xf32>
    tpu.vector_store %arg12[%c0_42, %c0_43], %43 {strides = array<i32>} : memref<2x256xf32, #tpu.memory_space<vmem>>, vector<2x64xf32>,
    %c2_44 = arith.constant 2 : index
    %c0_45 = arith.constant 0 : index
    %45 = tpu.strided_load %arg11[%c2_44, %c0_45] {strides = array<i32: 49, 1>} : memref<98x32xf32, #tpu.memory_space<vmem>>, vector<2x32xf32>
    %c3_46 = arith.constant 3 : index
    %c0_47 = arith.constant 0 : index
    %46 = tpu.strided_load %arg11[%c3_46, %c0_47] {strides = array<i32: 49, 1>} : memref<98x32xf32, #tpu.memory_space<vmem>>, vector<2x32xf32>
    %c4 = arith.constant 4 : index
    %c0_48 = arith.constant 0 : index
    %47 = tpu.strided_load %arg11[%c4, %c0_48] {strides = array<i32: 49, 1>} : memref<98x32xf32, #tpu.memory_space<vmem>>, vector<2x32xf32>
    %c5 = arith.constant 5 : index
    %c0_49 = arith.constant 0 : index
    %48 = tpu.strided_load %arg11[%c5, %c0_49] {strides = array<i32: 49, 1>} : memref<98x32xf32, #tpu.memory_space<vmem>>, vector<2x32xf32>
    %c9_50 = arith.constant 9 : index
    %c0_51 = arith.constant 0 : index
    %49 = tpu.strided_load %arg11[%c9_50, %c0_51] {strides = array<i32: 49, 1>} : memref<98x32xf32, #tpu.memory_space<vmem>>, vector<2x32xf32>
    %c10_52 = arith.constant 10 : index
    %c0_53 = arith.constant 0 : index
    %50 = tpu.strided_load %arg11[%c10_52, %c0_53] {strides = array<i32: 49, 1>} : memref<98x32xf32, #tpu.memory_space<vmem>>, vector<2x32xf32>
    %c11 = arith.constant 11 : index
    %c0_54 = arith.constant 0 : index
    %51 = tpu.strided_load %arg11[%c11, %c0_54] {strides = array<i32: 49, 1>} : memref<98x32xf32, #tpu.memory_space<vmem>>, vector<2x32xf32>
    %c12 = arith.constant 12 : index
    %c0_55 = arith.constant 0 : index
    %52 = tpu.strided_load %arg11[%c12, %c0_55] {strides = array<i32: 49, 1>} : memref<98x32xf32, #tpu.memory_space<vmem>>, vector<2x32xf32>
    %c16_56 = arith.constant 16 : index
    %c0_57 = arith.constant 0 : index
    %53 = tpu.strided_load %arg11[%c16_56, %c0_57] {strides = array<i32: 49, 1>} : memref<98x32xf32, #tpu.memory_space<vmem>>, vector<2x32xf32>
    %c17_58 = arith.constant 17 : index
    %c0_59 = arith.constant 0 : index
    %54 = tpu.strided_load %arg11[%c17_58, %c0_59] {strides = array<i32: 49, 1>} : memref<98x32xf32, #tpu.memory_space<vmem>>, vector<2x32xf32>
    %c18 = arith.constant 18 : index
    %c0_60 = arith.constant 0 : index
    %55 = tpu.strided_load %arg11[%c18, %c0_60] {strides = array<i32: 49, 1>} : memref<98x32xf32, #tpu.memory_space<vmem>>, vector<2x32xf32>
    %c19 = arith.constant 19 : index
    %c0_61 = arith.constant 0 : index
    %56 = tpu.strided_load %arg11[%c19, %c0_61] {strides = array<i32: 49, 1>} : memref<98x32xf32, #tpu.memory_space<vmem>>, vector<2x32xf32>
    %c23_62 = arith.constant 23 : index
    %c0_63 = arith.constant 0 : index
    %57 = tpu.strided_load %arg11[%c23_62, %c0_63] {strides = array<i32: 49, 1>} : memref<98x32xf32, #tpu.memory_space<vmem>>, vector<2x32xf32>
    %c24_64 = arith.constant 24 : index
    %c0_65 = arith.constant 0 : index
    %58 = tpu.strided_load %arg11[%c24_64, %c0_65] {strides = array<i32: 49, 1>} : memref<98x32xf32, #tpu.memory_space<vmem>>, vector<2x32xf32>
    %c25 = arith.constant 25 : index
    %c0_66 = arith.constant 0 : index
    %59 = tpu.strided_load %arg11[%c25, %c0_66] {strides = array<i32: 49, 1>} : memref<98x32xf32, #tpu.memory_space<vmem>>, vector<2x32xf32>
    %c26 = arith.constant 26 : index
    %c0_67 = arith.constant 0 : index
    %60 = tpu.strided_load %arg11[%c26, %c0_67] {strides = array<i32: 49, 1>} : memref<98x32xf32, #tpu.memory_space<vmem>>, vector<2x32xf32>
    %61 = tpu.concatenate %45, %46, %47, %48, %49, %50, %51, %52, %53, %54, %55, %56, %57, %58, %59, %60 in 1 : vector<2x32xf32>, vector<2x32xf32>, vector<2x32xf32>, vector<2x32xf32>, vector<2x32xf32>, vector<2x32xf32>, vector<2x32xf32>, vector<2x32xf32>, vector<2x32xf32>, vector<2x32xf32>, vector<2x32xf32>, vector<2x32xf32>, vector<2x32xf32>, vector<2x32xf32>, vector<2x32xf32>, vector<2x32xf32> -> vector<2x512xf32>
    %c0_68 = arith.constant 0 : index
    %c0_69 = arith.constant 0 : index
    %62 = vector.load %arg4[%c0_68, %c0_69] : memref<512x64xf32, #tpu.memory_space<vmem>>, vector<512x64xf32>
    %cst_70 = arith.constant dense<0.000000e+00> : vector<2x64xf32>
    %63 = tpu.matmul %61, %62, %cst_70 {dimension_numbers = #tpu.dot_dimension_numbers<[1], [0], [0], [1], [0, 0, 1, 1], [], []>} : vector<2x512xf32>, vector<512x64xf32>, vector<2x64xf32> -> vector<2x64xf32>
    %c0_71 = arith.constant 0 : index
    %c0_72 = arith.constant 0 : index
    %64 = vector.load %arg5[%c0_71, %c0_72] : memref<1x64xf32, #tpu.memory_space<vmem>>, vector<1x64xf32>
    %65 = vector.broadcast %64 : vector<1x64xf32> to vector<2x64xf32>
    %66 = arith.addf %63, %65 : vector<2x64xf32>
    %cst_73 = arith.constant 0.000000e+00 : f32
    %67 = vector.broadcast %cst_73 : f32 to vector<2x64xf32>
    %68 = arith.maximumf %66, %67 : vector<2x64xf32>
    %c0_74 = arith.constant 0 : index
    %c64 = arith.constant 64 : index
    %69 = vector.load %arg12[%c0_74, %c64] : memref<2x256xf32, #tpu.memory_space<vmem>>, vector<2x64xf32>
    tpu.vector_store %arg12[%c0_74, %c64], %68 {strides = array<i32>} : memref<2x256xf32, #tpu.memory_space<vmem>>, vector<2x64xf32>,
    %c14_75 = arith.constant 14 : index
    %c0_76 = arith.constant 0 : index
    %70 = tpu.strided_load %arg11[%c14_75, %c0_76] {strides = array<i32: 49, 1>} : memref<98x32xf32, #tpu.memory_space<vmem>>, vector<2x32xf32>
    %c15_77 = arith.constant 15 : index
    %c0_78 = arith.constant 0 : index
    %71 = tpu.strided_load %arg11[%c15_77, %c0_78] {strides = array<i32: 49, 1>} : memref<98x32xf32, #tpu.memory_space<vmem>>, vector<2x32xf32>
    %c16_79 = arith.constant 16 : index
    %c0_80 = arith.constant 0 : index
    %72 = tpu.strided_load %arg11[%c16_79, %c0_80] {strides = array<i32: 49, 1>} : memref<98x32xf32, #tpu.memory_space<vmem>>, vector<2x32xf32>
    %c17_81 = arith.constant 17 : index
    %c0_82 = arith.constant 0 : index
    %73 = tpu.strided_load %arg11[%c17_81, %c0_82] {strides = array<i32: 49, 1>} : memref<98x32xf32, #tpu.memory_space<vmem>>, vector<2x32xf32>
    %c21_83 = arith.constant 21 : index
    %c0_84 = arith.constant 0 : index
    %74 = tpu.strided_load %arg11[%c21_83, %c0_84] {strides = array<i32: 49, 1>} : memref<98x32xf32, #tpu.memory_space<vmem>>, vector<2x32xf32>
    %c22_85 = arith.constant 22 : index
    %c0_86 = arith.constant 0 : index
    %75 = tpu.strided_load %arg11[%c22_85, %c0_86] {strides = array<i32: 49, 1>} : memref<98x32xf32, #tpu.memory_space<vmem>>, vector<2x32xf32>
    %c23_87 = arith.constant 23 : index
    %c0_88 = arith.constant 0 : index
    %76 = tpu.strided_load %arg11[%c23_87, %c0_88] {strides = array<i32: 49, 1>} : memref<98x32xf32, #tpu.memory_space<vmem>>, vector<2x32xf32>
    %c24_89 = arith.constant 24 : index
    %c0_90 = arith.constant 0 : index
    %77 = tpu.strided_load %arg11[%c24_89, %c0_90] {strides = array<i32: 49, 1>} : memref<98x32xf32, #tpu.memory_space<vmem>>, vector<2x32xf32>
    %c28 = arith.constant 28 : index
    %c0_91 = arith.constant 0 : index
    %78 = tpu.strided_load %arg11[%c28, %c0_91] {strides = array<i32: 49, 1>} : memref<98x32xf32, #tpu.memory_space<vmem>>, vector<2x32xf32>
    %c29 = arith.constant 29 : index
    %c0_92 = arith.constant 0 : index
    %79 = tpu.strided_load %arg11[%c29, %c0_92] {strides = array<i32: 49, 1>} : memref<98x32xf32, #tpu.memory_space<vmem>>, vector<2x32xf32>
    %c30 = arith.constant 30 : index
    %c0_93 = arith.constant 0 : index
    %80 = tpu.strided_load %arg11[%c30, %c0_93] {strides = array<i32: 49, 1>} : memref<98x32xf32, #tpu.memory_space<vmem>>, vector<2x32xf32>
    %c31 = arith.constant 31 : index
    %c0_94 = arith.constant 0 : index
    %81 = tpu.strided_load %arg11[%c31, %c0_94] {strides = array<i32: 49, 1>} : memref<98x32xf32, #tpu.memory_space<vmem>>, vector<2x32xf32>
    %c35 = arith.constant 35 : index
    %c0_95 = arith.constant 0 : index
    %82 = tpu.strided_load %arg11[%c35, %c0_95] {strides = array<i32: 49, 1>} : memref<98x32xf32, #tpu.memory_space<vmem>>, vector<2x32xf32>
    %c36 = arith.constant 36 : index
    %c0_96 = arith.constant 0 : index
    %83 = tpu.strided_load %arg11[%c36, %c0_96] {strides = array<i32: 49, 1>} : memref<98x32xf32, #tpu.memory_space<vmem>>, vector<2x32xf32>
    %c37 = arith.constant 37 : index
    %c0_97 = arith.constant 0 : index
    %84 = tpu.strided_load %arg11[%c37, %c0_97] {strides = array<i32: 49, 1>} : memref<98x32xf32, #tpu.memory_space<vmem>>, vector<2x32xf32>
    %c38 = arith.constant 38 : index
    %c0_98 = arith.constant 0 : index
    %85 = tpu.strided_load %arg11[%c38, %c0_98] {strides = array<i32: 49, 1>} : memref<98x32xf32, #tpu.memory_space<vmem>>, vector<2x32xf32>
    %86 = tpu.concatenate %70, %71, %72, %73, %74, %75, %76, %77, %78, %79, %80, %81, %82, %83, %84, %85 in 1 : vector<2x32xf32>, vector<2x32xf32>, vector<2x32xf32>, vector<2x32xf32>, vector<2x32xf32>, vector<2x32xf32>, vector<2x32xf32>, vector<2x32xf32>, vector<2x32xf32>, vector<2x32xf32>, vector<2x32xf32>, vector<2x32xf32>, vector<2x32xf32>, vector<2x32xf32>, vector<2x32xf32>, vector<2x32xf32> -> vector<2x512xf32>
    %c0_99 = arith.constant 0 : index
    %c0_100 = arith.constant 0 : index
    %87 = vector.load %arg4[%c0_99, %c0_100] : memref<512x64xf32, #tpu.memory_space<vmem>>, vector<512x64xf32>
    %cst_101 = arith.constant dense<0.000000e+00> : vector<2x64xf32>
    %88 = tpu.matmul %86, %87, %cst_101 {dimension_numbers = #tpu.dot_dimension_numbers<[1], [0], [0], [1], [0, 0, 1, 1], [], []>} : vector<2x512xf32>, vector<512x64xf32>, vector<2x64xf32> -> vector<2x64xf32>
    %c0_102 = arith.constant 0 : index
    %c0_103 = arith.constant 0 : index
    %89 = vector.load %arg5[%c0_102, %c0_103] : memref<1x64xf32, #tpu.memory_space<vmem>>, vector<1x64xf32>
    %90 = vector.broadcast %89 : vector<1x64xf32> to vector<2x64xf32>
    %91 = arith.addf %88, %90 : vector<2x64xf32>
    %cst_104 = arith.constant 0.000000e+00 : f32
    %92 = vector.broadcast %cst_104 : f32 to vector<2x64xf32>
    %93 = arith.maximumf %91, %92 : vector<2x64xf32>
    %c0_105 = arith.constant 0 : index
    %c128 = arith.constant 128 : index
    %94 = vector.load %arg12[%c0_105, %c128] : memref<2x256xf32, #tpu.memory_space<vmem>>, vector<2x64xf32>
    tpu.vector_store %arg12[%c0_105, %c128], %93 {strides = array<i32>} : memref<2x256xf32, #tpu.memory_space<vmem>>, vector<2x64xf32>,
    %c16_106 = arith.constant 16 : index
    %c0_107 = arith.constant 0 : index
    %95 = tpu.strided_load %arg11[%c16_106, %c0_107] {strides = array<i32: 49, 1>} : memref<98x32xf32, #tpu.memory_space<vmem>>, vector<2x32xf32>
    %c17_108 = arith.constant 17 : index
    %c0_109 = arith.constant 0 : index
    %96 = tpu.strided_load %arg11[%c17_108, %c0_109] {strides = array<i32: 49, 1>} : memref<98x32xf32, #tpu.memory_space<vmem>>, vector<2x32xf32>
    %c18_110 = arith.constant 18 : index
    %c0_111 = arith.constant 0 : index
    %97 = tpu.strided_load %arg11[%c18_110, %c0_111] {strides = array<i32: 49, 1>} : memref<98x32xf32, #tpu.memory_space<vmem>>, vector<2x32xf32>
    %c19_112 = arith.constant 19 : index
    %c0_113 = arith.constant 0 : index
    %98 = tpu.strided_load %arg11[%c19_112, %c0_113] {strides = array<i32: 49, 1>} : memref<98x32xf32, #tpu.memory_space<vmem>>, vector<2x32xf32>
    %c23_114 = arith.constant 23 : index
    %c0_115 = arith.constant 0 : index
    %99 = tpu.strided_load %arg11[%c23_114, %c0_115] {strides = array<i32: 49, 1>} : memref<98x32xf32, #tpu.memory_space<vmem>>, vector<2x32xf32>
    %c24_116 = arith.constant 24 : index
    %c0_117 = arith.constant 0 : index
    %100 = tpu.strided_load %arg11[%c24_116, %c0_117] {strides = array<i32: 49, 1>} : memref<98x32xf32, #tpu.memory_space<vmem>>, vector<2x32xf32>
    %c25_118 = arith.constant 25 : index
    %c0_119 = arith.constant 0 : index
    %101 = tpu.strided_load %arg11[%c25_118, %c0_119] {strides = array<i32: 49, 1>} : memref<98x32xf32, #tpu.memory_space<vmem>>, vector<2x32xf32>
    %c26_120 = arith.constant 26 : index
    %c0_121 = arith.constant 0 : index
    %102 = tpu.strided_load %arg11[%c26_120, %c0_121] {strides = array<i32: 49, 1>} : memref<98x32xf32, #tpu.memory_space<vmem>>, vector<2x32xf32>
    %c30_122 = arith.constant 30 : index
    %c0_123 = arith.constant 0 : index
    %103 = tpu.strided_load %arg11[%c30_122, %c0_123] {strides = array<i32: 49, 1>} : memref<98x32xf32, #tpu.memory_space<vmem>>, vector<2x32xf32>
    %c31_124 = arith.constant 31 : index
    %c0_125 = arith.constant 0 : index
    %104 = tpu.strided_load %arg11[%c31_124, %c0_125] {strides = array<i32: 49, 1>} : memref<98x32xf32, #tpu.memory_space<vmem>>, vector<2x32xf32>
    %c32 = arith.constant 32 : index
    %c0_126 = arith.constant 0 : index
    %105 = tpu.strided_load %arg11[%c32, %c0_126] {strides = array<i32: 49, 1>} : memref<98x32xf32, #tpu.memory_space<vmem>>, vector<2x32xf32>
    %c33 = arith.constant 33 : index
    %c0_127 = arith.constant 0 : index
    %106 = tpu.strided_load %arg11[%c33, %c0_127] {strides = array<i32: 49, 1>} : memref<98x32xf32, #tpu.memory_space<vmem>>, vector<2x32xf32>
    %c37_128 = arith.constant 37 : index
    %c0_129 = arith.constant 0 : index
    %107 = tpu.strided_load %arg11[%c37_128, %c0_129] {strides = array<i32: 49, 1>} : memref<98x32xf32, #tpu.memory_space<vmem>>, vector<2x32xf32>
    %c38_130 = arith.constant 38 : index
    %c0_131 = arith.constant 0 : index
    %108 = tpu.strided_load %arg11[%c38_130, %c0_131] {strides = array<i32: 49, 1>} : memref<98x32xf32, #tpu.memory_space<vmem>>, vector<2x32xf32>
    %c39 = arith.constant 39 : index
    %c0_132 = arith.constant 0 : index
    %109 = tpu.strided_load %arg11[%c39, %c0_132] {strides = array<i32: 49, 1>} : memref<98x32xf32, #tpu.memory_space<vmem>>, vector<2x32xf32>
    %c40 = arith.constant 40 : index
    %c0_133 = arith.constant 0 : index
    %110 = tpu.strided_load %arg11[%c40, %c0_133] {strides = array<i32: 49, 1>} : memref<98x32xf32, #tpu.memory_space<vmem>>, vector<2x32xf32>
    %111 = tpu.concatenate %95, %96, %97, %98, %99, %100, %101, %102, %103, %104, %105, %106, %107, %108, %109, %110 in 1 : vector<2x32xf32>, vector<2x32xf32>, vector<2x32xf32>, vector<2x32xf32>, vector<2x32xf32>, vector<2x32xf32>, vector<2x32xf32>, vector<2x32xf32>, vector<2x32xf32>, vector<2x32xf32>, vector<2x32xf32>, vector<2x32xf32>, vector<2x32xf32>, vector<2x32xf32>, vector<2x32xf32>, vector<2x32xf32> -> vector<2x512xf32>
    %c0_134 = arith.constant 0 : index
    %c0_135 = arith.constant 0 : index
    %112 = vector.load %arg4[%c0_134, %c0_135] : memref<512x64xf32, #tpu.memory_space<vmem>>, vector<512x64xf32>
    %cst_136 = arith.constant dense<0.000000e+00> : vector<2x64xf32>
    %113 = tpu.matmul %111, %112, %cst_136 {dimension_numbers = #tpu.dot_dimension_numbers<[1], [0], [0], [1], [0, 0, 1, 1], [], []>} : vector<2x512xf32>, vector<512x64xf32>, vector<2x64xf32> -> vector<2x64xf32>
    %c0_137 = arith.constant 0 : index
    %c0_138 = arith.constant 0 : index
    %114 = vector.load %arg5[%c0_137, %c0_138] : memref<1x64xf32, #tpu.memory_space<vmem>>, vector<1x64xf32>
    %115 = vector.broadcast %114 : vector<1x64xf32> to vector<2x64xf32>
    %116 = arith.addf %113, %115 : vector<2x64xf32>
    %cst_139 = arith.constant 0.000000e+00 : f32
    %117 = vector.broadcast %cst_139 : f32 to vector<2x64xf32>
    %118 = arith.maximumf %116, %117 : vector<2x64xf32>
    %c0_140 = arith.constant 0 : index
    %c192 = arith.constant 192 : index
    %119 = vector.load %arg12[%c0_140, %c192] : memref<2x256xf32, #tpu.memory_space<vmem>>, vector<2x64xf32>
    tpu.vector_store %arg12[%c0_140, %c192], %118 {strides = array<i32>} : memref<2x256xf32, #tpu.memory_space<vmem>>, vector<2x64xf32>,
    %c0_141 = arith.constant 0 : index
    %c0_142 = arith.constant 0 : index
    %120 = vector.load %arg12[%c0_141, %c0_142] : memref<2x256xf32, #tpu.memory_space<vmem>>, vector<2x256xf32>
    %c0_143 = arith.constant 0 : index
    %c0_144 = arith.constant 0 : index
    %121 = vector.load %arg6[%c0_143, %c0_144] : memref<256x256xf32, #tpu.memory_space<vmem>>, vector<256x256xf32>
    %cst_145 = arith.constant dense<0.000000e+00> : vector<2x256xf32>
    %122 = tpu.matmul %120, %121, %cst_145 {dimension_numbers = #tpu.dot_dimension_numbers<[1], [0], [0], [1], [0, 0, 1, 1], [], []>} : vector<2x256xf32>, vector<256x256xf32>, vector<2x256xf32> -> vector<2x256xf32>
    %c0_146 = arith.constant 0 : index
    %c0_147 = arith.constant 0 : index
    %123 = vector.load %arg7[%c0_146, %c0_147] : memref<1x256xf32, #tpu.memory_space<vmem>>, vector<1x256xf32>
    %124 = vector.broadcast %123 : vector<1x256xf32> to vector<2x256xf32>
    %125 = arith.addf %122, %124 : vector<2x256xf32>
    %cst_148 = arith.constant 0.000000e+00 : f32
    %126 = vector.broadcast %cst_148 : f32 to vector<2x256xf32>
    %127 = arith.maximumf %125, %126 : vector<2x256xf32>
    %c0_149 = arith.constant 0 : index
    %c0_150 = arith.constant 0 : index
    %128 = vector.load %arg8[%c0_149, %c0_150] : memref<256x128xf32, #tpu.memory_space<vmem>>, vector<256x128xf32>
    %cst_151 = arith.constant dense<0.000000e+00> : vector<2x128xf32>
    %129 = tpu.matmul %127, %128, %cst_151 {dimension_numbers = #tpu.dot_dimension_numbers<[1], [0], [0], [1], [0, 0, 1, 1], [], []>} : vector<2x256xf32>, vector<256x128xf32>, vector<2x128xf32> -> vector<2x128xf32>
    %c0_152 = arith.constant 0 : index
    %c0_153 = arith.constant 0 : index
    %130 = vector.load %arg9[%c0_152, %c0_153] : memref<1x128xf32, #tpu.memory_space<vmem>>, vector<1x128xf32>
    %131 = vector.broadcast %130 : vector<1x128xf32> to vector<2x128xf32>
    %132 = arith.addf %129, %131 : vector<2x128xf32>
    %c0_154 = arith.constant 0 : index
    %c0_155 = arith.constant 0 : index
    %c0_156 = arith.constant 0 : index
    %133 = vector.load %arg10[%c0_154, %c0_155, %c0_156] : memref<1x2x128xf32, #tpu.memory_space<vmem>>, vector<1x2x128xf32>
    %134 = vector.shape_cast %133 : vector<1x2x128xf32> to vector<2x128xf32>
    %135 = vector.shape_cast %132 : vector<2x128xf32> to vector<1x2x128xf32>
    tpu.vector_store %arg10[%c0_154, %c0_155, %c0_156], %135 {strides = array<i32>} : memref<1x2x128xf32, #tpu.memory_space<vmem>>, vector<1x2x128xf32>,
    return
  }
  func.func @transform_0(%arg0: i32) -> (i32, i32, i32) {
    %c0_i32 = arith.constant 0 : i32
    %c0_i32_0 = arith.constant 0 : i32
    %c0_i32_1 = arith.constant 0 : i32
    return %arg0, %c0_i32, %c0_i32_0 : i32, i32, i32
  }
  func.func @transform_1(%arg0: i32) -> (i32, i32) {
    %c0_i32 = arith.constant 0 : i32
    %c0_i32_0 = arith.constant 0 : i32
    %c0_i32_1 = arith.constant 0 : i32
    return %c0_i32, %c0_i32_0 : i32, i32
  }
  func.func @transform_2(%arg0: i32) -> (i32, i32) {
    %c0_i32 = arith.constant 0 : i32
    %c0_i32_0 = arith.constant 0 : i32
    %c0_i32_1 = arith.constant 0 : i32
    return %c0_i32, %c0_i32_0 : i32, i32
  }
  func.func @transform_3(%arg0: i32) -> (i32, i32) {
    %c0_i32 = arith.constant 0 : i32
    %c0_i32_0 = arith.constant 0 : i32
    %c0_i32_1 = arith.constant 0 : i32
    return %c0_i32, %c0_i32_0 : i32, i32
  }
  func.func @transform_4(%arg0: i32) -> (i32, i32) {
    %c0_i32 = arith.constant 0 : i32
    %c0_i32_0 = arith.constant 0 : i32
    %c0_i32_1 = arith.constant 0 : i32
    return %c0_i32, %c0_i32_0 : i32, i32
  }
  func.func @transform_5(%arg0: i32) -> (i32, i32) {
    %c0_i32 = arith.constant 0 : i32
    %c0_i32_0 = arith.constant 0 : i32
    %c0_i32_1 = arith.constant 0 : i32
    return %c0_i32, %c0_i32_0 : i32, i32
  }
  func.func @transform_6(%arg0: i32) -> (i32, i32) {
    %c0_i32 = arith.constant 0 : i32
    %c0_i32_0 = arith.constant 0 : i32
    %c0_i32_1 = arith.constant 0 : i32
    return %c0_i32, %c0_i32_0 : i32, i32
  }
  func.func @transform_7(%arg0: i32) -> (i32, i32) {
    %c0_i32 = arith.constant 0 : i32
    %c0_i32_0 = arith.constant 0 : i32
    %c0_i32_1 = arith.constant 0 : i32
    return %c0_i32, %c0_i32_0 : i32, i32
  }
  func.func @transform_8(%arg0: i32) -> (i32, i32) {
    %c0_i32 = arith.constant 0 : i32
    %c0_i32_0 = arith.constant 0 : i32
    %c0_i32_1 = arith.constant 0 : i32
    return %c0_i32, %c0_i32_0 : i32, i32
  }
  func.func @transform_9(%arg0: i32) -> (i32, i32, i32) {
    %c0_i32 = arith.constant 0 : i32
    %c0_i32_0 = arith.constant 0 : i32
    %c0_i32_1 = arith.constant 0 : i32
    return %arg0, %c0_i32, %c0_i32_0 : i32, i32, i32
  }
}

module attributes {stable_mosaic.version = 11 : i64} {
  func.func @_dqn_kernel(%arg0: i32, %arg1: memref<2x49x16xf32, #tpu.memory_space<vmem>>, %arg2: memref<16x32xf32, #tpu.memory_space<vmem>>, %arg3: memref<1x32xf32, #tpu.memory_space<vmem>>, %arg4: memref<512x64xf32, #tpu.memory_space<vmem>>, %arg5: memref<1x64xf32, #tpu.memory_space<vmem>>, %arg6: memref<256x256xf32, #tpu.memory_space<vmem>>, %arg7: memref<1x256xf32, #tpu.memory_space<vmem>>, %arg8: memref<256x128xf32, #tpu.memory_space<vmem>>, %arg9: memref<1x128xf32, #tpu.memory_space<vmem>>, %arg10: memref<1x2x128xf32, #tpu.memory_space<vmem>>, %arg11: memref<98x32xf32, #tpu.memory_space<vmem>>, %arg12: memref<2x256xf32, #tpu.memory_space<vmem>>) attributes {dimension_semantics = [#tpu.dimension_semantics<parallel>], iteration_bounds = array<i64: 2>, scalar_prefetch = 0 : i64, scratch_operands = 2 : i64, tpu.core_type = #tpu.core_type<tc>, window_params = [{transform_indices = @transform_0, window_bounds = array<i64: 2, 49, 16>}, {pipeline_mode = #tpu.pipeline_mode<synchronous>, transform_indices = @transform_1, window_bounds = array<i64: 16, 32>}, {pipeline_mode = #tpu.pipeline_mode<synchronous>, transform_indices = @transform_2, window_bounds = array<i64: 1, 32>}, {pipeline_mode = #tpu.pipeline_mode<synchronous>, transform_indices = @transform_3, window_bounds = array<i64: 512, 64>}, {pipeline_mode = #tpu.pipeline_mode<synchronous>, transform_indices = @transform_4, window_bounds = array<i64: 1, 64>}, {pipeline_mode = #tpu.pipeline_mode<synchronous>, transform_indices = @transform_5, window_bounds = array<i64: 256, 256>}, {pipeline_mode = #tpu.pipeline_mode<synchronous>, transform_indices = @transform_6, window_bounds = array<i64: 1, 256>}, {pipeline_mode = #tpu.pipeline_mode<synchronous>, transform_indices = @transform_7, window_bounds = array<i64: 256, 128>}, {pipeline_mode = #tpu.pipeline_mode<synchronous>, transform_indices = @transform_8, window_bounds = array<i64: 1, 128>}, {transform_indices = @transform_9, window_bounds = array<i64: 1, 2, 128>}]} {
    %c0 = arith.constant 0 : index
    %c0_0 = arith.constant 0 : index
    %c0_1 = arith.constant 0 : index
    %0 = vector.load %arg1[%c0, %c0_0, %c0_1] : memref<2x49x16xf32, #tpu.memory_space<vmem>>, vector<1x49x16xf32>
    %1 = vector.shape_cast %0 : vector<1x49x16xf32> to vector<49x16xf32>
    %c0_2 = arith.constant 0 : index
    %c0_3 = arith.constant 0 : index
    %2 = vector.load %arg2[%c0_2, %c0_3] : memref<16x32xf32, #tpu.memory_space<vmem>>, vector<16x32xf32>
    %cst = arith.constant dense<0.000000e+00> : vector<49x32xf32>
    %3 = tpu.matmul %1, %2, %cst {dimension_numbers = #tpu.dot_dimension_numbers<[1], [0], [0], [1], [0, 0, 1, 1], [], []>} : vector<49x16xf32>, vector<16x32xf32>, vector<49x32xf32> -> vector<49x32xf32>
    %c0_4 = arith.constant 0 : index
    %c0_5 = arith.constant 0 : index
    %4 = vector.load %arg3[%c0_4, %c0_5] : memref<1x32xf32, #tpu.memory_space<vmem>>, vector<1x32xf32>
    %5 = vector.broadcast %4 : vector<1x32xf32> to vector<49x32xf32>
    %6 = arith.addf %3, %5 : vector<49x32xf32>
    %cst_6 = arith.constant 0.000000e+00 : f32
    %7 = vector.broadcast %cst_6 : f32 to vector<49x32xf32>
    %8 = arith.maximumf %6, %7 : vector<49x32xf32>
    %c0_7 = arith.constant 0 : index
    %c0_8 = arith.constant 0 : index
    %9 = vector.load %arg11[%c0_7, %c0_8] : memref<98x32xf32, #tpu.memory_space<vmem>>, vector<49x32xf32>
    tpu.vector_store %arg11[%c0_7, %c0_8], %8 {strides = array<i32>} : memref<98x32xf32, #tpu.memory_space<vmem>>, vector<49x32xf32>,
    %c1 = arith.constant 1 : index
    %c0_9 = arith.constant 0 : index
    %c0_10 = arith.constant 0 : index
    %10 = vector.load %arg1[%c1, %c0_9, %c0_10] : memref<2x49x16xf32, #tpu.memory_space<vmem>>, vector<1x49x16xf32>
    %11 = vector.shape_cast %10 : vector<1x49x16xf32> to vector<49x16xf32>
    %c0_11 = arith.constant 0 : index
    %c0_12 = arith.constant 0 : index
    %12 = vector.load %arg2[%c0_11, %c0_12] : memref<16x32xf32, #tpu.memory_space<vmem>>, vector<16x32xf32>
    %cst_13 = arith.constant dense<0.000000e+00> : vector<49x32xf32>
    %13 = tpu.matmul %11, %12, %cst_13 {dimension_numbers = #tpu.dot_dimension_numbers<[1], [0], [0], [1], [0, 0, 1, 1], [], []>} : vector<49x16xf32>, vector<16x32xf32>, vector<49x32xf32> -> vector<49x32xf32>
    %c0_14 = arith.constant 0 : index
    %c0_15 = arith.constant 0 : index
    %14 = vector.load %arg3[%c0_14, %c0_15] : memref<1x32xf32, #tpu.memory_space<vmem>>, vector<1x32xf32>
    %15 = vector.broadcast %14 : vector<1x32xf32> to vector<49x32xf32>
    %16 = arith.addf %13, %15 : vector<49x32xf32>
    %cst_16 = arith.constant 0.000000e+00 : f32
    %17 = vector.broadcast %cst_16 : f32 to vector<49x32xf32>
    %18 = arith.maximumf %16, %17 : vector<49x32xf32>
    %c49 = arith.constant 49 : index
    %c0_17 = arith.constant 0 : index
    %19 = vector.load %arg11[%c49, %c0_17] : memref<98x32xf32, #tpu.memory_space<vmem>>, vector<49x32xf32>
    tpu.vector_store %arg11[%c49, %c0_17], %18 {strides = array<i32>} : memref<98x32xf32, #tpu.memory_space<vmem>>, vector<49x32xf32>,
    %c0_18 = arith.constant 0 : index
    %c0_19 = arith.constant 0 : index
    %20 = tpu.strided_load %arg11[%c0_18, %c0_19] {strides = array<i32: 49, 1>} : memref<98x32xf32, #tpu.memory_space<vmem>>, vector<2x32xf32>
    %c1_20 = arith.constant 1 : index
    %c0_21 = arith.constant 0 : index
    %21 = tpu.strided_load %arg11[%c1_20, %c0_21] {strides = array<i32: 49, 1>} : memref<98x32xf32, #tpu.memory_space<vmem>>, vector<2x32xf32>
    %c2 = arith.constant 2 : index
    %c0_22 = arith.constant 0 : index
    %22 = tpu.strided_load %arg11[%c2, %c0_22] {strides = array<i32: 49, 1>} : memref<98x32xf32, #tpu.memory_space<vmem>>, vector<2x32xf32>
    %c3 = arith.constant 3 : index
    %c0_23 = arith.constant 0 : index
    %23 = tpu.strided_load %arg11[%c3, %c0_23] {strides = array<i32: 49, 1>} : memref<98x32xf32, #tpu.memory_space<vmem>>, vector<2x32xf32>
    %c7 = arith.constant 7 : index
    %c0_24 = arith.constant 0 : index
    %24 = tpu.strided_load %arg11[%c7, %c0_24] {strides = array<i32: 49, 1>} : memref<98x32xf32, #tpu.memory_space<vmem>>, vector<2x32xf32>
    %c8 = arith.constant 8 : index
    %c0_25 = arith.constant 0 : index
    %25 = tpu.strided_load %arg11[%c8, %c0_25] {strides = array<i32: 49, 1>} : memref<98x32xf32, #tpu.memory_space<vmem>>, vector<2x32xf32>
    %c9 = arith.constant 9 : index
    %c0_26 = arith.constant 0 : index
    %26 = tpu.strided_load %arg11[%c9, %c0_26] {strides = array<i32: 49, 1>} : memref<98x32xf32, #tpu.memory_space<vmem>>, vector<2x32xf32>
    %c10 = arith.constant 10 : index
    %c0_27 = arith.constant 0 : index
    %27 = tpu.strided_load %arg11[%c10, %c0_27] {strides = array<i32: 49, 1>} : memref<98x32xf32, #tpu.memory_space<vmem>>, vector<2x32xf32>
    %c14 = arith.constant 14 : index
    %c0_28 = arith.constant 0 : index
    %28 = tpu.strided_load %arg11[%c14, %c0_28] {strides = array<i32: 49, 1>} : memref<98x32xf32, #tpu.memory_space<vmem>>, vector<2x32xf32>
    %c15 = arith.constant 15 : index
    %c0_29 = arith.constant 0 : index
    %29 = tpu.strided_load %arg11[%c15, %c0_29] {strides = array<i32: 49, 1>} : memref<98x32xf32, #tpu.memory_space<vmem>>, vector<2x32xf32>
    %c16 = arith.constant 16 : index
    %c0_30 = arith.constant 0 : index
    %30 = tpu.strided_load %arg11[%c16, %c0_30] {strides = array<i32: 49, 1>} : memref<98x32xf32, #tpu.memory_space<vmem>>, vector<2x32xf32>
    %c17 = arith.constant 17 : index
    %c0_31 = arith.constant 0 : index
    %31 = tpu.strided_load %arg11[%c17, %c0_31] {strides = array<i32: 49, 1>} : memref<98x32xf32, #tpu.memory_space<vmem>>, vector<2x32xf32>
    %c21 = arith.constant 21 : index
    %c0_32 = arith.constant 0 : index
    %32 = tpu.strided_load %arg11[%c21, %c0_32] {strides = array<i32: 49, 1>} : memref<98x32xf32, #tpu.memory_space<vmem>>, vector<2x32xf32>
    %c22 = arith.constant 22 : index
    %c0_33 = arith.constant 0 : index
    %33 = tpu.strided_load %arg11[%c22, %c0_33] {strides = array<i32: 49, 1>} : memref<98x32xf32, #tpu.memory_space<vmem>>, vector<2x32xf32>
    %c23 = arith.constant 23 : index
    %c0_34 = arith.constant 0 : index
    %34 = tpu.strided_load %arg11[%c23, %c0_34] {strides = array<i32: 49, 1>} : memref<98x32xf32, #tpu.memory_space<vmem>>, vector<2x32xf32>
    %c24 = arith.constant 24 : index
    %c0_35 = arith.constant 0 : index
    %35 = tpu.strided_load %arg11[%c24, %c0_35] {strides = array<i32: 49, 1>} : memref<98x32xf32, #tpu.memory_space<vmem>>, vector<2x32xf32>
    %cst_36 = arith.constant 0.000000e+00 : f32
    %36 = vector.broadcast %cst_36 : f32 to vector<2x64xf32>
    %c0_37 = arith.constant 0 : index
    %c0_38 = arith.constant 0 : index
    %37 = vector.load %arg4[%c0_37, %c0_38] : memref<512x64xf32, #tpu.memory_space<vmem>>, vector<32x64xf32>
    %cst_39 = arith.constant dense<0.000000e+00> : vector<2x64xf32>
    %38 = tpu.matmul %20, %37, %cst_39 {dimension_numbers = #tpu.dot_dimension_numbers<[1], [0], [0], [1], [0, 0, 1, 1], [], []>} : vector<2x32xf32>, vector<32x64xf32>, vector<2x64xf32> -> vector<2x64xf32>
    %39 = arith.addf %36, %38 : vector<2x64xf32>
    %c32 = arith.constant 32 : index
    %c0_40 = arith.constant 0 : index
    %40 = vector.load %arg4[%c32, %c0_40] : memref<512x64xf32, #tpu.memory_space<vmem>>, vector<32x64xf32>
    %cst_41 = arith.constant dense<0.000000e+00> : vector<2x64xf32>
    %41 = tpu.matmul %21, %40, %cst_41 {dimension_numbers = #tpu.dot_dimension_numbers<[1], [0], [0], [1], [0, 0, 1, 1], [], []>} : vector<2x32xf32>, vector<32x64xf32>, vector<2x64xf32> -> vector<2x64xf32>
    %42 = arith.addf %39, %41 : vector<2x64xf32>
    %c64 = arith.constant 64 : index
    %c0_42 = arith.constant 0 : index
    %43 = vector.load %arg4[%c64, %c0_42] : memref<512x64xf32, #tpu.memory_space<vmem>>, vector<32x64xf32>
    %cst_43 = arith.constant dense<0.000000e+00> : vector<2x64xf32>
    %44 = tpu.matmul %22, %43, %cst_43 {dimension_numbers = #tpu.dot_dimension_numbers<[1], [0], [0], [1], [0, 0, 1, 1], [], []>} : vector<2x32xf32>, vector<32x64xf32>, vector<2x64xf32> -> vector<2x64xf32>
    %45 = arith.addf %42, %44 : vector<2x64xf32>
    %c96 = arith.constant 96 : index
    %c0_44 = arith.constant 0 : index
    %46 = vector.load %arg4[%c96, %c0_44] : memref<512x64xf32, #tpu.memory_space<vmem>>, vector<32x64xf32>
    %cst_45 = arith.constant dense<0.000000e+00> : vector<2x64xf32>
    %47 = tpu.matmul %23, %46, %cst_45 {dimension_numbers = #tpu.dot_dimension_numbers<[1], [0], [0], [1], [0, 0, 1, 1], [], []>} : vector<2x32xf32>, vector<32x64xf32>, vector<2x64xf32> -> vector<2x64xf32>
    %48 = arith.addf %45, %47 : vector<2x64xf32>
    %c128 = arith.constant 128 : index
    %c0_46 = arith.constant 0 : index
    %49 = vector.load %arg4[%c128, %c0_46] : memref<512x64xf32, #tpu.memory_space<vmem>>, vector<32x64xf32>
    %cst_47 = arith.constant dense<0.000000e+00> : vector<2x64xf32>
    %50 = tpu.matmul %24, %49, %cst_47 {dimension_numbers = #tpu.dot_dimension_numbers<[1], [0], [0], [1], [0, 0, 1, 1], [], []>} : vector<2x32xf32>, vector<32x64xf32>, vector<2x64xf32> -> vector<2x64xf32>
    %51 = arith.addf %48, %50 : vector<2x64xf32>
    %c160 = arith.constant 160 : index
    %c0_48 = arith.constant 0 : index
    %52 = vector.load %arg4[%c160, %c0_48] : memref<512x64xf32, #tpu.memory_space<vmem>>, vector<32x64xf32>
    %cst_49 = arith.constant dense<0.000000e+00> : vector<2x64xf32>
    %53 = tpu.matmul %25, %52, %cst_49 {dimension_numbers = #tpu.dot_dimension_numbers<[1], [0], [0], [1], [0, 0, 1, 1], [], []>} : vector<2x32xf32>, vector<32x64xf32>, vector<2x64xf32> -> vector<2x64xf32>
    %54 = arith.addf %51, %53 : vector<2x64xf32>
    %c192 = arith.constant 192 : index
    %c0_50 = arith.constant 0 : index
    %55 = vector.load %arg4[%c192, %c0_50] : memref<512x64xf32, #tpu.memory_space<vmem>>, vector<32x64xf32>
    %cst_51 = arith.constant dense<0.000000e+00> : vector<2x64xf32>
    %56 = tpu.matmul %26, %55, %cst_51 {dimension_numbers = #tpu.dot_dimension_numbers<[1], [0], [0], [1], [0, 0, 1, 1], [], []>} : vector<2x32xf32>, vector<32x64xf32>, vector<2x64xf32> -> vector<2x64xf32>
    %57 = arith.addf %54, %56 : vector<2x64xf32>
    %c224 = arith.constant 224 : index
    %c0_52 = arith.constant 0 : index
    %58 = vector.load %arg4[%c224, %c0_52] : memref<512x64xf32, #tpu.memory_space<vmem>>, vector<32x64xf32>
    %cst_53 = arith.constant dense<0.000000e+00> : vector<2x64xf32>
    %59 = tpu.matmul %27, %58, %cst_53 {dimension_numbers = #tpu.dot_dimension_numbers<[1], [0], [0], [1], [0, 0, 1, 1], [], []>} : vector<2x32xf32>, vector<32x64xf32>, vector<2x64xf32> -> vector<2x64xf32>
    %60 = arith.addf %57, %59 : vector<2x64xf32>
    %c256 = arith.constant 256 : index
    %c0_54 = arith.constant 0 : index
    %61 = vector.load %arg4[%c256, %c0_54] : memref<512x64xf32, #tpu.memory_space<vmem>>, vector<32x64xf32>
    %cst_55 = arith.constant dense<0.000000e+00> : vector<2x64xf32>
    %62 = tpu.matmul %28, %61, %cst_55 {dimension_numbers = #tpu.dot_dimension_numbers<[1], [0], [0], [1], [0, 0, 1, 1], [], []>} : vector<2x32xf32>, vector<32x64xf32>, vector<2x64xf32> -> vector<2x64xf32>
    %63 = arith.addf %60, %62 : vector<2x64xf32>
    %c288 = arith.constant 288 : index
    %c0_56 = arith.constant 0 : index
    %64 = vector.load %arg4[%c288, %c0_56] : memref<512x64xf32, #tpu.memory_space<vmem>>, vector<32x64xf32>
    %cst_57 = arith.constant dense<0.000000e+00> : vector<2x64xf32>
    %65 = tpu.matmul %29, %64, %cst_57 {dimension_numbers = #tpu.dot_dimension_numbers<[1], [0], [0], [1], [0, 0, 1, 1], [], []>} : vector<2x32xf32>, vector<32x64xf32>, vector<2x64xf32> -> vector<2x64xf32>
    %66 = arith.addf %63, %65 : vector<2x64xf32>
    %c320 = arith.constant 320 : index
    %c0_58 = arith.constant 0 : index
    %67 = vector.load %arg4[%c320, %c0_58] : memref<512x64xf32, #tpu.memory_space<vmem>>, vector<32x64xf32>
    %cst_59 = arith.constant dense<0.000000e+00> : vector<2x64xf32>
    %68 = tpu.matmul %30, %67, %cst_59 {dimension_numbers = #tpu.dot_dimension_numbers<[1], [0], [0], [1], [0, 0, 1, 1], [], []>} : vector<2x32xf32>, vector<32x64xf32>, vector<2x64xf32> -> vector<2x64xf32>
    %69 = arith.addf %66, %68 : vector<2x64xf32>
    %c352 = arith.constant 352 : index
    %c0_60 = arith.constant 0 : index
    %70 = vector.load %arg4[%c352, %c0_60] : memref<512x64xf32, #tpu.memory_space<vmem>>, vector<32x64xf32>
    %cst_61 = arith.constant dense<0.000000e+00> : vector<2x64xf32>
    %71 = tpu.matmul %31, %70, %cst_61 {dimension_numbers = #tpu.dot_dimension_numbers<[1], [0], [0], [1], [0, 0, 1, 1], [], []>} : vector<2x32xf32>, vector<32x64xf32>, vector<2x64xf32> -> vector<2x64xf32>
    %72 = arith.addf %69, %71 : vector<2x64xf32>
    %c384 = arith.constant 384 : index
    %c0_62 = arith.constant 0 : index
    %73 = vector.load %arg4[%c384, %c0_62] : memref<512x64xf32, #tpu.memory_space<vmem>>, vector<32x64xf32>
    %cst_63 = arith.constant dense<0.000000e+00> : vector<2x64xf32>
    %74 = tpu.matmul %32, %73, %cst_63 {dimension_numbers = #tpu.dot_dimension_numbers<[1], [0], [0], [1], [0, 0, 1, 1], [], []>} : vector<2x32xf32>, vector<32x64xf32>, vector<2x64xf32> -> vector<2x64xf32>
    %75 = arith.addf %72, %74 : vector<2x64xf32>
    %c416 = arith.constant 416 : index
    %c0_64 = arith.constant 0 : index
    %76 = vector.load %arg4[%c416, %c0_64] : memref<512x64xf32, #tpu.memory_space<vmem>>, vector<32x64xf32>
    %cst_65 = arith.constant dense<0.000000e+00> : vector<2x64xf32>
    %77 = tpu.matmul %33, %76, %cst_65 {dimension_numbers = #tpu.dot_dimension_numbers<[1], [0], [0], [1], [0, 0, 1, 1], [], []>} : vector<2x32xf32>, vector<32x64xf32>, vector<2x64xf32> -> vector<2x64xf32>
    %78 = arith.addf %75, %77 : vector<2x64xf32>
    %c448 = arith.constant 448 : index
    %c0_66 = arith.constant 0 : index
    %79 = vector.load %arg4[%c448, %c0_66] : memref<512x64xf32, #tpu.memory_space<vmem>>, vector<32x64xf32>
    %cst_67 = arith.constant dense<0.000000e+00> : vector<2x64xf32>
    %80 = tpu.matmul %34, %79, %cst_67 {dimension_numbers = #tpu.dot_dimension_numbers<[1], [0], [0], [1], [0, 0, 1, 1], [], []>} : vector<2x32xf32>, vector<32x64xf32>, vector<2x64xf32> -> vector<2x64xf32>
    %81 = arith.addf %78, %80 : vector<2x64xf32>
    %c480 = arith.constant 480 : index
    %c0_68 = arith.constant 0 : index
    %82 = vector.load %arg4[%c480, %c0_68] : memref<512x64xf32, #tpu.memory_space<vmem>>, vector<32x64xf32>
    %cst_69 = arith.constant dense<0.000000e+00> : vector<2x64xf32>
    %83 = tpu.matmul %35, %82, %cst_69 {dimension_numbers = #tpu.dot_dimension_numbers<[1], [0], [0], [1], [0, 0, 1, 1], [], []>} : vector<2x32xf32>, vector<32x64xf32>, vector<2x64xf32> -> vector<2x64xf32>
    %84 = arith.addf %81, %83 : vector<2x64xf32>
    %c0_70 = arith.constant 0 : index
    %c0_71 = arith.constant 0 : index
    %85 = vector.load %arg5[%c0_70, %c0_71] : memref<1x64xf32, #tpu.memory_space<vmem>>, vector<1x64xf32>
    %86 = vector.broadcast %85 : vector<1x64xf32> to vector<2x64xf32>
    %87 = arith.addf %84, %86 : vector<2x64xf32>
    %cst_72 = arith.constant 0.000000e+00 : f32
    %88 = vector.broadcast %cst_72 : f32 to vector<2x64xf32>
    %89 = arith.maximumf %87, %88 : vector<2x64xf32>
    %c0_73 = arith.constant 0 : index
    %c0_74 = arith.constant 0 : index
    %90 = vector.load %arg12[%c0_73, %c0_74] : memref<2x256xf32, #tpu.memory_space<vmem>>, vector<2x64xf32>
    tpu.vector_store %arg12[%c0_73, %c0_74], %89 {strides = array<i32>} : memref<2x256xf32, #tpu.memory_space<vmem>>, vector<2x64xf32>,
    %c2_75 = arith.constant 2 : index
    %c0_76 = arith.constant 0 : index
    %91 = tpu.strided_load %arg11[%c2_75, %c0_76] {strides = array<i32: 49, 1>} : memref<98x32xf32, #tpu.memory_space<vmem>>, vector<2x32xf32>
    %c3_77 = arith.constant 3 : index
    %c0_78 = arith.constant 0 : index
    %92 = tpu.strided_load %arg11[%c3_77, %c0_78] {strides = array<i32: 49, 1>} : memref<98x32xf32, #tpu.memory_space<vmem>>, vector<2x32xf32>
    %c4 = arith.constant 4 : index
    %c0_79 = arith.constant 0 : index
    %93 = tpu.strided_load %arg11[%c4, %c0_79] {strides = array<i32: 49, 1>} : memref<98x32xf32, #tpu.memory_space<vmem>>, vector<2x32xf32>
    %c5 = arith.constant 5 : index
    %c0_80 = arith.constant 0 : index
    %94 = tpu.strided_load %arg11[%c5, %c0_80] {strides = array<i32: 49, 1>} : memref<98x32xf32, #tpu.memory_space<vmem>>, vector<2x32xf32>
    %c9_81 = arith.constant 9 : index
    %c0_82 = arith.constant 0 : index
    %95 = tpu.strided_load %arg11[%c9_81, %c0_82] {strides = array<i32: 49, 1>} : memref<98x32xf32, #tpu.memory_space<vmem>>, vector<2x32xf32>
    %c10_83 = arith.constant 10 : index
    %c0_84 = arith.constant 0 : index
    %96 = tpu.strided_load %arg11[%c10_83, %c0_84] {strides = array<i32: 49, 1>} : memref<98x32xf32, #tpu.memory_space<vmem>>, vector<2x32xf32>
    %c11 = arith.constant 11 : index
    %c0_85 = arith.constant 0 : index
    %97 = tpu.strided_load %arg11[%c11, %c0_85] {strides = array<i32: 49, 1>} : memref<98x32xf32, #tpu.memory_space<vmem>>, vector<2x32xf32>
    %c12 = arith.constant 12 : index
    %c0_86 = arith.constant 0 : index
    %98 = tpu.strided_load %arg11[%c12, %c0_86] {strides = array<i32: 49, 1>} : memref<98x32xf32, #tpu.memory_space<vmem>>, vector<2x32xf32>
    %c16_87 = arith.constant 16 : index
    %c0_88 = arith.constant 0 : index
    %99 = tpu.strided_load %arg11[%c16_87, %c0_88] {strides = array<i32: 49, 1>} : memref<98x32xf32, #tpu.memory_space<vmem>>, vector<2x32xf32>
    %c17_89 = arith.constant 17 : index
    %c0_90 = arith.constant 0 : index
    %100 = tpu.strided_load %arg11[%c17_89, %c0_90] {strides = array<i32: 49, 1>} : memref<98x32xf32, #tpu.memory_space<vmem>>, vector<2x32xf32>
    %c18 = arith.constant 18 : index
    %c0_91 = arith.constant 0 : index
    %101 = tpu.strided_load %arg11[%c18, %c0_91] {strides = array<i32: 49, 1>} : memref<98x32xf32, #tpu.memory_space<vmem>>, vector<2x32xf32>
    %c19 = arith.constant 19 : index
    %c0_92 = arith.constant 0 : index
    %102 = tpu.strided_load %arg11[%c19, %c0_92] {strides = array<i32: 49, 1>} : memref<98x32xf32, #tpu.memory_space<vmem>>, vector<2x32xf32>
    %c23_93 = arith.constant 23 : index
    %c0_94 = arith.constant 0 : index
    %103 = tpu.strided_load %arg11[%c23_93, %c0_94] {strides = array<i32: 49, 1>} : memref<98x32xf32, #tpu.memory_space<vmem>>, vector<2x32xf32>
    %c24_95 = arith.constant 24 : index
    %c0_96 = arith.constant 0 : index
    %104 = tpu.strided_load %arg11[%c24_95, %c0_96] {strides = array<i32: 49, 1>} : memref<98x32xf32, #tpu.memory_space<vmem>>, vector<2x32xf32>
    %c25 = arith.constant 25 : index
    %c0_97 = arith.constant 0 : index
    %105 = tpu.strided_load %arg11[%c25, %c0_97] {strides = array<i32: 49, 1>} : memref<98x32xf32, #tpu.memory_space<vmem>>, vector<2x32xf32>
    %c26 = arith.constant 26 : index
    %c0_98 = arith.constant 0 : index
    %106 = tpu.strided_load %arg11[%c26, %c0_98] {strides = array<i32: 49, 1>} : memref<98x32xf32, #tpu.memory_space<vmem>>, vector<2x32xf32>
    %cst_99 = arith.constant 0.000000e+00 : f32
    %107 = vector.broadcast %cst_99 : f32 to vector<2x64xf32>
    %c0_100 = arith.constant 0 : index
    %c0_101 = arith.constant 0 : index
    %108 = vector.load %arg4[%c0_100, %c0_101] : memref<512x64xf32, #tpu.memory_space<vmem>>, vector<32x64xf32>
    %cst_102 = arith.constant dense<0.000000e+00> : vector<2x64xf32>
    %109 = tpu.matmul %91, %108, %cst_102 {dimension_numbers = #tpu.dot_dimension_numbers<[1], [0], [0], [1], [0, 0, 1, 1], [], []>} : vector<2x32xf32>, vector<32x64xf32>, vector<2x64xf32> -> vector<2x64xf32>
    %110 = arith.addf %107, %109 : vector<2x64xf32>
    %c32_103 = arith.constant 32 : index
    %c0_104 = arith.constant 0 : index
    %111 = vector.load %arg4[%c32_103, %c0_104] : memref<512x64xf32, #tpu.memory_space<vmem>>, vector<32x64xf32>
    %cst_105 = arith.constant dense<0.000000e+00> : vector<2x64xf32>
    %112 = tpu.matmul %92, %111, %cst_105 {dimension_numbers = #tpu.dot_dimension_numbers<[1], [0], [0], [1], [0, 0, 1, 1], [], []>} : vector<2x32xf32>, vector<32x64xf32>, vector<2x64xf32> -> vector<2x64xf32>
    %113 = arith.addf %110, %112 : vector<2x64xf32>
    %c64_106 = arith.constant 64 : index
    %c0_107 = arith.constant 0 : index
    %114 = vector.load %arg4[%c64_106, %c0_107] : memref<512x64xf32, #tpu.memory_space<vmem>>, vector<32x64xf32>
    %cst_108 = arith.constant dense<0.000000e+00> : vector<2x64xf32>
    %115 = tpu.matmul %93, %114, %cst_108 {dimension_numbers = #tpu.dot_dimension_numbers<[1], [0], [0], [1], [0, 0, 1, 1], [], []>} : vector<2x32xf32>, vector<32x64xf32>, vector<2x64xf32> -> vector<2x64xf32>
    %116 = arith.addf %113, %115 : vector<2x64xf32>
    %c96_109 = arith.constant 96 : index
    %c0_110 = arith.constant 0 : index
    %117 = vector.load %arg4[%c96_109, %c0_110] : memref<512x64xf32, #tpu.memory_space<vmem>>, vector<32x64xf32>
    %cst_111 = arith.constant dense<0.000000e+00> : vector<2x64xf32>
    %118 = tpu.matmul %94, %117, %cst_111 {dimension_numbers = #tpu.dot_dimension_numbers<[1], [0], [0], [1], [0, 0, 1, 1], [], []>} : vector<2x32xf32>, vector<32x64xf32>, vector<2x64xf32> -> vector<2x64xf32>
    %119 = arith.addf %116, %118 : vector<2x64xf32>
    %c128_112 = arith.constant 128 : index
    %c0_113 = arith.constant 0 : index
    %120 = vector.load %arg4[%c128_112, %c0_113] : memref<512x64xf32, #tpu.memory_space<vmem>>, vector<32x64xf32>
    %cst_114 = arith.constant dense<0.000000e+00> : vector<2x64xf32>
    %121 = tpu.matmul %95, %120, %cst_114 {dimension_numbers = #tpu.dot_dimension_numbers<[1], [0], [0], [1], [0, 0, 1, 1], [], []>} : vector<2x32xf32>, vector<32x64xf32>, vector<2x64xf32> -> vector<2x64xf32>
    %122 = arith.addf %119, %121 : vector<2x64xf32>
    %c160_115 = arith.constant 160 : index
    %c0_116 = arith.constant 0 : index
    %123 = vector.load %arg4[%c160_115, %c0_116] : memref<512x64xf32, #tpu.memory_space<vmem>>, vector<32x64xf32>
    %cst_117 = arith.constant dense<0.000000e+00> : vector<2x64xf32>
    %124 = tpu.matmul %96, %123, %cst_117 {dimension_numbers = #tpu.dot_dimension_numbers<[1], [0], [0], [1], [0, 0, 1, 1], [], []>} : vector<2x32xf32>, vector<32x64xf32>, vector<2x64xf32> -> vector<2x64xf32>
    %125 = arith.addf %122, %124 : vector<2x64xf32>
    %c192_118 = arith.constant 192 : index
    %c0_119 = arith.constant 0 : index
    %126 = vector.load %arg4[%c192_118, %c0_119] : memref<512x64xf32, #tpu.memory_space<vmem>>, vector<32x64xf32>
    %cst_120 = arith.constant dense<0.000000e+00> : vector<2x64xf32>
    %127 = tpu.matmul %97, %126, %cst_120 {dimension_numbers = #tpu.dot_dimension_numbers<[1], [0], [0], [1], [0, 0, 1, 1], [], []>} : vector<2x32xf32>, vector<32x64xf32>, vector<2x64xf32> -> vector<2x64xf32>
    %128 = arith.addf %125, %127 : vector<2x64xf32>
    %c224_121 = arith.constant 224 : index
    %c0_122 = arith.constant 0 : index
    %129 = vector.load %arg4[%c224_121, %c0_122] : memref<512x64xf32, #tpu.memory_space<vmem>>, vector<32x64xf32>
    %cst_123 = arith.constant dense<0.000000e+00> : vector<2x64xf32>
    %130 = tpu.matmul %98, %129, %cst_123 {dimension_numbers = #tpu.dot_dimension_numbers<[1], [0], [0], [1], [0, 0, 1, 1], [], []>} : vector<2x32xf32>, vector<32x64xf32>, vector<2x64xf32> -> vector<2x64xf32>
    %131 = arith.addf %128, %130 : vector<2x64xf32>
    %c256_124 = arith.constant 256 : index
    %c0_125 = arith.constant 0 : index
    %132 = vector.load %arg4[%c256_124, %c0_125] : memref<512x64xf32, #tpu.memory_space<vmem>>, vector<32x64xf32>
    %cst_126 = arith.constant dense<0.000000e+00> : vector<2x64xf32>
    %133 = tpu.matmul %99, %132, %cst_126 {dimension_numbers = #tpu.dot_dimension_numbers<[1], [0], [0], [1], [0, 0, 1, 1], [], []>} : vector<2x32xf32>, vector<32x64xf32>, vector<2x64xf32> -> vector<2x64xf32>
    %134 = arith.addf %131, %133 : vector<2x64xf32>
    %c288_127 = arith.constant 288 : index
    %c0_128 = arith.constant 0 : index
    %135 = vector.load %arg4[%c288_127, %c0_128] : memref<512x64xf32, #tpu.memory_space<vmem>>, vector<32x64xf32>
    %cst_129 = arith.constant dense<0.000000e+00> : vector<2x64xf32>
    %136 = tpu.matmul %100, %135, %cst_129 {dimension_numbers = #tpu.dot_dimension_numbers<[1], [0], [0], [1], [0, 0, 1, 1], [], []>} : vector<2x32xf32>, vector<32x64xf32>, vector<2x64xf32> -> vector<2x64xf32>
    %137 = arith.addf %134, %136 : vector<2x64xf32>
    %c320_130 = arith.constant 320 : index
    %c0_131 = arith.constant 0 : index
    %138 = vector.load %arg4[%c320_130, %c0_131] : memref<512x64xf32, #tpu.memory_space<vmem>>, vector<32x64xf32>
    %cst_132 = arith.constant dense<0.000000e+00> : vector<2x64xf32>
    %139 = tpu.matmul %101, %138, %cst_132 {dimension_numbers = #tpu.dot_dimension_numbers<[1], [0], [0], [1], [0, 0, 1, 1], [], []>} : vector<2x32xf32>, vector<32x64xf32>, vector<2x64xf32> -> vector<2x64xf32>
    %140 = arith.addf %137, %139 : vector<2x64xf32>
    %c352_133 = arith.constant 352 : index
    %c0_134 = arith.constant 0 : index
    %141 = vector.load %arg4[%c352_133, %c0_134] : memref<512x64xf32, #tpu.memory_space<vmem>>, vector<32x64xf32>
    %cst_135 = arith.constant dense<0.000000e+00> : vector<2x64xf32>
    %142 = tpu.matmul %102, %141, %cst_135 {dimension_numbers = #tpu.dot_dimension_numbers<[1], [0], [0], [1], [0, 0, 1, 1], [], []>} : vector<2x32xf32>, vector<32x64xf32>, vector<2x64xf32> -> vector<2x64xf32>
    %143 = arith.addf %140, %142 : vector<2x64xf32>
    %c384_136 = arith.constant 384 : index
    %c0_137 = arith.constant 0 : index
    %144 = vector.load %arg4[%c384_136, %c0_137] : memref<512x64xf32, #tpu.memory_space<vmem>>, vector<32x64xf32>
    %cst_138 = arith.constant dense<0.000000e+00> : vector<2x64xf32>
    %145 = tpu.matmul %103, %144, %cst_138 {dimension_numbers = #tpu.dot_dimension_numbers<[1], [0], [0], [1], [0, 0, 1, 1], [], []>} : vector<2x32xf32>, vector<32x64xf32>, vector<2x64xf32> -> vector<2x64xf32>
    %146 = arith.addf %143, %145 : vector<2x64xf32>
    %c416_139 = arith.constant 416 : index
    %c0_140 = arith.constant 0 : index
    %147 = vector.load %arg4[%c416_139, %c0_140] : memref<512x64xf32, #tpu.memory_space<vmem>>, vector<32x64xf32>
    %cst_141 = arith.constant dense<0.000000e+00> : vector<2x64xf32>
    %148 = tpu.matmul %104, %147, %cst_141 {dimension_numbers = #tpu.dot_dimension_numbers<[1], [0], [0], [1], [0, 0, 1, 1], [], []>} : vector<2x32xf32>, vector<32x64xf32>, vector<2x64xf32> -> vector<2x64xf32>
    %149 = arith.addf %146, %148 : vector<2x64xf32>
    %c448_142 = arith.constant 448 : index
    %c0_143 = arith.constant 0 : index
    %150 = vector.load %arg4[%c448_142, %c0_143] : memref<512x64xf32, #tpu.memory_space<vmem>>, vector<32x64xf32>
    %cst_144 = arith.constant dense<0.000000e+00> : vector<2x64xf32>
    %151 = tpu.matmul %105, %150, %cst_144 {dimension_numbers = #tpu.dot_dimension_numbers<[1], [0], [0], [1], [0, 0, 1, 1], [], []>} : vector<2x32xf32>, vector<32x64xf32>, vector<2x64xf32> -> vector<2x64xf32>
    %152 = arith.addf %149, %151 : vector<2x64xf32>
    %c480_145 = arith.constant 480 : index
    %c0_146 = arith.constant 0 : index
    %153 = vector.load %arg4[%c480_145, %c0_146] : memref<512x64xf32, #tpu.memory_space<vmem>>, vector<32x64xf32>
    %cst_147 = arith.constant dense<0.000000e+00> : vector<2x64xf32>
    %154 = tpu.matmul %106, %153, %cst_147 {dimension_numbers = #tpu.dot_dimension_numbers<[1], [0], [0], [1], [0, 0, 1, 1], [], []>} : vector<2x32xf32>, vector<32x64xf32>, vector<2x64xf32> -> vector<2x64xf32>
    %155 = arith.addf %152, %154 : vector<2x64xf32>
    %c0_148 = arith.constant 0 : index
    %c0_149 = arith.constant 0 : index
    %156 = vector.load %arg5[%c0_148, %c0_149] : memref<1x64xf32, #tpu.memory_space<vmem>>, vector<1x64xf32>
    %157 = vector.broadcast %156 : vector<1x64xf32> to vector<2x64xf32>
    %158 = arith.addf %155, %157 : vector<2x64xf32>
    %cst_150 = arith.constant 0.000000e+00 : f32
    %159 = vector.broadcast %cst_150 : f32 to vector<2x64xf32>
    %160 = arith.maximumf %158, %159 : vector<2x64xf32>
    %c0_151 = arith.constant 0 : index
    %c64_152 = arith.constant 64 : index
    %161 = vector.load %arg12[%c0_151, %c64_152] : memref<2x256xf32, #tpu.memory_space<vmem>>, vector<2x64xf32>
    tpu.vector_store %arg12[%c0_151, %c64_152], %160 {strides = array<i32>} : memref<2x256xf32, #tpu.memory_space<vmem>>, vector<2x64xf32>,
    %c14_153 = arith.constant 14 : index
    %c0_154 = arith.constant 0 : index
    %162 = tpu.strided_load %arg11[%c14_153, %c0_154] {strides = array<i32: 49, 1>} : memref<98x32xf32, #tpu.memory_space<vmem>>, vector<2x32xf32>
    %c15_155 = arith.constant 15 : index
    %c0_156 = arith.constant 0 : index
    %163 = tpu.strided_load %arg11[%c15_155, %c0_156] {strides = array<i32: 49, 1>} : memref<98x32xf32, #tpu.memory_space<vmem>>, vector<2x32xf32>
    %c16_157 = arith.constant 16 : index
    %c0_158 = arith.constant 0 : index
    %164 = tpu.strided_load %arg11[%c16_157, %c0_158] {strides = array<i32: 49, 1>} : memref<98x32xf32, #tpu.memory_space<vmem>>, vector<2x32xf32>
    %c17_159 = arith.constant 17 : index
    %c0_160 = arith.constant 0 : index
    %165 = tpu.strided_load %arg11[%c17_159, %c0_160] {strides = array<i32: 49, 1>} : memref<98x32xf32, #tpu.memory_space<vmem>>, vector<2x32xf32>
    %c21_161 = arith.constant 21 : index
    %c0_162 = arith.constant 0 : index
    %166 = tpu.strided_load %arg11[%c21_161, %c0_162] {strides = array<i32: 49, 1>} : memref<98x32xf32, #tpu.memory_space<vmem>>, vector<2x32xf32>
    %c22_163 = arith.constant 22 : index
    %c0_164 = arith.constant 0 : index
    %167 = tpu.strided_load %arg11[%c22_163, %c0_164] {strides = array<i32: 49, 1>} : memref<98x32xf32, #tpu.memory_space<vmem>>, vector<2x32xf32>
    %c23_165 = arith.constant 23 : index
    %c0_166 = arith.constant 0 : index
    %168 = tpu.strided_load %arg11[%c23_165, %c0_166] {strides = array<i32: 49, 1>} : memref<98x32xf32, #tpu.memory_space<vmem>>, vector<2x32xf32>
    %c24_167 = arith.constant 24 : index
    %c0_168 = arith.constant 0 : index
    %169 = tpu.strided_load %arg11[%c24_167, %c0_168] {strides = array<i32: 49, 1>} : memref<98x32xf32, #tpu.memory_space<vmem>>, vector<2x32xf32>
    %c28 = arith.constant 28 : index
    %c0_169 = arith.constant 0 : index
    %170 = tpu.strided_load %arg11[%c28, %c0_169] {strides = array<i32: 49, 1>} : memref<98x32xf32, #tpu.memory_space<vmem>>, vector<2x32xf32>
    %c29 = arith.constant 29 : index
    %c0_170 = arith.constant 0 : index
    %171 = tpu.strided_load %arg11[%c29, %c0_170] {strides = array<i32: 49, 1>} : memref<98x32xf32, #tpu.memory_space<vmem>>, vector<2x32xf32>
    %c30 = arith.constant 30 : index
    %c0_171 = arith.constant 0 : index
    %172 = tpu.strided_load %arg11[%c30, %c0_171] {strides = array<i32: 49, 1>} : memref<98x32xf32, #tpu.memory_space<vmem>>, vector<2x32xf32>
    %c31 = arith.constant 31 : index
    %c0_172 = arith.constant 0 : index
    %173 = tpu.strided_load %arg11[%c31, %c0_172] {strides = array<i32: 49, 1>} : memref<98x32xf32, #tpu.memory_space<vmem>>, vector<2x32xf32>
    %c35 = arith.constant 35 : index
    %c0_173 = arith.constant 0 : index
    %174 = tpu.strided_load %arg11[%c35, %c0_173] {strides = array<i32: 49, 1>} : memref<98x32xf32, #tpu.memory_space<vmem>>, vector<2x32xf32>
    %c36 = arith.constant 36 : index
    %c0_174 = arith.constant 0 : index
    %175 = tpu.strided_load %arg11[%c36, %c0_174] {strides = array<i32: 49, 1>} : memref<98x32xf32, #tpu.memory_space<vmem>>, vector<2x32xf32>
    %c37 = arith.constant 37 : index
    %c0_175 = arith.constant 0 : index
    %176 = tpu.strided_load %arg11[%c37, %c0_175] {strides = array<i32: 49, 1>} : memref<98x32xf32, #tpu.memory_space<vmem>>, vector<2x32xf32>
    %c38 = arith.constant 38 : index
    %c0_176 = arith.constant 0 : index
    %177 = tpu.strided_load %arg11[%c38, %c0_176] {strides = array<i32: 49, 1>} : memref<98x32xf32, #tpu.memory_space<vmem>>, vector<2x32xf32>
    %cst_177 = arith.constant 0.000000e+00 : f32
    %178 = vector.broadcast %cst_177 : f32 to vector<2x64xf32>
    %c0_178 = arith.constant 0 : index
    %c0_179 = arith.constant 0 : index
    %179 = vector.load %arg4[%c0_178, %c0_179] : memref<512x64xf32, #tpu.memory_space<vmem>>, vector<32x64xf32>
    %cst_180 = arith.constant dense<0.000000e+00> : vector<2x64xf32>
    %180 = tpu.matmul %162, %179, %cst_180 {dimension_numbers = #tpu.dot_dimension_numbers<[1], [0], [0], [1], [0, 0, 1, 1], [], []>} : vector<2x32xf32>, vector<32x64xf32>, vector<2x64xf32> -> vector<2x64xf32>
    %181 = arith.addf %178, %180 : vector<2x64xf32>
    %c32_181 = arith.constant 32 : index
    %c0_182 = arith.constant 0 : index
    %182 = vector.load %arg4[%c32_181, %c0_182] : memref<512x64xf32, #tpu.memory_space<vmem>>, vector<32x64xf32>
    %cst_183 = arith.constant dense<0.000000e+00> : vector<2x64xf32>
    %183 = tpu.matmul %163, %182, %cst_183 {dimension_numbers = #tpu.dot_dimension_numbers<[1], [0], [0], [1], [0, 0, 1, 1], [], []>} : vector<2x32xf32>, vector<32x64xf32>, vector<2x64xf32> -> vector<2x64xf32>
    %184 = arith.addf %181, %183 : vector<2x64xf32>
    %c64_184 = arith.constant 64 : index
    %c0_185 = arith.constant 0 : index
    %185 = vector.load %arg4[%c64_184, %c0_185] : memref<512x64xf32, #tpu.memory_space<vmem>>, vector<32x64xf32>
    %cst_186 = arith.constant dense<0.000000e+00> : vector<2x64xf32>
    %186 = tpu.matmul %164, %185, %cst_186 {dimension_numbers = #tpu.dot_dimension_numbers<[1], [0], [0], [1], [0, 0, 1, 1], [], []>} : vector<2x32xf32>, vector<32x64xf32>, vector<2x64xf32> -> vector<2x64xf32>
    %187 = arith.addf %184, %186 : vector<2x64xf32>
    %c96_187 = arith.constant 96 : index
    %c0_188 = arith.constant 0 : index
    %188 = vector.load %arg4[%c96_187, %c0_188] : memref<512x64xf32, #tpu.memory_space<vmem>>, vector<32x64xf32>
    %cst_189 = arith.constant dense<0.000000e+00> : vector<2x64xf32>
    %189 = tpu.matmul %165, %188, %cst_189 {dimension_numbers = #tpu.dot_dimension_numbers<[1], [0], [0], [1], [0, 0, 1, 1], [], []>} : vector<2x32xf32>, vector<32x64xf32>, vector<2x64xf32> -> vector<2x64xf32>
    %190 = arith.addf %187, %189 : vector<2x64xf32>
    %c128_190 = arith.constant 128 : index
    %c0_191 = arith.constant 0 : index
    %191 = vector.load %arg4[%c128_190, %c0_191] : memref<512x64xf32, #tpu.memory_space<vmem>>, vector<32x64xf32>
    %cst_192 = arith.constant dense<0.000000e+00> : vector<2x64xf32>
    %192 = tpu.matmul %166, %191, %cst_192 {dimension_numbers = #tpu.dot_dimension_numbers<[1], [0], [0], [1], [0, 0, 1, 1], [], []>} : vector<2x32xf32>, vector<32x64xf32>, vector<2x64xf32> -> vector<2x64xf32>
    %193 = arith.addf %190, %192 : vector<2x64xf32>
    %c160_193 = arith.constant 160 : index
    %c0_194 = arith.constant 0 : index
    %194 = vector.load %arg4[%c160_193, %c0_194] : memref<512x64xf32, #tpu.memory_space<vmem>>, vector<32x64xf32>
    %cst_195 = arith.constant dense<0.000000e+00> : vector<2x64xf32>
    %195 = tpu.matmul %167, %194, %cst_195 {dimension_numbers = #tpu.dot_dimension_numbers<[1], [0], [0], [1], [0, 0, 1, 1], [], []>} : vector<2x32xf32>, vector<32x64xf32>, vector<2x64xf32> -> vector<2x64xf32>
    %196 = arith.addf %193, %195 : vector<2x64xf32>
    %c192_196 = arith.constant 192 : index
    %c0_197 = arith.constant 0 : index
    %197 = vector.load %arg4[%c192_196, %c0_197] : memref<512x64xf32, #tpu.memory_space<vmem>>, vector<32x64xf32>
    %cst_198 = arith.constant dense<0.000000e+00> : vector<2x64xf32>
    %198 = tpu.matmul %168, %197, %cst_198 {dimension_numbers = #tpu.dot_dimension_numbers<[1], [0], [0], [1], [0, 0, 1, 1], [], []>} : vector<2x32xf32>, vector<32x64xf32>, vector<2x64xf32> -> vector<2x64xf32>
    %199 = arith.addf %196, %198 : vector<2x64xf32>
    %c224_199 = arith.constant 224 : index
    %c0_200 = arith.constant 0 : index
    %200 = vector.load %arg4[%c224_199, %c0_200] : memref<512x64xf32, #tpu.memory_space<vmem>>, vector<32x64xf32>
    %cst_201 = arith.constant dense<0.000000e+00> : vector<2x64xf32>
    %201 = tpu.matmul %169, %200, %cst_201 {dimension_numbers = #tpu.dot_dimension_numbers<[1], [0], [0], [1], [0, 0, 1, 1], [], []>} : vector<2x32xf32>, vector<32x64xf32>, vector<2x64xf32> -> vector<2x64xf32>
    %202 = arith.addf %199, %201 : vector<2x64xf32>
    %c256_202 = arith.constant 256 : index
    %c0_203 = arith.constant 0 : index
    %203 = vector.load %arg4[%c256_202, %c0_203] : memref<512x64xf32, #tpu.memory_space<vmem>>, vector<32x64xf32>
    %cst_204 = arith.constant dense<0.000000e+00> : vector<2x64xf32>
    %204 = tpu.matmul %170, %203, %cst_204 {dimension_numbers = #tpu.dot_dimension_numbers<[1], [0], [0], [1], [0, 0, 1, 1], [], []>} : vector<2x32xf32>, vector<32x64xf32>, vector<2x64xf32> -> vector<2x64xf32>
    %205 = arith.addf %202, %204 : vector<2x64xf32>
    %c288_205 = arith.constant 288 : index
    %c0_206 = arith.constant 0 : index
    %206 = vector.load %arg4[%c288_205, %c0_206] : memref<512x64xf32, #tpu.memory_space<vmem>>, vector<32x64xf32>
    %cst_207 = arith.constant dense<0.000000e+00> : vector<2x64xf32>
    %207 = tpu.matmul %171, %206, %cst_207 {dimension_numbers = #tpu.dot_dimension_numbers<[1], [0], [0], [1], [0, 0, 1, 1], [], []>} : vector<2x32xf32>, vector<32x64xf32>, vector<2x64xf32> -> vector<2x64xf32>
    %208 = arith.addf %205, %207 : vector<2x64xf32>
    %c320_208 = arith.constant 320 : index
    %c0_209 = arith.constant 0 : index
    %209 = vector.load %arg4[%c320_208, %c0_209] : memref<512x64xf32, #tpu.memory_space<vmem>>, vector<32x64xf32>
    %cst_210 = arith.constant dense<0.000000e+00> : vector<2x64xf32>
    %210 = tpu.matmul %172, %209, %cst_210 {dimension_numbers = #tpu.dot_dimension_numbers<[1], [0], [0], [1], [0, 0, 1, 1], [], []>} : vector<2x32xf32>, vector<32x64xf32>, vector<2x64xf32> -> vector<2x64xf32>
    %211 = arith.addf %208, %210 : vector<2x64xf32>
    %c352_211 = arith.constant 352 : index
    %c0_212 = arith.constant 0 : index
    %212 = vector.load %arg4[%c352_211, %c0_212] : memref<512x64xf32, #tpu.memory_space<vmem>>, vector<32x64xf32>
    %cst_213 = arith.constant dense<0.000000e+00> : vector<2x64xf32>
    %213 = tpu.matmul %173, %212, %cst_213 {dimension_numbers = #tpu.dot_dimension_numbers<[1], [0], [0], [1], [0, 0, 1, 1], [], []>} : vector<2x32xf32>, vector<32x64xf32>, vector<2x64xf32> -> vector<2x64xf32>
    %214 = arith.addf %211, %213 : vector<2x64xf32>
    %c384_214 = arith.constant 384 : index
    %c0_215 = arith.constant 0 : index
    %215 = vector.load %arg4[%c384_214, %c0_215] : memref<512x64xf32, #tpu.memory_space<vmem>>, vector<32x64xf32>
    %cst_216 = arith.constant dense<0.000000e+00> : vector<2x64xf32>
    %216 = tpu.matmul %174, %215, %cst_216 {dimension_numbers = #tpu.dot_dimension_numbers<[1], [0], [0], [1], [0, 0, 1, 1], [], []>} : vector<2x32xf32>, vector<32x64xf32>, vector<2x64xf32> -> vector<2x64xf32>
    %217 = arith.addf %214, %216 : vector<2x64xf32>
    %c416_217 = arith.constant 416 : index
    %c0_218 = arith.constant 0 : index
    %218 = vector.load %arg4[%c416_217, %c0_218] : memref<512x64xf32, #tpu.memory_space<vmem>>, vector<32x64xf32>
    %cst_219 = arith.constant dense<0.000000e+00> : vector<2x64xf32>
    %219 = tpu.matmul %175, %218, %cst_219 {dimension_numbers = #tpu.dot_dimension_numbers<[1], [0], [0], [1], [0, 0, 1, 1], [], []>} : vector<2x32xf32>, vector<32x64xf32>, vector<2x64xf32> -> vector<2x64xf32>
    %220 = arith.addf %217, %219 : vector<2x64xf32>
    %c448_220 = arith.constant 448 : index
    %c0_221 = arith.constant 0 : index
    %221 = vector.load %arg4[%c448_220, %c0_221] : memref<512x64xf32, #tpu.memory_space<vmem>>, vector<32x64xf32>
    %cst_222 = arith.constant dense<0.000000e+00> : vector<2x64xf32>
    %222 = tpu.matmul %176, %221, %cst_222 {dimension_numbers = #tpu.dot_dimension_numbers<[1], [0], [0], [1], [0, 0, 1, 1], [], []>} : vector<2x32xf32>, vector<32x64xf32>, vector<2x64xf32> -> vector<2x64xf32>
    %223 = arith.addf %220, %222 : vector<2x64xf32>
    %c480_223 = arith.constant 480 : index
    %c0_224 = arith.constant 0 : index
    %224 = vector.load %arg4[%c480_223, %c0_224] : memref<512x64xf32, #tpu.memory_space<vmem>>, vector<32x64xf32>
    %cst_225 = arith.constant dense<0.000000e+00> : vector<2x64xf32>
    %225 = tpu.matmul %177, %224, %cst_225 {dimension_numbers = #tpu.dot_dimension_numbers<[1], [0], [0], [1], [0, 0, 1, 1], [], []>} : vector<2x32xf32>, vector<32x64xf32>, vector<2x64xf32> -> vector<2x64xf32>
    %226 = arith.addf %223, %225 : vector<2x64xf32>
    %c0_226 = arith.constant 0 : index
    %c0_227 = arith.constant 0 : index
    %227 = vector.load %arg5[%c0_226, %c0_227] : memref<1x64xf32, #tpu.memory_space<vmem>>, vector<1x64xf32>
    %228 = vector.broadcast %227 : vector<1x64xf32> to vector<2x64xf32>
    %229 = arith.addf %226, %228 : vector<2x64xf32>
    %cst_228 = arith.constant 0.000000e+00 : f32
    %230 = vector.broadcast %cst_228 : f32 to vector<2x64xf32>
    %231 = arith.maximumf %229, %230 : vector<2x64xf32>
    %c0_229 = arith.constant 0 : index
    %c128_230 = arith.constant 128 : index
    %232 = vector.load %arg12[%c0_229, %c128_230] : memref<2x256xf32, #tpu.memory_space<vmem>>, vector<2x64xf32>
    tpu.vector_store %arg12[%c0_229, %c128_230], %231 {strides = array<i32>} : memref<2x256xf32, #tpu.memory_space<vmem>>, vector<2x64xf32>,
    %c16_231 = arith.constant 16 : index
    %c0_232 = arith.constant 0 : index
    %233 = tpu.strided_load %arg11[%c16_231, %c0_232] {strides = array<i32: 49, 1>} : memref<98x32xf32, #tpu.memory_space<vmem>>, vector<2x32xf32>
    %c17_233 = arith.constant 17 : index
    %c0_234 = arith.constant 0 : index
    %234 = tpu.strided_load %arg11[%c17_233, %c0_234] {strides = array<i32: 49, 1>} : memref<98x32xf32, #tpu.memory_space<vmem>>, vector<2x32xf32>
    %c18_235 = arith.constant 18 : index
    %c0_236 = arith.constant 0 : index
    %235 = tpu.strided_load %arg11[%c18_235, %c0_236] {strides = array<i32: 49, 1>} : memref<98x32xf32, #tpu.memory_space<vmem>>, vector<2x32xf32>
    %c19_237 = arith.constant 19 : index
    %c0_238 = arith.constant 0 : index
    %236 = tpu.strided_load %arg11[%c19_237, %c0_238] {strides = array<i32: 49, 1>} : memref<98x32xf32, #tpu.memory_space<vmem>>, vector<2x32xf32>
    %c23_239 = arith.constant 23 : index
    %c0_240 = arith.constant 0 : index
    %237 = tpu.strided_load %arg11[%c23_239, %c0_240] {strides = array<i32: 49, 1>} : memref<98x32xf32, #tpu.memory_space<vmem>>, vector<2x32xf32>
    %c24_241 = arith.constant 24 : index
    %c0_242 = arith.constant 0 : index
    %238 = tpu.strided_load %arg11[%c24_241, %c0_242] {strides = array<i32: 49, 1>} : memref<98x32xf32, #tpu.memory_space<vmem>>, vector<2x32xf32>
    %c25_243 = arith.constant 25 : index
    %c0_244 = arith.constant 0 : index
    %239 = tpu.strided_load %arg11[%c25_243, %c0_244] {strides = array<i32: 49, 1>} : memref<98x32xf32, #tpu.memory_space<vmem>>, vector<2x32xf32>
    %c26_245 = arith.constant 26 : index
    %c0_246 = arith.constant 0 : index
    %240 = tpu.strided_load %arg11[%c26_245, %c0_246] {strides = array<i32: 49, 1>} : memref<98x32xf32, #tpu.memory_space<vmem>>, vector<2x32xf32>
    %c30_247 = arith.constant 30 : index
    %c0_248 = arith.constant 0 : index
    %241 = tpu.strided_load %arg11[%c30_247, %c0_248] {strides = array<i32: 49, 1>} : memref<98x32xf32, #tpu.memory_space<vmem>>, vector<2x32xf32>
    %c31_249 = arith.constant 31 : index
    %c0_250 = arith.constant 0 : index
    %242 = tpu.strided_load %arg11[%c31_249, %c0_250] {strides = array<i32: 49, 1>} : memref<98x32xf32, #tpu.memory_space<vmem>>, vector<2x32xf32>
    %c32_251 = arith.constant 32 : index
    %c0_252 = arith.constant 0 : index
    %243 = tpu.strided_load %arg11[%c32_251, %c0_252] {strides = array<i32: 49, 1>} : memref<98x32xf32, #tpu.memory_space<vmem>>, vector<2x32xf32>
    %c33 = arith.constant 33 : index
    %c0_253 = arith.constant 0 : index
    %244 = tpu.strided_load %arg11[%c33, %c0_253] {strides = array<i32: 49, 1>} : memref<98x32xf32, #tpu.memory_space<vmem>>, vector<2x32xf32>
    %c37_254 = arith.constant 37 : index
    %c0_255 = arith.constant 0 : index
    %245 = tpu.strided_load %arg11[%c37_254, %c0_255] {strides = array<i32: 49, 1>} : memref<98x32xf32, #tpu.memory_space<vmem>>, vector<2x32xf32>
    %c38_256 = arith.constant 38 : index
    %c0_257 = arith.constant 0 : index
    %246 = tpu.strided_load %arg11[%c38_256, %c0_257] {strides = array<i32: 49, 1>} : memref<98x32xf32, #tpu.memory_space<vmem>>, vector<2x32xf32>
    %c39 = arith.constant 39 : index
    %c0_258 = arith.constant 0 : index
    %247 = tpu.strided_load %arg11[%c39, %c0_258] {strides = array<i32: 49, 1>} : memref<98x32xf32, #tpu.memory_space<vmem>>, vector<2x32xf32>
    %c40 = arith.constant 40 : index
    %c0_259 = arith.constant 0 : index
    %248 = tpu.strided_load %arg11[%c40, %c0_259] {strides = array<i32: 49, 1>} : memref<98x32xf32, #tpu.memory_space<vmem>>, vector<2x32xf32>
    %cst_260 = arith.constant 0.000000e+00 : f32
    %249 = vector.broadcast %cst_260 : f32 to vector<2x64xf32>
    %c0_261 = arith.constant 0 : index
    %c0_262 = arith.constant 0 : index
    %250 = vector.load %arg4[%c0_261, %c0_262] : memref<512x64xf32, #tpu.memory_space<vmem>>, vector<32x64xf32>
    %cst_263 = arith.constant dense<0.000000e+00> : vector<2x64xf32>
    %251 = tpu.matmul %233, %250, %cst_263 {dimension_numbers = #tpu.dot_dimension_numbers<[1], [0], [0], [1], [0, 0, 1, 1], [], []>} : vector<2x32xf32>, vector<32x64xf32>, vector<2x64xf32> -> vector<2x64xf32>
    %252 = arith.addf %249, %251 : vector<2x64xf32>
    %c32_264 = arith.constant 32 : index
    %c0_265 = arith.constant 0 : index
    %253 = vector.load %arg4[%c32_264, %c0_265] : memref<512x64xf32, #tpu.memory_space<vmem>>, vector<32x64xf32>
    %cst_266 = arith.constant dense<0.000000e+00> : vector<2x64xf32>
    %254 = tpu.matmul %234, %253, %cst_266 {dimension_numbers = #tpu.dot_dimension_numbers<[1], [0], [0], [1], [0, 0, 1, 1], [], []>} : vector<2x32xf32>, vector<32x64xf32>, vector<2x64xf32> -> vector<2x64xf32>
    %255 = arith.addf %252, %254 : vector<2x64xf32>
    %c64_267 = arith.constant 64 : index
    %c0_268 = arith.constant 0 : index
    %256 = vector.load %arg4[%c64_267, %c0_268] : memref<512x64xf32, #tpu.memory_space<vmem>>, vector<32x64xf32>
    %cst_269 = arith.constant dense<0.000000e+00> : vector<2x64xf32>
    %257 = tpu.matmul %235, %256, %cst_269 {dimension_numbers = #tpu.dot_dimension_numbers<[1], [0], [0], [1], [0, 0, 1, 1], [], []>} : vector<2x32xf32>, vector<32x64xf32>, vector<2x64xf32> -> vector<2x64xf32>
    %258 = arith.addf %255, %257 : vector<2x64xf32>
    %c96_270 = arith.constant 96 : index
    %c0_271 = arith.constant 0 : index
    %259 = vector.load %arg4[%c96_270, %c0_271] : memref<512x64xf32, #tpu.memory_space<vmem>>, vector<32x64xf32>
    %cst_272 = arith.constant dense<0.000000e+00> : vector<2x64xf32>
    %260 = tpu.matmul %236, %259, %cst_272 {dimension_numbers = #tpu.dot_dimension_numbers<[1], [0], [0], [1], [0, 0, 1, 1], [], []>} : vector<2x32xf32>, vector<32x64xf32>, vector<2x64xf32> -> vector<2x64xf32>
    %261 = arith.addf %258, %260 : vector<2x64xf32>
    %c128_273 = arith.constant 128 : index
    %c0_274 = arith.constant 0 : index
    %262 = vector.load %arg4[%c128_273, %c0_274] : memref<512x64xf32, #tpu.memory_space<vmem>>, vector<32x64xf32>
    %cst_275 = arith.constant dense<0.000000e+00> : vector<2x64xf32>
    %263 = tpu.matmul %237, %262, %cst_275 {dimension_numbers = #tpu.dot_dimension_numbers<[1], [0], [0], [1], [0, 0, 1, 1], [], []>} : vector<2x32xf32>, vector<32x64xf32>, vector<2x64xf32> -> vector<2x64xf32>
    %264 = arith.addf %261, %263 : vector<2x64xf32>
    %c160_276 = arith.constant 160 : index
    %c0_277 = arith.constant 0 : index
    %265 = vector.load %arg4[%c160_276, %c0_277] : memref<512x64xf32, #tpu.memory_space<vmem>>, vector<32x64xf32>
    %cst_278 = arith.constant dense<0.000000e+00> : vector<2x64xf32>
    %266 = tpu.matmul %238, %265, %cst_278 {dimension_numbers = #tpu.dot_dimension_numbers<[1], [0], [0], [1], [0, 0, 1, 1], [], []>} : vector<2x32xf32>, vector<32x64xf32>, vector<2x64xf32> -> vector<2x64xf32>
    %267 = arith.addf %264, %266 : vector<2x64xf32>
    %c192_279 = arith.constant 192 : index
    %c0_280 = arith.constant 0 : index
    %268 = vector.load %arg4[%c192_279, %c0_280] : memref<512x64xf32, #tpu.memory_space<vmem>>, vector<32x64xf32>
    %cst_281 = arith.constant dense<0.000000e+00> : vector<2x64xf32>
    %269 = tpu.matmul %239, %268, %cst_281 {dimension_numbers = #tpu.dot_dimension_numbers<[1], [0], [0], [1], [0, 0, 1, 1], [], []>} : vector<2x32xf32>, vector<32x64xf32>, vector<2x64xf32> -> vector<2x64xf32>
    %270 = arith.addf %267, %269 : vector<2x64xf32>
    %c224_282 = arith.constant 224 : index
    %c0_283 = arith.constant 0 : index
    %271 = vector.load %arg4[%c224_282, %c0_283] : memref<512x64xf32, #tpu.memory_space<vmem>>, vector<32x64xf32>
    %cst_284 = arith.constant dense<0.000000e+00> : vector<2x64xf32>
    %272 = tpu.matmul %240, %271, %cst_284 {dimension_numbers = #tpu.dot_dimension_numbers<[1], [0], [0], [1], [0, 0, 1, 1], [], []>} : vector<2x32xf32>, vector<32x64xf32>, vector<2x64xf32> -> vector<2x64xf32>
    %273 = arith.addf %270, %272 : vector<2x64xf32>
    %c256_285 = arith.constant 256 : index
    %c0_286 = arith.constant 0 : index
    %274 = vector.load %arg4[%c256_285, %c0_286] : memref<512x64xf32, #tpu.memory_space<vmem>>, vector<32x64xf32>
    %cst_287 = arith.constant dense<0.000000e+00> : vector<2x64xf32>
    %275 = tpu.matmul %241, %274, %cst_287 {dimension_numbers = #tpu.dot_dimension_numbers<[1], [0], [0], [1], [0, 0, 1, 1], [], []>} : vector<2x32xf32>, vector<32x64xf32>, vector<2x64xf32> -> vector<2x64xf32>
    %276 = arith.addf %273, %275 : vector<2x64xf32>
    %c288_288 = arith.constant 288 : index
    %c0_289 = arith.constant 0 : index
    %277 = vector.load %arg4[%c288_288, %c0_289] : memref<512x64xf32, #tpu.memory_space<vmem>>, vector<32x64xf32>
    %cst_290 = arith.constant dense<0.000000e+00> : vector<2x64xf32>
    %278 = tpu.matmul %242, %277, %cst_290 {dimension_numbers = #tpu.dot_dimension_numbers<[1], [0], [0], [1], [0, 0, 1, 1], [], []>} : vector<2x32xf32>, vector<32x64xf32>, vector<2x64xf32> -> vector<2x64xf32>
    %279 = arith.addf %276, %278 : vector<2x64xf32>
    %c320_291 = arith.constant 320 : index
    %c0_292 = arith.constant 0 : index
    %280 = vector.load %arg4[%c320_291, %c0_292] : memref<512x64xf32, #tpu.memory_space<vmem>>, vector<32x64xf32>
    %cst_293 = arith.constant dense<0.000000e+00> : vector<2x64xf32>
    %281 = tpu.matmul %243, %280, %cst_293 {dimension_numbers = #tpu.dot_dimension_numbers<[1], [0], [0], [1], [0, 0, 1, 1], [], []>} : vector<2x32xf32>, vector<32x64xf32>, vector<2x64xf32> -> vector<2x64xf32>
    %282 = arith.addf %279, %281 : vector<2x64xf32>
    %c352_294 = arith.constant 352 : index
    %c0_295 = arith.constant 0 : index
    %283 = vector.load %arg4[%c352_294, %c0_295] : memref<512x64xf32, #tpu.memory_space<vmem>>, vector<32x64xf32>
    %cst_296 = arith.constant dense<0.000000e+00> : vector<2x64xf32>
    %284 = tpu.matmul %244, %283, %cst_296 {dimension_numbers = #tpu.dot_dimension_numbers<[1], [0], [0], [1], [0, 0, 1, 1], [], []>} : vector<2x32xf32>, vector<32x64xf32>, vector<2x64xf32> -> vector<2x64xf32>
    %285 = arith.addf %282, %284 : vector<2x64xf32>
    %c384_297 = arith.constant 384 : index
    %c0_298 = arith.constant 0 : index
    %286 = vector.load %arg4[%c384_297, %c0_298] : memref<512x64xf32, #tpu.memory_space<vmem>>, vector<32x64xf32>
    %cst_299 = arith.constant dense<0.000000e+00> : vector<2x64xf32>
    %287 = tpu.matmul %245, %286, %cst_299 {dimension_numbers = #tpu.dot_dimension_numbers<[1], [0], [0], [1], [0, 0, 1, 1], [], []>} : vector<2x32xf32>, vector<32x64xf32>, vector<2x64xf32> -> vector<2x64xf32>
    %288 = arith.addf %285, %287 : vector<2x64xf32>
    %c416_300 = arith.constant 416 : index
    %c0_301 = arith.constant 0 : index
    %289 = vector.load %arg4[%c416_300, %c0_301] : memref<512x64xf32, #tpu.memory_space<vmem>>, vector<32x64xf32>
    %cst_302 = arith.constant dense<0.000000e+00> : vector<2x64xf32>
    %290 = tpu.matmul %246, %289, %cst_302 {dimension_numbers = #tpu.dot_dimension_numbers<[1], [0], [0], [1], [0, 0, 1, 1], [], []>} : vector<2x32xf32>, vector<32x64xf32>, vector<2x64xf32> -> vector<2x64xf32>
    %291 = arith.addf %288, %290 : vector<2x64xf32>
    %c448_303 = arith.constant 448 : index
    %c0_304 = arith.constant 0 : index
    %292 = vector.load %arg4[%c448_303, %c0_304] : memref<512x64xf32, #tpu.memory_space<vmem>>, vector<32x64xf32>
    %cst_305 = arith.constant dense<0.000000e+00> : vector<2x64xf32>
    %293 = tpu.matmul %247, %292, %cst_305 {dimension_numbers = #tpu.dot_dimension_numbers<[1], [0], [0], [1], [0, 0, 1, 1], [], []>} : vector<2x32xf32>, vector<32x64xf32>, vector<2x64xf32> -> vector<2x64xf32>
    %294 = arith.addf %291, %293 : vector<2x64xf32>
    %c480_306 = arith.constant 480 : index
    %c0_307 = arith.constant 0 : index
    %295 = vector.load %arg4[%c480_306, %c0_307] : memref<512x64xf32, #tpu.memory_space<vmem>>, vector<32x64xf32>
    %cst_308 = arith.constant dense<0.000000e+00> : vector<2x64xf32>
    %296 = tpu.matmul %248, %295, %cst_308 {dimension_numbers = #tpu.dot_dimension_numbers<[1], [0], [0], [1], [0, 0, 1, 1], [], []>} : vector<2x32xf32>, vector<32x64xf32>, vector<2x64xf32> -> vector<2x64xf32>
    %297 = arith.addf %294, %296 : vector<2x64xf32>
    %c0_309 = arith.constant 0 : index
    %c0_310 = arith.constant 0 : index
    %298 = vector.load %arg5[%c0_309, %c0_310] : memref<1x64xf32, #tpu.memory_space<vmem>>, vector<1x64xf32>
    %299 = vector.broadcast %298 : vector<1x64xf32> to vector<2x64xf32>
    %300 = arith.addf %297, %299 : vector<2x64xf32>
    %cst_311 = arith.constant 0.000000e+00 : f32
    %301 = vector.broadcast %cst_311 : f32 to vector<2x64xf32>
    %302 = arith.maximumf %300, %301 : vector<2x64xf32>
    %c0_312 = arith.constant 0 : index
    %c192_313 = arith.constant 192 : index
    %303 = vector.load %arg12[%c0_312, %c192_313] : memref<2x256xf32, #tpu.memory_space<vmem>>, vector<2x64xf32>
    tpu.vector_store %arg12[%c0_312, %c192_313], %302 {strides = array<i32>} : memref<2x256xf32, #tpu.memory_space<vmem>>, vector<2x64xf32>,
    %c0_314 = arith.constant 0 : index
    %c0_315 = arith.constant 0 : index
    %304 = vector.load %arg12[%c0_314, %c0_315] : memref<2x256xf32, #tpu.memory_space<vmem>>, vector<2x256xf32>
    %c0_316 = arith.constant 0 : index
    %c0_317 = arith.constant 0 : index
    %305 = vector.load %arg6[%c0_316, %c0_317] : memref<256x256xf32, #tpu.memory_space<vmem>>, vector<256x256xf32>
    %cst_318 = arith.constant dense<0.000000e+00> : vector<2x256xf32>
    %306 = tpu.matmul %304, %305, %cst_318 {dimension_numbers = #tpu.dot_dimension_numbers<[1], [0], [0], [1], [0, 0, 1, 1], [], []>} : vector<2x256xf32>, vector<256x256xf32>, vector<2x256xf32> -> vector<2x256xf32>
    %c0_319 = arith.constant 0 : index
    %c0_320 = arith.constant 0 : index
    %307 = vector.load %arg7[%c0_319, %c0_320] : memref<1x256xf32, #tpu.memory_space<vmem>>, vector<1x256xf32>
    %308 = vector.broadcast %307 : vector<1x256xf32> to vector<2x256xf32>
    %309 = arith.addf %306, %308 : vector<2x256xf32>
    %cst_321 = arith.constant 0.000000e+00 : f32
    %310 = vector.broadcast %cst_321 : f32 to vector<2x256xf32>
    %311 = arith.maximumf %309, %310 : vector<2x256xf32>
    %c0_322 = arith.constant 0 : index
    %c0_323 = arith.constant 0 : index
    %312 = vector.load %arg8[%c0_322, %c0_323] : memref<256x128xf32, #tpu.memory_space<vmem>>, vector<256x128xf32>
    %cst_324 = arith.constant dense<0.000000e+00> : vector<2x128xf32>
    %313 = tpu.matmul %311, %312, %cst_324 {dimension_numbers = #tpu.dot_dimension_numbers<[1], [0], [0], [1], [0, 0, 1, 1], [], []>} : vector<2x256xf32>, vector<256x128xf32>, vector<2x128xf32> -> vector<2x128xf32>
    %c0_325 = arith.constant 0 : index
    %c0_326 = arith.constant 0 : index
    %314 = vector.load %arg9[%c0_325, %c0_326] : memref<1x128xf32, #tpu.memory_space<vmem>>, vector<1x128xf32>
    %315 = vector.broadcast %314 : vector<1x128xf32> to vector<2x128xf32>
    %316 = arith.addf %313, %315 : vector<2x128xf32>
    %c0_327 = arith.constant 0 : index
    %c0_328 = arith.constant 0 : index
    %c0_329 = arith.constant 0 : index
    %317 = vector.load %arg10[%c0_327, %c0_328, %c0_329] : memref<1x2x128xf32, #tpu.memory_space<vmem>>, vector<1x2x128xf32>
    %318 = vector.shape_cast %317 : vector<1x2x128xf32> to vector<2x128xf32>
    %319 = vector.shape_cast %316 : vector<2x128xf32> to vector<1x2x128xf32>
    tpu.vector_store %arg10[%c0_327, %c0_328, %c0_329], %319 {strides = array<i32>} : memref<1x2x128xf32, #tpu.memory_space<vmem>>, vector<1x2x128xf32>,
    return
  }
  func.func @transform_0(%arg0: i32) -> (i32, i32, i32) {
    %c0_i32 = arith.constant 0 : i32
    %c0_i32_0 = arith.constant 0 : i32
    %c0_i32_1 = arith.constant 0 : i32
    return %arg0, %c0_i32, %c0_i32_0 : i32, i32, i32
  }
  func.func @transform_1(%arg0: i32) -> (i32, i32) {
    %c0_i32 = arith.constant 0 : i32
    %c0_i32_0 = arith.constant 0 : i32
    %c0_i32_1 = arith.constant 0 : i32
    return %c0_i32, %c0_i32_0 : i32, i32
  }
  func.func @transform_2(%arg0: i32) -> (i32, i32) {
    %c0_i32 = arith.constant 0 : i32
    %c0_i32_0 = arith.constant 0 : i32
    %c0_i32_1 = arith.constant 0 : i32
    return %c0_i32, %c0_i32_0 : i32, i32
  }
  func.func @transform_3(%arg0: i32) -> (i32, i32) {
    %c0_i32 = arith.constant 0 : i32
    %c0_i32_0 = arith.constant 0 : i32
    %c0_i32_1 = arith.constant 0 : i32
    return %c0_i32, %c0_i32_0 : i32, i32
  }
  func.func @transform_4(%arg0: i32) -> (i32, i32) {
    %c0_i32 = arith.constant 0 : i32
    %c0_i32_0 = arith.constant 0 : i32
    %c0_i32_1 = arith.constant 0 : i32
    return %c0_i32, %c0_i32_0 : i32, i32
  }
  func.func @transform_5(%arg0: i32) -> (i32, i32) {
    %c0_i32 = arith.constant 0 : i32
    %c0_i32_0 = arith.constant 0 : i32
    %c0_i32_1 = arith.constant 0 : i32
    return %c0_i32, %c0_i32_0 : i32, i32
  }
  func.func @transform_6(%arg0: i32) -> (i32, i32) {
    %c0_i32 = arith.constant 0 : i32
    %c0_i32_0 = arith.constant 0 : i32
    %c0_i32_1 = arith.constant 0 : i32
    return %c0_i32, %c0_i32_0 : i32, i32
  }
  func.func @transform_7(%arg0: i32) -> (i32, i32) {
    %c0_i32 = arith.constant 0 : i32
    %c0_i32_0 = arith.constant 0 : i32
    %c0_i32_1 = arith.constant 0 : i32
    return %c0_i32, %c0_i32_0 : i32, i32
  }
  func.func @transform_8(%arg0: i32) -> (i32, i32) {
    %c0_i32 = arith.constant 0 : i32
    %c0_i32_0 = arith.constant 0 : i32
    %c0_i32_1 = arith.constant 0 : i32
    return %c0_i32, %c0_i32_0 : i32, i32
  }
  func.func @transform_9(%arg0: i32) -> (i32, i32, i32) {
    %c0_i32 = arith.constant 0 : i32
    %c0_i32_0 = arith.constant 0 : i32
    %c0_i32_1 = arith.constant 0 : i32
    return %arg0, %c0_i32, %c0_i32_0 : i32, i32, i32
  }
}

</mosaic_0001>

<llo_original>
// kernel: dqn_forward.1
$region0: #{dqn_forward.1}
  #allocation0 [shape = 'u32[]', space=smem, size = 0x4, offset = 0x4, fixed_abs, tag = 'smem constant byte address 0x4 - core index']
  #allocation1 [shape = 'u32[144,128]{1,0:T(1,128)}', space=vmem, size = 0x12000, scoped, tag = 'internal scratch']
  #allocation2 [shape = 'f32[98,32]{1,0:T(8,128)}', space=vmem, size = 0xd000, scoped, tag = 'scratch operand']
  #allocation3 [shape = 'f32[2,256]{1,0:T(2,128)}', space=vmem, size = 0x800, scoped, tag = 'scratch operand']
  %s0 = inlined_call_operand.vmem [shape: f32[4,49,16], index: 0, kind: input, shape index: {}]
  %s1 = inlined_call_operand.vmem [shape: f32[16,32], index: 1, kind: input, shape index: {}]
  %s2 = inlined_call_operand.vmem [shape: f32[1,32], index: 2, kind: input, shape index: {}]
  %s3 = inlined_call_operand.vmem [shape: f32[512,64], index: 3, kind: input, shape index: {}]
  %s4 = inlined_call_operand.vmem [shape: f32[1,64], index: 4, kind: input, shape index: {}]
  %s5 = inlined_call_operand.vmem [shape: f32[256,256], index: 5, kind: input, shape index: {}]
  %s6 = inlined_call_operand.vmem [shape: f32[1,256], index: 6, kind: input, shape index: {}]
  %s7 = inlined_call_operand.vmem [shape: f32[256,128], index: 7, kind: input, shape index: {}]
  %s8 = inlined_call_operand.vmem [shape: f32[1,128], index: 8, kind: input, shape index: {}]
  %s9 = inlined_call_operand.hbm [shape: f32[2,2,128], index: 9, kind: output, shape index: {}]
  %s10 = sld [smem:[#allocation0]]
  $region69: #{dqn_forward.1} parent=0
    _
  %s12 = ssub.s32 1, %s10
  %s13 = scalar_select 0, %s12, %s10
  $region1: #{dqn_forward.1} parent=0
    #allocation4 [shape = 'u8[2048]{0}', space=vmem, size = 0x800, scoped, tag = 'output window, operand 0']
    #allocation5 [shape = 's32[2]{0}', space=sflag, size = 0x8, scoped, tag = 'scoped memory for dqn_forward.1']
    %14 = vsyncpa [#allocation5], 0
    %s15 = scalar_lea.sflag [#allocation5], 1
    %16 = vsyncpa %s15, 0
    loop: start=0, step=1, limit=4
    $region2: #{dqn_forward.1} parent=1 // loop_pre_header
      _
    $region3: #{dqn_forward.1} parent=1 // loop_header
      %s18 = sphi 0, %s22
      %p19 = scmp.ge.s32.totalorder %s18, 4
      %s28 = sphi 0, %s30
      %s31 = sphi 0, %s28
      %s32 = sphi 0, %s31
      %s48 = sphi 0, %s32
      %s52 = sphi 0, %s52
      %s54 = sphi 0, %s52
      %s55 = sphi 0, %s54
      %s69 = sphi 0, %s55
      %s73 = sphi 0, %s73
      %s75 = sphi 0, %s73
      %s76 = sphi 0, %s75
      %s90 = sphi 0, %s76
      %s94 = sphi 0, %s94
      %s96 = sphi 0, %s94
      %s97 = sphi 0, %s96
      %s111 = sphi 0, %s97
      %s115 = sphi 0, %s115
      %s117 = sphi 0, %s115
      %s118 = sphi 0, %s117
      %s132 = sphi 0, %s118
      %s136 = sphi 0, %s136
      %s138 = sphi 0, %s136
      %s139 = sphi 0, %s138
      %s153 = sphi 0, %s139
      %s157 = sphi 0, %s157
      %s159 = sphi 0, %s157
      %s160 = sphi 0, %s159
      %s174 = sphi 0, %s160
      %s178 = sphi 0, %s178
      %s180 = sphi 0, %s178
      %s181 = sphi 0, %s180
      %s195 = sphi 0, %s181
      %s199 = sphi 0, %s199
      %s201 = sphi 0, %s199
      %s202 = sphi 0, %s201
      %s216 = sphi 0, %s202
      %s222 = sphi 0, %s224
      %s225 = sphi 0, %s222
      %s226 = sphi 0, %s225
      %s242 = sphi 0, %s226
    $region4: #{dqn_forward.1} parent=1 // loop_header_branch
      %21 = sbr.rel (%p19) target = $region8
    $region5: #{dqn_forward.1} parent=1 // loop_body
      %s23 = ssub.s32 %s18, 1
      %s24 = ssub.s32 %s18, 2
      %s25 = sadd.s32 %s18, 1
      %s26 = ssub.s32 %s18, %s25
      %p27 = scmp.eq.s32.totalorder %s26, 0
      %s29 = sadd.s32 %s28, 1
      %s30 = scalar_select %p27, %s28, %s29
      %p33 = pneg %p27
      %p34 = scmp.eq.s32.totalorder %s18, 1
      %p35 = por %p33, %p34
      %p36 = scmp.ne.s32.totalorder %s28, %s31
      %p37 = scmp.eq.s32.totalorder %s18, 0
      %p38 = por %p36, %p37
      %p39 = scmp.ne.s32.totalorder %s28, %s31
      %p40 = scmp.eq.s32.totalorder %s23, 1
      %p41 = por %p39, %p40
      %p42 = scmp.ne.s32.totalorder %s31, %s32
      %p43 = scmp.eq.s32.totalorder %s23, 0
      %p44 = por %p42, %p43
      %p45 = scmp.ne.s32.totalorder %s31, %s32
      %p46 = scmp.eq.s32.totalorder %s24, 1
      %p47 = por %p45, %p46
      %p49 = scmp.ne.s32.totalorder %s32, %s48
      %p50 = scmp.eq.s32.totalorder %s24, 0
      %p51 = por %p49, %p50
      %s53 = sadd.s32 %s52, 1
      %p56 = scmp.eq.s32.totalorder %s18, 1
      %p57 = scmp.ne.s32.totalorder %s52, %s54
      %p58 = scmp.eq.s32.totalorder %s18, 0
      %p59 = por %p57, %p58
      %p60 = scmp.ne.s32.totalorder %s52, %s54
      %p61 = scmp.eq.s32.totalorder %s23, 1
      %p62 = por %p60, %p61
      %p63 = scmp.ne.s32.totalorder %s54, %s55
      %p64 = scmp.eq.s32.totalorder %s23, 0
      %p65 = por %p63, %p64
      %p66 = scmp.ne.s32.totalorder %s54, %s55
      %p67 = scmp.eq.s32.totalorder %s24, 1
      %p68 = por %p66, %p67
      %p70 = scmp.ne.s32.totalorder %s55, %s69
      %p71 = scmp.eq.s32.totalorder %s24, 0
      %p72 = por %p70, %p71
      %s74 = sadd.s32 %s73, 1
      %p77 = scmp.eq.s32.totalorder %s18, 1
      %p78 = scmp.ne.s32.totalorder %s73, %s75
      %p79 = scmp.eq.s32.totalorder %s18, 0
      %p80 = por %p78, %p79
      %p81 = scmp.ne.s32.totalorder %s73, %s75
      %p82 = scmp.eq.s32.totalorder %s23, 1
      %p83 = por %p81, %p82
      %p84 = scmp.ne.s32.totalorder %s75, %s76
      %p85 = scmp.eq.s32.totalorder %s23, 0
      %p86 = por %p84, %p85
      %p87 = scmp.ne.s32.totalorder %s75, %s76
      %p88 = scmp.eq.s32.totalorder %s24, 1
      %p89 = por %p87, %p88
      %p91 = scmp.ne.s32.totalorder %s76, %s90
      %p92 = scmp.eq.s32.totalorder %s24, 0
      %p93 = por %p91, %p92
      %s95 = sadd.s32 %s94, 1
      %p98 = scmp.eq.s32.totalorder %s18, 1
      %p99 = scmp.ne.s32.totalorder %s94, %s96
      %p100 = scmp.eq.s32.totalorder %s18, 0
      %p101 = por %p99, %p100
      %p102 = scmp.ne.s32.totalorder %s94, %s96
      %p103 = scmp.eq.s32.totalorder %s23, 1
      %p104 = por %p102, %p103
      %p105 = scmp.ne.s32.totalorder %s96, %s97
      %p106 = scmp.eq.s32.totalorder %s23, 0
      %p107 = por %p105, %p106
      %p108 = scmp.ne.s32.totalorder %s96, %s97
      %p109 = scmp.eq.s32.totalorder %s24, 1
      %p110 = por %p108, %p109
      %p112 = scmp.ne.s32.totalorder %s97, %s111
      %p113 = scmp.eq.s32.totalorder %s24, 0
      %p114 = por %p112, %p113
      %s116 = sadd.s32 %s115, 1
      %p119 = scmp.eq.s32.totalorder %s18, 1
      %p120 = scmp.ne.s32.totalorder %s115, %s117
      %p121 = scmp.eq.s32.totalorder %s18, 0
      %p122 = por %p120, %p121
      %p123 = scmp.ne.s32.totalorder %s115, %s117
      %p124 = scmp.eq.s32.totalorder %s23, 1
      %p125 = por %p123, %p124
      %p126 = scmp.ne.s32.totalorder %s117, %s118
      %p127 = scmp.eq.s32.totalorder %s23, 0
      %p128 = por %p126, %p127
      %p129 = scmp.ne.s32.totalorder %s117, %s118
      %p130 = scmp.eq.s32.totalorder %s24, 1
      %p131 = por %p129, %p130
      %p133 = scmp.ne.s32.totalorder %s118, %s132
      %p134 = scmp.eq.s32.totalorder %s24, 0
      %p135 = por %p133, %p134
      %s137 = sadd.s32 %s136, 1
      %p140 = scmp.eq.s32.totalorder %s18, 1
      %p141 = scmp.ne.s32.totalorder %s136, %s138
      %p142 = scmp.eq.s32.totalorder %s18, 0
      %p143 = por %p141, %p142
      %p144 = scmp.ne.s32.totalorder %s136, %s138
      %p145 = scmp.eq.s32.totalorder %s23, 1
      %p146 = por %p144, %p145
      %p147 = scmp.ne.s32.totalorder %s138, %s139
      %p148 = scmp.eq.s32.totalorder %s23, 0
      %p149 = por %p147, %p148
      %p150 = scmp.ne.s32.totalorder %s138, %s139
      %p151 = scmp.eq.s32.totalorder %s24, 1
      %p152 = por %p150, %p151
      %p154 = scmp.ne.s32.totalorder %s139, %s153
      %p155 = scmp.eq.s32.totalorder %s24, 0
      %p156 = por %p154, %p155
      %s158 = sadd.s32 %s157, 1
      %p161 = scmp.eq.s32.totalorder %s18, 1
      %p162 = scmp.ne.s32.totalorder %s157, %s159
      %p163 = scmp.eq.s32.totalorder %s18, 0
      %p164 = por %p162, %p163
      %p165 = scmp.ne.s32.totalorder %s157, %s159
      %p166 = scmp.eq.s32.totalorder %s23, 1
      %p167 = por %p165, %p166
      %p168 = scmp.ne.s32.totalorder %s159, %s160
      %p169 = scmp.eq.s32.totalorder %s23, 0
      %p170 = por %p168, %p169
      %p171 = scmp.ne.s32.totalorder %s159, %s160
      %p172 = scmp.eq.s32.totalorder %s24, 1
      %p173 = por %p171, %p172
      %p175 = scmp.ne.s32.totalorder %s160, %s174
      %p176 = scmp.eq.s32.totalorder %s24, 0
      %p177 = por %p175, %p176
      %s179 = sadd.s32 %s178, 1
      %p182 = scmp.eq.s32.totalorder %s18, 1
      %p183 = scmp.ne.s32.totalorder %s178, %s180
      %p184 = scmp.eq.s32.totalorder %s18, 0
      %p185 = por %p183, %p184
      %p186 = scmp.ne.s32.totalorder %s178, %s180
      %p187 = scmp.eq.s32.totalorder %s23, 1
      %p188 = por %p186, %p187
      %p189 = scmp.ne.s32.totalorder %s180, %s181
      %p190 = scmp.eq.s32.totalorder %s23, 0
      %p191 = por %p189, %p190
      %p192 = scmp.ne.s32.totalorder %s180, %s181
      %p193 = scmp.eq.s32.totalorder %s24, 1
      %p194 = por %p192, %p193
      %p196 = scmp.ne.s32.totalorder %s181, %s195
      %p197 = scmp.eq.s32.totalorder %s24, 0
      %p198 = por %p196, %p197
      %s200 = sadd.s32 %s199, 1
      %p203 = scmp.eq.s32.totalorder %s18, 1
      %p204 = scmp.ne.s32.totalorder %s199, %s201
      %p205 = scmp.eq.s32.totalorder %s18, 0
      %p206 = por %p204, %p205
      %p207 = scmp.ne.s32.totalorder %s199, %s201
      %p208 = scmp.eq.s32.totalorder %s23, 1
      %p209 = por %p207, %p208
      %p210 = scmp.ne.s32.totalorder %s201, %s202
      %p211 = scmp.eq.s32.totalorder %s23, 0
      %p212 = por %p210, %p211
      %p213 = scmp.ne.s32.totalorder %s201, %s202
      %p214 = scmp.eq.s32.totalorder %s24, 1
      %p215 = por %p213, %p214
      %p217 = scmp.ne.s32.totalorder %s202, %s216
      %p218 = scmp.eq.s32.totalorder %s24, 0
      %p219 = por %p217, %p218
      %s220 = ssub.s32 %s18, %s25
      %p221 = scmp.eq.s32.totalorder %s220, 0
      %s223 = sadd.s32 %s222, 1
      %s224 = scalar_select %p221, %s222, %s223
      %p227 = pneg %p221
      %p228 = scmp.eq.s32.totalorder %s18, 1
      %p229 = por %p227, %p228
      %p230 = scmp.ne.s32.totalorder %s222, %s225
      %p231 = scmp.eq.s32.totalorder %s18, 0
      %p232 = por %p230, %p231
      %p233 = scmp.ne.s32.totalorder %s222, %s225
      %p234 = scmp.eq.s32.totalorder %s23, 1
      %p235 = por %p233, %p234
      %p236 = scmp.ne.s32.totalorder %s225, %s226
      %p237 = scmp.eq.s32.totalorder %s23, 0
      %p238 = por %p236, %p237
      %p239 = scmp.ne.s32.totalorder %s225, %s226
      %p240 = scmp.eq.s32.totalorder %s24, 1
      %p241 = por %p239, %p240
      %p243 = scmp.ne.s32.totalorder %s226, %s242
      %p244 = scmp.eq.s32.totalorder %s24, 0
      %p245 = por %p243, %p244
      %p246 = scmp.le.s32.totalorder 1, %s18
      %p247 = scmp.lt.s32.totalorder %s18, 3
      %p248 = pnand %p246, %p247
      %p249 = pneg %p248
      // Predicated region
      $region9: #{dqn_forward.1} parent=5 // pred_check
        _
      $region10: #{dqn_forward.1} parent=5 // pred_check_branch
        %251 = sbr.rel (%p248) target = $region12
      $region11: #{dqn_forward.1} parent=5 // pred_region
        %s252 = ssub.s32 %s18, 1
        // Predicated region
        $region13: #{dqn_forward.1} parent=11 // pred_check
          %p253 = pneg %p65
        $region14: #{dqn_forward.1} parent=11 // pred_check_branch
          %255 = sbr.rel (%p253) target = $region16
        $region15: #{dqn_forward.1} parent=11 // pred_region
          _
        $region16: #{dqn_forward.1} parent=11 // pred_fallthru
          _
        // Predicated region
        $region17: #{dqn_forward.1} parent=11 // pred_check
          %p256 = pneg %p86
        $region18: #{dqn_forward.1} parent=11 // pred_check_branch
          %258 = sbr.rel (%p256) target = $region20
        $region19: #{dqn_forward.1} parent=11 // pred_region
          _
        $region20: #{dqn_forward.1} parent=11 // pred_fallthru
          _
        // Predicated region
        $region21: #{dqn_forward.1} parent=11 // pred_check
          %p259 = pneg %p107
        $region22: #{dqn_forward.1} parent=11 // pred_check_branch
          %261 = sbr.rel (%p259) target = $region24
        $region23: #{dqn_forward.1} parent=11 // pred_region
          _
        $region24: #{dqn_forward.1} parent=11 // pred_fallthru
          _
        // Predicated region
        $region25: #{dqn_forward.1} parent=11 // pred_check
          %p262 = pneg %p128
        $region26: #{dqn_forward.1} parent=11 // pred_check_branch
          %264 = sbr.rel (%p262) target = $region28
        $region27: #{dqn_forward.1} parent=11 // pred_region
          _
        $region28: #{dqn_forward.1} parent=11 // pred_fallthru
          _
        // Predicated region
        $region29: #{dqn_forward.1} parent=11 // pred_check
          %p265 = pneg %p149
        $region30: #{dqn_forward.1} parent=11 // pred_check_branch
          %267 = sbr.rel (%p265) target = $region32
        $region31: #{dqn_forward.1} parent=11 // pred_region
          _
        $region32: #{dqn_forward.1} parent=11 // pred_fallthru
          _
        // Predicated region
        $region33: #{dqn_forward.1} parent=11 // pred_check
          %p268 = pneg %p170
        $region34: #{dqn_forward.1} parent=11 // pred_check_branch
          %270 = sbr.rel (%p268) target = $region36
        $region35: #{dqn_forward.1} parent=11 // pred_region
          _
        $region36: #{dqn_forward.1} parent=11 // pred_fallthru
          _
        // Predicated region
        $region37: #{dqn_forward.1} parent=11 // pred_check
          %p271 = pneg %p191
        $region38: #{dqn_forward.1} parent=11 // pred_check_branch
          %273 = sbr.rel (%p271) target = $region40
        $region39: #{dqn_forward.1} parent=11 // pred_region
          _
        $region40: #{dqn_forward.1} parent=11 // pred_fallthru
          _
        // Predicated region
        $region41: #{dqn_forward.1} parent=11 // pred_check
          %p274 = pneg %p212
        $region42: #{dqn_forward.1} parent=11 // pred_check_branch
          %276 = sbr.rel (%p274) target = $region44
        $region43: #{dqn_forward.1} parent=11 // pred_region
          _
        $region44: #{dqn_forward.1} parent=11 // pred_fallthru
          _
      $region12: #{dqn_forward.1} parent=5 // pred_fallthru
        _
      %p277 = scmp.lt.s32.totalorder %s18, 2
      // Predicated region
      $region45: #{dqn_forward.1} parent=5 // pred_check
        %p278 = pneg %p277
      $region46: #{dqn_forward.1} parent=5 // pred_check_branch
        %280 = sbr.rel (%p278) target = $region48
      $region47: #{dqn_forward.1} parent=5 // pred_region
        // Predicated region
        $region49: #{dqn_forward.1} parent=47 // pred_check
          %p281 = pneg %p38
        $region50: #{dqn_forward.1} parent=47 // pred_check_branch
          %283 = sbr.rel (%p281) target = $region52
        $region51: #{dqn_forward.1} parent=47 // pred_region
          %s284 = smul.u32 2, %s18
          %p285 = scmp.lt.s32.totalorder %s284, 3
          %s286 = scalar_select %p285, %s284, 3
          %s287 = smul.addr %s286, 7
          %s288 = smul.addr %s287, 8
          %s289 = scalar_lea.vmem %s0, %s288
          %s290 = smul.u32 2, %s18
        $region52: #{dqn_forward.1} parent=47 // pred_fallthru
          _
      $region48: #{dqn_forward.1} parent=5 // pred_fallthru
        _
      %p291 = scmp.le.s32.totalorder 1, %s18
      %p292 = scmp.lt.s32.totalorder %s18, 3
      %p293 = pnand %p291, %p292
      %p294 = pneg %p293
      // Predicated region
      $region53: #{dqn_forward.1} parent=5 // pred_check
        _
      $region54: #{dqn_forward.1} parent=5 // pred_check_branch
        %296 = sbr.rel (%p293) target = $region56
      $region55: #{dqn_forward.1} parent=5 // pred_region
        %s297 = ssub.s32 %s18, 1
        %s298 = smul.u32 2, %s23
        %p299 = scmp.lt.s32.totalorder %s298, 3
        %s300 = scalar_select %p299, %s298, 3
        %s301 = smul.addr %s300, 7
        %s302 = smul.addr %s301, 8
        %s303 = scalar_lea.vmem %s0, %s302
        %p304 = pneg %p44
        %p305 = pneg %p41
        %p306 = pneg %p65
        %p307 = pneg %p62
        %p308 = pneg %p86
        %p309 = pneg %p83
        %p310 = pneg %p107
        %p311 = pneg %p104
        %p312 = pneg %p128
        %p313 = pneg %p125
        %p314 = pneg %p149
        %p315 = pneg %p146
        %p316 = pneg %p170
        %p317 = pneg %p167
        %p318 = pneg %p191
        %p319 = pneg %p188
        %p320 = pneg %p212
        %p321 = pneg %p209
        %p322 = pneg %p238
        %p323 = pneg %p235
        %s324 = sand.u32 %s225, 1
        %s325 = scalar_lea.sflag [#allocation5], %s324
        %s326 = sand.u32 %s225, 1
        %s327 = smul.addr %s326, 2
        %s328 = scalar_lea.vmem [#allocation4], %s327
        %s329 = smul.u32 2, %s23
        %p330 = scmp.lt.s32.totalorder %s329, 3
        %s331 = scalar_select %p330, %s329, 3
        %s332 = smul.addr %s331, 7
        %s333 = smul.addr %s332, 8
        %s334 = scalar_lea.vmem %s0, %s333
        %s335 = smul.u32 2, %s23
        %v336 = vld [vmem:[%s334] sm:$0xff]
        %v337 = vld [vmem:[%s334 + $0x8] sm:$0xff]
        %v338 = vld [vmem:[%s334 + $0x10] sm:$0xff]
        %v339 = vld [vmem:[%s334 + $0x18] sm:$0xff]
        %v340 = vld [vmem:[%s334 + $0x20] sm:$0xff]
        %v341 = vld [vmem:[%s334 + $0x28] sm:$0xff]
        %v342 = vld [vmem:[%s334 + $0x30] sm:$0x1]
        %v343 = vld [vmem:[%s1] sm:$0xff]
        %v344 = vld [vmem:[%s1 + $0x8] sm:$0xff]
        %v345 = vld [vmem:[%s2] sm:$0x1]
        %v347 = vlaneseq
        %v348 = vshrl.u32 %v347, 7
        %v349 = vsub.s32 0, %v348
        %v350 = vrot.slane %v345, %v349
        %vm352 = vcmask 130048
        %v354 = vsel %vm352, %v336, 0
        %v357 = vsel %vm352, %v337, 0
        %v360 = vsel %vm352, %v338, 0
        %v363 = vsel %vm352, %v339, 0
        %v366 = vsel %vm352, %v340, 0
        %v369 = vsel %vm352, %v341, 0
        %v372 = vsel %vm352, %v342, 0
        %374 = vmatprep.subr.mxu0 0.0
        %375 = vmatpush1.msra.mxu0 %v343
        %376 = vmatprep.subr.mxu0 0.0
        %377 = vmatpush1.msra.mxu0 %v344
        %378 = vmatprep.subr.mxu0 0.0
        %379 = vmatpush1.msra.mxu0 0.0
        %380 = vmatprep.subr.mxu0 0.0
        %381 = vmatpush1.msra.mxu0 0.0
        %382 = vmatprep.subr.mxu0 0.0
        %383 = vmatpush1.msra.mxu0 0.0
        %384 = vmatprep.subr.mxu0 0.0
        %385 = vmatpush1.msra.mxu0 0.0
        %386 = vmatprep.subr.mxu0 0.0
        %387 = vmatpush1.msra.mxu0 0.0
        %388 = vmatprep.subr.mxu0 0.0
        %389 = vmatpush1.msra.mxu0 0.0
        %390 = vmatprep.subr.mxu0 0.0
        %391 = vmatpush1.msra.mxu0 0.0
        %392 = vmatprep.subr.mxu0 0.0
        %393 = vmatpush1.msra.mxu0 0.0
        %394 = vmatprep.subr.mxu0 0.0
        %395 = vmatpush1.msra.mxu0 0.0
        %396 = vmatprep.subr.mxu0 0.0
        %397 = vmatpush1.msra.mxu0 0.0
        %398 = vmatprep.subr.mxu0 0.0
        %399 = vmatpush1.msra.mxu0 0.0
        %400 = vmatprep.subr.mxu0 0.0
        %401 = vmatpush1.msra.mxu0 0.0
        %402 = vmatprep.subr.mxu0 0.0
        %403 = vmatpush1.msra.mxu0 0.0
        %404 = vmatprep.subr.mxu0 0.0
        %405 = vmatpush1.msra.mxu0 0.0
        %406 = vmatprep.subr.mxu0 0.0
        %407 = vmatpush1.msra.mxu0 0.0
        %408 = vmatprep.subr.mxu0 0.0
        %409 = vmatpush1.msra.mxu0 0.0
        %410 = vmatprep.subr.mxu0 0.0
        %411 = vmatpush1.msra.mxu0 0.0
        %412 = vmatprep.subr.mxu0 0.0
        %413 = vmatpush1.msra.mxu0 0.0
        %414 = vmatprep.subr.mxu0 0.0
        %415 = vmatpush1.msra.mxu0 0.0
        %416 = vmatprep.subr.mxu0 0.0
        %417 = vmatpush1.msra.mxu0 0.0
        %418 = vmatprep.subr.mxu0 0.0
        %419 = vmatpush1.msra.mxu0 0.0
        %420 = vmatprep.subr.mxu0 0.0
        %421 = vmatpush1.msra.mxu0 0.0
        %422 = vmatprep.subr.mxu0 0.0
        %423 = vmatpush1.msra.mxu0 0.0
        %424 = vmatprep.subr.mxu0 0.0
        %425 = vmatpush1.msra.mxu0 0.0
        %426 = vmatprep.subr.mxu0 0.0
        %427 = vmatpush1.msra.mxu0 0.0
        %428 = vmatprep.subr.mxu0 0.0
        %429 = vmatpush1.msra.mxu0 0.0
        %430 = vmatprep.subr.mxu0 0.0
        %431 = vmatpush1.msra.mxu0 0.0
        %432 = vmatprep.subr.mxu0 0.0
        %433 = vmatpush1.msra.mxu0 0.0
        %434 = vmatprep.subr.mxu0 0.0
        %435 = vmatpush1.msra.mxu0 0.0
        %436 = vmatprep.subr.mxu0 0.0
        %437 = vmatpush1.msra.mxu0 0.0
        %438 = vmatprep.mubr.f32.mxu0 0.0
        %439 = vmatmul.mubr.f32.gmra.mrb[0].mxu0 %v354
        %v440 = vpop.f32.mrb[0].mxu0
        %v441 = vadd.f32 %v350, %v440
        %v442 = vpop.f32.mrb[0].mxu0
        %443 = vmatprep.mubr.f32.mxu0 0.0
        %444 = vmatmul.mubr.f32.gmra.mrb[0].mxu0 %v357
        %v445 = vpop.f32.mrb[0].mxu0
        %v446 = vadd.f32 %v350, %v445
        %v447 = vpop.f32.mrb[0].mxu0
        %448 = vmatprep.mubr.f32.mxu0 0.0
        %449 = vmatmul.mubr.f32.gmra.mrb[0].mxu0 %v360
        %v450 = vpop.f32.mrb[0].mxu0
        %v451 = vadd.f32 %v350, %v450
        %v452 = vpop.f32.mrb[0].mxu0
        %453 = vmatprep.mubr.f32.mxu0 0.0
        %454 = vmatmul.mubr.f32.gmra.mrb[0].mxu0 %v363
        %v455 = vpop.f32.mrb[0].mxu0
        %v456 = vadd.f32 %v350, %v455
        %v457 = vpop.f32.mrb[0].mxu0
        %458 = vmatprep.mubr.f32.mxu0 0.0
        %459 = vmatmul.mubr.f32.gmra.mrb[0].mxu0 %v366
        %v460 = vpop.f32.mrb[0].mxu0
        %v461 = vadd.f32 %v350, %v460
        %v462 = vpop.f32.mrb[0].mxu0
        %463 = vmatprep.mubr.f32.mxu0 0.0
        %464 = vmatmul.mubr.f32.gmra.mrb[0].mxu0 %v369
        %v465 = vpop.f32.mrb[0].mxu0
        %v466 = vadd.f32 %v350, %v465
        %v467 = vpop.f32.mrb[0].mxu0
        %468 = vmatprep.mubr.f32.mxu0 0.0
        %469 = vmatmul.mubr.f32.gmra.mrb[0].mxu0 %v372
        %v470 = vpop.f32.mrb[0].mxu0
        %v471 = vadd.f32 %v350, %v470
        %v472 = vpop.f32.mrb[0].mxu0
        %473 = vdwg.mxu0
        %v474 = vmax.f32 %v441, 0.0
        %v475 = vmax.f32 %v446, 0.0
        %v476 = vmax.f32 %v451, 0.0
        %v477 = vmax.f32 %v456, 0.0
        %v478 = vmax.f32 %v461, 0.0
        %v479 = vmax.f32 %v466, 0.0
        %v480 = vmax.f32 %v471, 0.0
        %vm481 = vcmask 261120
        %482 = vst.msk [vmem:[#allocation2] sm:$0xff] %vm481, %v474
        %483 = vst.msk [vmem:[#allocation2 + $0x8] sm:$0xff] %vm481, %v475
        %484 = vst.msk [vmem:[#allocation2 + $0x10] sm:$0xff] %vm481, %v476
        %485 = vst.msk [vmem:[#allocation2 + $0x18] sm:$0xff] %vm481, %v477
        %486 = vst.msk [vmem:[#allocation2 + $0x20] sm:$0xff] %vm481, %v478
        %487 = vst.msk [vmem:[#allocation2 + $0x28] sm:$0xff] %vm481, %v479
        %vm488 = vcmask 253952
        %489 = vst.msk [vmem:[#allocation2 + $0x30] sm:$0x1] %vm488, %v480
        %s490 = scalar_lea.vmem %s334, 56
        %v491 = vld [vmem:[%s490] sm:$0xff]
        %v492 = vld [vmem:[%s490 + $0x8] sm:$0xff]
        %v493 = vld [vmem:[%s490 + $0x10] sm:$0xff]
        %v494 = vld [vmem:[%s490 + $0x18] sm:$0xff]
        %v495 = vld [vmem:[%s490 + $0x20] sm:$0xff]
        %v496 = vld [vmem:[%s490 + $0x28] sm:$0xff]
        %v497 = vld [vmem:[%s490 + $0x30] sm:$0x1]
        %v498 = vld [vmem:[%s1] sm:$0xff]
        %v499 = vld [vmem:[%s1 + $0x8] sm:$0xff]
        %v500 = vld [vmem:[%s2] sm:$0x1]
        %v502 = vlaneseq
        %v503 = vshrl.u32 %v502, 7
        %v504 = vsub.s32 0, %v503
        %v505 = vrot.slane %v500, %v504
        %v508 = vsel %vm352, %v491, 0
        %v511 = vsel %vm352, %v492, 0
        %v514 = vsel %vm352, %v493, 0
        %v517 = vsel %vm352, %v494, 0
        %v520 = vsel %vm352, %v495, 0
        %v523 = vsel %vm352, %v496, 0
        %v526 = vsel %vm352, %v497, 0
        %528 = vmatprep.subr.mxu0 0.0
        %529 = vmatpush1.msra.mxu0 %v498
        %530 = vmatprep.subr.mxu0 0.0
        %531 = vmatpush1.msra.mxu0 %v499
        %532 = vmatprep.subr.mxu0 0.0
        %533 = vmatpush1.msra.mxu0 0.0
        %534 = vmatprep.subr.mxu0 0.0
        %535 = vmatpush1.msra.mxu0 0.0
        %536 = vmatprep.subr.mxu0 0.0
        %537 = vmatpush1.msra.mxu0 0.0
        %538 = vmatprep.subr.mxu0 0.0
        %539 = vmatpush1.msra.mxu0 0.0
        %540 = vmatprep.subr.mxu0 0.0
        %541 = vmatpush1.msra.mxu0 0.0
        %542 = vmatprep.subr.mxu0 0.0
        %543 = vmatpush1.msra.mxu0 0.0
        %544 = vmatprep.subr.mxu0 0.0
        %545 = vmatpush1.msra.mxu0 0.0
        %546 = vmatprep.subr.mxu0 0.0
        %547 = vmatpush1.msra.mxu0 0.0
        %548 = vmatprep.subr.mxu0 0.0
        %549 = vmatpush1.msra.mxu0 0.0
        %550 = vmatprep.subr.mxu0 0.0
        %551 = vmatpush1.msra.mxu0 0.0
        %552 = vmatprep.subr.mxu0 0.0
        %553 = vmatpush1.msra.mxu0 0.0
        %554 = vmatprep.subr.mxu0 0.0
        %555 = vmatpush1.msra.mxu0 0.0
        %556 = vmatprep.subr.mxu0 0.0
        %557 = vmatpush1.msra.mxu0 0.0
        %558 = vmatprep.subr.mxu0 0.0
        %559 = vmatpush1.msra.mxu0 0.0
        %560 = vmatprep.subr.mxu0 0.0
        %561 = vmatpush1.msra.mxu0 0.0
        %562 = vmatprep.subr.mxu0 0.0
        %563 = vmatpush1.msra.mxu0 0.0
        %564 = vmatprep.subr.mxu0 0.0
        %565 = vmatpush1.msra.mxu0 0.0
        %566 = vmatprep.subr.mxu0 0.0
        %567 = vmatpush1.msra.mxu0 0.0
        %568 = vmatprep.subr.mxu0 0.0
        %569 = vmatpush1.msra.mxu0 0.0
        %570 = vmatprep.subr.mxu0 0.0
        %571 = vmatpush1.msra.mxu0 0.0
        %572 = vmatprep.subr.mxu0 0.0
        %573 = vmatpush1.msra.mxu0 0.0
        %574 = vmatprep.subr.mxu0 0.0
        %575 = vmatpush1.msra.mxu0 0.0
        %576 = vmatprep.subr.mxu0 0.0
        %577 = vmatpush1.msra.mxu0 0.0
        %578 = vmatprep.subr.mxu0 0.0
        %579 = vmatpush1.msra.mxu0 0.0
        %580 = vmatprep.subr.mxu0 0.0
        %581 = vmatpush1.msra.mxu0 0.0
        %582 = vmatprep.subr.mxu0 0.0
        %583 = vmatpush1.msra.mxu0 0.0
        %584 = vmatprep.subr.mxu0 0.0
        %585 = vmatpush1.msra.mxu0 0.0
        %586 = vmatprep.subr.mxu0 0.0
        %587 = vmatpush1.msra.mxu0 0.0
        %588 = vmatprep.subr.mxu0 0.0
        %589 = vmatpush1.msra.mxu0 0.0
        %590 = vmatprep.subr.mxu0 0.0
        %591 = vmatpush1.msra.mxu0 0.0
        %592 = vmatprep.mubr.f32.mxu0 0.0
        %593 = vmatmul.mubr.f32.gmra.mrb[0].mxu0 %v508
        %v594 = vpop.f32.mrb[0].mxu0
        %v595 = vadd.f32 %v505, %v594
        %v596 = vpop.f32.mrb[0].mxu0
        %597 = vmatprep.mubr.f32.mxu0 0.0
        %598 = vmatmul.mubr.f32.gmra.mrb[0].mxu0 %v511
        %v599 = vpop.f32.mrb[0].mxu0
        %v600 = vadd.f32 %v505, %v599
        %v601 = vpop.f32.mrb[0].mxu0
        %602 = vmatprep.mubr.f32.mxu0 0.0
        %603 = vmatmul.mubr.f32.gmra.mrb[0].mxu0 %v514
        %v604 = vpop.f32.mrb[0].mxu0
        %v605 = vadd.f32 %v505, %v604
        %v606 = vpop.f32.mrb[0].mxu0
        %607 = vmatprep.mubr.f32.mxu0 0.0
        %608 = vmatmul.mubr.f32.gmra.mrb[0].mxu0 %v517
        %v609 = vpop.f32.mrb[0].mxu0
        %v610 = vadd.f32 %v505, %v609
        %v611 = vpop.f32.mrb[0].mxu0
        %612 = vmatprep.mubr.f32.mxu0 0.0
        %613 = vmatmul.mubr.f32.gmra.mrb[0].mxu0 %v520
        %v614 = vpop.f32.mrb[0].mxu0
        %v615 = vadd.f32 %v505, %v614
        %v616 = vpop.f32.mrb[0].mxu0
        %617 = vmatprep.mubr.f32.mxu0 0.0
        %618 = vmatmul.mubr.f32.gmra.mrb[0].mxu0 %v523
        %v619 = vpop.f32.mrb[0].mxu0
        %v620 = vadd.f32 %v505, %v619
        %v621 = vpop.f32.mrb[0].mxu0
        %622 = vmatprep.mubr.f32.mxu0 0.0
        %623 = vmatmul.mubr.f32.gmra.mrb[0].mxu0 %v526
        %v624 = vpop.f32.mrb[0].mxu0
        %v625 = vadd.f32 %v505, %v624
        %v626 = vpop.f32.mrb[0].mxu0
        %627 = vdwg.mxu0
        %v628 = vmax.f32 %v595, 0.0
        %v629 = vmax.f32 %v600, 0.0
        %v630 = vmax.f32 %v605, 0.0
        %v631 = vmax.f32 %v610, 0.0
        %v632 = vmax.f32 %v615, 0.0
        %v633 = vmax.f32 %v620, 0.0
        %v634 = vmax.f32 %v625, 0.0
        %635 = vst.msk [vmem:[#allocation2 + $0x31] sm:$0xff] %vm481, %v628
        %636 = vst.msk [vmem:[#allocation2 + $0x39] sm:$0xff] %vm481, %v629
        %637 = vst.msk [vmem:[#allocation2 + $0x41] sm:$0xff] %vm481, %v630
        %638 = vst.msk [vmem:[#allocation2 + $0x49] sm:$0xff] %vm481, %v631
        %639 = vst.msk [vmem:[#allocation2 + $0x51] sm:$0xff] %vm481, %v632
        %640 = vst.msk [vmem:[#allocation2 + $0x59] sm:$0xff] %vm481, %v633
        %641 = vst.msk [vmem:[#allocation2 + $0x61] sm:$0x1] %vm488, %v634
        %v642 = vld [vmem:[#allocation2] ss:$49 sm:$0x3]
        %s643 = scalar_lea.vmem [#allocation2], 1
        %v644 = vld [vmem:[%s643] ss:$49 sm:$0x3]
        %s645 = scalar_lea.vmem [#allocation2], 2
        %v646 = vld [vmem:[%s645] ss:$49 sm:$0x3]
        %s647 = scalar_lea.vmem [#allocation2], 3
        %v648 = vld [vmem:[%s647] ss:$49 sm:$0x3]
        %s649 = scalar_lea.vmem [#allocation2], 7
        %v650 = vld [vmem:[%s649] ss:$49 sm:$0x3]
        %s651 = scalar_lea.vmem [#allocation2], 8
        %v652 = vld [vmem:[%s651] ss:$49 sm:$0x3]
        %s653 = scalar_lea.vmem [#allocation2], 9
        %v654 = vld [vmem:[%s653] ss:$49 sm:$0x3]
        %s655 = scalar_lea.vmem [#allocation2], 10
        %v656 = vld [vmem:[%s655] ss:$49 sm:$0x3]
        %s657 = scalar_lea.vmem [#allocation2], 14
        %v658 = vld [vmem:[%s657] ss:$49 sm:$0x3]
        %s659 = scalar_lea.vmem [#allocation2], 15
        %v660 = vld [vmem:[%s659] ss:$49 sm:$0x3]
        %s661 = scalar_lea.vmem [#allocation2], 16
        %v662 = vld [vmem:[%s661] ss:$49 sm:$0x3]
        %s663 = scalar_lea.vmem [#allocation2], 17
        %v664 = vld [vmem:[%s663] ss:$49 sm:$0x3]
        %s665 = scalar_lea.vmem [#allocation2], 21
        %v666 = vld [vmem:[%s665] ss:$49 sm:$0x3]
        %s667 = scalar_lea.vmem [#allocation2], 22
        %v668 = vld [vmem:[%s667] ss:$49 sm:$0x3]
        %s669 = scalar_lea.vmem [#allocation2], 23
        %v670 = vld [vmem:[%s669] ss:$49 sm:$0x3]
        %s671 = scalar_lea.vmem [#allocation2], 24
        %v672 = vld [vmem:[%s671] ss:$49 sm:$0x3]
        %674 = vrot.lane.b32.xlu0 %v644, 32
        %v675 = vpop.permute.xlu0 %674
        %678 = vrot.lane.b32.xlu0 %v646, 64
        %v679 = vpop.permute.xlu0 %678
        %682 = vrot.lane.b32.xlu0 %v648, 96
        %v683 = vpop.permute.xlu0 %682
        %686 = vrot.lane.b32.xlu0 %v652, 32
        %v687 = vpop.permute.xlu0 %686
        %690 = vrot.lane.b32.xlu0 %v654, 64
        %v691 = vpop.permute.xlu0 %690
        %694 = vrot.lane.b32.xlu0 %v656, 96
        %v695 = vpop.permute.xlu0 %694
        %698 = vrot.lane.b32.xlu0 %v660, 32
        %v699 = vpop.permute.xlu0 %698
        %702 = vrot.lane.b32.xlu0 %v662, 64
        %v703 = vpop.permute.xlu0 %702
        %706 = vrot.lane.b32.xlu0 %v664, 96
        %v707 = vpop.permute.xlu0 %706
        %710 = vrot.lane.b32.xlu0 %v668, 32
        %v711 = vpop.permute.xlu0 %710
        %714 = vrot.lane.b32.xlu0 %v670, 64
        %v715 = vpop.permute.xlu0 %714
        %718 = vrot.lane.b32.xlu0 %v672, 96
        %v719 = vpop.permute.xlu0 %718
        %v721 = vsel %vm481, %v642, %v675
        %vm722 = vcmask 523264
        %v723 = vsel %vm722, %v721, %v679
        %vm724 = vcmask 785408
        %v725 = vsel %vm724, %v723, %v683
        %v726 = vsel %vm481, %v650, %v687
        %v727 = vsel %vm722, %v726, %v691
        %v728 = vsel %vm724, %v727, %v695
        %v729 = vsel %vm481, %v658, %v699
        %v730 = vsel %vm722, %v729, %v703
        %v731 = vsel %vm724, %v730, %v707
        %v732 = vsel %vm481, %v666, %v711
        %v733 = vsel %vm722, %v732, %v715
        %v734 = vsel %vm724, %v733, %v719
        %v735 = vld [vmem:[%s3] sm:$0xff]
        %v736 = vld [vmem:[%s3 + $0x8] sm:$0xff]
        %v737 = vld [vmem:[%s3 + $0x10] sm:$0xff]
        %v738 = vld [vmem:[%s3 + $0x18] sm:$0xff]
        %v739 = vld [vmem:[%s3 + $0x20] sm:$0xff]
        %v740 = vld [vmem:[%s3 + $0x28] sm:$0xff]
        %v741 = vld [vmem:[%s3 + $0x30] sm:$0xff]
        %v742 = vld [vmem:[%s3 + $0x38] sm:$0xff]
        %v743 = vld [vmem:[%s3 + $0x40] sm:$0xff]
        %v744 = vld [vmem:[%s3 + $0x48] sm:$0xff]
        %v745 = vld [vmem:[%s3 + $0x50] sm:$0xff]
        %v746 = vld [vmem:[%s3 + $0x58] sm:$0xff]
        %v747 = vld [vmem:[%s3 + $0x60] sm:$0xff]
        %v748 = vld [vmem:[%s3 + $0x68] sm:$0xff]
        %v749 = vld [vmem:[%s3 + $0x70] sm:$0xff]
        %v750 = vld [vmem:[%s3 + $0x78] sm:$0xff]
        %v751 = vld [vmem:[%s3 + $0x80] sm:$0xff]
        %v752 = vld [vmem:[%s3 + $0x88] sm:$0xff]
        %v753 = vld [vmem:[%s3 + $0x90] sm:$0xff]
        %v754 = vld [vmem:[%s3 + $0x98] sm:$0xff]
        %v755 = vld [vmem:[%s3 + $0xa0] sm:$0xff]
        %v756 = vld [vmem:[%s3 + $0xa8] sm:$0xff]
        %v757 = vld [vmem:[%s3 + $0xb0] sm:$0xff]
        %v758 = vld [vmem:[%s3 + $0xb8] sm:$0xff]
        %v759 = vld [vmem:[%s3 + $0xc0] sm:$0xff]
        %v760 = vld [vmem:[%s3 + $0xc8] sm:$0xff]
        %v761 = vld [vmem:[%s3 + $0xd0] sm:$0xff]
        %v762 = vld [vmem:[%s3 + $0xd8] sm:$0xff]
        %v763 = vld [vmem:[%s3 + $0xe0] sm:$0xff]
        %v764 = vld [vmem:[%s3 + $0xe8] sm:$0xff]
        %v765 = vld [vmem:[%s3 + $0xf0] sm:$0xff]
        %v766 = vld [vmem:[%s3 + $0xf8] sm:$0xff]
        %v767 = vld [vmem:[%s3 + $0x100] sm:$0xff]
        %v768 = vld [vmem:[%s3 + $0x108] sm:$0xff]
        %v769 = vld [vmem:[%s3 + $0x110] sm:$0xff]
        %v770 = vld [vmem:[%s3 + $0x118] sm:$0xff]
        %v771 = vld [vmem:[%s3 + $0x120] sm:$0xff]
        %v772 = vld [vmem:[%s3 + $0x128] sm:$0xff]
        %v773 = vld [vmem:[%s3 + $0x130] sm:$0xff]
        %v774 = vld [vmem:[%s3 + $0x138] sm:$0xff]
        %v775 = vld [vmem:[%s3 + $0x140] sm:$0xff]
        %v776 = vld [vmem:[%s3 + $0x148] sm:$0xff]
        %v777 = vld [vmem:[%s3 + $0x150] sm:$0xff]
        %v778 = vld [vmem:[%s3 + $0x158] sm:$0xff]
        %v779 = vld [vmem:[%s3 + $0x160] sm:$0xff]
        %v780 = vld [vmem:[%s3 + $0x168] sm:$0xff]
        %v781 = vld [vmem:[%s3 + $0x170] sm:$0xff]
        %v782 = vld [vmem:[%s3 + $0x178] sm:$0xff]
        %v783 = vld [vmem:[%s3 + $0x180] sm:$0xff]
        %v784 = vld [vmem:[%s3 + $0x188] sm:$0xff]
        %v785 = vld [vmem:[%s3 + $0x190] sm:$0xff]
        %v786 = vld [vmem:[%s3 + $0x198] sm:$0xff]
        %v787 = vld [vmem:[%s3 + $0x1a0] sm:$0xff]
        %v788 = vld [vmem:[%s3 + $0x1a8] sm:$0xff]
        %v789 = vld [vmem:[%s3 + $0x1b0] sm:$0xff]
        %v790 = vld [vmem:[%s3 + $0x1b8] sm:$0xff]
        %v791 = vld [vmem:[%s3 + $0x1c0] sm:$0xff]
        %v792 = vld [vmem:[%s3 + $0x1c8] sm:$0xff]
        %v793 = vld [vmem:[%s3 + $0x1d0] sm:$0xff]
        %v794 = vld [vmem:[%s3 + $0x1d8] sm:$0xff]
        %v795 = vld [vmem:[%s3 + $0x1e0] sm:$0xff]
        %v796 = vld [vmem:[%s3 + $0x1e8] sm:$0xff]
        %v797 = vld [vmem:[%s3 + $0x1f0] sm:$0xff]
        %v798 = vld [vmem:[%s3 + $0x1f8] sm:$0xff]
        %v799 = vld [vmem:[%s4] sm:$0x1]
        %v801 = vlaneseq
        %v802 = vshrl.u32 %v801, 7
        %v803 = vsub.s32 0, %v802
        %v804 = vrot.slane %v799, %v803
        %806 = vmatprep.subr.mxu0 0.0
        %807 = vmatpush1.msra.mxu0 %v735
        %808 = vmatprep.subr.mxu0 0.0
        %809 = vmatpush1.msra.mxu0 %v736
        %810 = vmatprep.subr.mxu0 0.0
        %811 = vmatpush1.msra.mxu0 %v737
        %812 = vmatprep.subr.mxu0 0.0
        %813 = vmatpush1.msra.mxu0 %v738
        %814 = vmatprep.subr.mxu0 0.0
        %815 = vmatpush1.msra.mxu0 %v739
        %816 = vmatprep.subr.mxu0 0.0
        %817 = vmatpush1.msra.mxu0 %v740
        %818 = vmatprep.subr.mxu0 0.0
        %819 = vmatpush1.msra.mxu0 %v741
        %820 = vmatprep.subr.mxu0 0.0
        %821 = vmatpush1.msra.mxu0 %v742
        %822 = vmatprep.subr.mxu0 0.0
        %823 = vmatpush1.msra.mxu0 %v743
        %824 = vmatprep.subr.mxu0 0.0
        %825 = vmatpush1.msra.mxu0 %v744
        %826 = vmatprep.subr.mxu0 0.0
        %827 = vmatpush1.msra.mxu0 %v745
        %828 = vmatprep.subr.mxu0 0.0
        %829 = vmatpush1.msra.mxu0 %v746
        %830 = vmatprep.subr.mxu0 0.0
        %831 = vmatpush1.msra.mxu0 %v747
        %832 = vmatprep.subr.mxu0 0.0
        %833 = vmatpush1.msra.mxu0 %v748
        %834 = vmatprep.subr.mxu0 0.0
        %835 = vmatpush1.msra.mxu0 %v749
        %836 = vmatprep.subr.mxu0 0.0
        %837 = vmatpush1.msra.mxu0 %v750
        %838 = vmatprep.subr.mxu0 0.0
        %839 = vmatpush1.msra.mxu0 %v751
        %840 = vmatprep.subr.mxu0 0.0
        %841 = vmatpush1.msra.mxu0 %v752
        %842 = vmatprep.subr.mxu0 0.0
        %843 = vmatpush1.msra.mxu0 %v753
        %844 = vmatprep.subr.mxu0 0.0
        %845 = vmatpush1.msra.mxu0 %v754
        %846 = vmatprep.subr.mxu0 0.0
        %847 = vmatpush1.msra.mxu0 %v755
        %848 = vmatprep.subr.mxu0 0.0
        %849 = vmatpush1.msra.mxu0 %v756
        %850 = vmatprep.subr.mxu0 0.0
        %851 = vmatpush1.msra.mxu0 %v757
        %852 = vmatprep.subr.mxu0 0.0
        %853 = vmatpush1.msra.mxu0 %v758
        %854 = vmatprep.subr.mxu0 0.0
        %855 = vmatpush1.msra.mxu0 %v759
        %856 = vmatprep.subr.mxu0 0.0
        %857 = vmatpush1.msra.mxu0 %v760
        %858 = vmatprep.subr.mxu0 0.0
        %859 = vmatpush1.msra.mxu0 %v761
        %860 = vmatprep.subr.mxu0 0.0
        %861 = vmatpush1.msra.mxu0 %v762
        %862 = vmatprep.subr.mxu0 0.0
        %863 = vmatpush1.msra.mxu0 %v763
        %864 = vmatprep.subr.mxu0 0.0
        %865 = vmatpush1.msra.mxu0 %v764
        %866 = vmatprep.subr.mxu0 0.0
        %867 = vmatpush1.msra.mxu0 %v765
        %868 = vmatprep.subr.mxu0 0.0
        %869 = vmatpush1.msra.mxu0 %v766
        %870 = vmatprep.mubr.f32.mxu0 %v728
        %871 = vmatmul.mubr.f32.gmra.mrb[0].mxu0 %v725
        %v872 = vpop.f32.mrb[0].mxu0
        %v873 = vadd.f32 %v804, %v872
        %v874 = vpop.f32.mrb[0].mxu0
        %875 = vdwg.mxu0
        %876 = vmatprep.subr.mxu0 0.0
        %877 = vmatpush1.msra.mxu0 %v767
        %878 = vmatprep.subr.mxu0 0.0
        %879 = vmatpush1.msra.mxu0 %v768
        %880 = vmatprep.subr.mxu0 0.0
        %881 = vmatpush1.msra.mxu0 %v769
        %882 = vmatprep.subr.mxu0 0.0
        %883 = vmatpush1.msra.mxu0 %v770
        %884 = vmatprep.subr.mxu0 0.0
        %885 = vmatpush1.msra.mxu0 %v771
        %886 = vmatprep.subr.mxu0 0.0
        %887 = vmatpush1.msra.mxu0 %v772
        %888 = vmatprep.subr.mxu0 0.0
        %889 = vmatpush1.msra.mxu0 %v773
        %890 = vmatprep.subr.mxu0 0.0
        %891 = vmatpush1.msra.mxu0 %v774
        %892 = vmatprep.subr.mxu0 0.0
        %893 = vmatpush1.msra.mxu0 %v775
        %894 = vmatprep.subr.mxu0 0.0
        %895 = vmatpush1.msra.mxu0 %v776
        %896 = vmatprep.subr.mxu0 0.0
        %897 = vmatpush1.msra.mxu0 %v777
        %898 = vmatprep.subr.mxu0 0.0
        %899 = vmatpush1.msra.mxu0 %v778
        %900 = vmatprep.subr.mxu0 0.0
        %901 = vmatpush1.msra.mxu0 %v779
        %902 = vmatprep.subr.mxu0 0.0
        %903 = vmatpush1.msra.mxu0 %v780
        %904 = vmatprep.subr.mxu0 0.0
        %905 = vmatpush1.msra.mxu0 %v781
        %906 = vmatprep.subr.mxu0 0.0
        %907 = vmatpush1.msra.mxu0 %v782
        %908 = vmatprep.subr.mxu0 0.0
        %909 = vmatpush1.msra.mxu0 %v783
        %910 = vmatprep.subr.mxu0 0.0
        %911 = vmatpush1.msra.mxu0 %v784
        %912 = vmatprep.subr.mxu0 0.0
        %913 = vmatpush1.msra.mxu0 %v785
        %914 = vmatprep.subr.mxu0 0.0
        %915 = vmatpush1.msra.mxu0 %v786
        %916 = vmatprep.subr.mxu0 0.0
        %917 = vmatpush1.msra.mxu0 %v787
        %918 = vmatprep.subr.mxu0 0.0
        %919 = vmatpush1.msra.mxu0 %v788
        %920 = vmatprep.subr.mxu0 0.0
        %921 = vmatpush1.msra.mxu0 %v789
        %922 = vmatprep.subr.mxu0 0.0
        %923 = vmatpush1.msra.mxu0 %v790
        %924 = vmatprep.subr.mxu0 0.0
        %925 = vmatpush1.msra.mxu0 %v791
        %926 = vmatprep.subr.mxu0 0.0
        %927 = vmatpush1.msra.mxu0 %v792
        %928 = vmatprep.subr.mxu0 0.0
        %929 = vmatpush1.msra.mxu0 %v793
        %930 = vmatprep.subr.mxu0 0.0
        %931 = vmatpush1.msra.mxu0 %v794
        %932 = vmatprep.subr.mxu0 0.0
        %933 = vmatpush1.msra.mxu0 %v795
        %934 = vmatprep.subr.mxu0 0.0
        %935 = vmatpush1.msra.mxu0 %v796
        %936 = vmatprep.subr.mxu0 0.0
        %937 = vmatpush1.msra.mxu0 %v797
        %938 = vmatprep.subr.mxu0 0.0
        %939 = vmatpush1.msra.mxu0 %v798
        %940 = vmatprep.mubr.f32.mxu0 %v734
        %941 = vmatmul.mubr.f32.gmra.mrb[0].mxu0 %v731
        %v942 = vpop.f32.mrb[0].mxu0
        %v943 = vadd.f32 %v873, %v942
        %v944 = vpop.f32.mrb[0].mxu0
        %945 = vdwg.mxu0
        %v946 = vmax.f32 %v943, 0.0
        %vm947 = vcmask 517120
        %948 = vst.msk [vmem:[#allocation3] sm:$0x3] %vm947, %v946
        %v949 = vld [vmem:[%s645] ss:$49 sm:$0x3]
        %v950 = vld [vmem:[%s647] ss:$49 sm:$0x3]
        %s951 = scalar_lea.vmem [#allocation2], 4
        %v952 = vld [vmem:[%s951] ss:$49 sm:$0x3]
        %s953 = scalar_lea.vmem [#allocation2], 5
        %v954 = vld [vmem:[%s953] ss:$49 sm:$0x3]
        %v955 = vld [vmem:[%s653] ss:$49 sm:$0x3]
        %v956 = vld [vmem:[%s655] ss:$49 sm:$0x3]
        %s957 = scalar_lea.vmem [#allocation2], 11
        %v958 = vld [vmem:[%s957] ss:$49 sm:$0x3]
        %s959 = scalar_lea.vmem [#allocation2], 12
        %v960 = vld [vmem:[%s959] ss:$49 sm:$0x3]
        %v961 = vld [vmem:[%s661] ss:$49 sm:$0x3]
        %v962 = vld [vmem:[%s663] ss:$49 sm:$0x3]
        %s963 = scalar_lea.vmem [#allocation2], 18
        %v964 = vld [vmem:[%s963] ss:$49 sm:$0x3]
        %s965 = scalar_lea.vmem [#allocation2], 19
        %v966 = vld [vmem:[%s965] ss:$49 sm:$0x3]
        %v967 = vld [vmem:[%s669] ss:$49 sm:$0x3]
        %v968 = vld [vmem:[%s671] ss:$49 sm:$0x3]
        %s969 = scalar_lea.vmem [#allocation2], 25
        %v970 = vld [vmem:[%s969] ss:$49 sm:$0x3]
        %s971 = scalar_lea.vmem [#allocation2], 26
        %v972 = vld [vmem:[%s971] ss:$49 sm:$0x3]
        %974 = vrot.lane.b32.xlu0 %v950, 32
        %v975 = vpop.permute.xlu0 %974
        %978 = vrot.lane.b32.xlu0 %v952, 64
        %v979 = vpop.permute.xlu0 %978
        %982 = vrot.lane.b32.xlu0 %v954, 96
        %v983 = vpop.permute.xlu0 %982
        %986 = vrot.lane.b32.xlu0 %v956, 32
        %v987 = vpop.permute.xlu0 %986
        %990 = vrot.lane.b32.xlu0 %v958, 64
        %v991 = vpop.permute.xlu0 %990
        %994 = vrot.lane.b32.xlu0 %v960, 96
        %v995 = vpop.permute.xlu0 %994
        %998 = vrot.lane.b32.xlu0 %v962, 32
        %v999 = vpop.permute.xlu0 %998
        %1002 = vrot.lane.b32.xlu0 %v964, 64
        %v1003 = vpop.permute.xlu0 %1002
        %1006 = vrot.lane.b32.xlu0 %v966, 96
        %v1007 = vpop.permute.xlu0 %1006
        %1010 = vrot.lane.b32.xlu0 %v968, 32
        %v1011 = vpop.permute.xlu0 %1010
        %1014 = vrot.lane.b32.xlu0 %v970, 64
        %v1015 = vpop.permute.xlu0 %1014
        %1018 = vrot.lane.b32.xlu0 %v972, 96
        %v1019 = vpop.permute.xlu0 %1018
        %v1021 = vsel %vm481, %v949, %v975
        %v1022 = vsel %vm722, %v1021, %v979
        %v1023 = vsel %vm724, %v1022, %v983
        %v1024 = vsel %vm481, %v955, %v987
        %v1025 = vsel %vm722, %v1024, %v991
        %v1026 = vsel %vm724, %v1025, %v995
        %v1027 = vsel %vm481, %v961, %v999
        %v1028 = vsel %vm722, %v1027, %v1003
        %v1029 = vsel %vm724, %v1028, %v1007
        %v1030 = vsel %vm481, %v967, %v1011
        %v1031 = vsel %vm722, %v1030, %v1015
        %v1032 = vsel %vm724, %v1031, %v1019
        %v1033 = vld [vmem:[%s3] sm:$0xff]
        %v1034 = vld [vmem:[%s3 + $0x8] sm:$0xff]
        %v1035 = vld [vmem:[%s3 + $0x10] sm:$0xff]
        %v1036 = vld [vmem:[%s3 + $0x18] sm:$0xff]
        %v1037 = vld [vmem:[%s3 + $0x20] sm:$0xff]
        %v1038 = vld [vmem:[%s3 + $0x28] sm:$0xff]
        %v1039 = vld [vmem:[%s3 + $0x30] sm:$0xff]
        %v1040 = vld [vmem:[%s3 + $0x38] sm:$0xff]
        %v1041 = vld [vmem:[%s3 + $0x40] sm:$0xff]
        %v1042 = vld [vmem:[%s3 + $0x48] sm:$0xff]
        %v1043 = vld [vmem:[%s3 + $0x50] sm:$0xff]
        %v1044 = vld [vmem:[%s3 + $0x58] sm:$0xff]
        %v1045 = vld [vmem:[%s3 + $0x60] sm:$0xff]
        %v1046 = vld [vmem:[%s3 + $0x68] sm:$0xff]
        %v1047 = vld [vmem:[%s3 + $0x70] sm:$0xff]
        %v1048 = vld [vmem:[%s3 + $0x78] sm:$0xff]
        %v1049 = vld [vmem:[%s3 + $0x80] sm:$0xff]
        %v1050 = vld [vmem:[%s3 + $0x88] sm:$0xff]
        %v1051 = vld [vmem:[%s3 + $0x90] sm:$0xff]
        %v1052 = vld [vmem:[%s3 + $0x98] sm:$0xff]
        %v1053 = vld [vmem:[%s3 + $0xa0] sm:$0xff]
        %v1054 = vld [vmem:[%s3 + $0xa8] sm:$0xff]
        %v1055 = vld [vmem:[%s3 + $0xb0] sm:$0xff]
        %v1056 = vld [vmem:[%s3 + $0xb8] sm:$0xff]
        %v1057 = vld [vmem:[%s3 + $0xc0] sm:$0xff]
        %v1058 = vld [vmem:[%s3 + $0xc8] sm:$0xff]
        %v1059 = vld [vmem:[%s3 + $0xd0] sm:$0xff]
        %v1060 = vld [vmem:[%s3 + $0xd8] sm:$0xff]
        %v1061 = vld [vmem:[%s3 + $0xe0] sm:$0xff]
        %v1062 = vld [vmem:[%s3 + $0xe8] sm:$0xff]
        %v1063 = vld [vmem:[%s3 + $0xf0] sm:$0xff]
        %v1064 = vld [vmem:[%s3 + $0xf8] sm:$0xff]
        %v1065 = vld [vmem:[%s3 + $0x100] sm:$0xff]
        %v1066 = vld [vmem:[%s3 + $0x108] sm:$0xff]
        %v1067 = vld [vmem:[%s3 + $0x110] sm:$0xff]
        %v1068 = vld [vmem:[%s3 + $0x118] sm:$0xff]
        %v1069 = vld [vmem:[%s3 + $0x120] sm:$0xff]
        %v1070 = vld [vmem:[%s3 + $0x128] sm:$0xff]
        %v1071 = vld [vmem:[%s3 + $0x130] sm:$0xff]
        %v1072 = vld [vmem:[%s3 + $0x138] sm:$0xff]
        %v1073 = vld [vmem:[%s3 + $0x140] sm:$0xff]
        %v1074 = vld [vmem:[%s3 + $0x148] sm:$0xff]
        %v1075 = vld [vmem:[%s3 + $0x150] sm:$0xff]
        %v1076 = vld [vmem:[%s3 + $0x158] sm:$0xff]
        %v1077 = vld [vmem:[%s3 + $0x160] sm:$0xff]
        %v1078 = vld [vmem:[%s3 + $0x168] sm:$0xff]
        %v1079 = vld [vmem:[%s3 + $0x170] sm:$0xff]
        %v1080 = vld [vmem:[%s3 + $0x178] sm:$0xff]
        %v1081 = vld [vmem:[%s3 + $0x180] sm:$0xff]
        %v1082 = vld [vmem:[%s3 + $0x188] sm:$0xff]
        %v1083 = vld [vmem:[%s3 + $0x190] sm:$0xff]
        %v1084 = vld [vmem:[%s3 + $0x198] sm:$0xff]
        %v1085 = vld [vmem:[%s3 + $0x1a0] sm:$0xff]
        %v1086 = vld [vmem:[%s3 + $0x1a8] sm:$0xff]
        %v1087 = vld [vmem:[%s3 + $0x1b0] sm:$0xff]
        %v1088 = vld [vmem:[%s3 + $0x1b8] sm:$0xff]
        %v1089 = vld [vmem:[%s3 + $0x1c0] sm:$0xff]
        %v1090 = vld [vmem:[%s3 + $0x1c8] sm:$0xff]
        %v1091 = vld [vmem:[%s3 + $0x1d0] sm:$0xff]
        %v1092 = vld [vmem:[%s3 + $0x1d8] sm:$0xff]
        %v1093 = vld [vmem:[%s3 + $0x1e0] sm:$0xff]
        %v1094 = vld [vmem:[%s3 + $0x1e8] sm:$0xff]
        %v1095 = vld [vmem:[%s3 + $0x1f0] sm:$0xff]
        %v1096 = vld [vmem:[%s3 + $0x1f8] sm:$0xff]
        %v1097 = vld [vmem:[%s4] sm:$0x1]
        %v1099 = vlaneseq
        %v1100 = vshrl.u32 %v1099, 7
        %v1101 = vsub.s32 0, %v1100
        %v1102 = vrot.slane %v1097, %v1101
        %1104 = vmatprep.subr.mxu0 0.0
        %1105 = vmatpush1.msra.mxu0 %v1033
        %1106 = vmatprep.subr.mxu0 0.0
        %1107 = vmatpush1.msra.mxu0 %v1034
        %1108 = vmatprep.subr.mxu0 0.0
        %1109 = vmatpush1.msra.mxu0 %v1035
        %1110 = vmatprep.subr.mxu0 0.0
        %1111 = vmatpush1.msra.mxu0 %v1036
        %1112 = vmatprep.subr.mxu0 0.0
        %1113 = vmatpush1.msra.mxu0 %v1037
        %1114 = vmatprep.subr.mxu0 0.0
        %1115 = vmatpush1.msra.mxu0 %v1038
        %1116 = vmatprep.subr.mxu0 0.0
        %1117 = vmatpush1.msra.mxu0 %v1039
        %1118 = vmatprep.subr.mxu0 0.0
        %1119 = vmatpush1.msra.mxu0 %v1040
        %1120 = vmatprep.subr.mxu0 0.0
        %1121 = vmatpush1.msra.mxu0 %v1041
        %1122 = vmatprep.subr.mxu0 0.0
        %1123 = vmatpush1.msra.mxu0 %v1042
        %1124 = vmatprep.subr.mxu0 0.0
        %1125 = vmatpush1.msra.mxu0 %v1043
        %1126 = vmatprep.subr.mxu0 0.0
        %1127 = vmatpush1.msra.mxu0 %v1044
        %1128 = vmatprep.subr.mxu0 0.0
        %1129 = vmatpush1.msra.mxu0 %v1045
        %1130 = vmatprep.subr.mxu0 0.0
        %1131 = vmatpush1.msra.mxu0 %v1046
        %1132 = vmatprep.subr.mxu0 0.0
        %1133 = vmatpush1.msra.mxu0 %v1047
        %1134 = vmatprep.subr.mxu0 0.0
        %1135 = vmatpush1.msra.mxu0 %v1048
        %1136 = vmatprep.subr.mxu0 0.0
        %1137 = vmatpush1.msra.mxu0 %v1049
        %1138 = vmatprep.subr.mxu0 0.0
        %1139 = vmatpush1.msra.mxu0 %v1050
        %1140 = vmatprep.subr.mxu0 0.0
        %1141 = vmatpush1.msra.mxu0 %v1051
        %1142 = vmatprep.subr.mxu0 0.0
        %1143 = vmatpush1.msra.mxu0 %v1052
        %1144 = vmatprep.subr.mxu0 0.0
        %1145 = vmatpush1.msra.mxu0 %v1053
        %1146 = vmatprep.subr.mxu0 0.0
        %1147 = vmatpush1.msra.mxu0 %v1054
        %1148 = vmatprep.subr.mxu0 0.0
        %1149 = vmatpush1.msra.mxu0 %v1055
        %1150 = vmatprep.subr.mxu0 0.0
        %1151 = vmatpush1.msra.mxu0 %v1056
        %1152 = vmatprep.subr.mxu0 0.0
        %1153 = vmatpush1.msra.mxu0 %v1057
        %1154 = vmatprep.subr.mxu0 0.0
        %1155 = vmatpush1.msra.mxu0 %v1058
        %1156 = vmatprep.subr.mxu0 0.0
        %1157 = vmatpush1.msra.mxu0 %v1059
        %1158 = vmatprep.subr.mxu0 0.0
        %1159 = vmatpush1.msra.mxu0 %v1060
        %1160 = vmatprep.subr.mxu0 0.0
        %1161 = vmatpush1.msra.mxu0 %v1061
        %1162 = vmatprep.subr.mxu0 0.0
        %1163 = vmatpush1.msra.mxu0 %v1062
        %1164 = vmatprep.subr.mxu0 0.0
        %1165 = vmatpush1.msra.mxu0 %v1063
        %1166 = vmatprep.subr.mxu0 0.0
        %1167 = vmatpush1.msra.mxu0 %v1064
        %1168 = vmatprep.mubr.f32.mxu0 %v1026
        %1169 = vmatmul.mubr.f32.gmra.mrb[0].mxu0 %v1023
        %v1170 = vpop.f32.mrb[0].mxu0
        %v1171 = vadd.f32 %v1102, %v1170
        %v1172 = vpop.f32.mrb[0].mxu0
        %1173 = vdwg.mxu0
        %1174 = vmatprep.subr.mxu0 0.0
        %1175 = vmatpush1.msra.mxu0 %v1065
        %1176 = vmatprep.subr.mxu0 0.0
        %1177 = vmatpush1.msra.mxu0 %v1066
        %1178 = vmatprep.subr.mxu0 0.0
        %1179 = vmatpush1.msra.mxu0 %v1067
        %1180 = vmatprep.subr.mxu0 0.0
        %1181 = vmatpush1.msra.mxu0 %v1068
        %1182 = vmatprep.subr.mxu0 0.0
        %1183 = vmatpush1.msra.mxu0 %v1069
        %1184 = vmatprep.subr.mxu0 0.0
        %1185 = vmatpush1.msra.mxu0 %v1070
        %1186 = vmatprep.subr.mxu0 0.0
        %1187 = vmatpush1.msra.mxu0 %v1071
        %1188 = vmatprep.subr.mxu0 0.0
        %1189 = vmatpush1.msra.mxu0 %v1072
        %1190 = vmatprep.subr.mxu0 0.0
        %1191 = vmatpush1.msra.mxu0 %v1073
        %1192 = vmatprep.subr.mxu0 0.0
        %1193 = vmatpush1.msra.mxu0 %v1074
        %1194 = vmatprep.subr.mxu0 0.0
        %1195 = vmatpush1.msra.mxu0 %v1075
        %1196 = vmatprep.subr.mxu0 0.0
        %1197 = vmatpush1.msra.mxu0 %v1076
        %1198 = vmatprep.subr.mxu0 0.0
        %1199 = vmatpush1.msra.mxu0 %v1077
        %1200 = vmatprep.subr.mxu0 0.0
        %1201 = vmatpush1.msra.mxu0 %v1078
        %1202 = vmatprep.subr.mxu0 0.0
        %1203 = vmatpush1.msra.mxu0 %v1079
        %1204 = vmatprep.subr.mxu0 0.0
        %1205 = vmatpush1.msra.mxu0 %v1080
        %1206 = vmatprep.subr.mxu0 0.0
        %1207 = vmatpush1.msra.mxu0 %v1081
        %1208 = vmatprep.subr.mxu0 0.0
        %1209 = vmatpush1.msra.mxu0 %v1082
        %1210 = vmatprep.subr.mxu0 0.0
        %1211 = vmatpush1.msra.mxu0 %v1083
        %1212 = vmatprep.subr.mxu0 0.0
        %1213 = vmatpush1.msra.mxu0 %v1084
        %1214 = vmatprep.subr.mxu0 0.0
        %1215 = vmatpush1.msra.mxu0 %v1085
        %1216 = vmatprep.subr.mxu0 0.0
        %1217 = vmatpush1.msra.mxu0 %v1086
        %1218 = vmatprep.subr.mxu0 0.0
        %1219 = vmatpush1.msra.mxu0 %v1087
        %1220 = vmatprep.subr.mxu0 0.0
        %1221 = vmatpush1.msra.mxu0 %v1088
        %1222 = vmatprep.subr.mxu0 0.0
        %1223 = vmatpush1.msra.mxu0 %v1089
        %1224 = vmatprep.subr.mxu0 0.0
        %1225 = vmatpush1.msra.mxu0 %v1090
        %1226 = vmatprep.subr.mxu0 0.0
        %1227 = vmatpush1.msra.mxu0 %v1091
        %1228 = vmatprep.subr.mxu0 0.0
        %1229 = vmatpush1.msra.mxu0 %v1092
        %1230 = vmatprep.subr.mxu0 0.0
        %1231 = vmatpush1.msra.mxu0 %v1093
        %1232 = vmatprep.subr.mxu0 0.0
        %1233 = vmatpush1.msra.mxu0 %v1094
        %1234 = vmatprep.subr.mxu0 0.0
        %1235 = vmatpush1.msra.mxu0 %v1095
        %1236 = vmatprep.subr.mxu0 0.0
        %1237 = vmatpush1.msra.mxu0 %v1096
        %1238 = vmatprep.mubr.f32.mxu0 %v1032
        %1239 = vmatmul.mubr.f32.gmra.mrb[0].mxu0 %v1029
        %v1240 = vpop.f32.mrb[0].mxu0
        %v1241 = vadd.f32 %v1171, %v1240
        %v1242 = vpop.f32.mrb[0].mxu0
        %1243 = vdwg.mxu0
        %v1244 = vmax.f32 %v1241, 0.0
        %v1247 = vunpack.c.l.s4 1983009808
        %v1248 = vunpack.c.0.s8 %v1247
        %v1249 = vlaneseq
        %v1250 = vshrl.u32 %v1249, 7
        %v1251 = vsub.s32 %v1248, %v1250
        %v1252 = vrot.slane %v1244, %v1251
        %1253 = vrot.lane.b32.xlu0 %v1252, 64
        %v1254 = vpop.permute.xlu0 %1253
        %vm1256 = vcmask 1041920
        %1257 = vst.msk [vmem:[#allocation3] sm:$0x3] %vm1256, %v1254
        %v1258 = vld [vmem:[%s657] ss:$49 sm:$0x3]
        %v1259 = vld [vmem:[%s659] ss:$49 sm:$0x3]
        %v1260 = vld [vmem:[%s661] ss:$49 sm:$0x3]
        %v1261 = vld [vmem:[%s663] ss:$49 sm:$0x3]
        %v1262 = vld [vmem:[%s665] ss:$49 sm:$0x3]
        %v1263 = vld [vmem:[%s667] ss:$49 sm:$0x3]
        %v1264 = vld [vmem:[%s669] ss:$49 sm:$0x3]
        %v1265 = vld [vmem:[%s671] ss:$49 sm:$0x3]
        %s1266 = scalar_lea.vmem [#allocation2], 28
        %v1267 = vld [vmem:[%s1266] ss:$49 sm:$0x3]
        %s1268 = scalar_lea.vmem [#allocation2], 29
        %v1269 = vld [vmem:[%s1268] ss:$49 sm:$0x3]
        %s1270 = scalar_lea.vmem [#allocation2], 30
        %v1271 = vld [vmem:[%s1270] ss:$49 sm:$0x3]
        %s1272 = scalar_lea.vmem [#allocation2], 31
        %v1273 = vld [vmem:[%s1272] ss:$49 sm:$0x3]
        %s1274 = scalar_lea.vmem [#allocation2], 35
        %v1275 = vld [vmem:[%s1274] ss:$49 sm:$0x3]
        %s1276 = scalar_lea.vmem [#allocation2], 36
        %v1277 = vld [vmem:[%s1276] ss:$49 sm:$0x3]
        %s1278 = scalar_lea.vmem [#allocation2], 37
        %v1279 = vld [vmem:[%s1278] ss:$49 sm:$0x3]
        %s1280 = scalar_lea.vmem [#allocation2], 38
        %v1281 = vld [vmem:[%s1280] ss:$49 sm:$0x3]
        %1283 = vrot.lane.b32.xlu0 %v1259, 32
        %v1284 = vpop.permute.xlu0 %1283
        %1287 = vrot.lane.b32.xlu0 %v1260, 64
        %v1288 = vpop.permute.xlu0 %1287
        %1291 = vrot.lane.b32.xlu0 %v1261, 96
        %v1292 = vpop.permute.xlu0 %1291
        %1295 = vrot.lane.b32.xlu0 %v1263, 32
        %v1296 = vpop.permute.xlu0 %1295
        %1299 = vrot.lane.b32.xlu0 %v1264, 64
        %v1300 = vpop.permute.xlu0 %1299
        %1303 = vrot.lane.b32.xlu0 %v1265, 96
        %v1304 = vpop.permute.xlu0 %1303
        %1307 = vrot.lane.b32.xlu0 %v1269, 32
        %v1308 = vpop.permute.xlu0 %1307
        %1311 = vrot.lane.b32.xlu0 %v1271, 64
        %v1312 = vpop.permute.xlu0 %1311
        %1315 = vrot.lane.b32.xlu0 %v1273, 96
        %v1316 = vpop.permute.xlu0 %1315
        %1319 = vrot.lane.b32.xlu0 %v1277, 32
        %v1320 = vpop.permute.xlu0 %1319
        %1323 = vrot.lane.b32.xlu0 %v1279, 64
        %v1324 = vpop.permute.xlu0 %1323
        %1327 = vrot.lane.b32.xlu0 %v1281, 96
        %v1328 = vpop.permute.xlu0 %1327
        %v1330 = vsel %vm481, %v1258, %v1284
        %v1331 = vsel %vm722, %v1330, %v1288
        %v1332 = vsel %vm724, %v1331, %v1292
        %v1333 = vsel %vm481, %v1262, %v1296
        %v1334 = vsel %vm722, %v1333, %v1300
        %v1335 = vsel %vm724, %v1334, %v1304
        %v1336 = vsel %vm481, %v1267, %v1308
        %v1337 = vsel %vm722, %v1336, %v1312
        %v1338 = vsel %vm724, %v1337, %v1316
        %v1339 = vsel %vm481, %v1275, %v1320
        %v1340 = vsel %vm722, %v1339, %v1324
        %v1341 = vsel %vm724, %v1340, %v1328
        %v1342 = vld [vmem:[%s3] sm:$0xff]
        %v1343 = vld [vmem:[%s3 + $0x8] sm:$0xff]
        %v1344 = vld [vmem:[%s3 + $0x10] sm:$0xff]
        %v1345 = vld [vmem:[%s3 + $0x18] sm:$0xff]
        %v1346 = vld [vmem:[%s3 + $0x20] sm:$0xff]
        %v1347 = vld [vmem:[%s3 + $0x28] sm:$0xff]
        %v1348 = vld [vmem:[%s3 + $0x30] sm:$0xff]
        %v1349 = vld [vmem:[%s3 + $0x38] sm:$0xff]
        %v1350 = vld [vmem:[%s3 + $0x40] sm:$0xff]
        %v1351 = vld [vmem:[%s3 + $0x48] sm:$0xff]
        %v1352 = vld [vmem:[%s3 + $0x50] sm:$0xff]
        %v1353 = vld [vmem:[%s3 + $0x58] sm:$0xff]
        %v1354 = vld [vmem:[%s3 + $0x60] sm:$0xff]
        %v1355 = vld [vmem:[%s3 + $0x68] sm:$0xff]
        %v1356 = vld [vmem:[%s3 + $0x70] sm:$0xff]
        %v1357 = vld [vmem:[%s3 + $0x78] sm:$0xff]
        %v1358 = vld [vmem:[%s3 + $0x80] sm:$0xff]
        %v1359 = vld [vmem:[%s3 + $0x88] sm:$0xff]
        %v1360 = vld [vmem:[%s3 + $0x90] sm:$0xff]
        %v1361 = vld [vmem:[%s3 + $0x98] sm:$0xff]
        %v1362 = vld [vmem:[%s3 + $0xa0] sm:$0xff]
        %v1363 = vld [vmem:[%s3 + $0xa8] sm:$0xff]
        %v1364 = vld [vmem:[%s3 + $0xb0] sm:$0xff]
        %v1365 = vld [vmem:[%s3 + $0xb8] sm:$0xff]
        %v1366 = vld [vmem:[%s3 + $0xc0] sm:$0xff]
        %v1367 = vld [vmem:[%s3 + $0xc8] sm:$0xff]
        %v1368 = vld [vmem:[%s3 + $0xd0] sm:$0xff]
        %v1369 = vld [vmem:[%s3 + $0xd8] sm:$0xff]
        %v1370 = vld [vmem:[%s3 + $0xe0] sm:$0xff]
        %v1371 = vld [vmem:[%s3 + $0xe8] sm:$0xff]
        %v1372 = vld [vmem:[%s3 + $0xf0] sm:$0xff]
        %v1373 = vld [vmem:[%s3 + $0xf8] sm:$0xff]
        %v1374 = vld [vmem:[%s3 + $0x100] sm:$0xff]
        %v1375 = vld [vmem:[%s3 + $0x108] sm:$0xff]
        %v1376 = vld [vmem:[%s3 + $0x110] sm:$0xff]
        %v1377 = vld [vmem:[%s3 + $0x118] sm:$0xff]
        %v1378 = vld [vmem:[%s3 + $0x120] sm:$0xff]
        %v1379 = vld [vmem:[%s3 + $0x128] sm:$0xff]
        %v1380 = vld [vmem:[%s3 + $0x130] sm:$0xff]
        %v1381 = vld [vmem:[%s3 + $0x138] sm:$0xff]
        %v1382 = vld [vmem:[%s3 + $0x140] sm:$0xff]
        %v1383 = vld [vmem:[%s3 + $0x148] sm:$0xff]
        %v1384 = vld [vmem:[%s3 + $0x150] sm:$0xff]
        %v1385 = vld [vmem:[%s3 + $0x158] sm:$0xff]
        %v1386 = vld [vmem:[%s3 + $0x160] sm:$0xff]
        %v1387 = vld [vmem:[%s3 + $0x168] sm:$0xff]
        %v1388 = vld [vmem:[%s3 + $0x170] sm:$0xff]
        %v1389 = vld [vmem:[%s3 + $0x178] sm:$0xff]
        %v1390 = vld [vmem:[%s3 + $0x180] sm:$0xff]
        %v1391 = vld [vmem:[%s3 + $0x188] sm:$0xff]
        %v1392 = vld [vmem:[%s3 + $0x190] sm:$0xff]
        %v1393 = vld [vmem:[%s3 + $0x198] sm:$0xff]
        %v1394 = vld [vmem:[%s3 + $0x1a0] sm:$0xff]
        %v1395 = vld [vmem:[%s3 + $0x1a8] sm:$0xff]
        %v1396 = vld [vmem:[%s3 + $0x1b0] sm:$0xff]
        %v1397 = vld [vmem:[%s3 + $0x1b8] sm:$0xff]
        %v1398 = vld [vmem:[%s3 + $0x1c0] sm:$0xff]
        %v1399 = vld [vmem:[%s3 + $0x1c8] sm:$0xff]
        %v1400 = vld [vmem:[%s3 + $0x1d0] sm:$0xff]
        %v1401 = vld [vmem:[%s3 + $0x1d8] sm:$0xff]
        %v1402 = vld [vmem:[%s3 + $0x1e0] sm:$0xff]
        %v1403 = vld [vmem:[%s3 + $0x1e8] sm:$0xff]
        %v1404 = vld [vmem:[%s3 + $0x1f0] sm:$0xff]
        %v1405 = vld [vmem:[%s3 + $0x1f8] sm:$0xff]
        %v1406 = vld [vmem:[%s4] sm:$0x1]
        %v1408 = vlaneseq
        %v1409 = vshrl.u32 %v1408, 7
        %v1410 = vsub.s32 0, %v1409
        %v1411 = vrot.slane %v1406, %v1410
        %1413 = vmatprep.subr.mxu0 0.0
        %1414 = vmatpush1.msra.mxu0 %v1342
        %1415 = vmatprep.subr.mxu0 0.0
        %1416 = vmatpush1.msra.mxu0 %v1343
        %1417 = vmatprep.subr.mxu0 0.0
        %1418 = vmatpush1.msra.mxu0 %v1344
        %1419 = vmatprep.subr.mxu0 0.0
        %1420 = vmatpush1.msra.mxu0 %v1345
        %1421 = vmatprep.subr.mxu0 0.0
        %1422 = vmatpush1.msra.mxu0 %v1346
        %1423 = vmatprep.subr.mxu0 0.0
        %1424 = vmatpush1.msra.mxu0 %v1347
        %1425 = vmatprep.subr.mxu0 0.0
        %1426 = vmatpush1.msra.mxu0 %v1348
        %1427 = vmatprep.subr.mxu0 0.0
        %1428 = vmatpush1.msra.mxu0 %v1349
        %1429 = vmatprep.subr.mxu0 0.0
        %1430 = vmatpush1.msra.mxu0 %v1350
        %1431 = vmatprep.subr.mxu0 0.0
        %1432 = vmatpush1.msra.mxu0 %v1351
        %1433 = vmatprep.subr.mxu0 0.0
        %1434 = vmatpush1.msra.mxu0 %v1352
        %1435 = vmatprep.subr.mxu0 0.0
        %1436 = vmatpush1.msra.mxu0 %v1353
        %1437 = vmatprep.subr.mxu0 0.0
        %1438 = vmatpush1.msra.mxu0 %v1354
        %1439 = vmatprep.subr.mxu0 0.0
        %1440 = vmatpush1.msra.mxu0 %v1355
        %1441 = vmatprep.subr.mxu0 0.0
        %1442 = vmatpush1.msra.mxu0 %v1356
        %1443 = vmatprep.subr.mxu0 0.0
        %1444 = vmatpush1.msra.mxu0 %v1357
        %1445 = vmatprep.subr.mxu0 0.0
        %1446 = vmatpush1.msra.mxu0 %v1358
        %1447 = vmatprep.subr.mxu0 0.0
        %1448 = vmatpush1.msra.mxu0 %v1359
        %1449 = vmatprep.subr.mxu0 0.0
        %1450 = vmatpush1.msra.mxu0 %v1360
        %1451 = vmatprep.subr.mxu0 0.0
        %1452 = vmatpush1.msra.mxu0 %v1361
        %1453 = vmatprep.subr.mxu0 0.0
        %1454 = vmatpush1.msra.mxu0 %v1362
        %1455 = vmatprep.subr.mxu0 0.0
        %1456 = vmatpush1.msra.mxu0 %v1363
        %1457 = vmatprep.subr.mxu0 0.0
        %1458 = vmatpush1.msra.mxu0 %v1364
        %1459 = vmatprep.subr.mxu0 0.0
        %1460 = vmatpush1.msra.mxu0 %v1365
        %1461 = vmatprep.subr.mxu0 0.0
        %1462 = vmatpush1.msra.mxu0 %v1366
        %1463 = vmatprep.subr.mxu0 0.0
        %1464 = vmatpush1.msra.mxu0 %v1367
        %1465 = vmatprep.subr.mxu0 0.0
        %1466 = vmatpush1.msra.mxu0 %v1368
        %1467 = vmatprep.subr.mxu0 0.0
        %1468 = vmatpush1.msra.mxu0 %v1369
        %1469 = vmatprep.subr.mxu0 0.0
        %1470 = vmatpush1.msra.mxu0 %v1370
        %1471 = vmatprep.subr.mxu0 0.0
        %1472 = vmatpush1.msra.mxu0 %v1371
        %1473 = vmatprep.subr.mxu0 0.0
        %1474 = vmatpush1.msra.mxu0 %v1372
        %1475 = vmatprep.subr.mxu0 0.0
        %1476 = vmatpush1.msra.mxu0 %v1373
        %1477 = vmatprep.mubr.f32.mxu0 %v1335
        %1478 = vmatmul.mubr.f32.gmra.mrb[0].mxu0 %v1332
        %v1479 = vpop.f32.mrb[0].mxu0
        %v1480 = vadd.f32 %v1411, %v1479
        %v1481 = vpop.f32.mrb[0].mxu0
        %1482 = vdwg.mxu0
        %1483 = vmatprep.subr.mxu0 0.0
        %1484 = vmatpush1.msra.mxu0 %v1374
        %1485 = vmatprep.subr.mxu0 0.0
        %1486 = vmatpush1.msra.mxu0 %v1375
        %1487 = vmatprep.subr.mxu0 0.0
        %1488 = vmatpush1.msra.mxu0 %v1376
        %1489 = vmatprep.subr.mxu0 0.0
        %1490 = vmatpush1.msra.mxu0 %v1377
        %1491 = vmatprep.subr.mxu0 0.0
        %1492 = vmatpush1.msra.mxu0 %v1378
        %1493 = vmatprep.subr.mxu0 0.0
        %1494 = vmatpush1.msra.mxu0 %v1379
        %1495 = vmatprep.subr.mxu0 0.0
        %1496 = vmatpush1.msra.mxu0 %v1380
        %1497 = vmatprep.subr.mxu0 0.0
        %1498 = vmatpush1.msra.mxu0 %v1381
        %1499 = vmatprep.subr.mxu0 0.0
        %1500 = vmatpush1.msra.mxu0 %v1382
        %1501 = vmatprep.subr.mxu0 0.0
        %1502 = vmatpush1.msra.mxu0 %v1383
        %1503 = vmatprep.subr.mxu0 0.0
        %1504 = vmatpush1.msra.mxu0 %v1384
        %1505 = vmatprep.subr.mxu0 0.0
        %1506 = vmatpush1.msra.mxu0 %v1385
        %1507 = vmatprep.subr.mxu0 0.0
        %1508 = vmatpush1.msra.mxu0 %v1386
        %1509 = vmatprep.subr.mxu0 0.0
        %1510 = vmatpush1.msra.mxu0 %v1387
        %1511 = vmatprep.subr.mxu0 0.0
        %1512 = vmatpush1.msra.mxu0 %v1388
        %1513 = vmatprep.subr.mxu0 0.0
        %1514 = vmatpush1.msra.mxu0 %v1389
        %1515 = vmatprep.subr.mxu0 0.0
        %1516 = vmatpush1.msra.mxu0 %v1390
        %1517 = vmatprep.subr.mxu0 0.0
        %1518 = vmatpush1.msra.mxu0 %v1391
        %1519 = vmatprep.subr.mxu0 0.0
        %1520 = vmatpush1.msra.mxu0 %v1392
        %1521 = vmatprep.subr.mxu0 0.0
        %1522 = vmatpush1.msra.mxu0 %v1393
        %1523 = vmatprep.subr.mxu0 0.0
        %1524 = vmatpush1.msra.mxu0 %v1394
        %1525 = vmatprep.subr.mxu0 0.0
        %1526 = vmatpush1.msra.mxu0 %v1395
        %1527 = vmatprep.subr.mxu0 0.0
        %1528 = vmatpush1.msra.mxu0 %v1396
        %1529 = vmatprep.subr.mxu0 0.0
        %1530 = vmatpush1.msra.mxu0 %v1397
        %1531 = vmatprep.subr.mxu0 0.0
        %1532 = vmatpush1.msra.mxu0 %v1398
        %1533 = vmatprep.subr.mxu0 0.0
        %1534 = vmatpush1.msra.mxu0 %v1399
        %1535 = vmatprep.subr.mxu0 0.0
        %1536 = vmatpush1.msra.mxu0 %v1400
        %1537 = vmatprep.subr.mxu0 0.0
        %1538 = vmatpush1.msra.mxu0 %v1401
        %1539 = vmatprep.subr.mxu0 0.0
        %1540 = vmatpush1.msra.mxu0 %v1402
        %1541 = vmatprep.subr.mxu0 0.0
        %1542 = vmatpush1.msra.mxu0 %v1403
        %1543 = vmatprep.subr.mxu0 0.0
        %1544 = vmatpush1.msra.mxu0 %v1404
        %1545 = vmatprep.subr.mxu0 0.0
        %1546 = vmatpush1.msra.mxu0 %v1405
        %1547 = vmatprep.mubr.f32.mxu0 %v1341
        %1548 = vmatmul.mubr.f32.gmra.mrb[0].mxu0 %v1338
        %v1549 = vpop.f32.mrb[0].mxu0
        %v1550 = vadd.f32 %v1480, %v1549
        %v1551 = vpop.f32.mrb[0].mxu0
        %1552 = vdwg.mxu0
        %v1553 = vmax.f32 %v1550, 0.0
        %1554 = vst.msk [vmem:[#allocation3 + $0x2] sm:$0x3] %vm947, %v1553
        %v1555 = vld [vmem:[%s661] ss:$49 sm:$0x3]
        %v1556 = vld [vmem:[%s663] ss:$49 sm:$0x3]
        %v1557 = vld [vmem:[%s963] ss:$49 sm:$0x3]
        %v1558 = vld [vmem:[%s965] ss:$49 sm:$0x3]
        %v1559 = vld [vmem:[%s669] ss:$49 sm:$0x3]
        %v1560 = vld [vmem:[%s671] ss:$49 sm:$0x3]
        %v1561 = vld [vmem:[%s969] ss:$49 sm:$0x3]
        %v1562 = vld [vmem:[%s971] ss:$49 sm:$0x3]
        %v1563 = vld [vmem:[%s1270] ss:$49 sm:$0x3]
        %v1564 = vld [vmem:[%s1272] ss:$49 sm:$0x3]
        %s1565 = scalar_lea.vmem [#allocation2], 32
        %v1566 = vld [vmem:[%s1565] ss:$49 sm:$0x3]
        %s1567 = scalar_lea.vmem [#allocation2], 33
        %v1568 = vld [vmem:[%s1567] ss:$49 sm:$0x3]
        %v1569 = vld [vmem:[%s1278] ss:$49 sm:$0x3]
        %v1570 = vld [vmem:[%s1280] ss:$49 sm:$0x3]
        %s1571 = scalar_lea.vmem [#allocation2], 39
        %v1572 = vld [vmem:[%s1571] ss:$49 sm:$0x3]
        %s1573 = scalar_lea.vmem [#allocation2], 40
        %v1574 = vld [vmem:[%s1573] ss:$49 sm:$0x3]
        %1576 = vrot.lane.b32.xlu0 %v1556, 32
        %v1577 = vpop.permute.xlu0 %1576
        %1580 = vrot.lane.b32.xlu0 %v1557, 64
        %v1581 = vpop.permute.xlu0 %1580
        %1584 = vrot.lane.b32.xlu0 %v1558, 96
        %v1585 = vpop.permute.xlu0 %1584
        %1588 = vrot.lane.b32.xlu0 %v1560, 32
        %v1589 = vpop.permute.xlu0 %1588
        %1592 = vrot.lane.b32.xlu0 %v1561, 64
        %v1593 = vpop.permute.xlu0 %1592
        %1596 = vrot.lane.b32.xlu0 %v1562, 96
        %v1597 = vpop.permute.xlu0 %1596
        %1600 = vrot.lane.b32.xlu0 %v1564, 32
        %v1601 = vpop.permute.xlu0 %1600
        %1604 = vrot.lane.b32.xlu0 %v1566, 64
        %v1605 = vpop.permute.xlu0 %1604
        %1608 = vrot.lane.b32.xlu0 %v1568, 96
        %v1609 = vpop.permute.xlu0 %1608
        %1612 = vrot.lane.b32.xlu0 %v1570, 32
        %v1613 = vpop.permute.xlu0 %1612
        %1616 = vrot.lane.b32.xlu0 %v1572, 64
        %v1617 = vpop.permute.xlu0 %1616
        %1620 = vrot.lane.b32.xlu0 %v1574, 96
        %v1621 = vpop.permute.xlu0 %1620
        %v1623 = vsel %vm481, %v1555, %v1577
        %v1624 = vsel %vm722, %v1623, %v1581
        %v1625 = vsel %vm724, %v1624, %v1585
        %v1626 = vsel %vm481, %v1559, %v1589
        %v1627 = vsel %vm722, %v1626, %v1593
        %v1628 = vsel %vm724, %v1627, %v1597
        %v1629 = vsel %vm481, %v1563, %v1601
        %v1630 = vsel %vm722, %v1629, %v1605
        %v1631 = vsel %vm724, %v1630, %v1609
        %v1632 = vsel %vm481, %v1569, %v1613
        %v1633 = vsel %vm722, %v1632, %v1617
        %v1634 = vsel %vm724, %v1633, %v1621
        %v1635 = vld [vmem:[%s3] sm:$0xff]
        %v1636 = vld [vmem:[%s3 + $0x8] sm:$0xff]
        %v1637 = vld [vmem:[%s3 + $0x10] sm:$0xff]
        %v1638 = vld [vmem:[%s3 + $0x18] sm:$0xff]
        %v1639 = vld [vmem:[%s3 + $0x20] sm:$0xff]
        %v1640 = vld [vmem:[%s3 + $0x28] sm:$0xff]
        %v1641 = vld [vmem:[%s3 + $0x30] sm:$0xff]
        %v1642 = vld [vmem:[%s3 + $0x38] sm:$0xff]
        %v1643 = vld [vmem:[%s3 + $0x40] sm:$0xff]
        %v1644 = vld [vmem:[%s3 + $0x48] sm:$0xff]
        %v1645 = vld [vmem:[%s3 + $0x50] sm:$0xff]
        %v1646 = vld [vmem:[%s3 + $0x58] sm:$0xff]
        %v1647 = vld [vmem:[%s3 + $0x60] sm:$0xff]
        %v1648 = vld [vmem:[%s3 + $0x68] sm:$0xff]
        %v1649 = vld [vmem:[%s3 + $0x70] sm:$0xff]
        %v1650 = vld [vmem:[%s3 + $0x78] sm:$0xff]
        %v1651 = vld [vmem:[%s3 + $0x80] sm:$0xff]
        %v1652 = vld [vmem:[%s3 + $0x88] sm:$0xff]
        %v1653 = vld [vmem:[%s3 + $0x90] sm:$0xff]
        %v1654 = vld [vmem:[%s3 + $0x98] sm:$0xff]
        %v1655 = vld [vmem:[%s3 + $0xa0] sm:$0xff]
        %v1656 = vld [vmem:[%s3 + $0xa8] sm:$0xff]
        %v1657 = vld [vmem:[%s3 + $0xb0] sm:$0xff]
        %v1658 = vld [vmem:[%s3 + $0xb8] sm:$0xff]
        %v1659 = vld [vmem:[%s3 + $0xc0] sm:$0xff]
        %v1660 = vld [vmem:[%s3 + $0xc8] sm:$0xff]
        %v1661 = vld [vmem:[%s3 + $0xd0] sm:$0xff]
        %v1662 = vld [vmem:[%s3 + $0xd8] sm:$0xff]
        %v1663 = vld [vmem:[%s3 + $0xe0] sm:$0xff]
        %v1664 = vld [vmem:[%s3 + $0xe8] sm:$0xff]
        %v1665 = vld [vmem:[%s3 + $0xf0] sm:$0xff]
        %v1666 = vld [vmem:[%s3 + $0xf8] sm:$0xff]
        %v1667 = vld [vmem:[%s3 + $0x100] sm:$0xff]
        %v1668 = vld [vmem:[%s3 + $0x108] sm:$0xff]
        %v1669 = vld [vmem:[%s3 + $0x110] sm:$0xff]
        %v1670 = vld [vmem:[%s3 + $0x118] sm:$0xff]
        %v1671 = vld [vmem:[%s3 + $0x120] sm:$0xff]
        %v1672 = vld [vmem:[%s3 + $0x128] sm:$0xff]
        %v1673 = vld [vmem:[%s3 + $0x130] sm:$0xff]
        %v1674 = vld [vmem:[%s3 + $0x138] sm:$0xff]
        %v1675 = vld [vmem:[%s3 + $0x140] sm:$0xff]
        %v1676 = vld [vmem:[%s3 + $0x148] sm:$0xff]
        %v1677 = vld [vmem:[%s3 + $0x150] sm:$0xff]
        %v1678 = vld [vmem:[%s3 + $0x158] sm:$0xff]
        %v1679 = vld [vmem:[%s3 + $0x160] sm:$0xff]
        %v1680 = vld [vmem:[%s3 + $0x168] sm:$0xff]
        %v1681 = vld [vmem:[%s3 + $0x170] sm:$0xff]
        %v1682 = vld [vmem:[%s3 + $0x178] sm:$0xff]
        %v1683 = vld [vmem:[%s3 + $0x180] sm:$0xff]
        %v1684 = vld [vmem:[%s3 + $0x188] sm:$0xff]
        %v1685 = vld [vmem:[%s3 + $0x190] sm:$0xff]
        %v1686 = vld [vmem:[%s3 + $0x198] sm:$0xff]
        %v1687 = vld [vmem:[%s3 + $0x1a0] sm:$0xff]
        %v1688 = vld [vmem:[%s3 + $0x1a8] sm:$0xff]
        %v1689 = vld [vmem:[%s3 + $0x1b0] sm:$0xff]
        %v1690 = vld [vmem:[%s3 + $0x1b8] sm:$0xff]
        %v1691 = vld [vmem:[%s3 + $0x1c0] sm:$0xff]
        %v1692 = vld [vmem:[%s3 + $0x1c8] sm:$0xff]
        %v1693 = vld [vmem:[%s3 + $0x1d0] sm:$0xff]
        %v1694 = vld [vmem:[%s3 + $0x1d8] sm:$0xff]
        %v1695 = vld [vmem:[%s3 + $0x1e0] sm:$0xff]
        %v1696 = vld [vmem:[%s3 + $0x1e8] sm:$0xff]
        %v1697 = vld [vmem:[%s3 + $0x1f0] sm:$0xff]
        %v1698 = vld [vmem:[%s3 + $0x1f8] sm:$0xff]
        %v1699 = vld [vmem:[%s4] sm:$0x1]
        %v1701 = vlaneseq
        %v1702 = vshrl.u32 %v1701, 7
        %v1703 = vsub.s32 0, %v1702
        %v1704 = vrot.slane %v1699, %v1703
        %1706 = vmatprep.subr.mxu0 0.0
        %1707 = vmatpush1.msra.mxu0 %v1635
        %1708 = vmatprep.subr.mxu0 0.0
        %1709 = vmatpush1.msra.mxu0 %v1636
        %1710 = vmatprep.subr.mxu0 0.0
        %1711 = vmatpush1.msra.mxu0 %v1637
        %1712 = vmatprep.subr.mxu0 0.0
        %1713 = vmatpush1.msra.mxu0 %v1638
        %1714 = vmatprep.subr.mxu0 0.0
        %1715 = vmatpush1.msra.mxu0 %v1639
        %1716 = vmatprep.subr.mxu0 0.0
        %1717 = vmatpush1.msra.mxu0 %v1640
        %1718 = vmatprep.subr.mxu0 0.0
        %1719 = vmatpush1.msra.mxu0 %v1641
        %1720 = vmatprep.subr.mxu0 0.0
        %1721 = vmatpush1.msra.mxu0 %v1642
        %1722 = vmatprep.subr.mxu0 0.0
        %1723 = vmatpush1.msra.mxu0 %v1643
        %1724 = vmatprep.subr.mxu0 0.0
        %1725 = vmatpush1.msra.mxu0 %v1644
        %1726 = vmatprep.subr.mxu0 0.0
        %1727 = vmatpush1.msra.mxu0 %v1645
        %1728 = vmatprep.subr.mxu0 0.0
        %1729 = vmatpush1.msra.mxu0 %v1646
        %1730 = vmatprep.subr.mxu0 0.0
        %1731 = vmatpush1.msra.mxu0 %v1647
        %1732 = vmatprep.subr.mxu0 0.0
        %1733 = vmatpush1.msra.mxu0 %v1648
        %1734 = vmatprep.subr.mxu0 0.0
        %1735 = vmatpush1.msra.mxu0 %v1649
        %1736 = vmatprep.subr.mxu0 0.0
        %1737 = vmatpush1.msra.mxu0 %v1650
        %1738 = vmatprep.subr.mxu0 0.0
        %1739 = vmatpush1.msra.mxu0 %v1651
        %1740 = vmatprep.subr.mxu0 0.0
        %1741 = vmatpush1.msra.mxu0 %v1652
        %1742 = vmatprep.subr.mxu0 0.0
        %1743 = vmatpush1.msra.mxu0 %v1653
        %1744 = vmatprep.subr.mxu0 0.0
        %1745 = vmatpush1.msra.mxu0 %v1654
        %1746 = vmatprep.subr.mxu0 0.0
        %1747 = vmatpush1.msra.mxu0 %v1655
        %1748 = vmatprep.subr.mxu0 0.0
        %1749 = vmatpush1.msra.mxu0 %v1656
        %1750 = vmatprep.subr.mxu0 0.0
        %1751 = vmatpush1.msra.mxu0 %v1657
        %1752 = vmatprep.subr.mxu0 0.0
        %1753 = vmatpush1.msra.mxu0 %v1658
        %1754 = vmatprep.subr.mxu0 0.0
        %1755 = vmatpush1.msra.mxu0 %v1659
        %1756 = vmatprep.subr.mxu0 0.0
        %1757 = vmatpush1.msra.mxu0 %v1660
        %1758 = vmatprep.subr.mxu0 0.0
        %1759 = vmatpush1.msra.mxu0 %v1661
        %1760 = vmatprep.subr.mxu0 0.0
        %1761 = vmatpush1.msra.mxu0 %v1662
        %1762 = vmatprep.subr.mxu0 0.0
        %1763 = vmatpush1.msra.mxu0 %v1663
        %1764 = vmatprep.subr.mxu0 0.0
        %1765 = vmatpush1.msra.mxu0 %v1664
        %1766 = vmatprep.subr.mxu0 0.0
        %1767 = vmatpush1.msra.mxu0 %v1665
        %1768 = vmatprep.subr.mxu0 0.0
        %1769 = vmatpush1.msra.mxu0 %v1666
        %1770 = vmatprep.mubr.f32.mxu0 %v1628
        %1771 = vmatmul.mubr.f32.gmra.mrb[0].mxu0 %v1625
        %v1772 = vpop.f32.mrb[0].mxu0
        %v1773 = vadd.f32 %v1704, %v1772
        %v1774 = vpop.f32.mrb[0].mxu0
        %1775 = vdwg.mxu0
        %1776 = vmatprep.subr.mxu0 0.0
        %1777 = vmatpush1.msra.mxu0 %v1667
        %1778 = vmatprep.subr.mxu0 0.0
        %1779 = vmatpush1.msra.mxu0 %v1668
        %1780 = vmatprep.subr.mxu0 0.0
        %1781 = vmatpush1.msra.mxu0 %v1669
        %1782 = vmatprep.subr.mxu0 0.0
        %1783 = vmatpush1.msra.mxu0 %v1670
        %1784 = vmatprep.subr.mxu0 0.0
        %1785 = vmatpush1.msra.mxu0 %v1671
        %1786 = vmatprep.subr.mxu0 0.0
        %1787 = vmatpush1.msra.mxu0 %v1672
        %1788 = vmatprep.subr.mxu0 0.0
        %1789 = vmatpush1.msra.mxu0 %v1673
        %1790 = vmatprep.subr.mxu0 0.0
        %1791 = vmatpush1.msra.mxu0 %v1674
        %1792 = vmatprep.subr.mxu0 0.0
        %1793 = vmatpush1.msra.mxu0 %v1675
        %1794 = vmatprep.subr.mxu0 0.0
        %1795 = vmatpush1.msra.mxu0 %v1676
        %1796 = vmatprep.subr.mxu0 0.0
        %1797 = vmatpush1.msra.mxu0 %v1677
        %1798 = vmatprep.subr.mxu0 0.0
        %1799 = vmatpush1.msra.mxu0 %v1678
        %1800 = vmatprep.subr.mxu0 0.0
        %1801 = vmatpush1.msra.mxu0 %v1679
        %1802 = vmatprep.subr.mxu0 0.0
        %1803 = vmatpush1.msra.mxu0 %v1680
        %1804 = vmatprep.subr.mxu0 0.0
        %1805 = vmatpush1.msra.mxu0 %v1681
        %1806 = vmatprep.subr.mxu0 0.0
        %1807 = vmatpush1.msra.mxu0 %v1682
        %1808 = vmatprep.subr.mxu0 0.0
        %1809 = vmatpush1.msra.mxu0 %v1683
        %1810 = vmatprep.subr.mxu0 0.0
        %1811 = vmatpush1.msra.mxu0 %v1684
        %1812 = vmatprep.subr.mxu0 0.0
        %1813 = vmatpush1.msra.mxu0 %v1685
        %1814 = vmatprep.subr.mxu0 0.0
        %1815 = vmatpush1.msra.mxu0 %v1686
        %1816 = vmatprep.subr.mxu0 0.0
        %1817 = vmatpush1.msra.mxu0 %v1687
        %1818 = vmatprep.subr.mxu0 0.0
        %1819 = vmatpush1.msra.mxu0 %v1688
        %1820 = vmatprep.subr.mxu0 0.0
        %1821 = vmatpush1.msra.mxu0 %v1689
        %1822 = vmatprep.subr.mxu0 0.0
        %1823 = vmatpush1.msra.mxu0 %v1690
        %1824 = vmatprep.subr.mxu0 0.0
        %1825 = vmatpush1.msra.mxu0 %v1691
        %1826 = vmatprep.subr.mxu0 0.0
        %1827 = vmatpush1.msra.mxu0 %v1692
        %1828 = vmatprep.subr.mxu0 0.0
        %1829 = vmatpush1.msra.mxu0 %v1693
        %1830 = vmatprep.subr.mxu0 0.0
        %1831 = vmatpush1.msra.mxu0 %v1694
        %1832 = vmatprep.subr.mxu0 0.0
        %1833 = vmatpush1.msra.mxu0 %v1695
        %1834 = vmatprep.subr.mxu0 0.0
        %1835 = vmatpush1.msra.mxu0 %v1696
        %1836 = vmatprep.subr.mxu0 0.0
        %1837 = vmatpush1.msra.mxu0 %v1697
        %1838 = vmatprep.subr.mxu0 0.0
        %1839 = vmatpush1.msra.mxu0 %v1698
        %1840 = vmatprep.mubr.f32.mxu0 %v1634
        %1841 = vmatmul.mubr.f32.gmra.mrb[0].mxu0 %v1631
        %v1842 = vpop.f32.mrb[0].mxu0
        %v1843 = vadd.f32 %v1773, %v1842
        %v1844 = vpop.f32.mrb[0].mxu0
        %1845 = vdwg.mxu0
        %v1846 = vmax.f32 %v1843, 0.0
        %v1849 = vunpack.c.l.s4 1983009808
        %v1850 = vunpack.c.0.s8 %v1849
        %v1851 = vlaneseq
        %v1852 = vshrl.u32 %v1851, 7
        %v1853 = vsub.s32 %v1850, %v1852
        %v1854 = vrot.slane %v1846, %v1853
        %1855 = vrot.lane.b32.xlu0 %v1854, 64
        %v1856 = vpop.permute.xlu0 %1855
        %1858 = vst.msk [vmem:[#allocation3 + $0x2] sm:$0x3] %vm1256, %v1856
        %v1859 = vld [vmem:[#allocation3] sm:$0xf]
        %v1860 = vld [vmem:[%s5] sm:$0xff]
        %v1861 = vld [vmem:[%s5 + $0x8] sm:$0xff]
        %v1862 = vld [vmem:[%s5 + $0x10] sm:$0xff]
        %v1863 = vld [vmem:[%s5 + $0x18] sm:$0xff]
        %v1864 = vld [vmem:[%s5 + $0x20] sm:$0xff]
        %v1865 = vld [vmem:[%s5 + $0x28] sm:$0xff]
        %v1866 = vld [vmem:[%s5 + $0x30] sm:$0xff]
        %v1867 = vld [vmem:[%s5 + $0x38] sm:$0xff]
        %v1868 = vld [vmem:[%s5 + $0x40] sm:$0xff]
        %v1869 = vld [vmem:[%s5 + $0x48] sm:$0xff]
        %v1870 = vld [vmem:[%s5 + $0x50] sm:$0xff]
        %v1871 = vld [vmem:[%s5 + $0x58] sm:$0xff]
        %v1872 = vld [vmem:[%s5 + $0x60] sm:$0xff]
        %v1873 = vld [vmem:[%s5 + $0x68] sm:$0xff]
        %v1874 = vld [vmem:[%s5 + $0x70] sm:$0xff]
        %v1875 = vld [vmem:[%s5 + $0x78] sm:$0xff]
        %v1876 = vld [vmem:[%s5 + $0x80] sm:$0xff]
        %v1877 = vld [vmem:[%s5 + $0x88] sm:$0xff]
        %v1878 = vld [vmem:[%s5 + $0x90] sm:$0xff]
        %v1879 = vld [vmem:[%s5 + $0x98] sm:$0xff]
        %v1880 = vld [vmem:[%s5 + $0xa0] sm:$0xff]
        %v1881 = vld [vmem:[%s5 + $0xa8] sm:$0xff]
        %v1882 = vld [vmem:[%s5 + $0xb0] sm:$0xff]
        %v1883 = vld [vmem:[%s5 + $0xb8] sm:$0xff]
        %v1884 = vld [vmem:[%s5 + $0xc0] sm:$0xff]
        %v1885 = vld [vmem:[%s5 + $0xc8] sm:$0xff]
        %v1886 = vld [vmem:[%s5 + $0xd0] sm:$0xff]
        %v1887 = vld [vmem:[%s5 + $0xd8] sm:$0xff]
        %v1888 = vld [vmem:[%s5 + $0xe0] sm:$0xff]
        %v1889 = vld [vmem:[%s5 + $0xe8] sm:$0xff]
        %v1890 = vld [vmem:[%s5 + $0xf0] sm:$0xff]
        %v1891 = vld [vmem:[%s5 + $0xf8] sm:$0xff]
        %v1892 = vld [vmem:[%s5 + $0x100] sm:$0xff]
        %v1893 = vld [vmem:[%s5 + $0x108] sm:$0xff]
        %v1894 = vld [vmem:[%s5 + $0x110] sm:$0xff]
        %v1895 = vld [vmem:[%s5 + $0x118] sm:$0xff]
        %v1896 = vld [vmem:[%s5 + $0x120] sm:$0xff]
        %v1897 = vld [vmem:[%s5 + $0x128] sm:$0xff]
        %v1898 = vld [vmem:[%s5 + $0x130] sm:$0xff]
        %v1899 = vld [vmem:[%s5 + $0x138] sm:$0xff]
        %v1900 = vld [vmem:[%s5 + $0x140] sm:$0xff]
        %v1901 = vld [vmem:[%s5 + $0x148] sm:$0xff]
        %v1902 = vld [vmem:[%s5 + $0x150] sm:$0xff]
        %v1903 = vld [vmem:[%s5 + $0x158] sm:$0xff]
        %v1904 = vld [vmem:[%s5 + $0x160] sm:$0xff]
        %v1905 = vld [vmem:[%s5 + $0x168] sm:$0xff]
        %v1906 = vld [vmem:[%s5 + $0x170] sm:$0xff]
        %v1907 = vld [vmem:[%s5 + $0x178] sm:$0xff]
        %v1908 = vld [vmem:[%s5 + $0x180] sm:$0xff]
        %v1909 = vld [vmem:[%s5 + $0x188] sm:$0xff]
        %v1910 = vld [vmem:[%s5 + $0x190] sm:$0xff]
        %v1911 = vld [vmem:[%s5 + $0x198] sm:$0xff]
        %v1912 = vld [vmem:[%s5 + $0x1a0] sm:$0xff]
        %v1913 = vld [vmem:[%s5 + $0x1a8] sm:$0xff]
        %v1914 = vld [vmem:[%s5 + $0x1b0] sm:$0xff]
        %v1915 = vld [vmem:[%s5 + $0x1b8] sm:$0xff]
        %v1916 = vld [vmem:[%s5 + $0x1c0] sm:$0xff]
        %v1917 = vld [vmem:[%s5 + $0x1c8] sm:$0xff]
        %v1918 = vld [vmem:[%s5 + $0x1d0] sm:$0xff]
        %v1919 = vld [vmem:[%s5 + $0x1d8] sm:$0xff]
        %v1920 = vld [vmem:[%s5 + $0x1e0] sm:$0xff]
        %v1921 = vld [vmem:[%s5 + $0x1e8] sm:$0xff]
        %v1922 = vld [vmem:[%s5 + $0x1f0] sm:$0xff]
        %v1923 = vld [vmem:[%s5 + $0x1f8] sm:$0xff]
        %v1924 = vld [vmem:[%s6] sm:$0x3]
        %v1926 = vlaneseq
        %v1927 = vshrl.u32 %v1926, 7
        %v1928 = vsub.s32 0, %v1927
        %v1929 = vrot.slane %v1924, %v1928
        %v1930 = vlaneseq
        %v1931 = vshrl.u32 %v1930, 7
        %v1932 = vsub.s32 1, %v1931
        %v1933 = vrot.slane %v1924, %v1932
        %v1938 = vunpack.c.l.s4 1983009808
        %v1939 = vunpack.c.0.s8 %v1938
        %v1940 = vlaneseq
        %v1941 = vshrl.u32 %v1940, 7
        %v1942 = vsub.s32 %v1939, %v1941
        %v1943 = vrot.slane %v1859, %v1942
        %v1944 = vcombine.high %v1943, %v1943
        %1947 = vmatprep.subr.mxu0 %v1861
        %1948 = vmatpush1.msra.mxu0 %v1860
        %1949 = vmatprep.subr.mxu0 %v1863
        %1950 = vmatpush1.msra.mxu0 %v1862
        %1951 = vmatprep.subr.mxu0 %v1865
        %1952 = vmatpush1.msra.mxu0 %v1864
        %1953 = vmatprep.subr.mxu0 %v1867
        %1954 = vmatpush1.msra.mxu0 %v1866
        %1955 = vmatprep.subr.mxu0 %v1869
        %1956 = vmatpush1.msra.mxu0 %v1868
        %1957 = vmatprep.subr.mxu0 %v1871
        %1958 = vmatpush1.msra.mxu0 %v1870
        %1959 = vmatprep.subr.mxu0 %v1873
        %1960 = vmatpush1.msra.mxu0 %v1872
        %1961 = vmatprep.subr.mxu0 %v1875
        %1962 = vmatpush1.msra.mxu0 %v1874
        %1963 = vmatprep.subr.mxu0 %v1877
        %1964 = vmatpush1.msra.mxu0 %v1876
        %1965 = vmatprep.subr.mxu0 %v1879
        %1966 = vmatpush1.msra.mxu0 %v1878
        %1967 = vmatprep.subr.mxu0 %v1881
        %1968 = vmatpush1.msra.mxu0 %v1880
        %1969 = vmatprep.subr.mxu0 %v1883
        %1970 = vmatpush1.msra.mxu0 %v1882
        %1971 = vmatprep.subr.mxu0 %v1885
        %1972 = vmatpush1.msra.mxu0 %v1884
        %1973 = vmatprep.subr.mxu0 %v1887
        %1974 = vmatpush1.msra.mxu0 %v1886
        %1975 = vmatprep.subr.mxu0 %v1889
        %1976 = vmatpush1.msra.mxu0 %v1888
        %1977 = vmatprep.subr.mxu0 %v1891
        %1978 = vmatpush1.msra.mxu0 %v1890
        %1979 = vmatprep.subr.mxu0 %v1893
        %1980 = vmatpush1.msra.mxu0 %v1892
        %1981 = vmatprep.subr.mxu0 %v1895
        %1982 = vmatpush1.msra.mxu0 %v1894
        %1983 = vmatprep.subr.mxu0 %v1897
        %1984 = vmatpush1.msra.mxu0 %v1896
        %1985 = vmatprep.subr.mxu0 %v1899
        %1986 = vmatpush1.msra.mxu0 %v1898
        %1987 = vmatprep.subr.mxu0 %v1901
        %1988 = vmatpush1.msra.mxu0 %v1900
        %1989 = vmatprep.subr.mxu0 %v1903
        %1990 = vmatpush1.msra.mxu0 %v1902
        %1991 = vmatprep.subr.mxu0 %v1905
        %1992 = vmatpush1.msra.mxu0 %v1904
        %1993 = vmatprep.subr.mxu0 %v1907
        %1994 = vmatpush1.msra.mxu0 %v1906
        %1995 = vmatprep.subr.mxu0 %v1909
        %1996 = vmatpush1.msra.mxu0 %v1908
        %1997 = vmatprep.subr.mxu0 %v1911
        %1998 = vmatpush1.msra.mxu0 %v1910
        %1999 = vmatprep.subr.mxu0 %v1913
        %2000 = vmatpush1.msra.mxu0 %v1912
        %2001 = vmatprep.subr.mxu0 %v1915
        %2002 = vmatpush1.msra.mxu0 %v1914
        %2003 = vmatprep.subr.mxu0 %v1917
        %2004 = vmatpush1.msra.mxu0 %v1916
        %2005 = vmatprep.subr.mxu0 %v1919
        %2006 = vmatpush1.msra.mxu0 %v1918
        %2007 = vmatprep.subr.mxu0 %v1921
        %2008 = vmatpush1.msra.mxu0 %v1920
        %2009 = vmatprep.subr.mxu0 %v1923
        %2010 = vmatpush1.msra.mxu0 %v1922
        %2011 = vmatprep.mubr.f32.mxu0 %v1944
        %2012 = vmatmul.mubr.f32.gmra.mrb[0].mxu0 %v1943
        %v2013 = vpop.f32.mrb[0].mxu0
        %v2014 = vadd.f32 %v1929, %v2013
        %v2015 = vpop.f32.mrb[0].mxu0
        %v2016 = vadd.f32 %v1933, %v2015
        %2017 = vdwg.mxu0
        %v2018 = vmax.f32 %v2014, 0.0
        %v2019 = vmax.f32 %v2016, 0.0
        %v2020 = vld [vmem:[%s7] sm:$0xff]
        %v2021 = vld [vmem:[%s7 + $0x8] sm:$0xff]
        %v2022 = vld [vmem:[%s7 + $0x10] sm:$0xff]
        %v2023 = vld [vmem:[%s7 + $0x18] sm:$0xff]
        %v2024 = vld [vmem:[%s7 + $0x20] sm:$0xff]
        %v2025 = vld [vmem:[%s7 + $0x28] sm:$0xff]
        %v2026 = vld [vmem:[%s7 + $0x30] sm:$0xff]
        %v2027 = vld [vmem:[%s7 + $0x38] sm:$0xff]
        %v2028 = vld [vmem:[%s7 + $0x40] sm:$0xff]
        %v2029 = vld [vmem:[%s7 + $0x48] sm:$0xff]
        %v2030 = vld [vmem:[%s7 + $0x50] sm:$0xff]
        %v2031 = vld [vmem:[%s7 + $0x58] sm:$0xff]
        %v2032 = vld [vmem:[%s7 + $0x60] sm:$0xff]
        %v2033 = vld [vmem:[%s7 + $0x68] sm:$0xff]
        %v2034 = vld [vmem:[%s7 + $0x70] sm:$0xff]
        %v2035 = vld [vmem:[%s7 + $0x78] sm:$0xff]
        %v2036 = vld [vmem:[%s7 + $0x80] sm:$0xff]
        %v2037 = vld [vmem:[%s7 + $0x88] sm:$0xff]
        %v2038 = vld [vmem:[%s7 + $0x90] sm:$0xff]
        %v2039 = vld [vmem:[%s7 + $0x98] sm:$0xff]
        %v2040 = vld [vmem:[%s7 + $0xa0] sm:$0xff]
        %v2041 = vld [vmem:[%s7 + $0xa8] sm:$0xff]
        %v2042 = vld [vmem:[%s7 + $0xb0] sm:$0xff]
        %v2043 = vld [vmem:[%s7 + $0xb8] sm:$0xff]
        %v2044 = vld [vmem:[%s7 + $0xc0] sm:$0xff]
        %v2045 = vld [vmem:[%s7 + $0xc8] sm:$0xff]
        %v2046 = vld [vmem:[%s7 + $0xd0] sm:$0xff]
        %v2047 = vld [vmem:[%s7 + $0xd8] sm:$0xff]
        %v2048 = vld [vmem:[%s7 + $0xe0] sm:$0xff]
        %v2049 = vld [vmem:[%s7 + $0xe8] sm:$0xff]
        %v2050 = vld [vmem:[%s7 + $0xf0] sm:$0xff]
        %v2051 = vld [vmem:[%s7 + $0xf8] sm:$0xff]
        %v2052 = vld [vmem:[%s8] sm:$0x1]
        %v2054 = vlaneseq
        %v2055 = vshrl.u32 %v2054, 7
        %v2056 = vsub.s32 0, %v2055
        %v2057 = vrot.slane %v2052, %v2056
        %2059 = vmatprep.subr.mxu0 0.0
        %2060 = vmatpush1.msra.mxu0 %v2020
        %2061 = vmatprep.subr.mxu0 0.0
        %2062 = vmatpush1.msra.mxu0 %v2021
        %2063 = vmatprep.subr.mxu0 0.0
        %2064 = vmatpush1.msra.mxu0 %v2022
        %2065 = vmatprep.subr.mxu0 0.0
        %2066 = vmatpush1.msra.mxu0 %v2023
        %2067 = vmatprep.subr.mxu0 0.0
        %2068 = vmatpush1.msra.mxu0 %v2024
        %2069 = vmatprep.subr.mxu0 0.0
        %2070 = vmatpush1.msra.mxu0 %v2025
        %2071 = vmatprep.subr.mxu0 0.0
        %2072 = vmatpush1.msra.mxu0 %v2026
        %2073 = vmatprep.subr.mxu0 0.0
        %2074 = vmatpush1.msra.mxu0 %v2027
        %2075 = vmatprep.subr.mxu0 0.0
        %2076 = vmatpush1.msra.mxu0 %v2028
        %2077 = vmatprep.subr.mxu0 0.0
        %2078 = vmatpush1.msra.mxu0 %v2029
        %2079 = vmatprep.subr.mxu0 0.0
        %2080 = vmatpush1.msra.mxu0 %v2030
        %2081 = vmatprep.subr.mxu0 0.0
        %2082 = vmatpush1.msra.mxu0 %v2031
        %2083 = vmatprep.subr.mxu0 0.0
        %2084 = vmatpush1.msra.mxu0 %v2032
        %2085 = vmatprep.subr.mxu0 0.0
        %2086 = vmatpush1.msra.mxu0 %v2033
        %2087 = vmatprep.subr.mxu0 0.0
        %2088 = vmatpush1.msra.mxu0 %v2034
        %2089 = vmatprep.subr.mxu0 0.0
        %2090 = vmatpush1.msra.mxu0 %v2035
        %2091 = vmatprep.subr.mxu0 0.0
        %2092 = vmatpush1.msra.mxu0 %v2036
        %2093 = vmatprep.subr.mxu0 0.0
        %2094 = vmatpush1.msra.mxu0 %v2037
        %2095 = vmatprep.subr.mxu0 0.0
        %2096 = vmatpush1.msra.mxu0 %v2038
        %2097 = vmatprep.subr.mxu0 0.0
        %2098 = vmatpush1.msra.mxu0 %v2039
        %2099 = vmatprep.subr.mxu0 0.0
        %2100 = vmatpush1.msra.mxu0 %v2040
        %2101 = vmatprep.subr.mxu0 0.0
        %2102 = vmatpush1.msra.mxu0 %v2041
        %2103 = vmatprep.subr.mxu0 0.0
        %2104 = vmatpush1.msra.mxu0 %v2042
        %2105 = vmatprep.subr.mxu0 0.0
        %2106 = vmatpush1.msra.mxu0 %v2043
        %2107 = vmatprep.subr.mxu0 0.0
        %2108 = vmatpush1.msra.mxu0 %v2044
        %2109 = vmatprep.subr.mxu0 0.0
        %2110 = vmatpush1.msra.mxu0 %v2045
        %2111 = vmatprep.subr.mxu0 0.0
        %2112 = vmatpush1.msra.mxu0 %v2046
        %2113 = vmatprep.subr.mxu0 0.0
        %2114 = vmatpush1.msra.mxu0 %v2047
        %2115 = vmatprep.subr.mxu0 0.0
        %2116 = vmatpush1.msra.mxu0 %v2048
        %2117 = vmatprep.subr.mxu0 0.0
        %2118 = vmatpush1.msra.mxu0 %v2049
        %2119 = vmatprep.subr.mxu0 0.0
        %2120 = vmatpush1.msra.mxu0 %v2050
        %2121 = vmatprep.subr.mxu0 0.0
        %2122 = vmatpush1.msra.mxu0 %v2051
        %2123 = vmatprep.mubr.f32.mxu0 %v2019
        %2124 = vmatmul.mubr.f32.gmra.mrb[0].mxu0 %v2018
        %v2125 = vpop.f32.mrb[0].mxu0
        %v2126 = vadd.f32 %v2057, %v2125
        %v2127 = vpop.f32.mrb[0].mxu0
        %2128 = vdwg.mxu0
        %2129 = vst [vmem:[%s328] sm:$0x3] %v2126
        %s2130 = sand.u32 %s225, 1
        %s2131 = scalar_lea.sflag [#allocation5], %s2130
        %s2132 = sand.u32 %s225, 1
        %s2133 = smul.addr %s2132, 2
        %s2134 = scalar_lea.vmem [#allocation4], %s2133
        // Predicated region
        $region57: #{dqn_forward.1} parent=55 // pred_check
          %p2135 = pneg %p235
        $region58: #{dqn_forward.1} parent=55 // pred_check_branch
          %2137 = sbr.rel (%p2135) target = $region60
        $region59: #{dqn_forward.1} parent=55 // pred_region
          %s2139 = ssub.s32 32, 32
          %2140 = vsyncadd %s2131, %s2139
          %s2141 = smul.addr %s23, 32
          %s2142 = scalar_lea.hbm %s9, %s2141
          %s2144 = sshll.u32 %s2134, 4
          %s2145 = int_to_ptr.vmem [resolvable:$true] %s2144
          %2147 = dma.vmem_to_hbm [thread:$0]  %s2145, 32, %s2142, %s2131
        $region60: #{dqn_forward.1} parent=55 // pred_fallthru
          _
      $region56: #{dqn_forward.1} parent=5 // pred_fallthru
        _
      %p2148 = scmp.le.s32.totalorder 2, %s18
      // Predicated region
      $region61: #{dqn_forward.1} parent=5 // pred_check
        %p2149 = pneg %p2148
      $region62: #{dqn_forward.1} parent=5 // pred_check_branch
        %2151 = sbr.rel (%p2149) target = $region64
      $region63: #{dqn_forward.1} parent=5 // pred_region
        %s2152 = ssub.s32 %s18, 2
        // Predicated region
        $region65: #{dqn_forward.1} parent=63 // pred_check
          %p2153 = pneg %p241
        $region66: #{dqn_forward.1} parent=63 // pred_check_branch
          %2155 = sbr.rel (%p2153) target = $region68
        $region67: #{dqn_forward.1} parent=63 // pred_region
          %s2156 = sand.u32 %s226, 1
          %s2157 = scalar_lea.sflag [#allocation5], %s2156
          %s2158 = sand.u32 %s226, 1
          %s2159 = smul.addr %s2158, 2
          %s2160 = scalar_lea.vmem [#allocation4], %s2159
          %2161 = dma.done %s2157, 32
        $region68: #{dqn_forward.1} parent=63 // pred_fallthru
          _
      $region64: #{dqn_forward.1} parent=5 // pred_fallthru
        _
    $region6: #{dqn_forward.1} parent=1 // loop_footer
      %s22 = sadd.s32 1, %s18
    $region7: #{dqn_forward.1} parent=1 // loop_footer_branch
      %17 = sbr.rel target = $region3
    $region8: #{dqn_forward.1} parent=1 // loop_exit
      _
    %2162 = vsyncpa [#allocation5], 1
    %s2163 = scalar_lea.sflag [#allocation5], 1
    %2164 = vsyncpa %s2163, 1

// kernel: dqn_forward.1
$region0: #{dqn_forward.1}
  #allocation0 [shape = 'u32[]', space=smem, size = 0x4, offset = 0x4, fixed_abs, tag = 'smem constant byte address 0x4 - core index']
  #allocation1 [shape = 'u32[144,128]{1,0:T(1,128)}', space=vmem, size = 0x12000, scoped, tag = 'internal scratch']
  #allocation2 [shape = 'f32[98,32]{1,0:T(8,128)}', space=vmem, size = 0xd000, scoped, tag = 'scratch operand']
  #allocation3 [shape = 'f32[2,256]{1,0:T(2,128)}', space=vmem, size = 0x800, scoped, tag = 'scratch operand']
  %s0 = inlined_call_operand.vmem [shape: f32[4,49,16], index: 0, kind: input, shape index: {}]
  %s1 = inlined_call_operand.vmem [shape: f32[16,32], index: 1, kind: input, shape index: {}]
  %s2 = inlined_call_operand.vmem [shape: f32[1,32], index: 2, kind: input, shape index: {}]
  %s3 = inlined_call_operand.vmem [shape: f32[512,64], index: 3, kind: input, shape index: {}]
  %s4 = inlined_call_operand.vmem [shape: f32[1,64], index: 4, kind: input, shape index: {}]
  %s5 = inlined_call_operand.vmem [shape: f32[256,256], index: 5, kind: input, shape index: {}]
  %s6 = inlined_call_operand.vmem [shape: f32[1,256], index: 6, kind: input, shape index: {}]
  %s7 = inlined_call_operand.vmem [shape: f32[256,128], index: 7, kind: input, shape index: {}]
  %s8 = inlined_call_operand.vmem [shape: f32[1,128], index: 8, kind: input, shape index: {}]
  %s9 = inlined_call_operand.hbm [shape: f32[2,2,128], index: 9, kind: output, shape index: {}]
  %s10 = sld [smem:[#allocation0]]
  $region69: #{dqn_forward.1} parent=0
    _
  %s12 = ssub.s32 1, %s10
  %s13 = scalar_select 0, %s12, %s10
  $region1: #{dqn_forward.1} parent=0
    #allocation4 [shape = 'u8[2048]{0}', space=vmem, size = 0x800, scoped, tag = 'output window, operand 0']
    #allocation5 [shape = 's32[2]{0}', space=sflag, size = 0x8, scoped, tag = 'scoped memory for dqn_forward.1']
    %14 = vsyncpa [#allocation5], 0
    %s15 = scalar_lea.sflag [#allocation5], 1
    %16 = vsyncpa %s15, 0
    loop: start=0, step=1, limit=4
    $region2: #{dqn_forward.1} parent=1 // loop_pre_header
      _
    $region3: #{dqn_forward.1} parent=1 // loop_header
      %s18 = sphi 0, %s22
      %p19 = scmp.ge.s32.totalorder %s18, 4
      %s28 = sphi 0, %s30
      %s31 = sphi 0, %s28
      %s32 = sphi 0, %s31
      %s48 = sphi 0, %s32
      %s52 = sphi 0, %s52
      %s54 = sphi 0, %s52
      %s55 = sphi 0, %s54
      %s69 = sphi 0, %s55
      %s73 = sphi 0, %s73
      %s75 = sphi 0, %s73
      %s76 = sphi 0, %s75
      %s90 = sphi 0, %s76
      %s94 = sphi 0, %s94
      %s96 = sphi 0, %s94
      %s97 = sphi 0, %s96
      %s111 = sphi 0, %s97
      %s115 = sphi 0, %s115
      %s117 = sphi 0, %s115
      %s118 = sphi 0, %s117
      %s132 = sphi 0, %s118
      %s136 = sphi 0, %s136
      %s138 = sphi 0, %s136
      %s139 = sphi 0, %s138
      %s153 = sphi 0, %s139
      %s157 = sphi 0, %s157
      %s159 = sphi 0, %s157
      %s160 = sphi 0, %s159
      %s174 = sphi 0, %s160
      %s178 = sphi 0, %s178
      %s180 = sphi 0, %s178
      %s181 = sphi 0, %s180
      %s195 = sphi 0, %s181
      %s199 = sphi 0, %s199
      %s201 = sphi 0, %s199
      %s202 = sphi 0, %s201
      %s216 = sphi 0, %s202
      %s222 = sphi 0, %s224
      %s225 = sphi 0, %s222
      %s226 = sphi 0, %s225
      %s242 = sphi 0, %s226
    $region4: #{dqn_forward.1} parent=1 // loop_header_branch
      %21 = sbr.rel (%p19) target = $region8
    $region5: #{dqn_forward.1} parent=1 // loop_body
      %s23 = ssub.s32 %s18, 1
      %s24 = ssub.s32 %s18, 2
      %s25 = sadd.s32 %s18, 1
      %s26 = ssub.s32 %s18, %s25
      %p27 = scmp.eq.s32.totalorder %s26, 0
      %s29 = sadd.s32 %s28, 1
      %s30 = scalar_select %p27, %s28, %s29
      %p33 = pneg %p27
      %p34 = scmp.eq.s32.totalorder %s18, 1
      %p35 = por %p33, %p34
      %p36 = scmp.ne.s32.totalorder %s28, %s31
      %p37 = scmp.eq.s32.totalorder %s18, 0
      %p38 = por %p36, %p37
      %p39 = scmp.ne.s32.totalorder %s28, %s31
      %p40 = scmp.eq.s32.totalorder %s23, 1
      %p41 = por %p39, %p40
      %p42 = scmp.ne.s32.totalorder %s31, %s32
      %p43 = scmp.eq.s32.totalorder %s23, 0
      %p44 = por %p42, %p43
      %p45 = scmp.ne.s32.totalorder %s31, %s32
      %p46 = scmp.eq.s32.totalorder %s24, 1
      %p47 = por %p45, %p46
      %p49 = scmp.ne.s32.totalorder %s32, %s48
      %p50 = scmp.eq.s32.totalorder %s24, 0
      %p51 = por %p49, %p50
      %s53 = sadd.s32 %s52, 1
      %p56 = scmp.eq.s32.totalorder %s18, 1
      %p57 = scmp.ne.s32.totalorder %s52, %s54
      %p58 = scmp.eq.s32.totalorder %s18, 0
      %p59 = por %p57, %p58
      %p60 = scmp.ne.s32.totalorder %s52, %s54
      %p61 = scmp.eq.s32.totalorder %s23, 1
      %p62 = por %p60, %p61
      %p63 = scmp.ne.s32.totalorder %s54, %s55
      %p64 = scmp.eq.s32.totalorder %s23, 0
      %p65 = por %p63, %p64
      %p66 = scmp.ne.s32.totalorder %s54, %s55
      %p67 = scmp.eq.s32.totalorder %s24, 1
      %p68 = por %p66, %p67
      %p70 = scmp.ne.s32.totalorder %s55, %s69
      %p71 = scmp.eq.s32.totalorder %s24, 0
      %p72 = por %p70, %p71
      %s74 = sadd.s32 %s73, 1
      %p77 = scmp.eq.s32.totalorder %s18, 1
      %p78 = scmp.ne.s32.totalorder %s73, %s75
      %p79 = scmp.eq.s32.totalorder %s18, 0
      %p80 = por %p78, %p79
      %p81 = scmp.ne.s32.totalorder %s73, %s75
      %p82 = scmp.eq.s32.totalorder %s23, 1
      %p83 = por %p81, %p82
      %p84 = scmp.ne.s32.totalorder %s75, %s76
      %p85 = scmp.eq.s32.totalorder %s23, 0
      %p86 = por %p84, %p85
      %p87 = scmp.ne.s32.totalorder %s75, %s76
      %p88 = scmp.eq.s32.totalorder %s24, 1
      %p89 = por %p87, %p88
      %p91 = scmp.ne.s32.totalorder %s76, %s90
      %p92 = scmp.eq.s32.totalorder %s24, 0
      %p93 = por %p91, %p92
      %s95 = sadd.s32 %s94, 1
      %p98 = scmp.eq.s32.totalorder %s18, 1
      %p99 = scmp.ne.s32.totalorder %s94, %s96
      %p100 = scmp.eq.s32.totalorder %s18, 0
      %p101 = por %p99, %p100
      %p102 = scmp.ne.s32.totalorder %s94, %s96
      %p103 = scmp.eq.s32.totalorder %s23, 1
      %p104 = por %p102, %p103
      %p105 = scmp.ne.s32.totalorder %s96, %s97
      %p106 = scmp.eq.s32.totalorder %s23, 0
      %p107 = por %p105, %p106
      %p108 = scmp.ne.s32.totalorder %s96, %s97
      %p109 = scmp.eq.s32.totalorder %s24, 1
      %p110 = por %p108, %p109
      %p112 = scmp.ne.s32.totalorder %s97, %s111
      %p113 = scmp.eq.s32.totalorder %s24, 0
      %p114 = por %p112, %p113
      %s116 = sadd.s32 %s115, 1
      %p119 = scmp.eq.s32.totalorder %s18, 1
      %p120 = scmp.ne.s32.totalorder %s115, %s117
      %p121 = scmp.eq.s32.totalorder %s18, 0
      %p122 = por %p120, %p121
      %p123 = scmp.ne.s32.totalorder %s115, %s117
      %p124 = scmp.eq.s32.totalorder %s23, 1
      %p125 = por %p123, %p124
      %p126 = scmp.ne.s32.totalorder %s117, %s118
      %p127 = scmp.eq.s32.totalorder %s23, 0
      %p128 = por %p126, %p127
      %p129 = scmp.ne.s32.totalorder %s117, %s118
      %p130 = scmp.eq.s32.totalorder %s24, 1
      %p131 = por %p129, %p130
      %p133 = scmp.ne.s32.totalorder %s118, %s132
      %p134 = scmp.eq.s32.totalorder %s24, 0
      %p135 = por %p133, %p134
      %s137 = sadd.s32 %s136, 1
      %p140 = scmp.eq.s32.totalorder %s18, 1
      %p141 = scmp.ne.s32.totalorder %s136, %s138
      %p142 = scmp.eq.s32.totalorder %s18, 0
      %p143 = por %p141, %p142
      %p144 = scmp.ne.s32.totalorder %s136, %s138
      %p145 = scmp.eq.s32.totalorder %s23, 1
      %p146 = por %p144, %p145
      %p147 = scmp.ne.s32.totalorder %s138, %s139
      %p148 = scmp.eq.s32.totalorder %s23, 0
      %p149 = por %p147, %p148
      %p150 = scmp.ne.s32.totalorder %s138, %s139
      %p151 = scmp.eq.s32.totalorder %s24, 1
      %p152 = por %p150, %p151
      %p154 = scmp.ne.s32.totalorder %s139, %s153
      %p155 = scmp.eq.s32.totalorder %s24, 0
      %p156 = por %p154, %p155
      %s158 = sadd.s32 %s157, 1
      %p161 = scmp.eq.s32.totalorder %s18, 1
      %p162 = scmp.ne.s32.totalorder %s157, %s159
      %p163 = scmp.eq.s32.totalorder %s18, 0
      %p164 = por %p162, %p163
      %p165 = scmp.ne.s32.totalorder %s157, %s159
      %p166 = scmp.eq.s32.totalorder %s23, 1
      %p167 = por %p165, %p166
      %p168 = scmp.ne.s32.totalorder %s159, %s160
      %p169 = scmp.eq.s32.totalorder %s23, 0
      %p170 = por %p168, %p169
      %p171 = scmp.ne.s32.totalorder %s159, %s160
      %p172 = scmp.eq.s32.totalorder %s24, 1
      %p173 = por %p171, %p172
      %p175 = scmp.ne.s32.totalorder %s160, %s174
      %p176 = scmp.eq.s32.totalorder %s24, 0
      %p177 = por %p175, %p176
      %s179 = sadd.s32 %s178, 1
      %p182 = scmp.eq.s32.totalorder %s18, 1
      %p183 = scmp.ne.s32.totalorder %s178, %s180
      %p184 = scmp.eq.s32.totalorder %s18, 0
      %p185 = por %p183, %p184
      %p186 = scmp.ne.s32.totalorder %s178, %s180
      %p187 = scmp.eq.s32.totalorder %s23, 1
      %p188 = por %p186, %p187
      %p189 = scmp.ne.s32.totalorder %s180, %s181
      %p190 = scmp.eq.s32.totalorder %s23, 0
      %p191 = por %p189, %p190
      %p192 = scmp.ne.s32.totalorder %s180, %s181
      %p193 = scmp.eq.s32.totalorder %s24, 1
      %p194 = por %p192, %p193
      %p196 = scmp.ne.s32.totalorder %s181, %s195
      %p197 = scmp.eq.s32.totalorder %s24, 0
      %p198 = por %p196, %p197
      %s200 = sadd.s32 %s199, 1
      %p203 = scmp.eq.s32.totalorder %s18, 1
      %p204 = scmp.ne.s32.totalorder %s199, %s201
      %p205 = scmp.eq.s32.totalorder %s18, 0
      %p206 = por %p204, %p205
      %p207 = scmp.ne.s32.totalorder %s199, %s201
      %p208 = scmp.eq.s32.totalorder %s23, 1
      %p209 = por %p207, %p208
      %p210 = scmp.ne.s32.totalorder %s201, %s202
      %p211 = scmp.eq.s32.totalorder %s23, 0
      %p212 = por %p210, %p211
      %p213 = scmp.ne.s32.totalorder %s201, %s202
      %p214 = scmp.eq.s32.totalorder %s24, 1
      %p215 = por %p213, %p214
      %p217 = scmp.ne.s32.totalorder %s202, %s216
      %p218 = scmp.eq.s32.totalorder %s24, 0
      %p219 = por %p217, %p218
      %s220 = ssub.s32 %s18, %s25
      %p221 = scmp.eq.s32.totalorder %s220, 0
      %s223 = sadd.s32 %s222, 1
      %s224 = scalar_select %p221, %s222, %s223
      %p227 = pneg %p221
      %p228 = scmp.eq.s32.totalorder %s18, 1
      %p229 = por %p227, %p228
      %p230 = scmp.ne.s32.totalorder %s222, %s225
      %p231 = scmp.eq.s32.totalorder %s18, 0
      %p232 = por %p230, %p231
      %p233 = scmp.ne.s32.totalorder %s222, %s225
      %p234 = scmp.eq.s32.totalorder %s23, 1
      %p235 = por %p233, %p234
      %p236 = scmp.ne.s32.totalorder %s225, %s226
      %p237 = scmp.eq.s32.totalorder %s23, 0
      %p238 = por %p236, %p237
      %p239 = scmp.ne.s32.totalorder %s225, %s226
      %p240 = scmp.eq.s32.totalorder %s24, 1
      %p241 = por %p239, %p240
      %p243 = scmp.ne.s32.totalorder %s226, %s242
      %p244 = scmp.eq.s32.totalorder %s24, 0
      %p245 = por %p243, %p244
      %p246 = scmp.le.s32.totalorder 1, %s18
      %p247 = scmp.lt.s32.totalorder %s18, 3
      %p248 = pnand %p246, %p247
      %p249 = pneg %p248
      // Predicated region
      $region9: #{dqn_forward.1} parent=5 // pred_check
        _
      $region10: #{dqn_forward.1} parent=5 // pred_check_branch
        %251 = sbr.rel (%p248) target = $region12
      $region11: #{dqn_forward.1} parent=5 // pred_region
        %s252 = ssub.s32 %s18, 1
        // Predicated region
        $region13: #{dqn_forward.1} parent=11 // pred_check
          %p253 = pneg %p65
        $region14: #{dqn_forward.1} parent=11 // pred_check_branch
          %255 = sbr.rel (%p253) target = $region16
        $region15: #{dqn_forward.1} parent=11 // pred_region
          _
        $region16: #{dqn_forward.1} parent=11 // pred_fallthru
          _
        // Predicated region
        $region17: #{dqn_forward.1} parent=11 // pred_check
          %p256 = pneg %p86
        $region18: #{dqn_forward.1} parent=11 // pred_check_branch
          %258 = sbr.rel (%p256) target = $region20
        $region19: #{dqn_forward.1} parent=11 // pred_region
          _
        $region20: #{dqn_forward.1} parent=11 // pred_fallthru
          _
        // Predicated region
        $region21: #{dqn_forward.1} parent=11 // pred_check
          %p259 = pneg %p107
        $region22: #{dqn_forward.1} parent=11 // pred_check_branch
          %261 = sbr.rel (%p259) target = $region24
        $region23: #{dqn_forward.1} parent=11 // pred_region
          _
        $region24: #{dqn_forward.1} parent=11 // pred_fallthru
          _
        // Predicated region
        $region25: #{dqn_forward.1} parent=11 // pred_check
          %p262 = pneg %p128
        $region26: #{dqn_forward.1} parent=11 // pred_check_branch
          %264 = sbr.rel (%p262) target = $region28
        $region27: #{dqn_forward.1} parent=11 // pred_region
          _
        $region28: #{dqn_forward.1} parent=11 // pred_fallthru
          _
        // Predicated region
        $region29: #{dqn_forward.1} parent=11 // pred_check
          %p265 = pneg %p149
        $region30: #{dqn_forward.1} parent=11 // pred_check_branch
          %267 = sbr.rel (%p265) target = $region32
        $region31: #{dqn_forward.1} parent=11 // pred_region
          _
        $region32: #{dqn_forward.1} parent=11 // pred_fallthru
          _
        // Predicated region
        $region33: #{dqn_forward.1} parent=11 // pred_check
          %p268 = pneg %p170
        $region34: #{dqn_forward.1} parent=11 // pred_check_branch
          %270 = sbr.rel (%p268) target = $region36
        $region35: #{dqn_forward.1} parent=11 // pred_region
          _
        $region36: #{dqn_forward.1} parent=11 // pred_fallthru
          _
        // Predicated region
        $region37: #{dqn_forward.1} parent=11 // pred_check
          %p271 = pneg %p191
        $region38: #{dqn_forward.1} parent=11 // pred_check_branch
          %273 = sbr.rel (%p271) target = $region40
        $region39: #{dqn_forward.1} parent=11 // pred_region
          _
        $region40: #{dqn_forward.1} parent=11 // pred_fallthru
          _
        // Predicated region
        $region41: #{dqn_forward.1} parent=11 // pred_check
          %p274 = pneg %p212
        $region42: #{dqn_forward.1} parent=11 // pred_check_branch
          %276 = sbr.rel (%p274) target = $region44
        $region43: #{dqn_forward.1} parent=11 // pred_region
          _
        $region44: #{dqn_forward.1} parent=11 // pred_fallthru
          _
      $region12: #{dqn_forward.1} parent=5 // pred_fallthru
        _
      %p277 = scmp.lt.s32.totalorder %s18, 2
      // Predicated region
      $region45: #{dqn_forward.1} parent=5 // pred_check
        %p278 = pneg %p277
      $region46: #{dqn_forward.1} parent=5 // pred_check_branch
        %280 = sbr.rel (%p278) target = $region48
      $region47: #{dqn_forward.1} parent=5 // pred_region
        // Predicated region
        $region49: #{dqn_forward.1} parent=47 // pred_check
          %p281 = pneg %p38
        $region50: #{dqn_forward.1} parent=47 // pred_check_branch
          %283 = sbr.rel (%p281) target = $region52
        $region51: #{dqn_forward.1} parent=47 // pred_region
          %s284 = smul.u32 2, %s18
          %p285 = scmp.lt.s32.totalorder %s284, 3
          %s286 = scalar_select %p285, %s284, 3
          %s287 = smul.addr %s286, 7
          %s288 = smul.addr %s287, 8
          %s289 = scalar_lea.vmem %s0, %s288
          %s290 = smul.u32 2, %s18
        $region52: #{dqn_forward.1} parent=47 // pred_fallthru
          _
      $region48: #{dqn_forward.1} parent=5 // pred_fallthru
        _
      %p291 = scmp.le.s32.totalorder 1, %s18
      %p292 = scmp.lt.s32.totalorder %s18, 3
      %p293 = pnand %p291, %p292
      %p294 = pneg %p293
      // Predicated region
      $region53: #{dqn_forward.1} parent=5 // pred_check
        _
      $region54: #{dqn_forward.1} parent=5 // pred_check_branch
        %296 = sbr.rel (%p293) target = $region56
      $region55: #{dqn_forward.1} parent=5 // pred_region
        %s297 = ssub.s32 %s18, 1
        %s298 = smul.u32 2, %s23
        %p299 = scmp.lt.s32.totalorder %s298, 3
        %s300 = scalar_select %p299, %s298, 3
        %s301 = smul.addr %s300, 7
        %s302 = smul.addr %s301, 8
        %s303 = scalar_lea.vmem %s0, %s302
        %p304 = pneg %p44
        %p305 = pneg %p41
        %p306 = pneg %p65
        %p307 = pneg %p62
        %p308 = pneg %p86
        %p309 = pneg %p83
        %p310 = pneg %p107
        %p311 = pneg %p104
        %p312 = pneg %p128
        %p313 = pneg %p125
        %p314 = pneg %p149
        %p315 = pneg %p146
        %p316 = pneg %p170
        %p317 = pneg %p167
        %p318 = pneg %p191
        %p319 = pneg %p188
        %p320 = pneg %p212
        %p321 = pneg %p209
        %p322 = pneg %p238
        %p323 = pneg %p235
        %s324 = sand.u32 %s225, 1
        %s325 = scalar_lea.sflag [#allocation5], %s324
        %s326 = sand.u32 %s225, 1
        %s327 = smul.addr %s326, 2
        %s328 = scalar_lea.vmem [#allocation4], %s327
        %s329 = smul.u32 2, %s23
        %p330 = scmp.lt.s32.totalorder %s329, 3
        %s331 = scalar_select %p330, %s329, 3
        %s332 = smul.addr %s331, 7
        %s333 = smul.addr %s332, 8
        %s334 = scalar_lea.vmem %s0, %s333
        %s335 = smul.u32 2, %s23
        %v336 = vld [vmem:[%s334] sm:$0xff]
        %v337 = vld [vmem:[%s334 + $0x8] sm:$0xff]
        %v338 = vld [vmem:[%s334 + $0x10] sm:$0xff]
        %v339 = vld [vmem:[%s334 + $0x18] sm:$0xff]
        %v340 = vld [vmem:[%s334 + $0x20] sm:$0xff]
        %v341 = vld [vmem:[%s334 + $0x28] sm:$0xff]
        %v342 = vld [vmem:[%s334 + $0x30] sm:$0x1]
        %v343 = vld [vmem:[%s1] sm:$0xff]
        %v344 = vld [vmem:[%s1 + $0x8] sm:$0xff]
        %v345 = vld [vmem:[%s2] sm:$0x1]
        %v347 = vlaneseq
        %v348 = vshrl.u32 %v347, 7
        %v349 = vsub.s32 0, %v348
        %v350 = vrot.slane %v345, %v349
        %vm352 = vcmask 130048
        %v354 = vsel %vm352, %v336, 0
        %v357 = vsel %vm352, %v337, 0
        %v360 = vsel %vm352, %v338, 0
        %v363 = vsel %vm352, %v339, 0
        %v366 = vsel %vm352, %v340, 0
        %v369 = vsel %vm352, %v341, 0
        %v372 = vsel %vm352, %v342, 0
        %374 = vmatprep.subr.mxu0 0.0
        %375 = vmatpush1.msra.mxu0 %v343
        %376 = vmatprep.subr.mxu0 0.0
        %377 = vmatpush1.msra.mxu0 %v344
        %378 = vmatprep.subr.mxu0 0.0
        %379 = vmatpush1.msra.mxu0 0.0
        %380 = vmatprep.subr.mxu0 0.0
        %381 = vmatpush1.msra.mxu0 0.0
        %382 = vmatprep.subr.mxu0 0.0
        %383 = vmatpush1.msra.mxu0 0.0
        %384 = vmatprep.subr.mxu0 0.0
        %385 = vmatpush1.msra.mxu0 0.0
        %386 = vmatprep.subr.mxu0 0.0
        %387 = vmatpush1.msra.mxu0 0.0
        %388 = vmatprep.subr.mxu0 0.0
        %389 = vmatpush1.msra.mxu0 0.0
        %390 = vmatprep.subr.mxu0 0.0
        %391 = vmatpush1.msra.mxu0 0.0
        %392 = vmatprep.subr.mxu0 0.0
        %393 = vmatpush1.msra.mxu0 0.0
        %394 = vmatprep.subr.mxu0 0.0
        %395 = vmatpush1.msra.mxu0 0.0
        %396 = vmatprep.subr.mxu0 0.0
        %397 = vmatpush1.msra.mxu0 0.0
        %398 = vmatprep.subr.mxu0 0.0
        %399 = vmatpush1.msra.mxu0 0.0
        %400 = vmatprep.subr.mxu0 0.0
        %401 = vmatpush1.msra.mxu0 0.0
        %402 = vmatprep.subr.mxu0 0.0
        %403 = vmatpush1.msra.mxu0 0.0
        %404 = vmatprep.subr.mxu0 0.0
        %405 = vmatpush1.msra.mxu0 0.0
        %406 = vmatprep.subr.mxu0 0.0
        %407 = vmatpush1.msra.mxu0 0.0
        %408 = vmatprep.subr.mxu0 0.0
        %409 = vmatpush1.msra.mxu0 0.0
        %410 = vmatprep.subr.mxu0 0.0
        %411 = vmatpush1.msra.mxu0 0.0
        %412 = vmatprep.subr.mxu0 0.0
        %413 = vmatpush1.msra.mxu0 0.0
        %414 = vmatprep.subr.mxu0 0.0
        %415 = vmatpush1.msra.mxu0 0.0
        %416 = vmatprep.subr.mxu0 0.0
        %417 = vmatpush1.msra.mxu0 0.0
        %418 = vmatprep.subr.mxu0 0.0
        %419 = vmatpush1.msra.mxu0 0.0
        %420 = vmatprep.subr.mxu0 0.0
        %421 = vmatpush1.msra.mxu0 0.0
        %422 = vmatprep.subr.mxu0 0.0
        %423 = vmatpush1.msra.mxu0 0.0
        %424 = vmatprep.subr.mxu0 0.0
        %425 = vmatpush1.msra.mxu0 0.0
        %426 = vmatprep.subr.mxu0 0.0
        %427 = vmatpush1.msra.mxu0 0.0
        %428 = vmatprep.subr.mxu0 0.0
        %429 = vmatpush1.msra.mxu0 0.0
        %430 = vmatprep.subr.mxu0 0.0
        %431 = vmatpush1.msra.mxu0 0.0
        %432 = vmatprep.subr.mxu0 0.0
        %433 = vmatpush1.msra.mxu0 0.0
        %434 = vmatprep.subr.mxu0 0.0
        %435 = vmatpush1.msra.mxu0 0.0
        %436 = vmatprep.subr.mxu0 0.0
        %437 = vmatpush1.msra.mxu0 0.0
        %438 = vmatprep.mubr.f32.mxu0 0.0
        %439 = vmatmul.mubr.f32.gmra.mrb[0].mxu0 %v354
        %v440 = vpop.f32.mrb[0].mxu0
        %v441 = vadd.f32 %v350, %v440
        %v442 = vpop.f32.mrb[0].mxu0
        %443 = vmatprep.mubr.f32.mxu0 0.0
        %444 = vmatmul.mubr.f32.gmra.mrb[0].mxu0 %v357
        %v445 = vpop.f32.mrb[0].mxu0
        %v446 = vadd.f32 %v350, %v445
        %v447 = vpop.f32.mrb[0].mxu0
        %448 = vmatprep.mubr.f32.mxu0 0.0
        %449 = vmatmul.mubr.f32.gmra.mrb[0].mxu0 %v360
        %v450 = vpop.f32.mrb[0].mxu0
        %v451 = vadd.f32 %v350, %v450
        %v452 = vpop.f32.mrb[0].mxu0
        %453 = vmatprep.mubr.f32.mxu0 0.0
        %454 = vmatmul.mubr.f32.gmra.mrb[0].mxu0 %v363
        %v455 = vpop.f32.mrb[0].mxu0
        %v456 = vadd.f32 %v350, %v455
        %v457 = vpop.f32.mrb[0].mxu0
        %458 = vmatprep.mubr.f32.mxu0 0.0
        %459 = vmatmul.mubr.f32.gmra.mrb[0].mxu0 %v366
        %v460 = vpop.f32.mrb[0].mxu0
        %v461 = vadd.f32 %v350, %v460
        %v462 = vpop.f32.mrb[0].mxu0
        %463 = vmatprep.mubr.f32.mxu0 0.0
        %464 = vmatmul.mubr.f32.gmra.mrb[0].mxu0 %v369
        %v465 = vpop.f32.mrb[0].mxu0
        %v466 = vadd.f32 %v350, %v465
        %v467 = vpop.f32.mrb[0].mxu0
        %468 = vmatprep.mubr.f32.mxu0 0.0
        %469 = vmatmul.mubr.f32.gmra.mrb[0].mxu0 %v372
        %v470 = vpop.f32.mrb[0].mxu0
        %v471 = vadd.f32 %v350, %v470
        %v472 = vpop.f32.mrb[0].mxu0
        %473 = vdwg.mxu0
        %v474 = vmax.f32 %v441, 0.0
        %v475 = vmax.f32 %v446, 0.0
        %v476 = vmax.f32 %v451, 0.0
        %v477 = vmax.f32 %v456, 0.0
        %v478 = vmax.f32 %v461, 0.0
        %v479 = vmax.f32 %v466, 0.0
        %v480 = vmax.f32 %v471, 0.0
        %vm481 = vcmask 261120
        %482 = vst.msk [vmem:[#allocation2] sm:$0xff] %vm481, %v474
        %483 = vst.msk [vmem:[#allocation2 + $0x8] sm:$0xff] %vm481, %v475
        %484 = vst.msk [vmem:[#allocation2 + $0x10] sm:$0xff] %vm481, %v476
        %485 = vst.msk [vmem:[#allocation2 + $0x18] sm:$0xff] %vm481, %v477
        %486 = vst.msk [vmem:[#allocation2 + $0x20] sm:$0xff] %vm481, %v478
        %487 = vst.msk [vmem:[#allocation2 + $0x28] sm:$0xff] %vm481, %v479
        %vm488 = vcmask 253952
        %489 = vst.msk [vmem:[#allocation2 + $0x30] sm:$0x1] %vm488, %v480
        %s490 = scalar_lea.vmem %s334, 56
        %v491 = vld [vmem:[%s490] sm:$0xff]
        %v492 = vld [vmem:[%s490 + $0x8] sm:$0xff]
        %v493 = vld [vmem:[%s490 + $0x10] sm:$0xff]
        %v494 = vld [vmem:[%s490 + $0x18] sm:$0xff]
        %v495 = vld [vmem:[%s490 + $0x20] sm:$0xff]
        %v496 = vld [vmem:[%s490 + $0x28] sm:$0xff]
        %v497 = vld [vmem:[%s490 + $0x30] sm:$0x1]
        %v498 = vld [vmem:[%s1] sm:$0xff]
        %v499 = vld [vmem:[%s1 + $0x8] sm:$0xff]
        %v500 = vld [vmem:[%s2] sm:$0x1]
        %v502 = vlaneseq
        %v503 = vshrl.u32 %v502, 7
        %v504 = vsub.s32 0, %v503
        %v505 = vrot.slane %v500, %v504
        %v508 = vsel %vm352, %v491, 0
        %v511 = vsel %vm352, %v492, 0
        %v514 = vsel %vm352, %v493, 0
        %v517 = vsel %vm352, %v494, 0
        %v520 = vsel %vm352, %v495, 0
        %v523 = vsel %vm352, %v496, 0
        %v526 = vsel %vm352, %v497, 0
        %528 = vmatprep.subr.mxu0 0.0
        %529 = vmatpush1.msra.mxu0 %v498
        %530 = vmatprep.subr.mxu0 0.0
        %531 = vmatpush1.msra.mxu0 %v499
        %532 = vmatprep.subr.mxu0 0.0
        %533 = vmatpush1.msra.mxu0 0.0
        %534 = vmatprep.subr.mxu0 0.0
        %535 = vmatpush1.msra.mxu0 0.0
        %536 = vmatprep.subr.mxu0 0.0
        %537 = vmatpush1.msra.mxu0 0.0
        %538 = vmatprep.subr.mxu0 0.0
        %539 = vmatpush1.msra.mxu0 0.0
        %540 = vmatprep.subr.mxu0 0.0
        %541 = vmatpush1.msra.mxu0 0.0
        %542 = vmatprep.subr.mxu0 0.0
        %543 = vmatpush1.msra.mxu0 0.0
        %544 = vmatprep.subr.mxu0 0.0
        %545 = vmatpush1.msra.mxu0 0.0
        %546 = vmatprep.subr.mxu0 0.0
        %547 = vmatpush1.msra.mxu0 0.0
        %548 = vmatprep.subr.mxu0 0.0
        %549 = vmatpush1.msra.mxu0 0.0
        %550 = vmatprep.subr.mxu0 0.0
        %551 = vmatpush1.msra.mxu0 0.0
        %552 = vmatprep.subr.mxu0 0.0
        %553 = vmatpush1.msra.mxu0 0.0
        %554 = vmatprep.subr.mxu0 0.0
        %555 = vmatpush1.msra.mxu0 0.0
        %556 = vmatprep.subr.mxu0 0.0
        %557 = vmatpush1.msra.mxu0 0.0
        %558 = vmatprep.subr.mxu0 0.0
        %559 = vmatpush1.msra.mxu0 0.0
        %560 = vmatprep.subr.mxu0 0.0
        %561 = vmatpush1.msra.mxu0 0.0
        %562 = vmatprep.subr.mxu0 0.0
        %563 = vmatpush1.msra.mxu0 0.0
        %564 = vmatprep.subr.mxu0 0.0
        %565 = vmatpush1.msra.mxu0 0.0
        %566 = vmatprep.subr.mxu0 0.0
        %567 = vmatpush1.msra.mxu0 0.0
        %568 = vmatprep.subr.mxu0 0.0
        %569 = vmatpush1.msra.mxu0 0.0
        %570 = vmatprep.subr.mxu0 0.0
        %571 = vmatpush1.msra.mxu0 0.0
        %572 = vmatprep.subr.mxu0 0.0
        %573 = vmatpush1.msra.mxu0 0.0
        %574 = vmatprep.subr.mxu0 0.0
        %575 = vmatpush1.msra.mxu0 0.0
        %576 = vmatprep.subr.mxu0 0.0
        %577 = vmatpush1.msra.mxu0 0.0
        %578 = vmatprep.subr.mxu0 0.0
        %579 = vmatpush1.msra.mxu0 0.0
        %580 = vmatprep.subr.mxu0 0.0
        %581 = vmatpush1.msra.mxu0 0.0
        %582 = vmatprep.subr.mxu0 0.0
        %583 = vmatpush1.msra.mxu0 0.0
        %584 = vmatprep.subr.mxu0 0.0
        %585 = vmatpush1.msra.mxu0 0.0
        %586 = vmatprep.subr.mxu0 0.0
        %587 = vmatpush1.msra.mxu0 0.0
        %588 = vmatprep.subr.mxu0 0.0
        %589 = vmatpush1.msra.mxu0 0.0
        %590 = vmatprep.subr.mxu0 0.0
        %591 = vmatpush1.msra.mxu0 0.0
        %592 = vmatprep.mubr.f32.mxu0 0.0
        %593 = vmatmul.mubr.f32.gmra.mrb[0].mxu0 %v508
        %v594 = vpop.f32.mrb[0].mxu0
        %v595 = vadd.f32 %v505, %v594
        %v596 = vpop.f32.mrb[0].mxu0
        %597 = vmatprep.mubr.f32.mxu0 0.0
        %598 = vmatmul.mubr.f32.gmra.mrb[0].mxu0 %v511
        %v599 = vpop.f32.mrb[0].mxu0
        %v600 = vadd.f32 %v505, %v599
        %v601 = vpop.f32.mrb[0].mxu0
        %602 = vmatprep.mubr.f32.mxu0 0.0
        %603 = vmatmul.mubr.f32.gmra.mrb[0].mxu0 %v514
        %v604 = vpop.f32.mrb[0].mxu0
        %v605 = vadd.f32 %v505, %v604
        %v606 = vpop.f32.mrb[0].mxu0
        %607 = vmatprep.mubr.f32.mxu0 0.0
        %608 = vmatmul.mubr.f32.gmra.mrb[0].mxu0 %v517
        %v609 = vpop.f32.mrb[0].mxu0
        %v610 = vadd.f32 %v505, %v609
        %v611 = vpop.f32.mrb[0].mxu0
        %612 = vmatprep.mubr.f32.mxu0 0.0
        %613 = vmatmul.mubr.f32.gmra.mrb[0].mxu0 %v520
        %v614 = vpop.f32.mrb[0].mxu0
        %v615 = vadd.f32 %v505, %v614
        %v616 = vpop.f32.mrb[0].mxu0
        %617 = vmatprep.mubr.f32.mxu0 0.0
        %618 = vmatmul.mubr.f32.gmra.mrb[0].mxu0 %v523
        %v619 = vpop.f32.mrb[0].mxu0
        %v620 = vadd.f32 %v505, %v619
        %v621 = vpop.f32.mrb[0].mxu0
        %622 = vmatprep.mubr.f32.mxu0 0.0
        %623 = vmatmul.mubr.f32.gmra.mrb[0].mxu0 %v526
        %v624 = vpop.f32.mrb[0].mxu0
        %v625 = vadd.f32 %v505, %v624
        %v626 = vpop.f32.mrb[0].mxu0
        %627 = vdwg.mxu0
        %v628 = vmax.f32 %v595, 0.0
        %v629 = vmax.f32 %v600, 0.0
        %v630 = vmax.f32 %v605, 0.0
        %v631 = vmax.f32 %v610, 0.0
        %v632 = vmax.f32 %v615, 0.0
        %v633 = vmax.f32 %v620, 0.0
        %v634 = vmax.f32 %v625, 0.0
        %635 = vst.msk [vmem:[#allocation2 + $0x31] sm:$0xff] %vm481, %v628
        %636 = vst.msk [vmem:[#allocation2 + $0x39] sm:$0xff] %vm481, %v629
        %637 = vst.msk [vmem:[#allocation2 + $0x41] sm:$0xff] %vm481, %v630
        %638 = vst.msk [vmem:[#allocation2 + $0x49] sm:$0xff] %vm481, %v631
        %639 = vst.msk [vmem:[#allocation2 + $0x51] sm:$0xff] %vm481, %v632
        %640 = vst.msk [vmem:[#allocation2 + $0x59] sm:$0xff] %vm481, %v633
        %641 = vst.msk [vmem:[#allocation2 + $0x61] sm:$0x1] %vm488, %v634
        %v642 = vld [vmem:[#allocation2] ss:$49 sm:$0x3]
        %s643 = scalar_lea.vmem [#allocation2], 1
        %v644 = vld [vmem:[%s643] ss:$49 sm:$0x3]
        %s645 = scalar_lea.vmem [#allocation2], 2
        %v646 = vld [vmem:[%s645] ss:$49 sm:$0x3]
        %s647 = scalar_lea.vmem [#allocation2], 3
        %v648 = vld [vmem:[%s647] ss:$49 sm:$0x3]
        %s649 = scalar_lea.vmem [#allocation2], 7
        %v650 = vld [vmem:[%s649] ss:$49 sm:$0x3]
        %s651 = scalar_lea.vmem [#allocation2], 8
        %v652 = vld [vmem:[%s651] ss:$49 sm:$0x3]
        %s653 = scalar_lea.vmem [#allocation2], 9
        %v654 = vld [vmem:[%s653] ss:$49 sm:$0x3]
        %s655 = scalar_lea.vmem [#allocation2], 10
        %v656 = vld [vmem:[%s655] ss:$49 sm:$0x3]
        %s657 = scalar_lea.vmem [#allocation2], 14
        %v658 = vld [vmem:[%s657] ss:$49 sm:$0x3]
        %s659 = scalar_lea.vmem [#allocation2], 15
        %v660 = vld [vmem:[%s659] ss:$49 sm:$0x3]
        %s661 = scalar_lea.vmem [#allocation2], 16
        %v662 = vld [vmem:[%s661] ss:$49 sm:$0x3]
        %s663 = scalar_lea.vmem [#allocation2], 17
        %v664 = vld [vmem:[%s663] ss:$49 sm:$0x3]
        %s665 = scalar_lea.vmem [#allocation2], 21
        %v666 = vld [vmem:[%s665] ss:$49 sm:$0x3]
        %s667 = scalar_lea.vmem [#allocation2], 22
        %v668 = vld [vmem:[%s667] ss:$49 sm:$0x3]
        %s669 = scalar_lea.vmem [#allocation2], 23
        %v670 = vld [vmem:[%s669] ss:$49 sm:$0x3]
        %s671 = scalar_lea.vmem [#allocation2], 24
        %v672 = vld [vmem:[%s671] ss:$49 sm:$0x3]
        %v673 = vld [vmem:[%s3] sm:$0xff]
        %v674 = vld [vmem:[%s3 + $0x8] sm:$0xff]
        %v675 = vld [vmem:[%s3 + $0x10] sm:$0xff]
        %v676 = vld [vmem:[%s3 + $0x18] sm:$0xff]
        %v677 = vld [vmem:[%s3 + $0x20] sm:$0xff]
        %v678 = vld [vmem:[%s3 + $0x28] sm:$0xff]
        %v679 = vld [vmem:[%s3 + $0x30] sm:$0xff]
        %v680 = vld [vmem:[%s3 + $0x38] sm:$0xff]
        %v682 = vsel %vm481, %v644, 0
        %684 = vmatprep.subr.mxu0 0.0
        %685 = vmatpush1.msra.mxu0 %v677
        %686 = vmatprep.subr.mxu0 0.0
        %687 = vmatpush1.msra.mxu0 %v678
        %688 = vmatprep.subr.mxu0 0.0
        %689 = vmatpush1.msra.mxu0 %v679
        %690 = vmatprep.subr.mxu0 0.0
        %691 = vmatpush1.msra.mxu0 %v680
        %692 = vmatprep.subr.mxu0 0.0
        %693 = vmatpush1.msra.mxu0 0.0
        %694 = vmatprep.subr.mxu0 0.0
        %695 = vmatpush1.msra.mxu0 0.0
        %696 = vmatprep.subr.mxu0 0.0
        %697 = vmatpush1.msra.mxu0 0.0
        %698 = vmatprep.subr.mxu0 0.0
        %699 = vmatpush1.msra.mxu0 0.0
        %700 = vmatprep.subr.mxu0 0.0
        %701 = vmatpush1.msra.mxu0 0.0
        %702 = vmatprep.subr.mxu0 0.0
        %703 = vmatpush1.msra.mxu0 0.0
        %704 = vmatprep.subr.mxu0 0.0
        %705 = vmatpush1.msra.mxu0 0.0
        %706 = vmatprep.subr.mxu0 0.0
        %707 = vmatpush1.msra.mxu0 0.0
        %708 = vmatprep.subr.mxu0 0.0
        %709 = vmatpush1.msra.mxu0 0.0
        %710 = vmatprep.subr.mxu0 0.0
        %711 = vmatpush1.msra.mxu0 0.0
        %712 = vmatprep.subr.mxu0 0.0
        %713 = vmatpush1.msra.mxu0 0.0
        %714 = vmatprep.subr.mxu0 0.0
        %715 = vmatpush1.msra.mxu0 0.0
        %716 = vmatprep.subr.mxu0 0.0
        %717 = vmatpush1.msra.mxu0 0.0
        %718 = vmatprep.subr.mxu0 0.0
        %719 = vmatpush1.msra.mxu0 0.0
        %720 = vmatprep.subr.mxu0 0.0
        %721 = vmatpush1.msra.mxu0 0.0
        %722 = vmatprep.subr.mxu0 0.0
        %723 = vmatpush1.msra.mxu0 0.0
        %724 = vmatprep.subr.mxu0 0.0
        %725 = vmatpush1.msra.mxu0 0.0
        %726 = vmatprep.subr.mxu0 0.0
        %727 = vmatpush1.msra.mxu0 0.0
        %728 = vmatprep.subr.mxu0 0.0
        %729 = vmatpush1.msra.mxu0 0.0
        %730 = vmatprep.subr.mxu0 0.0
        %731 = vmatpush1.msra.mxu0 0.0
        %732 = vmatprep.subr.mxu0 0.0
        %733 = vmatpush1.msra.mxu0 0.0
        %734 = vmatprep.subr.mxu0 0.0
        %735 = vmatpush1.msra.mxu0 0.0
        %736 = vmatprep.subr.mxu0 0.0
        %737 = vmatpush1.msra.mxu0 0.0
        %738 = vmatprep.subr.mxu0 0.0
        %739 = vmatpush1.msra.mxu0 0.0
        %740 = vmatprep.subr.mxu0 0.0
        %741 = vmatpush1.msra.mxu0 0.0
        %742 = vmatprep.subr.mxu0 0.0
        %743 = vmatpush1.msra.mxu0 0.0
        %744 = vmatprep.subr.mxu0 0.0
        %745 = vmatpush1.msra.mxu0 0.0
        %746 = vmatprep.subr.mxu0 0.0
        %747 = vmatpush1.msra.mxu0 0.0
        %748 = vmatprep.mubr.f32.mxu0 0.0
        %749 = vmatmul.mubr.f32.gmra.mrb[0].mxu0 %v682
        %v750 = vpop.f32.mrb[0].mxu0
        %v751 = vadd.f32 0.0, %v750
        %v752 = vpop.f32.mrb[0].mxu0
        %753 = vdwg.mxu0
        %v755 = vsel %vm481, %v642, 0
        %757 = vmatprep.subr.mxu0 0.0
        %758 = vmatpush1.msra.mxu0 %v673
        %759 = vmatprep.subr.mxu0 0.0
        %760 = vmatpush1.msra.mxu0 %v674
        %761 = vmatprep.subr.mxu0 0.0
        %762 = vmatpush1.msra.mxu0 %v675
        %763 = vmatprep.subr.mxu0 0.0
        %764 = vmatpush1.msra.mxu0 %v676
        %765 = vmatprep.subr.mxu0 0.0
        %766 = vmatpush1.msra.mxu0 0.0
        %767 = vmatprep.subr.mxu0 0.0
        %768 = vmatpush1.msra.mxu0 0.0
        %769 = vmatprep.subr.mxu0 0.0
        %770 = vmatpush1.msra.mxu0 0.0
        %771 = vmatprep.subr.mxu0 0.0
        %772 = vmatpush1.msra.mxu0 0.0
        %773 = vmatprep.subr.mxu0 0.0
        %774 = vmatpush1.msra.mxu0 0.0
        %775 = vmatprep.subr.mxu0 0.0
        %776 = vmatpush1.msra.mxu0 0.0
        %777 = vmatprep.subr.mxu0 0.0
        %778 = vmatpush1.msra.mxu0 0.0
        %779 = vmatprep.subr.mxu0 0.0
        %780 = vmatpush1.msra.mxu0 0.0
        %781 = vmatprep.subr.mxu0 0.0
        %782 = vmatpush1.msra.mxu0 0.0
        %783 = vmatprep.subr.mxu0 0.0
        %784 = vmatpush1.msra.mxu0 0.0
        %785 = vmatprep.subr.mxu0 0.0
        %786 = vmatpush1.msra.mxu0 0.0
        %787 = vmatprep.subr.mxu0 0.0
        %788 = vmatpush1.msra.mxu0 0.0
        %789 = vmatprep.subr.mxu0 0.0
        %790 = vmatpush1.msra.mxu0 0.0
        %791 = vmatprep.subr.mxu0 0.0
        %792 = vmatpush1.msra.mxu0 0.0
        %793 = vmatprep.subr.mxu0 0.0
        %794 = vmatpush1.msra.mxu0 0.0
        %795 = vmatprep.subr.mxu0 0.0
        %796 = vmatpush1.msra.mxu0 0.0
        %797 = vmatprep.subr.mxu0 0.0
        %798 = vmatpush1.msra.mxu0 0.0
        %799 = vmatprep.subr.mxu0 0.0
        %800 = vmatpush1.msra.mxu0 0.0
        %801 = vmatprep.subr.mxu0 0.0
        %802 = vmatpush1.msra.mxu0 0.0
        %803 = vmatprep.subr.mxu0 0.0
        %804 = vmatpush1.msra.mxu0 0.0
        %805 = vmatprep.subr.mxu0 0.0
        %806 = vmatpush1.msra.mxu0 0.0
        %807 = vmatprep.subr.mxu0 0.0
        %808 = vmatpush1.msra.mxu0 0.0
        %809 = vmatprep.subr.mxu0 0.0
        %810 = vmatpush1.msra.mxu0 0.0
        %811 = vmatprep.subr.mxu0 0.0
        %812 = vmatpush1.msra.mxu0 0.0
        %813 = vmatprep.subr.mxu0 0.0
        %814 = vmatpush1.msra.mxu0 0.0
        %815 = vmatprep.subr.mxu0 0.0
        %816 = vmatpush1.msra.mxu0 0.0
        %817 = vmatprep.subr.mxu0 0.0
        %818 = vmatpush1.msra.mxu0 0.0
        %819 = vmatprep.subr.mxu0 0.0
        %820 = vmatpush1.msra.mxu0 0.0
        %821 = vmatprep.mubr.f32.mxu0 0.0
        %822 = vmatmul.mubr.f32.gmra.mrb[0].mxu0 %v755
        %v823 = vpop.f32.mrb[0].mxu0
        %v824 = vadd.f32 %v751, %v823
        %v825 = vpop.f32.mrb[0].mxu0
        %826 = vdwg.mxu0
        %v827 = vld [vmem:[%s3 + $0x40] sm:$0xff]
        %v828 = vld [vmem:[%s3 + $0x48] sm:$0xff]
        %v829 = vld [vmem:[%s3 + $0x50] sm:$0xff]
        %v830 = vld [vmem:[%s3 + $0x58] sm:$0xff]
        %v832 = vsel %vm481, %v646, 0
        %834 = vmatprep.subr.mxu0 0.0
        %835 = vmatpush1.msra.mxu0 %v827
        %836 = vmatprep.subr.mxu0 0.0
        %837 = vmatpush1.msra.mxu0 %v828
        %838 = vmatprep.subr.mxu0 0.0
        %839 = vmatpush1.msra.mxu0 %v829
        %840 = vmatprep.subr.mxu0 0.0
        %841 = vmatpush1.msra.mxu0 %v830
        %842 = vmatprep.subr.mxu0 0.0
        %843 = vmatpush1.msra.mxu0 0.0
        %844 = vmatprep.subr.mxu0 0.0
        %845 = vmatpush1.msra.mxu0 0.0
        %846 = vmatprep.subr.mxu0 0.0
        %847 = vmatpush1.msra.mxu0 0.0
        %848 = vmatprep.subr.mxu0 0.0
        %849 = vmatpush1.msra.mxu0 0.0
        %850 = vmatprep.subr.mxu0 0.0
        %851 = vmatpush1.msra.mxu0 0.0
        %852 = vmatprep.subr.mxu0 0.0
        %853 = vmatpush1.msra.mxu0 0.0
        %854 = vmatprep.subr.mxu0 0.0
        %855 = vmatpush1.msra.mxu0 0.0
        %856 = vmatprep.subr.mxu0 0.0
        %857 = vmatpush1.msra.mxu0 0.0
        %858 = vmatprep.subr.mxu0 0.0
        %859 = vmatpush1.msra.mxu0 0.0
        %860 = vmatprep.subr.mxu0 0.0
        %861 = vmatpush1.msra.mxu0 0.0
        %862 = vmatprep.subr.mxu0 0.0
        %863 = vmatpush1.msra.mxu0 0.0
        %864 = vmatprep.subr.mxu0 0.0
        %865 = vmatpush1.msra.mxu0 0.0
        %866 = vmatprep.subr.mxu0 0.0
        %867 = vmatpush1.msra.mxu0 0.0
        %868 = vmatprep.subr.mxu0 0.0
        %869 = vmatpush1.msra.mxu0 0.0
        %870 = vmatprep.subr.mxu0 0.0
        %871 = vmatpush1.msra.mxu0 0.0
        %872 = vmatprep.subr.mxu0 0.0
        %873 = vmatpush1.msra.mxu0 0.0
        %874 = vmatprep.subr.mxu0 0.0
        %875 = vmatpush1.msra.mxu0 0.0
        %876 = vmatprep.subr.mxu0 0.0
        %877 = vmatpush1.msra.mxu0 0.0
        %878 = vmatprep.subr.mxu0 0.0
        %879 = vmatpush1.msra.mxu0 0.0
        %880 = vmatprep.subr.mxu0 0.0
        %881 = vmatpush1.msra.mxu0 0.0
        %882 = vmatprep.subr.mxu0 0.0
        %883 = vmatpush1.msra.mxu0 0.0
        %884 = vmatprep.subr.mxu0 0.0
        %885 = vmatpush1.msra.mxu0 0.0
        %886 = vmatprep.subr.mxu0 0.0
        %887 = vmatpush1.msra.mxu0 0.0
        %888 = vmatprep.subr.mxu0 0.0
        %889 = vmatpush1.msra.mxu0 0.0
        %890 = vmatprep.subr.mxu0 0.0
        %891 = vmatpush1.msra.mxu0 0.0
        %892 = vmatprep.subr.mxu0 0.0
        %893 = vmatpush1.msra.mxu0 0.0
        %894 = vmatprep.subr.mxu0 0.0
        %895 = vmatpush1.msra.mxu0 0.0
        %896 = vmatprep.subr.mxu0 0.0
        %897 = vmatpush1.msra.mxu0 0.0
        %898 = vmatprep.mubr.f32.mxu0 0.0
        %899 = vmatmul.mubr.f32.gmra.mrb[0].mxu0 %v832
        %v900 = vpop.f32.mrb[0].mxu0
        %v901 = vadd.f32 0.0, %v900
        %v902 = vpop.f32.mrb[0].mxu0
        %903 = vdwg.mxu0
        %v904 = vadd.f32 %v824, %v901
        %v905 = vld [vmem:[%s3 + $0x60] sm:$0xff]
        %v906 = vld [vmem:[%s3 + $0x68] sm:$0xff]
        %v907 = vld [vmem:[%s3 + $0x70] sm:$0xff]
        %v908 = vld [vmem:[%s3 + $0x78] sm:$0xff]
        %v910 = vsel %vm481, %v648, 0
        %912 = vmatprep.subr.mxu0 0.0
        %913 = vmatpush1.msra.mxu0 %v905
        %914 = vmatprep.subr.mxu0 0.0
        %915 = vmatpush1.msra.mxu0 %v906
        %916 = vmatprep.subr.mxu0 0.0
        %917 = vmatpush1.msra.mxu0 %v907
        %918 = vmatprep.subr.mxu0 0.0
        %919 = vmatpush1.msra.mxu0 %v908
        %920 = vmatprep.subr.mxu0 0.0
        %921 = vmatpush1.msra.mxu0 0.0
        %922 = vmatprep.subr.mxu0 0.0
        %923 = vmatpush1.msra.mxu0 0.0
        %924 = vmatprep.subr.mxu0 0.0
        %925 = vmatpush1.msra.mxu0 0.0
        %926 = vmatprep.subr.mxu0 0.0
        %927 = vmatpush1.msra.mxu0 0.0
        %928 = vmatprep.subr.mxu0 0.0
        %929 = vmatpush1.msra.mxu0 0.0
        %930 = vmatprep.subr.mxu0 0.0
        %931 = vmatpush1.msra.mxu0 0.0
        %932 = vmatprep.subr.mxu0 0.0
        %933 = vmatpush1.msra.mxu0 0.0
        %934 = vmatprep.subr.mxu0 0.0
        %935 = vmatpush1.msra.mxu0 0.0
        %936 = vmatprep.subr.mxu0 0.0
        %937 = vmatpush1.msra.mxu0 0.0
        %938 = vmatprep.subr.mxu0 0.0
        %939 = vmatpush1.msra.mxu0 0.0
        %940 = vmatprep.subr.mxu0 0.0
        %941 = vmatpush1.msra.mxu0 0.0
        %942 = vmatprep.subr.mxu0 0.0
        %943 = vmatpush1.msra.mxu0 0.0
        %944 = vmatprep.subr.mxu0 0.0
        %945 = vmatpush1.msra.mxu0 0.0
        %946 = vmatprep.subr.mxu0 0.0
        %947 = vmatpush1.msra.mxu0 0.0
        %948 = vmatprep.subr.mxu0 0.0
        %949 = vmatpush1.msra.mxu0 0.0
        %950 = vmatprep.subr.mxu0 0.0
        %951 = vmatpush1.msra.mxu0 0.0
        %952 = vmatprep.subr.mxu0 0.0
        %953 = vmatpush1.msra.mxu0 0.0
        %954 = vmatprep.subr.mxu0 0.0
        %955 = vmatpush1.msra.mxu0 0.0
        %956 = vmatprep.subr.mxu0 0.0
        %957 = vmatpush1.msra.mxu0 0.0
        %958 = vmatprep.subr.mxu0 0.0
        %959 = vmatpush1.msra.mxu0 0.0
        %960 = vmatprep.subr.mxu0 0.0
        %961 = vmatpush1.msra.mxu0 0.0
        %962 = vmatprep.subr.mxu0 0.0
        %963 = vmatpush1.msra.mxu0 0.0
        %964 = vmatprep.subr.mxu0 0.0
        %965 = vmatpush1.msra.mxu0 0.0
        %966 = vmatprep.subr.mxu0 0.0
        %967 = vmatpush1.msra.mxu0 0.0
        %968 = vmatprep.subr.mxu0 0.0
        %969 = vmatpush1.msra.mxu0 0.0
        %970 = vmatprep.subr.mxu0 0.0
        %971 = vmatpush1.msra.mxu0 0.0
        %972 = vmatprep.subr.mxu0 0.0
        %973 = vmatpush1.msra.mxu0 0.0
        %974 = vmatprep.subr.mxu0 0.0
        %975 = vmatpush1.msra.mxu0 0.0
        %976 = vmatprep.mubr.f32.mxu0 0.0
        %977 = vmatmul.mubr.f32.gmra.mrb[0].mxu0 %v910
        %v978 = vpop.f32.mrb[0].mxu0
        %v979 = vadd.f32 0.0, %v978
        %v980 = vpop.f32.mrb[0].mxu0
        %981 = vdwg.mxu0
        %v982 = vadd.f32 %v904, %v979
        %v983 = vld [vmem:[%s3 + $0x80] sm:$0xff]
        %v984 = vld [vmem:[%s3 + $0x88] sm:$0xff]
        %v985 = vld [vmem:[%s3 + $0x90] sm:$0xff]
        %v986 = vld [vmem:[%s3 + $0x98] sm:$0xff]
        %v988 = vsel %vm481, %v650, 0
        %990 = vmatprep.subr.mxu0 0.0
        %991 = vmatpush1.msra.mxu0 %v983
        %992 = vmatprep.subr.mxu0 0.0
        %993 = vmatpush1.msra.mxu0 %v984
        %994 = vmatprep.subr.mxu0 0.0
        %995 = vmatpush1.msra.mxu0 %v985
        %996 = vmatprep.subr.mxu0 0.0
        %997 = vmatpush1.msra.mxu0 %v986
        %998 = vmatprep.subr.mxu0 0.0
        %999 = vmatpush1.msra.mxu0 0.0
        %1000 = vmatprep.subr.mxu0 0.0
        %1001 = vmatpush1.msra.mxu0 0.0
        %1002 = vmatprep.subr.mxu0 0.0
        %1003 = vmatpush1.msra.mxu0 0.0
        %1004 = vmatprep.subr.mxu0 0.0
        %1005 = vmatpush1.msra.mxu0 0.0
        %1006 = vmatprep.subr.mxu0 0.0
        %1007 = vmatpush1.msra.mxu0 0.0
        %1008 = vmatprep.subr.mxu0 0.0
        %1009 = vmatpush1.msra.mxu0 0.0
        %1010 = vmatprep.subr.mxu0 0.0
        %1011 = vmatpush1.msra.mxu0 0.0
        %1012 = vmatprep.subr.mxu0 0.0
        %1013 = vmatpush1.msra.mxu0 0.0
        %1014 = vmatprep.subr.mxu0 0.0
        %1015 = vmatpush1.msra.mxu0 0.0
        %1016 = vmatprep.subr.mxu0 0.0
        %1017 = vmatpush1.msra.mxu0 0.0
        %1018 = vmatprep.subr.mxu0 0.0
        %1019 = vmatpush1.msra.mxu0 0.0
        %1020 = vmatprep.subr.mxu0 0.0
        %1021 = vmatpush1.msra.mxu0 0.0
        %1022 = vmatprep.subr.mxu0 0.0
        %1023 = vmatpush1.msra.mxu0 0.0
        %1024 = vmatprep.subr.mxu0 0.0
        %1025 = vmatpush1.msra.mxu0 0.0
        %1026 = vmatprep.subr.mxu0 0.0
        %1027 = vmatpush1.msra.mxu0 0.0
        %1028 = vmatprep.subr.mxu0 0.0
        %1029 = vmatpush1.msra.mxu0 0.0
        %1030 = vmatprep.subr.mxu0 0.0
        %1031 = vmatpush1.msra.mxu0 0.0
        %1032 = vmatprep.subr.mxu0 0.0
        %1033 = vmatpush1.msra.mxu0 0.0
        %1034 = vmatprep.subr.mxu0 0.0
        %1035 = vmatpush1.msra.mxu0 0.0
        %1036 = vmatprep.subr.mxu0 0.0
        %1037 = vmatpush1.msra.mxu0 0.0
        %1038 = vmatprep.subr.mxu0 0.0
        %1039 = vmatpush1.msra.mxu0 0.0
        %1040 = vmatprep.subr.mxu0 0.0
        %1041 = vmatpush1.msra.mxu0 0.0
        %1042 = vmatprep.subr.mxu0 0.0
        %1043 = vmatpush1.msra.mxu0 0.0
        %1044 = vmatprep.subr.mxu0 0.0
        %1045 = vmatpush1.msra.mxu0 0.0
        %1046 = vmatprep.subr.mxu0 0.0
        %1047 = vmatpush1.msra.mxu0 0.0
        %1048 = vmatprep.subr.mxu0 0.0
        %1049 = vmatpush1.msra.mxu0 0.0
        %1050 = vmatprep.subr.mxu0 0.0
        %1051 = vmatpush1.msra.mxu0 0.0
        %1052 = vmatprep.subr.mxu0 0.0
        %1053 = vmatpush1.msra.mxu0 0.0
        %1054 = vmatprep.mubr.f32.mxu0 0.0
        %1055 = vmatmul.mubr.f32.gmra.mrb[0].mxu0 %v988
        %v1056 = vpop.f32.mrb[0].mxu0
        %v1057 = vadd.f32 0.0, %v1056
        %v1058 = vpop.f32.mrb[0].mxu0
        %1059 = vdwg.mxu0
        %v1060 = vadd.f32 %v982, %v1057
        %v1061 = vld [vmem:[%s3 + $0xa0] sm:$0xff]
        %v1062 = vld [vmem:[%s3 + $0xa8] sm:$0xff]
        %v1063 = vld [vmem:[%s3 + $0xb0] sm:$0xff]
        %v1064 = vld [vmem:[%s3 + $0xb8] sm:$0xff]
        %v1066 = vsel %vm481, %v652, 0
        %1068 = vmatprep.subr.mxu0 0.0
        %1069 = vmatpush1.msra.mxu0 %v1061
        %1070 = vmatprep.subr.mxu0 0.0
        %1071 = vmatpush1.msra.mxu0 %v1062
        %1072 = vmatprep.subr.mxu0 0.0
        %1073 = vmatpush1.msra.mxu0 %v1063
        %1074 = vmatprep.subr.mxu0 0.0
        %1075 = vmatpush1.msra.mxu0 %v1064
        %1076 = vmatprep.subr.mxu0 0.0
        %1077 = vmatpush1.msra.mxu0 0.0
        %1078 = vmatprep.subr.mxu0 0.0
        %1079 = vmatpush1.msra.mxu0 0.0
        %1080 = vmatprep.subr.mxu0 0.0
        %1081 = vmatpush1.msra.mxu0 0.0
        %1082 = vmatprep.subr.mxu0 0.0
        %1083 = vmatpush1.msra.mxu0 0.0
        %1084 = vmatprep.subr.mxu0 0.0
        %1085 = vmatpush1.msra.mxu0 0.0
        %1086 = vmatprep.subr.mxu0 0.0
        %1087 = vmatpush1.msra.mxu0 0.0
        %1088 = vmatprep.subr.mxu0 0.0
        %1089 = vmatpush1.msra.mxu0 0.0
        %1090 = vmatprep.subr.mxu0 0.0
        %1091 = vmatpush1.msra.mxu0 0.0
        %1092 = vmatprep.subr.mxu0 0.0
        %1093 = vmatpush1.msra.mxu0 0.0
        %1094 = vmatprep.subr.mxu0 0.0
        %1095 = vmatpush1.msra.mxu0 0.0
        %1096 = vmatprep.subr.mxu0 0.0
        %1097 = vmatpush1.msra.mxu0 0.0
        %1098 = vmatprep.subr.mxu0 0.0
        %1099 = vmatpush1.msra.mxu0 0.0
        %1100 = vmatprep.subr.mxu0 0.0
        %1101 = vmatpush1.msra.mxu0 0.0
        %1102 = vmatprep.subr.mxu0 0.0
        %1103 = vmatpush1.msra.mxu0 0.0
        %1104 = vmatprep.subr.mxu0 0.0
        %1105 = vmatpush1.msra.mxu0 0.0
        %1106 = vmatprep.subr.mxu0 0.0
        %1107 = vmatpush1.msra.mxu0 0.0
        %1108 = vmatprep.subr.mxu0 0.0
        %1109 = vmatpush1.msra.mxu0 0.0
        %1110 = vmatprep.subr.mxu0 0.0
        %1111 = vmatpush1.msra.mxu0 0.0
        %1112 = vmatprep.subr.mxu0 0.0
        %1113 = vmatpush1.msra.mxu0 0.0
        %1114 = vmatprep.subr.mxu0 0.0
        %1115 = vmatpush1.msra.mxu0 0.0
        %1116 = vmatprep.subr.mxu0 0.0
        %1117 = vmatpush1.msra.mxu0 0.0
        %1118 = vmatprep.subr.mxu0 0.0
        %1119 = vmatpush1.msra.mxu0 0.0
        %1120 = vmatprep.subr.mxu0 0.0
        %1121 = vmatpush1.msra.mxu0 0.0
        %1122 = vmatprep.subr.mxu0 0.0
        %1123 = vmatpush1.msra.mxu0 0.0
        %1124 = vmatprep.subr.mxu0 0.0
        %1125 = vmatpush1.msra.mxu0 0.0
        %1126 = vmatprep.subr.mxu0 0.0
        %1127 = vmatpush1.msra.mxu0 0.0
        %1128 = vmatprep.subr.mxu0 0.0
        %1129 = vmatpush1.msra.mxu0 0.0
        %1130 = vmatprep.subr.mxu0 0.0
        %1131 = vmatpush1.msra.mxu0 0.0
        %1132 = vmatprep.mubr.f32.mxu0 0.0
        %1133 = vmatmul.mubr.f32.gmra.mrb[0].mxu0 %v1066
        %v1134 = vpop.f32.mrb[0].mxu0
        %v1135 = vadd.f32 0.0, %v1134
        %v1136 = vpop.f32.mrb[0].mxu0
        %1137 = vdwg.mxu0
        %v1138 = vadd.f32 %v1060, %v1135
        %v1139 = vld [vmem:[%s3 + $0xc0] sm:$0xff]
        %v1140 = vld [vmem:[%s3 + $0xc8] sm:$0xff]
        %v1141 = vld [vmem:[%s3 + $0xd0] sm:$0xff]
        %v1142 = vld [vmem:[%s3 + $0xd8] sm:$0xff]
        %v1144 = vsel %vm481, %v654, 0
        %1146 = vmatprep.subr.mxu0 0.0
        %1147 = vmatpush1.msra.mxu0 %v1139
        %1148 = vmatprep.subr.mxu0 0.0
        %1149 = vmatpush1.msra.mxu0 %v1140
        %1150 = vmatprep.subr.mxu0 0.0
        %1151 = vmatpush1.msra.mxu0 %v1141
        %1152 = vmatprep.subr.mxu0 0.0
        %1153 = vmatpush1.msra.mxu0 %v1142
        %1154 = vmatprep.subr.mxu0 0.0
        %1155 = vmatpush1.msra.mxu0 0.0
        %1156 = vmatprep.subr.mxu0 0.0
        %1157 = vmatpush1.msra.mxu0 0.0
        %1158 = vmatprep.subr.mxu0 0.0
        %1159 = vmatpush1.msra.mxu0 0.0
        %1160 = vmatprep.subr.mxu0 0.0
        %1161 = vmatpush1.msra.mxu0 0.0
        %1162 = vmatprep.subr.mxu0 0.0
        %1163 = vmatpush1.msra.mxu0 0.0
        %1164 = vmatprep.subr.mxu0 0.0
        %1165 = vmatpush1.msra.mxu0 0.0
        %1166 = vmatprep.subr.mxu0 0.0
        %1167 = vmatpush1.msra.mxu0 0.0
        %1168 = vmatprep.subr.mxu0 0.0
        %1169 = vmatpush1.msra.mxu0 0.0
        %1170 = vmatprep.subr.mxu0 0.0
        %1171 = vmatpush1.msra.mxu0 0.0
        %1172 = vmatprep.subr.mxu0 0.0
        %1173 = vmatpush1.msra.mxu0 0.0
        %1174 = vmatprep.subr.mxu0 0.0
        %1175 = vmatpush1.msra.mxu0 0.0
        %1176 = vmatprep.subr.mxu0 0.0
        %1177 = vmatpush1.msra.mxu0 0.0
        %1178 = vmatprep.subr.mxu0 0.0
        %1179 = vmatpush1.msra.mxu0 0.0
        %1180 = vmatprep.subr.mxu0 0.0
        %1181 = vmatpush1.msra.mxu0 0.0
        %1182 = vmatprep.subr.mxu0 0.0
        %1183 = vmatpush1.msra.mxu0 0.0
        %1184 = vmatprep.subr.mxu0 0.0
        %1185 = vmatpush1.msra.mxu0 0.0
        %1186 = vmatprep.subr.mxu0 0.0
        %1187 = vmatpush1.msra.mxu0 0.0
        %1188 = vmatprep.subr.mxu0 0.0
        %1189 = vmatpush1.msra.mxu0 0.0
        %1190 = vmatprep.subr.mxu0 0.0
        %1191 = vmatpush1.msra.mxu0 0.0
        %1192 = vmatprep.subr.mxu0 0.0
        %1193 = vmatpush1.msra.mxu0 0.0
        %1194 = vmatprep.subr.mxu0 0.0
        %1195 = vmatpush1.msra.mxu0 0.0
        %1196 = vmatprep.subr.mxu0 0.0
        %1197 = vmatpush1.msra.mxu0 0.0
        %1198 = vmatprep.subr.mxu0 0.0
        %1199 = vmatpush1.msra.mxu0 0.0
        %1200 = vmatprep.subr.mxu0 0.0
        %1201 = vmatpush1.msra.mxu0 0.0
        %1202 = vmatprep.subr.mxu0 0.0
        %1203 = vmatpush1.msra.mxu0 0.0
        %1204 = vmatprep.subr.mxu0 0.0
        %1205 = vmatpush1.msra.mxu0 0.0
        %1206 = vmatprep.subr.mxu0 0.0
        %1207 = vmatpush1.msra.mxu0 0.0
        %1208 = vmatprep.subr.mxu0 0.0
        %1209 = vmatpush1.msra.mxu0 0.0
        %1210 = vmatprep.mubr.f32.mxu0 0.0
        %1211 = vmatmul.mubr.f32.gmra.mrb[0].mxu0 %v1144
        %v1212 = vpop.f32.mrb[0].mxu0
        %v1213 = vadd.f32 0.0, %v1212
        %v1214 = vpop.f32.mrb[0].mxu0
        %1215 = vdwg.mxu0
        %v1216 = vadd.f32 %v1138, %v1213
        %v1217 = vld [vmem:[%s3 + $0xe0] sm:$0xff]
        %v1218 = vld [vmem:[%s3 + $0xe8] sm:$0xff]
        %v1219 = vld [vmem:[%s3 + $0xf0] sm:$0xff]
        %v1220 = vld [vmem:[%s3 + $0xf8] sm:$0xff]
        %v1222 = vsel %vm481, %v656, 0
        %1224 = vmatprep.subr.mxu0 0.0
        %1225 = vmatpush1.msra.mxu0 %v1217
        %1226 = vmatprep.subr.mxu0 0.0
        %1227 = vmatpush1.msra.mxu0 %v1218
        %1228 = vmatprep.subr.mxu0 0.0
        %1229 = vmatpush1.msra.mxu0 %v1219
        %1230 = vmatprep.subr.mxu0 0.0
        %1231 = vmatpush1.msra.mxu0 %v1220
        %1232 = vmatprep.subr.mxu0 0.0
        %1233 = vmatpush1.msra.mxu0 0.0
        %1234 = vmatprep.subr.mxu0 0.0
        %1235 = vmatpush1.msra.mxu0 0.0
        %1236 = vmatprep.subr.mxu0 0.0
        %1237 = vmatpush1.msra.mxu0 0.0
        %1238 = vmatprep.subr.mxu0 0.0
        %1239 = vmatpush1.msra.mxu0 0.0
        %1240 = vmatprep.subr.mxu0 0.0
        %1241 = vmatpush1.msra.mxu0 0.0
        %1242 = vmatprep.subr.mxu0 0.0
        %1243 = vmatpush1.msra.mxu0 0.0
        %1244 = vmatprep.subr.mxu0 0.0
        %1245 = vmatpush1.msra.mxu0 0.0
        %1246 = vmatprep.subr.mxu0 0.0
        %1247 = vmatpush1.msra.mxu0 0.0
        %1248 = vmatprep.subr.mxu0 0.0
        %1249 = vmatpush1.msra.mxu0 0.0
        %1250 = vmatprep.subr.mxu0 0.0
        %1251 = vmatpush1.msra.mxu0 0.0
        %1252 = vmatprep.subr.mxu0 0.0
        %1253 = vmatpush1.msra.mxu0 0.0
        %1254 = vmatprep.subr.mxu0 0.0
        %1255 = vmatpush1.msra.mxu0 0.0
        %1256 = vmatprep.subr.mxu0 0.0
        %1257 = vmatpush1.msra.mxu0 0.0
        %1258 = vmatprep.subr.mxu0 0.0
        %1259 = vmatpush1.msra.mxu0 0.0
        %1260 = vmatprep.subr.mxu0 0.0
        %1261 = vmatpush1.msra.mxu0 0.0
        %1262 = vmatprep.subr.mxu0 0.0
        %1263 = vmatpush1.msra.mxu0 0.0
        %1264 = vmatprep.subr.mxu0 0.0
        %1265 = vmatpush1.msra.mxu0 0.0
        %1266 = vmatprep.subr.mxu0 0.0
        %1267 = vmatpush1.msra.mxu0 0.0
        %1268 = vmatprep.subr.mxu0 0.0
        %1269 = vmatpush1.msra.mxu0 0.0
        %1270 = vmatprep.subr.mxu0 0.0
        %1271 = vmatpush1.msra.mxu0 0.0
        %1272 = vmatprep.subr.mxu0 0.0
        %1273 = vmatpush1.msra.mxu0 0.0
        %1274 = vmatprep.subr.mxu0 0.0
        %1275 = vmatpush1.msra.mxu0 0.0
        %1276 = vmatprep.subr.mxu0 0.0
        %1277 = vmatpush1.msra.mxu0 0.0
        %1278 = vmatprep.subr.mxu0 0.0
        %1279 = vmatpush1.msra.mxu0 0.0
        %1280 = vmatprep.subr.mxu0 0.0
        %1281 = vmatpush1.msra.mxu0 0.0
        %1282 = vmatprep.subr.mxu0 0.0
        %1283 = vmatpush1.msra.mxu0 0.0
        %1284 = vmatprep.subr.mxu0 0.0
        %1285 = vmatpush1.msra.mxu0 0.0
        %1286 = vmatprep.subr.mxu0 0.0
        %1287 = vmatpush1.msra.mxu0 0.0
        %1288 = vmatprep.mubr.f32.mxu0 0.0
        %1289 = vmatmul.mubr.f32.gmra.mrb[0].mxu0 %v1222
        %v1290 = vpop.f32.mrb[0].mxu0
        %v1291 = vadd.f32 0.0, %v1290
        %v1292 = vpop.f32.mrb[0].mxu0
        %1293 = vdwg.mxu0
        %v1294 = vadd.f32 %v1216, %v1291
        %v1295 = vld [vmem:[%s3 + $0x100] sm:$0xff]
        %v1296 = vld [vmem:[%s3 + $0x108] sm:$0xff]
        %v1297 = vld [vmem:[%s3 + $0x110] sm:$0xff]
        %v1298 = vld [vmem:[%s3 + $0x118] sm:$0xff]
        %v1300 = vsel %vm481, %v658, 0
        %1302 = vmatprep.subr.mxu0 0.0
        %1303 = vmatpush1.msra.mxu0 %v1295
        %1304 = vmatprep.subr.mxu0 0.0
        %1305 = vmatpush1.msra.mxu0 %v1296
        %1306 = vmatprep.subr.mxu0 0.0
        %1307 = vmatpush1.msra.mxu0 %v1297
        %1308 = vmatprep.subr.mxu0 0.0
        %1309 = vmatpush1.msra.mxu0 %v1298
        %1310 = vmatprep.subr.mxu0 0.0
        %1311 = vmatpush1.msra.mxu0 0.0
        %1312 = vmatprep.subr.mxu0 0.0
        %1313 = vmatpush1.msra.mxu0 0.0
        %1314 = vmatprep.subr.mxu0 0.0
        %1315 = vmatpush1.msra.mxu0 0.0
        %1316 = vmatprep.subr.mxu0 0.0
        %1317 = vmatpush1.msra.mxu0 0.0
        %1318 = vmatprep.subr.mxu0 0.0
        %1319 = vmatpush1.msra.mxu0 0.0
        %1320 = vmatprep.subr.mxu0 0.0
        %1321 = vmatpush1.msra.mxu0 0.0
        %1322 = vmatprep.subr.mxu0 0.0
        %1323 = vmatpush1.msra.mxu0 0.0
        %1324 = vmatprep.subr.mxu0 0.0
        %1325 = vmatpush1.msra.mxu0 0.0
        %1326 = vmatprep.subr.mxu0 0.0
        %1327 = vmatpush1.msra.mxu0 0.0
        %1328 = vmatprep.subr.mxu0 0.0
        %1329 = vmatpush1.msra.mxu0 0.0
        %1330 = vmatprep.subr.mxu0 0.0
        %1331 = vmatpush1.msra.mxu0 0.0
        %1332 = vmatprep.subr.mxu0 0.0
        %1333 = vmatpush1.msra.mxu0 0.0
        %1334 = vmatprep.subr.mxu0 0.0
        %1335 = vmatpush1.msra.mxu0 0.0
        %1336 = vmatprep.subr.mxu0 0.0
        %1337 = vmatpush1.msra.mxu0 0.0
        %1338 = vmatprep.subr.mxu0 0.0
        %1339 = vmatpush1.msra.mxu0 0.0
        %1340 = vmatprep.subr.mxu0 0.0
        %1341 = vmatpush1.msra.mxu0 0.0
        %1342 = vmatprep.subr.mxu0 0.0
        %1343 = vmatpush1.msra.mxu0 0.0
        %1344 = vmatprep.subr.mxu0 0.0
        %1345 = vmatpush1.msra.mxu0 0.0
        %1346 = vmatprep.subr.mxu0 0.0
        %1347 = vmatpush1.msra.mxu0 0.0
        %1348 = vmatprep.subr.mxu0 0.0
        %1349 = vmatpush1.msra.mxu0 0.0
        %1350 = vmatprep.subr.mxu0 0.0
        %1351 = vmatpush1.msra.mxu0 0.0
        %1352 = vmatprep.subr.mxu0 0.0
        %1353 = vmatpush1.msra.mxu0 0.0
        %1354 = vmatprep.subr.mxu0 0.0
        %1355 = vmatpush1.msra.mxu0 0.0
        %1356 = vmatprep.subr.mxu0 0.0
        %1357 = vmatpush1.msra.mxu0 0.0
        %1358 = vmatprep.subr.mxu0 0.0
        %1359 = vmatpush1.msra.mxu0 0.0
        %1360 = vmatprep.subr.mxu0 0.0
        %1361 = vmatpush1.msra.mxu0 0.0
        %1362 = vmatprep.subr.mxu0 0.0
        %1363 = vmatpush1.msra.mxu0 0.0
        %1364 = vmatprep.subr.mxu0 0.0
        %1365 = vmatpush1.msra.mxu0 0.0
        %1366 = vmatprep.mubr.f32.mxu0 0.0
        %1367 = vmatmul.mubr.f32.gmra.mrb[0].mxu0 %v1300
        %v1368 = vpop.f32.mrb[0].mxu0
        %v1369 = vadd.f32 0.0, %v1368
        %v1370 = vpop.f32.mrb[0].mxu0
        %1371 = vdwg.mxu0
        %v1372 = vadd.f32 %v1294, %v1369
        %v1373 = vld [vmem:[%s3 + $0x120] sm:$0xff]
        %v1374 = vld [vmem:[%s3 + $0x128] sm:$0xff]
        %v1375 = vld [vmem:[%s3 + $0x130] sm:$0xff]
        %v1376 = vld [vmem:[%s3 + $0x138] sm:$0xff]
        %v1378 = vsel %vm481, %v660, 0
        %1380 = vmatprep.subr.mxu0 0.0
        %1381 = vmatpush1.msra.mxu0 %v1373
        %1382 = vmatprep.subr.mxu0 0.0
        %1383 = vmatpush1.msra.mxu0 %v1374
        %1384 = vmatprep.subr.mxu0 0.0
        %1385 = vmatpush1.msra.mxu0 %v1375
        %1386 = vmatprep.subr.mxu0 0.0
        %1387 = vmatpush1.msra.mxu0 %v1376
        %1388 = vmatprep.subr.mxu0 0.0
        %1389 = vmatpush1.msra.mxu0 0.0
        %1390 = vmatprep.subr.mxu0 0.0
        %1391 = vmatpush1.msra.mxu0 0.0
        %1392 = vmatprep.subr.mxu0 0.0
        %1393 = vmatpush1.msra.mxu0 0.0
        %1394 = vmatprep.subr.mxu0 0.0
        %1395 = vmatpush1.msra.mxu0 0.0
        %1396 = vmatprep.subr.mxu0 0.0
        %1397 = vmatpush1.msra.mxu0 0.0
        %1398 = vmatprep.subr.mxu0 0.0
        %1399 = vmatpush1.msra.mxu0 0.0
        %1400 = vmatprep.subr.mxu0 0.0
        %1401 = vmatpush1.msra.mxu0 0.0
        %1402 = vmatprep.subr.mxu0 0.0
        %1403 = vmatpush1.msra.mxu0 0.0
        %1404 = vmatprep.subr.mxu0 0.0
        %1405 = vmatpush1.msra.mxu0 0.0
        %1406 = vmatprep.subr.mxu0 0.0
        %1407 = vmatpush1.msra.mxu0 0.0
        %1408 = vmatprep.subr.mxu0 0.0
        %1409 = vmatpush1.msra.mxu0 0.0
        %1410 = vmatprep.subr.mxu0 0.0
        %1411 = vmatpush1.msra.mxu0 0.0
        %1412 = vmatprep.subr.mxu0 0.0
        %1413 = vmatpush1.msra.mxu0 0.0
        %1414 = vmatprep.subr.mxu0 0.0
        %1415 = vmatpush1.msra.mxu0 0.0
        %1416 = vmatprep.subr.mxu0 0.0
        %1417 = vmatpush1.msra.mxu0 0.0
        %1418 = vmatprep.subr.mxu0 0.0
        %1419 = vmatpush1.msra.mxu0 0.0
        %1420 = vmatprep.subr.mxu0 0.0
        %1421 = vmatpush1.msra.mxu0 0.0
        %1422 = vmatprep.subr.mxu0 0.0
        %1423 = vmatpush1.msra.mxu0 0.0
        %1424 = vmatprep.subr.mxu0 0.0
        %1425 = vmatpush1.msra.mxu0 0.0
        %1426 = vmatprep.subr.mxu0 0.0
        %1427 = vmatpush1.msra.mxu0 0.0
        %1428 = vmatprep.subr.mxu0 0.0
        %1429 = vmatpush1.msra.mxu0 0.0
        %1430 = vmatprep.subr.mxu0 0.0
        %1431 = vmatpush1.msra.mxu0 0.0
        %1432 = vmatprep.subr.mxu0 0.0
        %1433 = vmatpush1.msra.mxu0 0.0
        %1434 = vmatprep.subr.mxu0 0.0
        %1435 = vmatpush1.msra.mxu0 0.0
        %1436 = vmatprep.subr.mxu0 0.0
        %1437 = vmatpush1.msra.mxu0 0.0
        %1438 = vmatprep.subr.mxu0 0.0
        %1439 = vmatpush1.msra.mxu0 0.0
        %1440 = vmatprep.subr.mxu0 0.0
        %1441 = vmatpush1.msra.mxu0 0.0
        %1442 = vmatprep.subr.mxu0 0.0
        %1443 = vmatpush1.msra.mxu0 0.0
        %1444 = vmatprep.mubr.f32.mxu0 0.0
        %1445 = vmatmul.mubr.f32.gmra.mrb[0].mxu0 %v1378
        %v1446 = vpop.f32.mrb[0].mxu0
        %v1447 = vadd.f32 0.0, %v1446
        %v1448 = vpop.f32.mrb[0].mxu0
        %1449 = vdwg.mxu0
        %v1450 = vadd.f32 %v1372, %v1447
        %v1451 = vld [vmem:[%s3 + $0x140] sm:$0xff]
        %v1452 = vld [vmem:[%s3 + $0x148] sm:$0xff]
        %v1453 = vld [vmem:[%s3 + $0x150] sm:$0xff]
        %v1454 = vld [vmem:[%s3 + $0x158] sm:$0xff]
        %v1456 = vsel %vm481, %v662, 0
        %1458 = vmatprep.subr.mxu0 0.0
        %1459 = vmatpush1.msra.mxu0 %v1451
        %1460 = vmatprep.subr.mxu0 0.0
        %1461 = vmatpush1.msra.mxu0 %v1452
        %1462 = vmatprep.subr.mxu0 0.0
        %1463 = vmatpush1.msra.mxu0 %v1453
        %1464 = vmatprep.subr.mxu0 0.0
        %1465 = vmatpush1.msra.mxu0 %v1454
        %1466 = vmatprep.subr.mxu0 0.0
        %1467 = vmatpush1.msra.mxu0 0.0
        %1468 = vmatprep.subr.mxu0 0.0
        %1469 = vmatpush1.msra.mxu0 0.0
        %1470 = vmatprep.subr.mxu0 0.0
        %1471 = vmatpush1.msra.mxu0 0.0
        %1472 = vmatprep.subr.mxu0 0.0
        %1473 = vmatpush1.msra.mxu0 0.0
        %1474 = vmatprep.subr.mxu0 0.0
        %1475 = vmatpush1.msra.mxu0 0.0
        %1476 = vmatprep.subr.mxu0 0.0
        %1477 = vmatpush1.msra.mxu0 0.0
        %1478 = vmatprep.subr.mxu0 0.0
        %1479 = vmatpush1.msra.mxu0 0.0
        %1480 = vmatprep.subr.mxu0 0.0
        %1481 = vmatpush1.msra.mxu0 0.0
        %1482 = vmatprep.subr.mxu0 0.0
        %1483 = vmatpush1.msra.mxu0 0.0
        %1484 = vmatprep.subr.mxu0 0.0
        %1485 = vmatpush1.msra.mxu0 0.0
        %1486 = vmatprep.subr.mxu0 0.0
        %1487 = vmatpush1.msra.mxu0 0.0
        %1488 = vmatprep.subr.mxu0 0.0
        %1489 = vmatpush1.msra.mxu0 0.0
        %1490 = vmatprep.subr.mxu0 0.0
        %1491 = vmatpush1.msra.mxu0 0.0
        %1492 = vmatprep.subr.mxu0 0.0
        %1493 = vmatpush1.msra.mxu0 0.0
        %1494 = vmatprep.subr.mxu0 0.0
        %1495 = vmatpush1.msra.mxu0 0.0
        %1496 = vmatprep.subr.mxu0 0.0
        %1497 = vmatpush1.msra.mxu0 0.0
        %1498 = vmatprep.subr.mxu0 0.0
        %1499 = vmatpush1.msra.mxu0 0.0
        %1500 = vmatprep.subr.mxu0 0.0
        %1501 = vmatpush1.msra.mxu0 0.0
        %1502 = vmatprep.subr.mxu0 0.0
        %1503 = vmatpush1.msra.mxu0 0.0
        %1504 = vmatprep.subr.mxu0 0.0
        %1505 = vmatpush1.msra.mxu0 0.0
        %1506 = vmatprep.subr.mxu0 0.0
        %1507 = vmatpush1.msra.mxu0 0.0
        %1508 = vmatprep.subr.mxu0 0.0
        %1509 = vmatpush1.msra.mxu0 0.0
        %1510 = vmatprep.subr.mxu0 0.0
        %1511 = vmatpush1.msra.mxu0 0.0
        %1512 = vmatprep.subr.mxu0 0.0
        %1513 = vmatpush1.msra.mxu0 0.0
        %1514 = vmatprep.subr.mxu0 0.0
        %1515 = vmatpush1.msra.mxu0 0.0
        %1516 = vmatprep.subr.mxu0 0.0
        %1517 = vmatpush1.msra.mxu0 0.0
        %1518 = vmatprep.subr.mxu0 0.0
        %1519 = vmatpush1.msra.mxu0 0.0
        %1520 = vmatprep.subr.mxu0 0.0
        %1521 = vmatpush1.msra.mxu0 0.0
        %1522 = vmatprep.mubr.f32.mxu0 0.0
        %1523 = vmatmul.mubr.f32.gmra.mrb[0].mxu0 %v1456
        %v1524 = vpop.f32.mrb[0].mxu0
        %v1525 = vadd.f32 0.0, %v1524
        %v1526 = vpop.f32.mrb[0].mxu0
        %1527 = vdwg.mxu0
        %v1528 = vadd.f32 %v1450, %v1525
        %v1529 = vld [vmem:[%s3 + $0x160] sm:$0xff]
        %v1530 = vld [vmem:[%s3 + $0x168] sm:$0xff]
        %v1531 = vld [vmem:[%s3 + $0x170] sm:$0xff]
        %v1532 = vld [vmem:[%s3 + $0x178] sm:$0xff]
        %v1534 = vsel %vm481, %v664, 0
        %1536 = vmatprep.subr.mxu0 0.0
        %1537 = vmatpush1.msra.mxu0 %v1529
        %1538 = vmatprep.subr.mxu0 0.0
        %1539 = vmatpush1.msra.mxu0 %v1530
        %1540 = vmatprep.subr.mxu0 0.0
        %1541 = vmatpush1.msra.mxu0 %v1531
        %1542 = vmatprep.subr.mxu0 0.0
        %1543 = vmatpush1.msra.mxu0 %v1532
        %1544 = vmatprep.subr.mxu0 0.0
        %1545 = vmatpush1.msra.mxu0 0.0
        %1546 = vmatprep.subr.mxu0 0.0
        %1547 = vmatpush1.msra.mxu0 0.0
        %1548 = vmatprep.subr.mxu0 0.0
        %1549 = vmatpush1.msra.mxu0 0.0
        %1550 = vmatprep.subr.mxu0 0.0
        %1551 = vmatpush1.msra.mxu0 0.0
        %1552 = vmatprep.subr.mxu0 0.0
        %1553 = vmatpush1.msra.mxu0 0.0
        %1554 = vmatprep.subr.mxu0 0.0
        %1555 = vmatpush1.msra.mxu0 0.0
        %1556 = vmatprep.subr.mxu0 0.0
        %1557 = vmatpush1.msra.mxu0 0.0
        %1558 = vmatprep.subr.mxu0 0.0
        %1559 = vmatpush1.msra.mxu0 0.0
        %1560 = vmatprep.subr.mxu0 0.0
        %1561 = vmatpush1.msra.mxu0 0.0
        %1562 = vmatprep.subr.mxu0 0.0
        %1563 = vmatpush1.msra.mxu0 0.0
        %1564 = vmatprep.subr.mxu0 0.0
        %1565 = vmatpush1.msra.mxu0 0.0
        %1566 = vmatprep.subr.mxu0 0.0
        %1567 = vmatpush1.msra.mxu0 0.0
        %1568 = vmatprep.subr.mxu0 0.0
        %1569 = vmatpush1.msra.mxu0 0.0
        %1570 = vmatprep.subr.mxu0 0.0
        %1571 = vmatpush1.msra.mxu0 0.0
        %1572 = vmatprep.subr.mxu0 0.0
        %1573 = vmatpush1.msra.mxu0 0.0
        %1574 = vmatprep.subr.mxu0 0.0
        %1575 = vmatpush1.msra.mxu0 0.0
        %1576 = vmatprep.subr.mxu0 0.0
        %1577 = vmatpush1.msra.mxu0 0.0
        %1578 = vmatprep.subr.mxu0 0.0
        %1579 = vmatpush1.msra.mxu0 0.0
        %1580 = vmatprep.subr.mxu0 0.0
        %1581 = vmatpush1.msra.mxu0 0.0
        %1582 = vmatprep.subr.mxu0 0.0
        %1583 = vmatpush1.msra.mxu0 0.0
        %1584 = vmatprep.subr.mxu0 0.0
        %1585 = vmatpush1.msra.mxu0 0.0
        %1586 = vmatprep.subr.mxu0 0.0
        %1587 = vmatpush1.msra.mxu0 0.0
        %1588 = vmatprep.subr.mxu0 0.0
        %1589 = vmatpush1.msra.mxu0 0.0
        %1590 = vmatprep.subr.mxu0 0.0
        %1591 = vmatpush1.msra.mxu0 0.0
        %1592 = vmatprep.subr.mxu0 0.0
        %1593 = vmatpush1.msra.mxu0 0.0
        %1594 = vmatprep.subr.mxu0 0.0
        %1595 = vmatpush1.msra.mxu0 0.0
        %1596 = vmatprep.subr.mxu0 0.0
        %1597 = vmatpush1.msra.mxu0 0.0
        %1598 = vmatprep.subr.mxu0 0.0
        %1599 = vmatpush1.msra.mxu0 0.0
        %1600 = vmatprep.mubr.f32.mxu0 0.0
        %1601 = vmatmul.mubr.f32.gmra.mrb[0].mxu0 %v1534
        %v1602 = vpop.f32.mrb[0].mxu0
        %v1603 = vadd.f32 0.0, %v1602
        %v1604 = vpop.f32.mrb[0].mxu0
        %1605 = vdwg.mxu0
        %v1606 = vadd.f32 %v1528, %v1603
        %v1607 = vld [vmem:[%s3 + $0x180] sm:$0xff]
        %v1608 = vld [vmem:[%s3 + $0x188] sm:$0xff]
        %v1609 = vld [vmem:[%s3 + $0x190] sm:$0xff]
        %v1610 = vld [vmem:[%s3 + $0x198] sm:$0xff]
        %v1612 = vsel %vm481, %v666, 0
        %1614 = vmatprep.subr.mxu0 0.0
        %1615 = vmatpush1.msra.mxu0 %v1607
        %1616 = vmatprep.subr.mxu0 0.0
        %1617 = vmatpush1.msra.mxu0 %v1608
        %1618 = vmatprep.subr.mxu0 0.0
        %1619 = vmatpush1.msra.mxu0 %v1609
        %1620 = vmatprep.subr.mxu0 0.0
        %1621 = vmatpush1.msra.mxu0 %v1610
        %1622 = vmatprep.subr.mxu0 0.0
        %1623 = vmatpush1.msra.mxu0 0.0
        %1624 = vmatprep.subr.mxu0 0.0
        %1625 = vmatpush1.msra.mxu0 0.0
        %1626 = vmatprep.subr.mxu0 0.0
        %1627 = vmatpush1.msra.mxu0 0.0
        %1628 = vmatprep.subr.mxu0 0.0
        %1629 = vmatpush1.msra.mxu0 0.0
        %1630 = vmatprep.subr.mxu0 0.0
        %1631 = vmatpush1.msra.mxu0 0.0
        %1632 = vmatprep.subr.mxu0 0.0
        %1633 = vmatpush1.msra.mxu0 0.0
        %1634 = vmatprep.subr.mxu0 0.0
        %1635 = vmatpush1.msra.mxu0 0.0
        %1636 = vmatprep.subr.mxu0 0.0
        %1637 = vmatpush1.msra.mxu0 0.0
        %1638 = vmatprep.subr.mxu0 0.0
        %1639 = vmatpush1.msra.mxu0 0.0
        %1640 = vmatprep.subr.mxu0 0.0
        %1641 = vmatpush1.msra.mxu0 0.0
        %1642 = vmatprep.subr.mxu0 0.0
        %1643 = vmatpush1.msra.mxu0 0.0
        %1644 = vmatprep.subr.mxu0 0.0
        %1645 = vmatpush1.msra.mxu0 0.0
        %1646 = vmatprep.subr.mxu0 0.0
        %1647 = vmatpush1.msra.mxu0 0.0
        %1648 = vmatprep.subr.mxu0 0.0
        %1649 = vmatpush1.msra.mxu0 0.0
        %1650 = vmatprep.subr.mxu0 0.0
        %1651 = vmatpush1.msra.mxu0 0.0
        %1652 = vmatprep.subr.mxu0 0.0
        %1653 = vmatpush1.msra.mxu0 0.0
        %1654 = vmatprep.subr.mxu0 0.0
        %1655 = vmatpush1.msra.mxu0 0.0
        %1656 = vmatprep.subr.mxu0 0.0
        %1657 = vmatpush1.msra.mxu0 0.0
        %1658 = vmatprep.subr.mxu0 0.0
        %1659 = vmatpush1.msra.mxu0 0.0
        %1660 = vmatprep.subr.mxu0 0.0
        %1661 = vmatpush1.msra.mxu0 0.0
        %1662 = vmatprep.subr.mxu0 0.0
        %1663 = vmatpush1.msra.mxu0 0.0
        %1664 = vmatprep.subr.mxu0 0.0
        %1665 = vmatpush1.msra.mxu0 0.0
        %1666 = vmatprep.subr.mxu0 0.0
        %1667 = vmatpush1.msra.mxu0 0.0
        %1668 = vmatprep.subr.mxu0 0.0
        %1669 = vmatpush1.msra.mxu0 0.0
        %1670 = vmatprep.subr.mxu0 0.0
        %1671 = vmatpush1.msra.mxu0 0.0
        %1672 = vmatprep.subr.mxu0 0.0
        %1673 = vmatpush1.msra.mxu0 0.0
        %1674 = vmatprep.subr.mxu0 0.0
        %1675 = vmatpush1.msra.mxu0 0.0
        %1676 = vmatprep.subr.mxu0 0.0
        %1677 = vmatpush1.msra.mxu0 0.0
        %1678 = vmatprep.mubr.f32.mxu0 0.0
        %1679 = vmatmul.mubr.f32.gmra.mrb[0].mxu0 %v1612
        %v1680 = vpop.f32.mrb[0].mxu0
        %v1681 = vadd.f32 0.0, %v1680
        %v1682 = vpop.f32.mrb[0].mxu0
        %1683 = vdwg.mxu0
        %v1684 = vadd.f32 %v1606, %v1681
        %v1685 = vld [vmem:[%s3 + $0x1a0] sm:$0xff]
        %v1686 = vld [vmem:[%s3 + $0x1a8] sm:$0xff]
        %v1687 = vld [vmem:[%s3 + $0x1b0] sm:$0xff]
        %v1688 = vld [vmem:[%s3 + $0x1b8] sm:$0xff]
        %v1690 = vsel %vm481, %v668, 0
        %1692 = vmatprep.subr.mxu0 0.0
        %1693 = vmatpush1.msra.mxu0 %v1685
        %1694 = vmatprep.subr.mxu0 0.0
        %1695 = vmatpush1.msra.mxu0 %v1686
        %1696 = vmatprep.subr.mxu0 0.0
        %1697 = vmatpush1.msra.mxu0 %v1687
        %1698 = vmatprep.subr.mxu0 0.0
        %1699 = vmatpush1.msra.mxu0 %v1688
        %1700 = vmatprep.subr.mxu0 0.0
        %1701 = vmatpush1.msra.mxu0 0.0
        %1702 = vmatprep.subr.mxu0 0.0
        %1703 = vmatpush1.msra.mxu0 0.0
        %1704 = vmatprep.subr.mxu0 0.0
        %1705 = vmatpush1.msra.mxu0 0.0
        %1706 = vmatprep.subr.mxu0 0.0
        %1707 = vmatpush1.msra.mxu0 0.0
        %1708 = vmatprep.subr.mxu0 0.0
        %1709 = vmatpush1.msra.mxu0 0.0
        %1710 = vmatprep.subr.mxu0 0.0
        %1711 = vmatpush1.msra.mxu0 0.0
        %1712 = vmatprep.subr.mxu0 0.0
        %1713 = vmatpush1.msra.mxu0 0.0
        %1714 = vmatprep.subr.mxu0 0.0
        %1715 = vmatpush1.msra.mxu0 0.0
        %1716 = vmatprep.subr.mxu0 0.0
        %1717 = vmatpush1.msra.mxu0 0.0
        %1718 = vmatprep.subr.mxu0 0.0
        %1719 = vmatpush1.msra.mxu0 0.0
        %1720 = vmatprep.subr.mxu0 0.0
        %1721 = vmatpush1.msra.mxu0 0.0
        %1722 = vmatprep.subr.mxu0 0.0
        %1723 = vmatpush1.msra.mxu0 0.0
        %1724 = vmatprep.subr.mxu0 0.0
        %1725 = vmatpush1.msra.mxu0 0.0
        %1726 = vmatprep.subr.mxu0 0.0
        %1727 = vmatpush1.msra.mxu0 0.0
        %1728 = vmatprep.subr.mxu0 0.0
        %1729 = vmatpush1.msra.mxu0 0.0
        %1730 = vmatprep.subr.mxu0 0.0
        %1731 = vmatpush1.msra.mxu0 0.0
        %1732 = vmatprep.subr.mxu0 0.0
        %1733 = vmatpush1.msra.mxu0 0.0
        %1734 = vmatprep.subr.mxu0 0.0
        %1735 = vmatpush1.msra.mxu0 0.0
        %1736 = vmatprep.subr.mxu0 0.0
        %1737 = vmatpush1.msra.mxu0 0.0
        %1738 = vmatprep.subr.mxu0 0.0
        %1739 = vmatpush1.msra.mxu0 0.0
        %1740 = vmatprep.subr.mxu0 0.0
        %1741 = vmatpush1.msra.mxu0 0.0
        %1742 = vmatprep.subr.mxu0 0.0
        %1743 = vmatpush1.msra.mxu0 0.0
        %1744 = vmatprep.subr.mxu0 0.0
        %1745 = vmatpush1.msra.mxu0 0.0
        %1746 = vmatprep.subr.mxu0 0.0
        %1747 = vmatpush1.msra.mxu0 0.0
        %1748 = vmatprep.subr.mxu0 0.0
        %1749 = vmatpush1.msra.mxu0 0.0
        %1750 = vmatprep.subr.mxu0 0.0
        %1751 = vmatpush1.msra.mxu0 0.0
        %1752 = vmatprep.subr.mxu0 0.0
        %1753 = vmatpush1.msra.mxu0 0.0
        %1754 = vmatprep.subr.mxu0 0.0
        %1755 = vmatpush1.msra.mxu0 0.0
        %1756 = vmatprep.mubr.f32.mxu0 0.0
        %1757 = vmatmul.mubr.f32.gmra.mrb[0].mxu0 %v1690
        %v1758 = vpop.f32.mrb[0].mxu0
        %v1759 = vadd.f32 0.0, %v1758
        %v1760 = vpop.f32.mrb[0].mxu0
        %1761 = vdwg.mxu0
        %v1762 = vadd.f32 %v1684, %v1759
        %v1763 = vld [vmem:[%s3 + $0x1c0] sm:$0xff]
        %v1764 = vld [vmem:[%s3 + $0x1c8] sm:$0xff]
        %v1765 = vld [vmem:[%s3 + $0x1d0] sm:$0xff]
        %v1766 = vld [vmem:[%s3 + $0x1d8] sm:$0xff]
        %v1768 = vsel %vm481, %v670, 0
        %1770 = vmatprep.subr.mxu0 0.0
        %1771 = vmatpush1.msra.mxu0 %v1763
        %1772 = vmatprep.subr.mxu0 0.0
        %1773 = vmatpush1.msra.mxu0 %v1764
        %1774 = vmatprep.subr.mxu0 0.0
        %1775 = vmatpush1.msra.mxu0 %v1765
        %1776 = vmatprep.subr.mxu0 0.0
        %1777 = vmatpush1.msra.mxu0 %v1766
        %1778 = vmatprep.subr.mxu0 0.0
        %1779 = vmatpush1.msra.mxu0 0.0
        %1780 = vmatprep.subr.mxu0 0.0
        %1781 = vmatpush1.msra.mxu0 0.0
        %1782 = vmatprep.subr.mxu0 0.0
        %1783 = vmatpush1.msra.mxu0 0.0
        %1784 = vmatprep.subr.mxu0 0.0
        %1785 = vmatpush1.msra.mxu0 0.0
        %1786 = vmatprep.subr.mxu0 0.0
        %1787 = vmatpush1.msra.mxu0 0.0
        %1788 = vmatprep.subr.mxu0 0.0
        %1789 = vmatpush1.msra.mxu0 0.0
        %1790 = vmatprep.subr.mxu0 0.0
        %1791 = vmatpush1.msra.mxu0 0.0
        %1792 = vmatprep.subr.mxu0 0.0
        %1793 = vmatpush1.msra.mxu0 0.0
        %1794 = vmatprep.subr.mxu0 0.0
        %1795 = vmatpush1.msra.mxu0 0.0
        %1796 = vmatprep.subr.mxu0 0.0
        %1797 = vmatpush1.msra.mxu0 0.0
        %1798 = vmatprep.subr.mxu0 0.0
        %1799 = vmatpush1.msra.mxu0 0.0
        %1800 = vmatprep.subr.mxu0 0.0
        %1801 = vmatpush1.msra.mxu0 0.0
        %1802 = vmatprep.subr.mxu0 0.0
        %1803 = vmatpush1.msra.mxu0 0.0
        %1804 = vmatprep.subr.mxu0 0.0
        %1805 = vmatpush1.msra.mxu0 0.0
        %1806 = vmatprep.subr.mxu0 0.0
        %1807 = vmatpush1.msra.mxu0 0.0
        %1808 = vmatprep.subr.mxu0 0.0
        %1809 = vmatpush1.msra.mxu0 0.0
        %1810 = vmatprep.subr.mxu0 0.0
        %1811 = vmatpush1.msra.mxu0 0.0
        %1812 = vmatprep.subr.mxu0 0.0
        %1813 = vmatpush1.msra.mxu0 0.0
        %1814 = vmatprep.subr.mxu0 0.0
        %1815 = vmatpush1.msra.mxu0 0.0
        %1816 = vmatprep.subr.mxu0 0.0
        %1817 = vmatpush1.msra.mxu0 0.0
        %1818 = vmatprep.subr.mxu0 0.0
        %1819 = vmatpush1.msra.mxu0 0.0
        %1820 = vmatprep.subr.mxu0 0.0
        %1821 = vmatpush1.msra.mxu0 0.0
        %1822 = vmatprep.subr.mxu0 0.0
        %1823 = vmatpush1.msra.mxu0 0.0
        %1824 = vmatprep.subr.mxu0 0.0
        %1825 = vmatpush1.msra.mxu0 0.0
        %1826 = vmatprep.subr.mxu0 0.0
        %1827 = vmatpush1.msra.mxu0 0.0
        %1828 = vmatprep.subr.mxu0 0.0
        %1829 = vmatpush1.msra.mxu0 0.0
        %1830 = vmatprep.subr.mxu0 0.0
        %1831 = vmatpush1.msra.mxu0 0.0
        %1832 = vmatprep.subr.mxu0 0.0
        %1833 = vmatpush1.msra.mxu0 0.0
        %1834 = vmatprep.mubr.f32.mxu0 0.0
        %1835 = vmatmul.mubr.f32.gmra.mrb[0].mxu0 %v1768
        %v1836 = vpop.f32.mrb[0].mxu0
        %v1837 = vadd.f32 0.0, %v1836
        %v1838 = vpop.f32.mrb[0].mxu0
        %1839 = vdwg.mxu0
        %v1840 = vadd.f32 %v1762, %v1837
        %v1841 = vld [vmem:[%s3 + $0x1e0] sm:$0xff]
        %v1842 = vld [vmem:[%s3 + $0x1e8] sm:$0xff]
        %v1843 = vld [vmem:[%s3 + $0x1f0] sm:$0xff]
        %v1844 = vld [vmem:[%s3 + $0x1f8] sm:$0xff]
        %v1846 = vsel %vm481, %v672, 0
        %1848 = vmatprep.subr.mxu0 0.0
        %1849 = vmatpush1.msra.mxu0 %v1841
        %1850 = vmatprep.subr.mxu0 0.0
        %1851 = vmatpush1.msra.mxu0 %v1842
        %1852 = vmatprep.subr.mxu0 0.0
        %1853 = vmatpush1.msra.mxu0 %v1843
        %1854 = vmatprep.subr.mxu0 0.0
        %1855 = vmatpush1.msra.mxu0 %v1844
        %1856 = vmatprep.subr.mxu0 0.0
        %1857 = vmatpush1.msra.mxu0 0.0
        %1858 = vmatprep.subr.mxu0 0.0
        %1859 = vmatpush1.msra.mxu0 0.0
        %1860 = vmatprep.subr.mxu0 0.0
        %1861 = vmatpush1.msra.mxu0 0.0
        %1862 = vmatprep.subr.mxu0 0.0
        %1863 = vmatpush1.msra.mxu0 0.0
        %1864 = vmatprep.subr.mxu0 0.0
        %1865 = vmatpush1.msra.mxu0 0.0
        %1866 = vmatprep.subr.mxu0 0.0
        %1867 = vmatpush1.msra.mxu0 0.0
        %1868 = vmatprep.subr.mxu0 0.0
        %1869 = vmatpush1.msra.mxu0 0.0
        %1870 = vmatprep.subr.mxu0 0.0
        %1871 = vmatpush1.msra.mxu0 0.0
        %1872 = vmatprep.subr.mxu0 0.0
        %1873 = vmatpush1.msra.mxu0 0.0
        %1874 = vmatprep.subr.mxu0 0.0
        %1875 = vmatpush1.msra.mxu0 0.0
        %1876 = vmatprep.subr.mxu0 0.0
        %1877 = vmatpush1.msra.mxu0 0.0
        %1878 = vmatprep.subr.mxu0 0.0
        %1879 = vmatpush1.msra.mxu0 0.0
        %1880 = vmatprep.subr.mxu0 0.0
        %1881 = vmatpush1.msra.mxu0 0.0
        %1882 = vmatprep.subr.mxu0 0.0
        %1883 = vmatpush1.msra.mxu0 0.0
        %1884 = vmatprep.subr.mxu0 0.0
        %1885 = vmatpush1.msra.mxu0 0.0
        %1886 = vmatprep.subr.mxu0 0.0
        %1887 = vmatpush1.msra.mxu0 0.0
        %1888 = vmatprep.subr.mxu0 0.0
        %1889 = vmatpush1.msra.mxu0 0.0
        %1890 = vmatprep.subr.mxu0 0.0
        %1891 = vmatpush1.msra.mxu0 0.0
        %1892 = vmatprep.subr.mxu0 0.0
        %1893 = vmatpush1.msra.mxu0 0.0
        %1894 = vmatprep.subr.mxu0 0.0
        %1895 = vmatpush1.msra.mxu0 0.0
        %1896 = vmatprep.subr.mxu0 0.0
        %1897 = vmatpush1.msra.mxu0 0.0
        %1898 = vmatprep.subr.mxu0 0.0
        %1899 = vmatpush1.msra.mxu0 0.0
        %1900 = vmatprep.subr.mxu0 0.0
        %1901 = vmatpush1.msra.mxu0 0.0
        %1902 = vmatprep.subr.mxu0 0.0
        %1903 = vmatpush1.msra.mxu0 0.0
        %1904 = vmatprep.subr.mxu0 0.0
        %1905 = vmatpush1.msra.mxu0 0.0
        %1906 = vmatprep.subr.mxu0 0.0
        %1907 = vmatpush1.msra.mxu0 0.0
        %1908 = vmatprep.subr.mxu0 0.0
        %1909 = vmatpush1.msra.mxu0 0.0
        %1910 = vmatprep.subr.mxu0 0.0
        %1911 = vmatpush1.msra.mxu0 0.0
        %1912 = vmatprep.mubr.f32.mxu0 0.0
        %1913 = vmatmul.mubr.f32.gmra.mrb[0].mxu0 %v1846
        %v1914 = vpop.f32.mrb[0].mxu0
        %v1915 = vadd.f32 0.0, %v1914
        %v1916 = vpop.f32.mrb[0].mxu0
        %1917 = vdwg.mxu0
        %v1918 = vadd.f32 %v1840, %v1915
        %v1919 = vld [vmem:[%s4] sm:$0x1]
        %v1921 = vlaneseq
        %v1922 = vshrl.u32 %v1921, 7
        %v1923 = vsub.s32 0, %v1922
        %v1924 = vrot.slane %v1919, %v1923
        %v1926 = vadd.f32 %v1918, %v1924
        %v1927 = vmax.f32 %v1926, 0.0
        %vm1928 = vcmask 517120
        %1929 = vst.msk [vmem:[#allocation3] sm:$0x3] %vm1928, %v1927
        %v1930 = vld [vmem:[%s645] ss:$49 sm:$0x3]
        %v1931 = vld [vmem:[%s647] ss:$49 sm:$0x3]
        %s1932 = scalar_lea.vmem [#allocation2], 4
        %v1933 = vld [vmem:[%s1932] ss:$49 sm:$0x3]
        %s1934 = scalar_lea.vmem [#allocation2], 5
        %v1935 = vld [vmem:[%s1934] ss:$49 sm:$0x3]
        %v1936 = vld [vmem:[%s653] ss:$49 sm:$0x3]
        %v1937 = vld [vmem:[%s655] ss:$49 sm:$0x3]
        %s1938 = scalar_lea.vmem [#allocation2], 11
        %v1939 = vld [vmem:[%s1938] ss:$49 sm:$0x3]
        %s1940 = scalar_lea.vmem [#allocation2], 12
        %v1941 = vld [vmem:[%s1940] ss:$49 sm:$0x3]
        %v1942 = vld [vmem:[%s661] ss:$49 sm:$0x3]
        %v1943 = vld [vmem:[%s663] ss:$49 sm:$0x3]
        %s1944 = scalar_lea.vmem [#allocation2], 18
        %v1945 = vld [vmem:[%s1944] ss:$49 sm:$0x3]
        %s1946 = scalar_lea.vmem [#allocation2], 19
        %v1947 = vld [vmem:[%s1946] ss:$49 sm:$0x3]
        %v1948 = vld [vmem:[%s669] ss:$49 sm:$0x3]
        %v1949 = vld [vmem:[%s671] ss:$49 sm:$0x3]
        %s1950 = scalar_lea.vmem [#allocation2], 25
        %v1951 = vld [vmem:[%s1950] ss:$49 sm:$0x3]
        %s1952 = scalar_lea.vmem [#allocation2], 26
        %v1953 = vld [vmem:[%s1952] ss:$49 sm:$0x3]
        %v1954 = vld [vmem:[%s3] sm:$0xff]
        %v1955 = vld [vmem:[%s3 + $0x8] sm:$0xff]
        %v1956 = vld [vmem:[%s3 + $0x10] sm:$0xff]
        %v1957 = vld [vmem:[%s3 + $0x18] sm:$0xff]
        %v1958 = vld [vmem:[%s3 + $0x20] sm:$0xff]
        %v1959 = vld [vmem:[%s3 + $0x28] sm:$0xff]
        %v1960 = vld [vmem:[%s3 + $0x30] sm:$0xff]
        %v1961 = vld [vmem:[%s3 + $0x38] sm:$0xff]
        %v1963 = vsel %vm481, %v1931, 0
        %1965 = vmatprep.subr.mxu0 0.0
        %1966 = vmatpush1.msra.mxu0 %v1958
        %1967 = vmatprep.subr.mxu0 0.0
        %1968 = vmatpush1.msra.mxu0 %v1959
        %1969 = vmatprep.subr.mxu0 0.0
        %1970 = vmatpush1.msra.mxu0 %v1960
        %1971 = vmatprep.subr.mxu0 0.0
        %1972 = vmatpush1.msra.mxu0 %v1961
        %1973 = vmatprep.subr.mxu0 0.0
        %1974 = vmatpush1.msra.mxu0 0.0
        %1975 = vmatprep.subr.mxu0 0.0
        %1976 = vmatpush1.msra.mxu0 0.0
        %1977 = vmatprep.subr.mxu0 0.0
        %1978 = vmatpush1.msra.mxu0 0.0
        %1979 = vmatprep.subr.mxu0 0.0
        %1980 = vmatpush1.msra.mxu0 0.0
        %1981 = vmatprep.subr.mxu0 0.0
        %1982 = vmatpush1.msra.mxu0 0.0
        %1983 = vmatprep.subr.mxu0 0.0
        %1984 = vmatpush1.msra.mxu0 0.0
        %1985 = vmatprep.subr.mxu0 0.0
        %1986 = vmatpush1.msra.mxu0 0.0
        %1987 = vmatprep.subr.mxu0 0.0
        %1988 = vmatpush1.msra.mxu0 0.0
        %1989 = vmatprep.subr.mxu0 0.0
        %1990 = vmatpush1.msra.mxu0 0.0
        %1991 = vmatprep.subr.mxu0 0.0
        %1992 = vmatpush1.msra.mxu0 0.0
        %1993 = vmatprep.subr.mxu0 0.0
        %1994 = vmatpush1.msra.mxu0 0.0
        %1995 = vmatprep.subr.mxu0 0.0
        %1996 = vmatpush1.msra.mxu0 0.0
        %1997 = vmatprep.subr.mxu0 0.0
        %1998 = vmatpush1.msra.mxu0 0.0
        %1999 = vmatprep.subr.mxu0 0.0
        %2000 = vmatpush1.msra.mxu0 0.0
        %2001 = vmatprep.subr.mxu0 0.0
        %2002 = vmatpush1.msra.mxu0 0.0
        %2003 = vmatprep.subr.mxu0 0.0
        %2004 = vmatpush1.msra.mxu0 0.0
        %2005 = vmatprep.subr.mxu0 0.0
        %2006 = vmatpush1.msra.mxu0 0.0
        %2007 = vmatprep.subr.mxu0 0.0
        %2008 = vmatpush1.msra.mxu0 0.0
        %2009 = vmatprep.subr.mxu0 0.0
        %2010 = vmatpush1.msra.mxu0 0.0
        %2011 = vmatprep.subr.mxu0 0.0
        %2012 = vmatpush1.msra.mxu0 0.0
        %2013 = vmatprep.subr.mxu0 0.0
        %2014 = vmatpush1.msra.mxu0 0.0
        %2015 = vmatprep.subr.mxu0 0.0
        %2016 = vmatpush1.msra.mxu0 0.0
        %2017 = vmatprep.subr.mxu0 0.0
        %2018 = vmatpush1.msra.mxu0 0.0
        %2019 = vmatprep.subr.mxu0 0.0
        %2020 = vmatpush1.msra.mxu0 0.0
        %2021 = vmatprep.subr.mxu0 0.0
        %2022 = vmatpush1.msra.mxu0 0.0
        %2023 = vmatprep.subr.mxu0 0.0
        %2024 = vmatpush1.msra.mxu0 0.0
        %2025 = vmatprep.subr.mxu0 0.0
        %2026 = vmatpush1.msra.mxu0 0.0
        %2027 = vmatprep.subr.mxu0 0.0
        %2028 = vmatpush1.msra.mxu0 0.0
        %2029 = vmatprep.mubr.f32.mxu0 0.0
        %2030 = vmatmul.mubr.f32.gmra.mrb[0].mxu0 %v1963
        %v2031 = vpop.f32.mrb[0].mxu0
        %v2032 = vadd.f32 0.0, %v2031
        %v2033 = vpop.f32.mrb[0].mxu0
        %2034 = vdwg.mxu0
        %v2036 = vsel %vm481, %v1930, 0
        %2038 = vmatprep.subr.mxu0 0.0
        %2039 = vmatpush1.msra.mxu0 %v1954
        %2040 = vmatprep.subr.mxu0 0.0
        %2041 = vmatpush1.msra.mxu0 %v1955
        %2042 = vmatprep.subr.mxu0 0.0
        %2043 = vmatpush1.msra.mxu0 %v1956
        %2044 = vmatprep.subr.mxu0 0.0
        %2045 = vmatpush1.msra.mxu0 %v1957
        %2046 = vmatprep.subr.mxu0 0.0
        %2047 = vmatpush1.msra.mxu0 0.0
        %2048 = vmatprep.subr.mxu0 0.0
        %2049 = vmatpush1.msra.mxu0 0.0
        %2050 = vmatprep.subr.mxu0 0.0
        %2051 = vmatpush1.msra.mxu0 0.0
        %2052 = vmatprep.subr.mxu0 0.0
        %2053 = vmatpush1.msra.mxu0 0.0
        %2054 = vmatprep.subr.mxu0 0.0
        %2055 = vmatpush1.msra.mxu0 0.0
        %2056 = vmatprep.subr.mxu0 0.0
        %2057 = vmatpush1.msra.mxu0 0.0
        %2058 = vmatprep.subr.mxu0 0.0
        %2059 = vmatpush1.msra.mxu0 0.0
        %2060 = vmatprep.subr.mxu0 0.0
        %2061 = vmatpush1.msra.mxu0 0.0
        %2062 = vmatprep.subr.mxu0 0.0
        %2063 = vmatpush1.msra.mxu0 0.0
        %2064 = vmatprep.subr.mxu0 0.0
        %2065 = vmatpush1.msra.mxu0 0.0
        %2066 = vmatprep.subr.mxu0 0.0
        %2067 = vmatpush1.msra.mxu0 0.0
        %2068 = vmatprep.subr.mxu0 0.0
        %2069 = vmatpush1.msra.mxu0 0.0
        %2070 = vmatprep.subr.mxu0 0.0
        %2071 = vmatpush1.msra.mxu0 0.0
        %2072 = vmatprep.subr.mxu0 0.0
        %2073 = vmatpush1.msra.mxu0 0.0
        %2074 = vmatprep.subr.mxu0 0.0
        %2075 = vmatpush1.msra.mxu0 0.0
        %2076 = vmatprep.subr.mxu0 0.0
        %2077 = vmatpush1.msra.mxu0 0.0
        %2078 = vmatprep.subr.mxu0 0.0
        %2079 = vmatpush1.msra.mxu0 0.0
        %2080 = vmatprep.subr.mxu0 0.0
        %2081 = vmatpush1.msra.mxu0 0.0
        %2082 = vmatprep.subr.mxu0 0.0
        %2083 = vmatpush1.msra.mxu0 0.0
        %2084 = vmatprep.subr.mxu0 0.0
        %2085 = vmatpush1.msra.mxu0 0.0
        %2086 = vmatprep.subr.mxu0 0.0
        %2087 = vmatpush1.msra.mxu0 0.0
        %2088 = vmatprep.subr.mxu0 0.0
        %2089 = vmatpush1.msra.mxu0 0.0
        %2090 = vmatprep.subr.mxu0 0.0
        %2091 = vmatpush1.msra.mxu0 0.0
        %2092 = vmatprep.subr.mxu0 0.0
        %2093 = vmatpush1.msra.mxu0 0.0
        %2094 = vmatprep.subr.mxu0 0.0
        %2095 = vmatpush1.msra.mxu0 0.0
        %2096 = vmatprep.subr.mxu0 0.0
        %2097 = vmatpush1.msra.mxu0 0.0
        %2098 = vmatprep.subr.mxu0 0.0
        %2099 = vmatpush1.msra.mxu0 0.0
        %2100 = vmatprep.subr.mxu0 0.0
        %2101 = vmatpush1.msra.mxu0 0.0
        %2102 = vmatprep.mubr.f32.mxu0 0.0
        %2103 = vmatmul.mubr.f32.gmra.mrb[0].mxu0 %v2036
        %v2104 = vpop.f32.mrb[0].mxu0
        %v2105 = vadd.f32 %v2032, %v2104
        %v2106 = vpop.f32.mrb[0].mxu0
        %2107 = vdwg.mxu0
        %v2108 = vld [vmem:[%s3 + $0x40] sm:$0xff]
        %v2109 = vld [vmem:[%s3 + $0x48] sm:$0xff]
        %v2110 = vld [vmem:[%s3 + $0x50] sm:$0xff]
        %v2111 = vld [vmem:[%s3 + $0x58] sm:$0xff]
        %v2113 = vsel %vm481, %v1933, 0
        %2115 = vmatprep.subr.mxu0 0.0
        %2116 = vmatpush1.msra.mxu0 %v2108
        %2117 = vmatprep.subr.mxu0 0.0
        %2118 = vmatpush1.msra.mxu0 %v2109
        %2119 = vmatprep.subr.mxu0 0.0
        %2120 = vmatpush1.msra.mxu0 %v2110
        %2121 = vmatprep.subr.mxu0 0.0
        %2122 = vmatpush1.msra.mxu0 %v2111
        %2123 = vmatprep.subr.mxu0 0.0
        %2124 = vmatpush1.msra.mxu0 0.0
        %2125 = vmatprep.subr.mxu0 0.0
        %2126 = vmatpush1.msra.mxu0 0.0
        %2127 = vmatprep.subr.mxu0 0.0
        %2128 = vmatpush1.msra.mxu0 0.0
        %2129 = vmatprep.subr.mxu0 0.0
        %2130 = vmatpush1.msra.mxu0 0.0
        %2131 = vmatprep.subr.mxu0 0.0
        %2132 = vmatpush1.msra.mxu0 0.0
        %2133 = vmatprep.subr.mxu0 0.0
        %2134 = vmatpush1.msra.mxu0 0.0
        %2135 = vmatprep.subr.mxu0 0.0
        %2136 = vmatpush1.msra.mxu0 0.0
        %2137 = vmatprep.subr.mxu0 0.0
        %2138 = vmatpush1.msra.mxu0 0.0
        %2139 = vmatprep.subr.mxu0 0.0
        %2140 = vmatpush1.msra.mxu0 0.0
        %2141 = vmatprep.subr.mxu0 0.0
        %2142 = vmatpush1.msra.mxu0 0.0
        %2143 = vmatprep.subr.mxu0 0.0
        %2144 = vmatpush1.msra.mxu0 0.0
        %2145 = vmatprep.subr.mxu0 0.0
        %2146 = vmatpush1.msra.mxu0 0.0
        %2147 = vmatprep.subr.mxu0 0.0
        %2148 = vmatpush1.msra.mxu0 0.0
        %2149 = vmatprep.subr.mxu0 0.0
        %2150 = vmatpush1.msra.mxu0 0.0
        %2151 = vmatprep.subr.mxu0 0.0
        %2152 = vmatpush1.msra.mxu0 0.0
        %2153 = vmatprep.subr.mxu0 0.0
        %2154 = vmatpush1.msra.mxu0 0.0
        %2155 = vmatprep.subr.mxu0 0.0
        %2156 = vmatpush1.msra.mxu0 0.0
        %2157 = vmatprep.subr.mxu0 0.0
        %2158 = vmatpush1.msra.mxu0 0.0
        %2159 = vmatprep.subr.mxu0 0.0
        %2160 = vmatpush1.msra.mxu0 0.0
        %2161 = vmatprep.subr.mxu0 0.0
        %2162 = vmatpush1.msra.mxu0 0.0
        %2163 = vmatprep.subr.mxu0 0.0
        %2164 = vmatpush1.msra.mxu0 0.0
        %2165 = vmatprep.subr.mxu0 0.0
        %2166 = vmatpush1.msra.mxu0 0.0
        %2167 = vmatprep.subr.mxu0 0.0
        %2168 = vmatpush1.msra.mxu0 0.0
        %2169 = vmatprep.subr.mxu0 0.0
        %2170 = vmatpush1.msra.mxu0 0.0
        %2171 = vmatprep.subr.mxu0 0.0
        %2172 = vmatpush1.msra.mxu0 0.0
        %2173 = vmatprep.subr.mxu0 0.0
        %2174 = vmatpush1.msra.mxu0 0.0
        %2175 = vmatprep.subr.mxu0 0.0
        %2176 = vmatpush1.msra.mxu0 0.0
        %2177 = vmatprep.subr.mxu0 0.0
        %2178 = vmatpush1.msra.mxu0 0.0
        %2179 = vmatprep.mubr.f32.mxu0 0.0
        %2180 = vmatmul.mubr.f32.gmra.mrb[0].mxu0 %v2113
        %v2181 = vpop.f32.mrb[0].mxu0
        %v2182 = vadd.f32 0.0, %v2181
        %v2183 = vpop.f32.mrb[0].mxu0
        %2184 = vdwg.mxu0
        %v2185 = vadd.f32 %v2105, %v2182
        %v2186 = vld [vmem:[%s3 + $0x60] sm:$0xff]
        %v2187 = vld [vmem:[%s3 + $0x68] sm:$0xff]
        %v2188 = vld [vmem:[%s3 + $0x70] sm:$0xff]
        %v2189 = vld [vmem:[%s3 + $0x78] sm:$0xff]
        %v2191 = vsel %vm481, %v1935, 0
        %2193 = vmatprep.subr.mxu0 0.0
        %2194 = vmatpush1.msra.mxu0 %v2186
        %2195 = vmatprep.subr.mxu0 0.0
        %2196 = vmatpush1.msra.mxu0 %v2187
        %2197 = vmatprep.subr.mxu0 0.0
        %2198 = vmatpush1.msra.mxu0 %v2188
        %2199 = vmatprep.subr.mxu0 0.0
        %2200 = vmatpush1.msra.mxu0 %v2189
        %2201 = vmatprep.subr.mxu0 0.0
        %2202 = vmatpush1.msra.mxu0 0.0
        %2203 = vmatprep.subr.mxu0 0.0
        %2204 = vmatpush1.msra.mxu0 0.0
        %2205 = vmatprep.subr.mxu0 0.0
        %2206 = vmatpush1.msra.mxu0 0.0
        %2207 = vmatprep.subr.mxu0 0.0
        %2208 = vmatpush1.msra.mxu0 0.0
        %2209 = vmatprep.subr.mxu0 0.0
        %2210 = vmatpush1.msra.mxu0 0.0
        %2211 = vmatprep.subr.mxu0 0.0
        %2212 = vmatpush1.msra.mxu0 0.0
        %2213 = vmatprep.subr.mxu0 0.0
        %2214 = vmatpush1.msra.mxu0 0.0
        %2215 = vmatprep.subr.mxu0 0.0
        %2216 = vmatpush1.msra.mxu0 0.0
        %2217 = vmatprep.subr.mxu0 0.0
        %2218 = vmatpush1.msra.mxu0 0.0
        %2219 = vmatprep.subr.mxu0 0.0
        %2220 = vmatpush1.msra.mxu0 0.0
        %2221 = vmatprep.subr.mxu0 0.0
        %2222 = vmatpush1.msra.mxu0 0.0
        %2223 = vmatprep.subr.mxu0 0.0
        %2224 = vmatpush1.msra.mxu0 0.0
        %2225 = vmatprep.subr.mxu0 0.0
        %2226 = vmatpush1.msra.mxu0 0.0
        %2227 = vmatprep.subr.mxu0 0.0
        %2228 = vmatpush1.msra.mxu0 0.0
        %2229 = vmatprep.subr.mxu0 0.0
        %2230 = vmatpush1.msra.mxu0 0.0
        %2231 = vmatprep.subr.mxu0 0.0
        %2232 = vmatpush1.msra.mxu0 0.0
        %2233 = vmatprep.subr.mxu0 0.0
        %2234 = vmatpush1.msra.mxu0 0.0
        %2235 = vmatprep.subr.mxu0 0.0
        %2236 = vmatpush1.msra.mxu0 0.0
        %2237 = vmatprep.subr.mxu0 0.0
        %2238 = vmatpush1.msra.mxu0 0.0
        %2239 = vmatprep.subr.mxu0 0.0
        %2240 = vmatpush1.msra.mxu0 0.0
        %2241 = vmatprep.subr.mxu0 0.0
        %2242 = vmatpush1.msra.mxu0 0.0
        %2243 = vmatprep.subr.mxu0 0.0
        %2244 = vmatpush1.msra.mxu0 0.0
        %2245 = vmatprep.subr.mxu0 0.0
        %2246 = vmatpush1.msra.mxu0 0.0
        %2247 = vmatprep.subr.mxu0 0.0
        %2248 = vmatpush1.msra.mxu0 0.0
        %2249 = vmatprep.subr.mxu0 0.0
        %2250 = vmatpush1.msra.mxu0 0.0
        %2251 = vmatprep.subr.mxu0 0.0
        %2252 = vmatpush1.msra.mxu0 0.0
        %2253 = vmatprep.subr.mxu0 0.0
        %2254 = vmatpush1.msra.mxu0 0.0
        %2255 = vmatprep.subr.mxu0 0.0
        %2256 = vmatpush1.msra.mxu0 0.0
        %2257 = vmatprep.mubr.f32.mxu0 0.0
        %2258 = vmatmul.mubr.f32.gmra.mrb[0].mxu0 %v2191
        %v2259 = vpop.f32.mrb[0].mxu0
        %v2260 = vadd.f32 0.0, %v2259
        %v2261 = vpop.f32.mrb[0].mxu0
        %2262 = vdwg.mxu0
        %v2263 = vadd.f32 %v2185, %v2260
        %v2264 = vld [vmem:[%s3 + $0x80] sm:$0xff]
        %v2265 = vld [vmem:[%s3 + $0x88] sm:$0xff]
        %v2266 = vld [vmem:[%s3 + $0x90] sm:$0xff]
        %v2267 = vld [vmem:[%s3 + $0x98] sm:$0xff]
        %v2269 = vsel %vm481, %v1936, 0
        %2271 = vmatprep.subr.mxu0 0.0
        %2272 = vmatpush1.msra.mxu0 %v2264
        %2273 = vmatprep.subr.mxu0 0.0
        %2274 = vmatpush1.msra.mxu0 %v2265
        %2275 = vmatprep.subr.mxu0 0.0
        %2276 = vmatpush1.msra.mxu0 %v2266
        %2277 = vmatprep.subr.mxu0 0.0
        %2278 = vmatpush1.msra.mxu0 %v2267
        %2279 = vmatprep.subr.mxu0 0.0
        %2280 = vmatpush1.msra.mxu0 0.0
        %2281 = vmatprep.subr.mxu0 0.0
        %2282 = vmatpush1.msra.mxu0 0.0
        %2283 = vmatprep.subr.mxu0 0.0
        %2284 = vmatpush1.msra.mxu0 0.0
        %2285 = vmatprep.subr.mxu0 0.0
        %2286 = vmatpush1.msra.mxu0 0.0
        %2287 = vmatprep.subr.mxu0 0.0
        %2288 = vmatpush1.msra.mxu0 0.0
        %2289 = vmatprep.subr.mxu0 0.0
        %2290 = vmatpush1.msra.mxu0 0.0
        %2291 = vmatprep.subr.mxu0 0.0
        %2292 = vmatpush1.msra.mxu0 0.0
        %2293 = vmatprep.subr.mxu0 0.0
        %2294 = vmatpush1.msra.mxu0 0.0
        %2295 = vmatprep.subr.mxu0 0.0
        %2296 = vmatpush1.msra.mxu0 0.0
        %2297 = vmatprep.subr.mxu0 0.0
        %2298 = vmatpush1.msra.mxu0 0.0
        %2299 = vmatprep.subr.mxu0 0.0
        %2300 = vmatpush1.msra.mxu0 0.0
        %2301 = vmatprep.subr.mxu0 0.0
        %2302 = vmatpush1.msra.mxu0 0.0
        %2303 = vmatprep.subr.mxu0 0.0
        %2304 = vmatpush1.msra.mxu0 0.0
        %2305 = vmatprep.subr.mxu0 0.0
        %2306 = vmatpush1.msra.mxu0 0.0
        %2307 = vmatprep.subr.mxu0 0.0
        %2308 = vmatpush1.msra.mxu0 0.0
        %2309 = vmatprep.subr.mxu0 0.0
        %2310 = vmatpush1.msra.mxu0 0.0
        %2311 = vmatprep.subr.mxu0 0.0
        %2312 = vmatpush1.msra.mxu0 0.0
        %2313 = vmatprep.subr.mxu0 0.0
        %2314 = vmatpush1.msra.mxu0 0.0
        %2315 = vmatprep.subr.mxu0 0.0
        %2316 = vmatpush1.msra.mxu0 0.0
        %2317 = vmatprep.subr.mxu0 0.0
        %2318 = vmatpush1.msra.mxu0 0.0
        %2319 = vmatprep.subr.mxu0 0.0
        %2320 = vmatpush1.msra.mxu0 0.0
        %2321 = vmatprep.subr.mxu0 0.0
        %2322 = vmatpush1.msra.mxu0 0.0
        %2323 = vmatprep.subr.mxu0 0.0
        %2324 = vmatpush1.msra.mxu0 0.0
        %2325 = vmatprep.subr.mxu0 0.0
        %2326 = vmatpush1.msra.mxu0 0.0
        %2327 = vmatprep.subr.mxu0 0.0
        %2328 = vmatpush1.msra.mxu0 0.0
        %2329 = vmatprep.subr.mxu0 0.0
        %2330 = vmatpush1.msra.mxu0 0.0
        %2331 = vmatprep.subr.mxu0 0.0
        %2332 = vmatpush1.msra.mxu0 0.0
        %2333 = vmatprep.subr.mxu0 0.0
        %2334 = vmatpush1.msra.mxu0 0.0
        %2335 = vmatprep.mubr.f32.mxu0 0.0
        %2336 = vmatmul.mubr.f32.gmra.mrb[0].mxu0 %v2269
        %v2337 = vpop.f32.mrb[0].mxu0
        %v2338 = vadd.f32 0.0, %v2337
        %v2339 = vpop.f32.mrb[0].mxu0
        %2340 = vdwg.mxu0
        %v2341 = vadd.f32 %v2263, %v2338
        %v2342 = vld [vmem:[%s3 + $0xa0] sm:$0xff]
        %v2343 = vld [vmem:[%s3 + $0xa8] sm:$0xff]
        %v2344 = vld [vmem:[%s3 + $0xb0] sm:$0xff]
        %v2345 = vld [vmem:[%s3 + $0xb8] sm:$0xff]
        %v2347 = vsel %vm481, %v1937, 0
        %2349 = vmatprep.subr.mxu0 0.0
        %2350 = vmatpush1.msra.mxu0 %v2342
        %2351 = vmatprep.subr.mxu0 0.0
        %2352 = vmatpush1.msra.mxu0 %v2343
        %2353 = vmatprep.subr.mxu0 0.0
        %2354 = vmatpush1.msra.mxu0 %v2344
        %2355 = vmatprep.subr.mxu0 0.0
        %2356 = vmatpush1.msra.mxu0 %v2345
        %2357 = vmatprep.subr.mxu0 0.0
        %2358 = vmatpush1.msra.mxu0 0.0
        %2359 = vmatprep.subr.mxu0 0.0
        %2360 = vmatpush1.msra.mxu0 0.0
        %2361 = vmatprep.subr.mxu0 0.0
        %2362 = vmatpush1.msra.mxu0 0.0
        %2363 = vmatprep.subr.mxu0 0.0
        %2364 = vmatpush1.msra.mxu0 0.0
        %2365 = vmatprep.subr.mxu0 0.0
        %2366 = vmatpush1.msra.mxu0 0.0
        %2367 = vmatprep.subr.mxu0 0.0
        %2368 = vmatpush1.msra.mxu0 0.0
        %2369 = vmatprep.subr.mxu0 0.0
        %2370 = vmatpush1.msra.mxu0 0.0
        %2371 = vmatprep.subr.mxu0 0.0
        %2372 = vmatpush1.msra.mxu0 0.0
        %2373 = vmatprep.subr.mxu0 0.0
        %2374 = vmatpush1.msra.mxu0 0.0
        %2375 = vmatprep.subr.mxu0 0.0
        %2376 = vmatpush1.msra.mxu0 0.0
        %2377 = vmatprep.subr.mxu0 0.0
        %2378 = vmatpush1.msra.mxu0 0.0
        %2379 = vmatprep.subr.mxu0 0.0
        %2380 = vmatpush1.msra.mxu0 0.0
        %2381 = vmatprep.subr.mxu0 0.0
        %2382 = vmatpush1.msra.mxu0 0.0
        %2383 = vmatprep.subr.mxu0 0.0
        %2384 = vmatpush1.msra.mxu0 0.0
        %2385 = vmatprep.subr.mxu0 0.0
        %2386 = vmatpush1.msra.mxu0 0.0
        %2387 = vmatprep.subr.mxu0 0.0
        %2388 = vmatpush1.msra.mxu0 0.0
        %2389 = vmatprep.subr.mxu0 0.0
        %2390 = vmatpush1.msra.mxu0 0.0
        %2391 = vmatprep.subr.mxu0 0.0
        %2392 = vmatpush1.msra.mxu0 0.0
        %2393 = vmatprep.subr.mxu0 0.0
        %2394 = vmatpush1.msra.mxu0 0.0
        %2395 = vmatprep.subr.mxu0 0.0
        %2396 = vmatpush1.msra.mxu0 0.0
        %2397 = vmatprep.subr.mxu0 0.0
        %2398 = vmatpush1.msra.mxu0 0.0
        %2399 = vmatprep.subr.mxu0 0.0
        %2400 = vmatpush1.msra.mxu0 0.0
        %2401 = vmatprep.subr.mxu0 0.0
        %2402 = vmatpush1.msra.mxu0 0.0
        %2403 = vmatprep.subr.mxu0 0.0
        %2404 = vmatpush1.msra.mxu0 0.0
        %2405 = vmatprep.subr.mxu0 0.0
        %2406 = vmatpush1.msra.mxu0 0.0
        %2407 = vmatprep.subr.mxu0 0.0
        %2408 = vmatpush1.msra.mxu0 0.0
        %2409 = vmatprep.subr.mxu0 0.0
        %2410 = vmatpush1.msra.mxu0 0.0
        %2411 = vmatprep.subr.mxu0 0.0
        %2412 = vmatpush1.msra.mxu0 0.0
        %2413 = vmatprep.mubr.f32.mxu0 0.0
        %2414 = vmatmul.mubr.f32.gmra.mrb[0].mxu0 %v2347
        %v2415 = vpop.f32.mrb[0].mxu0
        %v2416 = vadd.f32 0.0, %v2415
        %v2417 = vpop.f32.mrb[0].mxu0
        %2418 = vdwg.mxu0
        %v2419 = vadd.f32 %v2341, %v2416
        %v2420 = vld [vmem:[%s3 + $0xc0] sm:$0xff]
        %v2421 = vld [vmem:[%s3 + $0xc8] sm:$0xff]
        %v2422 = vld [vmem:[%s3 + $0xd0] sm:$0xff]
        %v2423 = vld [vmem:[%s3 + $0xd8] sm:$0xff]
        %v2425 = vsel %vm481, %v1939, 0
        %2427 = vmatprep.subr.mxu0 0.0
        %2428 = vmatpush1.msra.mxu0 %v2420
        %2429 = vmatprep.subr.mxu0 0.0
        %2430 = vmatpush1.msra.mxu0 %v2421
        %2431 = vmatprep.subr.mxu0 0.0
        %2432 = vmatpush1.msra.mxu0 %v2422
        %2433 = vmatprep.subr.mxu0 0.0
        %2434 = vmatpush1.msra.mxu0 %v2423
        %2435 = vmatprep.subr.mxu0 0.0
        %2436 = vmatpush1.msra.mxu0 0.0
        %2437 = vmatprep.subr.mxu0 0.0
        %2438 = vmatpush1.msra.mxu0 0.0
        %2439 = vmatprep.subr.mxu0 0.0
        %2440 = vmatpush1.msra.mxu0 0.0
        %2441 = vmatprep.subr.mxu0 0.0
        %2442 = vmatpush1.msra.mxu0 0.0
        %2443 = vmatprep.subr.mxu0 0.0
        %2444 = vmatpush1.msra.mxu0 0.0
        %2445 = vmatprep.subr.mxu0 0.0
        %2446 = vmatpush1.msra.mxu0 0.0
        %2447 = vmatprep.subr.mxu0 0.0
        %2448 = vmatpush1.msra.mxu0 0.0
        %2449 = vmatprep.subr.mxu0 0.0
        %2450 = vmatpush1.msra.mxu0 0.0
        %2451 = vmatprep.subr.mxu0 0.0
        %2452 = vmatpush1.msra.mxu0 0.0
        %2453 = vmatprep.subr.mxu0 0.0
        %2454 = vmatpush1.msra.mxu0 0.0
        %2455 = vmatprep.subr.mxu0 0.0
        %2456 = vmatpush1.msra.mxu0 0.0
        %2457 = vmatprep.subr.mxu0 0.0
        %2458 = vmatpush1.msra.mxu0 0.0
        %2459 = vmatprep.subr.mxu0 0.0
        %2460 = vmatpush1.msra.mxu0 0.0
        %2461 = vmatprep.subr.mxu0 0.0
        %2462 = vmatpush1.msra.mxu0 0.0
        %2463 = vmatprep.subr.mxu0 0.0
        %2464 = vmatpush1.msra.mxu0 0.0
        %2465 = vmatprep.subr.mxu0 0.0
        %2466 = vmatpush1.msra.mxu0 0.0
        %2467 = vmatprep.subr.mxu0 0.0
        %2468 = vmatpush1.msra.mxu0 0.0
        %2469 = vmatprep.subr.mxu0 0.0
        %2470 = vmatpush1.msra.mxu0 0.0
        %2471 = vmatprep.subr.mxu0 0.0
        %2472 = vmatpush1.msra.mxu0 0.0
        %2473 = vmatprep.subr.mxu0 0.0
        %2474 = vmatpush1.msra.mxu0 0.0
        %2475 = vmatprep.subr.mxu0 0.0
        %2476 = vmatpush1.msra.mxu0 0.0
        %2477 = vmatprep.subr.mxu0 0.0
        %2478 = vmatpush1.msra.mxu0 0.0
        %2479 = vmatprep.subr.mxu0 0.0
        %2480 = vmatpush1.msra.mxu0 0.0
        %2481 = vmatprep.subr.mxu0 0.0
        %2482 = vmatpush1.msra.mxu0 0.0
        %2483 = vmatprep.subr.mxu0 0.0
        %2484 = vmatpush1.msra.mxu0 0.0
        %2485 = vmatprep.subr.mxu0 0.0
        %2486 = vmatpush1.msra.mxu0 0.0
        %2487 = vmatprep.subr.mxu0 0.0
        %2488 = vmatpush1.msra.mxu0 0.0
        %2489 = vmatprep.subr.mxu0 0.0
        %2490 = vmatpush1.msra.mxu0 0.0
        %2491 = vmatprep.mubr.f32.mxu0 0.0
        %2492 = vmatmul.mubr.f32.gmra.mrb[0].mxu0 %v2425
        %v2493 = vpop.f32.mrb[0].mxu0
        %v2494 = vadd.f32 0.0, %v2493
        %v2495 = vpop.f32.mrb[0].mxu0
        %2496 = vdwg.mxu0
        %v2497 = vadd.f32 %v2419, %v2494
        %v2498 = vld [vmem:[%s3 + $0xe0] sm:$0xff]
        %v2499 = vld [vmem:[%s3 + $0xe8] sm:$0xff]
        %v2500 = vld [vmem:[%s3 + $0xf0] sm:$0xff]
        %v2501 = vld [vmem:[%s3 + $0xf8] sm:$0xff]
        %v2503 = vsel %vm481, %v1941, 0
        %2505 = vmatprep.subr.mxu0 0.0
        %2506 = vmatpush1.msra.mxu0 %v2498
        %2507 = vmatprep.subr.mxu0 0.0
        %2508 = vmatpush1.msra.mxu0 %v2499
        %2509 = vmatprep.subr.mxu0 0.0
        %2510 = vmatpush1.msra.mxu0 %v2500
        %2511 = vmatprep.subr.mxu0 0.0
        %2512 = vmatpush1.msra.mxu0 %v2501
        %2513 = vmatprep.subr.mxu0 0.0
        %2514 = vmatpush1.msra.mxu0 0.0
        %2515 = vmatprep.subr.mxu0 0.0
        %2516 = vmatpush1.msra.mxu0 0.0
        %2517 = vmatprep.subr.mxu0 0.0
        %2518 = vmatpush1.msra.mxu0 0.0
        %2519 = vmatprep.subr.mxu0 0.0
        %2520 = vmatpush1.msra.mxu0 0.0
        %2521 = vmatprep.subr.mxu0 0.0
        %2522 = vmatpush1.msra.mxu0 0.0
        %2523 = vmatprep.subr.mxu0 0.0
        %2524 = vmatpush1.msra.mxu0 0.0
        %2525 = vmatprep.subr.mxu0 0.0
        %2526 = vmatpush1.msra.mxu0 0.0
        %2527 = vmatprep.subr.mxu0 0.0
        %2528 = vmatpush1.msra.mxu0 0.0
        %2529 = vmatprep.subr.mxu0 0.0
        %2530 = vmatpush1.msra.mxu0 0.0
        %2531 = vmatprep.subr.mxu0 0.0
        %2532 = vmatpush1.msra.mxu0 0.0
        %2533 = vmatprep.subr.mxu0 0.0
        %2534 = vmatpush1.msra.mxu0 0.0
        %2535 = vmatprep.subr.mxu0 0.0
        %2536 = vmatpush1.msra.mxu0 0.0
        %2537 = vmatprep.subr.mxu0 0.0
        %2538 = vmatpush1.msra.mxu0 0.0
        %2539 = vmatprep.subr.mxu0 0.0
        %2540 = vmatpush1.msra.mxu0 0.0
        %2541 = vmatprep.subr.mxu0 0.0
        %2542 = vmatpush1.msra.mxu0 0.0
        %2543 = vmatprep.subr.mxu0 0.0
        %2544 = vmatpush1.msra.mxu0 0.0
        %2545 = vmatprep.subr.mxu0 0.0
        %2546 = vmatpush1.msra.mxu0 0.0
        %2547 = vmatprep.subr.mxu0 0.0
        %2548 = vmatpush1.msra.mxu0 0.0
        %2549 = vmatprep.subr.mxu0 0.0
        %2550 = vmatpush1.msra.mxu0 0.0
        %2551 = vmatprep.subr.mxu0 0.0
        %2552 = vmatpush1.msra.mxu0 0.0
        %2553 = vmatprep.subr.mxu0 0.0
        %2554 = vmatpush1.msra.mxu0 0.0
        %2555 = vmatprep.subr.mxu0 0.0
        %2556 = vmatpush1.msra.mxu0 0.0
        %2557 = vmatprep.subr.mxu0 0.0
        %2558 = vmatpush1.msra.mxu0 0.0
        %2559 = vmatprep.subr.mxu0 0.0
        %2560 = vmatpush1.msra.mxu0 0.0
        %2561 = vmatprep.subr.mxu0 0.0
        %2562 = vmatpush1.msra.mxu0 0.0
        %2563 = vmatprep.subr.mxu0 0.0
        %2564 = vmatpush1.msra.mxu0 0.0
        %2565 = vmatprep.subr.mxu0 0.0
        %2566 = vmatpush1.msra.mxu0 0.0
        %2567 = vmatprep.subr.mxu0 0.0
        %2568 = vmatpush1.msra.mxu0 0.0
        %2569 = vmatprep.mubr.f32.mxu0 0.0
        %2570 = vmatmul.mubr.f32.gmra.mrb[0].mxu0 %v2503
        %v2571 = vpop.f32.mrb[0].mxu0
        %v2572 = vadd.f32 0.0, %v2571
        %v2573 = vpop.f32.mrb[0].mxu0
        %2574 = vdwg.mxu0
        %v2575 = vadd.f32 %v2497, %v2572
        %v2576 = vld [vmem:[%s3 + $0x100] sm:$0xff]
        %v2577 = vld [vmem:[%s3 + $0x108] sm:$0xff]
        %v2578 = vld [vmem:[%s3 + $0x110] sm:$0xff]
        %v2579 = vld [vmem:[%s3 + $0x118] sm:$0xff]
        %v2581 = vsel %vm481, %v1942, 0
        %2583 = vmatprep.subr.mxu0 0.0
        %2584 = vmatpush1.msra.mxu0 %v2576
        %2585 = vmatprep.subr.mxu0 0.0
        %2586 = vmatpush1.msra.mxu0 %v2577
        %2587 = vmatprep.subr.mxu0 0.0
        %2588 = vmatpush1.msra.mxu0 %v2578
        %2589 = vmatprep.subr.mxu0 0.0
        %2590 = vmatpush1.msra.mxu0 %v2579
        %2591 = vmatprep.subr.mxu0 0.0
        %2592 = vmatpush1.msra.mxu0 0.0
        %2593 = vmatprep.subr.mxu0 0.0
        %2594 = vmatpush1.msra.mxu0 0.0
        %2595 = vmatprep.subr.mxu0 0.0
        %2596 = vmatpush1.msra.mxu0 0.0
        %2597 = vmatprep.subr.mxu0 0.0
        %2598 = vmatpush1.msra.mxu0 0.0
        %2599 = vmatprep.subr.mxu0 0.0
        %2600 = vmatpush1.msra.mxu0 0.0
        %2601 = vmatprep.subr.mxu0 0.0
        %2602 = vmatpush1.msra.mxu0 0.0
        %2603 = vmatprep.subr.mxu0 0.0
        %2604 = vmatpush1.msra.mxu0 0.0
        %2605 = vmatprep.subr.mxu0 0.0
        %2606 = vmatpush1.msra.mxu0 0.0
        %2607 = vmatprep.subr.mxu0 0.0
        %2608 = vmatpush1.msra.mxu0 0.0
        %2609 = vmatprep.subr.mxu0 0.0
        %2610 = vmatpush1.msra.mxu0 0.0
        %2611 = vmatprep.subr.mxu0 0.0
        %2612 = vmatpush1.msra.mxu0 0.0
        %2613 = vmatprep.subr.mxu0 0.0
        %2614 = vmatpush1.msra.mxu0 0.0
        %2615 = vmatprep.subr.mxu0 0.0
        %2616 = vmatpush1.msra.mxu0 0.0
        %2617 = vmatprep.subr.mxu0 0.0
        %2618 = vmatpush1.msra.mxu0 0.0
        %2619 = vmatprep.subr.mxu0 0.0
        %2620 = vmatpush1.msra.mxu0 0.0
        %2621 = vmatprep.subr.mxu0 0.0
        %2622 = vmatpush1.msra.mxu0 0.0
        %2623 = vmatprep.subr.mxu0 0.0
        %2624 = vmatpush1.msra.mxu0 0.0
        %2625 = vmatprep.subr.mxu0 0.0
        %2626 = vmatpush1.msra.mxu0 0.0
        %2627 = vmatprep.subr.mxu0 0.0
        %2628 = vmatpush1.msra.mxu0 0.0
        %2629 = vmatprep.subr.mxu0 0.0
        %2630 = vmatpush1.msra.mxu0 0.0
        %2631 = vmatprep.subr.mxu0 0.0
        %2632 = vmatpush1.msra.mxu0 0.0
        %2633 = vmatprep.subr.mxu0 0.0
        %2634 = vmatpush1.msra.mxu0 0.0
        %2635 = vmatprep.subr.mxu0 0.0
        %2636 = vmatpush1.msra.mxu0 0.0
        %2637 = vmatprep.subr.mxu0 0.0
        %2638 = vmatpush1.msra.mxu0 0.0
        %2639 = vmatprep.subr.mxu0 0.0
        %2640 = vmatpush1.msra.mxu0 0.0
        %2641 = vmatprep.subr.mxu0 0.0
        %2642 = vmatpush1.msra.mxu0 0.0
        %2643 = vmatprep.subr.mxu0 0.0
        %2644 = vmatpush1.msra.mxu0 0.0
        %2645 = vmatprep.subr.mxu0 0.0
        %2646 = vmatpush1.msra.mxu0 0.0
        %2647 = vmatprep.mubr.f32.mxu0 0.0
        %2648 = vmatmul.mubr.f32.gmra.mrb[0].mxu0 %v2581
        %v2649 = vpop.f32.mrb[0].mxu0
        %v2650 = vadd.f32 0.0, %v2649
        %v2651 = vpop.f32.mrb[0].mxu0
        %2652 = vdwg.mxu0
        %v2653 = vadd.f32 %v2575, %v2650
        %v2654 = vld [vmem:[%s3 + $0x120] sm:$0xff]
        %v2655 = vld [vmem:[%s3 + $0x128] sm:$0xff]
        %v2656 = vld [vmem:[%s3 + $0x130] sm:$0xff]
        %v2657 = vld [vmem:[%s3 + $0x138] sm:$0xff]
        %v2659 = vsel %vm481, %v1943, 0
        %2661 = vmatprep.subr.mxu0 0.0
        %2662 = vmatpush1.msra.mxu0 %v2654
        %2663 = vmatprep.subr.mxu0 0.0
        %2664 = vmatpush1.msra.mxu0 %v2655
        %2665 = vmatprep.subr.mxu0 0.0
        %2666 = vmatpush1.msra.mxu0 %v2656
        %2667 = vmatprep.subr.mxu0 0.0
        %2668 = vmatpush1.msra.mxu0 %v2657
        %2669 = vmatprep.subr.mxu0 0.0
        %2670 = vmatpush1.msra.mxu0 0.0
        %2671 = vmatprep.subr.mxu0 0.0
        %2672 = vmatpush1.msra.mxu0 0.0
        %2673 = vmatprep.subr.mxu0 0.0
        %2674 = vmatpush1.msra.mxu0 0.0
        %2675 = vmatprep.subr.mxu0 0.0
        %2676 = vmatpush1.msra.mxu0 0.0
        %2677 = vmatprep.subr.mxu0 0.0
        %2678 = vmatpush1.msra.mxu0 0.0
        %2679 = vmatprep.subr.mxu0 0.0
        %2680 = vmatpush1.msra.mxu0 0.0
        %2681 = vmatprep.subr.mxu0 0.0
        %2682 = vmatpush1.msra.mxu0 0.0
        %2683 = vmatprep.subr.mxu0 0.0
        %2684 = vmatpush1.msra.mxu0 0.0
        %2685 = vmatprep.subr.mxu0 0.0
        %2686 = vmatpush1.msra.mxu0 0.0
        %2687 = vmatprep.subr.mxu0 0.0
        %2688 = vmatpush1.msra.mxu0 0.0
        %2689 = vmatprep.subr.mxu0 0.0
        %2690 = vmatpush1.msra.mxu0 0.0
        %2691 = vmatprep.subr.mxu0 0.0
        %2692 = vmatpush1.msra.mxu0 0.0
        %2693 = vmatprep.subr.mxu0 0.0
        %2694 = vmatpush1.msra.mxu0 0.0
        %2695 = vmatprep.subr.mxu0 0.0
        %2696 = vmatpush1.msra.mxu0 0.0
        %2697 = vmatprep.subr.mxu0 0.0
        %2698 = vmatpush1.msra.mxu0 0.0
        %2699 = vmatprep.subr.mxu0 0.0
        %2700 = vmatpush1.msra.mxu0 0.0
        %2701 = vmatprep.subr.mxu0 0.0
        %2702 = vmatpush1.msra.mxu0 0.0
        %2703 = vmatprep.subr.mxu0 0.0
        %2704 = vmatpush1.msra.mxu0 0.0
        %2705 = vmatprep.subr.mxu0 0.0
        %2706 = vmatpush1.msra.mxu0 0.0
        %2707 = vmatprep.subr.mxu0 0.0
        %2708 = vmatpush1.msra.mxu0 0.0
        %2709 = vmatprep.subr.mxu0 0.0
        %2710 = vmatpush1.msra.mxu0 0.0
        %2711 = vmatprep.subr.mxu0 0.0
        %2712 = vmatpush1.msra.mxu0 0.0
        %2713 = vmatprep.subr.mxu0 0.0
        %2714 = vmatpush1.msra.mxu0 0.0
        %2715 = vmatprep.subr.mxu0 0.0
        %2716 = vmatpush1.msra.mxu0 0.0
        %2717 = vmatprep.subr.mxu0 0.0
        %2718 = vmatpush1.msra.mxu0 0.0
        %2719 = vmatprep.subr.mxu0 0.0
        %2720 = vmatpush1.msra.mxu0 0.0
        %2721 = vmatprep.subr.mxu0 0.0
        %2722 = vmatpush1.msra.mxu0 0.0
        %2723 = vmatprep.subr.mxu0 0.0
        %2724 = vmatpush1.msra.mxu0 0.0
        %2725 = vmatprep.mubr.f32.mxu0 0.0
        %2726 = vmatmul.mubr.f32.gmra.mrb[0].mxu0 %v2659
        %v2727 = vpop.f32.mrb[0].mxu0
        %v2728 = vadd.f32 0.0, %v2727
        %v2729 = vpop.f32.mrb[0].mxu0
        %2730 = vdwg.mxu0
        %v2731 = vadd.f32 %v2653, %v2728
        %v2732 = vld [vmem:[%s3 + $0x140] sm:$0xff]
        %v2733 = vld [vmem:[%s3 + $0x148] sm:$0xff]
        %v2734 = vld [vmem:[%s3 + $0x150] sm:$0xff]
        %v2735 = vld [vmem:[%s3 + $0x158] sm:$0xff]
        %v2737 = vsel %vm481, %v1945, 0
        %2739 = vmatprep.subr.mxu0 0.0
        %2740 = vmatpush1.msra.mxu0 %v2732
        %2741 = vmatprep.subr.mxu0 0.0
        %2742 = vmatpush1.msra.mxu0 %v2733
        %2743 = vmatprep.subr.mxu0 0.0
        %2744 = vmatpush1.msra.mxu0 %v2734
        %2745 = vmatprep.subr.mxu0 0.0
        %2746 = vmatpush1.msra.mxu0 %v2735
        %2747 = vmatprep.subr.mxu0 0.0
        %2748 = vmatpush1.msra.mxu0 0.0
        %2749 = vmatprep.subr.mxu0 0.0
        %2750 = vmatpush1.msra.mxu0 0.0
        %2751 = vmatprep.subr.mxu0 0.0
        %2752 = vmatpush1.msra.mxu0 0.0
        %2753 = vmatprep.subr.mxu0 0.0
        %2754 = vmatpush1.msra.mxu0 0.0
        %2755 = vmatprep.subr.mxu0 0.0
        %2756 = vmatpush1.msra.mxu0 0.0
        %2757 = vmatprep.subr.mxu0 0.0
        %2758 = vmatpush1.msra.mxu0 0.0
        %2759 = vmatprep.subr.mxu0 0.0
        %2760 = vmatpush1.msra.mxu0 0.0
        %2761 = vmatprep.subr.mxu0 0.0
        %2762 = vmatpush1.msra.mxu0 0.0
        %2763 = vmatprep.subr.mxu0 0.0
        %2764 = vmatpush1.msra.mxu0 0.0
        %2765 = vmatprep.subr.mxu0 0.0
        %2766 = vmatpush1.msra.mxu0 0.0
        %2767 = vmatprep.subr.mxu0 0.0
        %2768 = vmatpush1.msra.mxu0 0.0
        %2769 = vmatprep.subr.mxu0 0.0
        %2770 = vmatpush1.msra.mxu0 0.0
        %2771 = vmatprep.subr.mxu0 0.0
        %2772 = vmatpush1.msra.mxu0 0.0
        %2773 = vmatprep.subr.mxu0 0.0
        %2774 = vmatpush1.msra.mxu0 0.0
        %2775 = vmatprep.subr.mxu0 0.0
        %2776 = vmatpush1.msra.mxu0 0.0
        %2777 = vmatprep.subr.mxu0 0.0
        %2778 = vmatpush1.msra.mxu0 0.0
        %2779 = vmatprep.subr.mxu0 0.0
        %2780 = vmatpush1.msra.mxu0 0.0
        %2781 = vmatprep.subr.mxu0 0.0
        %2782 = vmatpush1.msra.mxu0 0.0
        %2783 = vmatprep.subr.mxu0 0.0
        %2784 = vmatpush1.msra.mxu0 0.0
        %2785 = vmatprep.subr.mxu0 0.0
        %2786 = vmatpush1.msra.mxu0 0.0
        %2787 = vmatprep.subr.mxu0 0.0
        %2788 = vmatpush1.msra.mxu0 0.0
        %2789 = vmatprep.subr.mxu0 0.0
        %2790 = vmatpush1.msra.mxu0 0.0
        %2791 = vmatprep.subr.mxu0 0.0
        %2792 = vmatpush1.msra.mxu0 0.0
        %2793 = vmatprep.subr.mxu0 0.0
        %2794 = vmatpush1.msra.mxu0 0.0
        %2795 = vmatprep.subr.mxu0 0.0
        %2796 = vmatpush1.msra.mxu0 0.0
        %2797 = vmatprep.subr.mxu0 0.0
        %2798 = vmatpush1.msra.mxu0 0.0
        %2799 = vmatprep.subr.mxu0 0.0
        %2800 = vmatpush1.msra.mxu0 0.0
        %2801 = vmatprep.subr.mxu0 0.0
        %2802 = vmatpush1.msra.mxu0 0.0
        %2803 = vmatprep.mubr.f32.mxu0 0.0
        %2804 = vmatmul.mubr.f32.gmra.mrb[0].mxu0 %v2737
        %v2805 = vpop.f32.mrb[0].mxu0
        %v2806 = vadd.f32 0.0, %v2805
        %v2807 = vpop.f32.mrb[0].mxu0
        %2808 = vdwg.mxu0
        %v2809 = vadd.f32 %v2731, %v2806
        %v2810 = vld [vmem:[%s3 + $0x160] sm:$0xff]
        %v2811 = vld [vmem:[%s3 + $0x168] sm:$0xff]
        %v2812 = vld [vmem:[%s3 + $0x170] sm:$0xff]
        %v2813 = vld [vmem:[%s3 + $0x178] sm:$0xff]
        %v2815 = vsel %vm481, %v1947, 0
        %2817 = vmatprep.subr.mxu0 0.0
        %2818 = vmatpush1.msra.mxu0 %v2810
        %2819 = vmatprep.subr.mxu0 0.0
        %2820 = vmatpush1.msra.mxu0 %v2811
        %2821 = vmatprep.subr.mxu0 0.0
        %2822 = vmatpush1.msra.mxu0 %v2812
        %2823 = vmatprep.subr.mxu0 0.0
        %2824 = vmatpush1.msra.mxu0 %v2813
        %2825 = vmatprep.subr.mxu0 0.0
        %2826 = vmatpush1.msra.mxu0 0.0
        %2827 = vmatprep.subr.mxu0 0.0
        %2828 = vmatpush1.msra.mxu0 0.0
        %2829 = vmatprep.subr.mxu0 0.0
        %2830 = vmatpush1.msra.mxu0 0.0
        %2831 = vmatprep.subr.mxu0 0.0
        %2832 = vmatpush1.msra.mxu0 0.0
        %2833 = vmatprep.subr.mxu0 0.0
        %2834 = vmatpush1.msra.mxu0 0.0
        %2835 = vmatprep.subr.mxu0 0.0
        %2836 = vmatpush1.msra.mxu0 0.0
        %2837 = vmatprep.subr.mxu0 0.0
        %2838 = vmatpush1.msra.mxu0 0.0
        %2839 = vmatprep.subr.mxu0 0.0
        %2840 = vmatpush1.msra.mxu0 0.0
        %2841 = vmatprep.subr.mxu0 0.0
        %2842 = vmatpush1.msra.mxu0 0.0
        %2843 = vmatprep.subr.mxu0 0.0
        %2844 = vmatpush1.msra.mxu0 0.0
        %2845 = vmatprep.subr.mxu0 0.0
        %2846 = vmatpush1.msra.mxu0 0.0
        %2847 = vmatprep.subr.mxu0 0.0
        %2848 = vmatpush1.msra.mxu0 0.0
        %2849 = vmatprep.subr.mxu0 0.0
        %2850 = vmatpush1.msra.mxu0 0.0
        %2851 = vmatprep.subr.mxu0 0.0
        %2852 = vmatpush1.msra.mxu0 0.0
        %2853 = vmatprep.subr.mxu0 0.0
        %2854 = vmatpush1.msra.mxu0 0.0
        %2855 = vmatprep.subr.mxu0 0.0
        %2856 = vmatpush1.msra.mxu0 0.0
        %2857 = vmatprep.subr.mxu0 0.0
        %2858 = vmatpush1.msra.mxu0 0.0
        %2859 = vmatprep.subr.mxu0 0.0
        %2860 = vmatpush1.msra.mxu0 0.0
        %2861 = vmatprep.subr.mxu0 0.0
        %2862 = vmatpush1.msra.mxu0 0.0
        %2863 = vmatprep.subr.mxu0 0.0
        %2864 = vmatpush1.msra.mxu0 0.0
        %2865 = vmatprep.subr.mxu0 0.0
        %2866 = vmatpush1.msra.mxu0 0.0
        %2867 = vmatprep.subr.mxu0 0.0
        %2868 = vmatpush1.msra.mxu0 0.0
        %2869 = vmatprep.subr.mxu0 0.0
        %2870 = vmatpush1.msra.mxu0 0.0
        %2871 = vmatprep.subr.mxu0 0.0
        %2872 = vmatpush1.msra.mxu0 0.0
        %2873 = vmatprep.subr.mxu0 0.0
        %2874 = vmatpush1.msra.mxu0 0.0
        %2875 = vmatprep.subr.mxu0 0.0
        %2876 = vmatpush1.msra.mxu0 0.0
        %2877 = vmatprep.subr.mxu0 0.0
        %2878 = vmatpush1.msra.mxu0 0.0
        %2879 = vmatprep.subr.mxu0 0.0
        %2880 = vmatpush1.msra.mxu0 0.0
        %2881 = vmatprep.mubr.f32.mxu0 0.0
        %2882 = vmatmul.mubr.f32.gmra.mrb[0].mxu0 %v2815
        %v2883 = vpop.f32.mrb[0].mxu0
        %v2884 = vadd.f32 0.0, %v2883
        %v2885 = vpop.f32.mrb[0].mxu0
        %2886 = vdwg.mxu0
        %v2887 = vadd.f32 %v2809, %v2884
        %v2888 = vld [vmem:[%s3 + $0x180] sm:$0xff]
        %v2889 = vld [vmem:[%s3 + $0x188] sm:$0xff]
        %v2890 = vld [vmem:[%s3 + $0x190] sm:$0xff]
        %v2891 = vld [vmem:[%s3 + $0x198] sm:$0xff]
        %v2893 = vsel %vm481, %v1948, 0
        %2895 = vmatprep.subr.mxu0 0.0
        %2896 = vmatpush1.msra.mxu0 %v2888
        %2897 = vmatprep.subr.mxu0 0.0
        %2898 = vmatpush1.msra.mxu0 %v2889
        %2899 = vmatprep.subr.mxu0 0.0
        %2900 = vmatpush1.msra.mxu0 %v2890
        %2901 = vmatprep.subr.mxu0 0.0
        %2902 = vmatpush1.msra.mxu0 %v2891
        %2903 = vmatprep.subr.mxu0 0.0
        %2904 = vmatpush1.msra.mxu0 0.0
        %2905 = vmatprep.subr.mxu0 0.0
        %2906 = vmatpush1.msra.mxu0 0.0
        %2907 = vmatprep.subr.mxu0 0.0
        %2908 = vmatpush1.msra.mxu0 0.0
        %2909 = vmatprep.subr.mxu0 0.0
        %2910 = vmatpush1.msra.mxu0 0.0
        %2911 = vmatprep.subr.mxu0 0.0
        %2912 = vmatpush1.msra.mxu0 0.0
        %2913 = vmatprep.subr.mxu0 0.0
        %2914 = vmatpush1.msra.mxu0 0.0
        %2915 = vmatprep.subr.mxu0 0.0
        %2916 = vmatpush1.msra.mxu0 0.0
        %2917 = vmatprep.subr.mxu0 0.0
        %2918 = vmatpush1.msra.mxu0 0.0
        %2919 = vmatprep.subr.mxu0 0.0
        %2920 = vmatpush1.msra.mxu0 0.0
        %2921 = vmatprep.subr.mxu0 0.0
        %2922 = vmatpush1.msra.mxu0 0.0
        %2923 = vmatprep.subr.mxu0 0.0
        %2924 = vmatpush1.msra.mxu0 0.0
        %2925 = vmatprep.subr.mxu0 0.0
        %2926 = vmatpush1.msra.mxu0 0.0
        %2927 = vmatprep.subr.mxu0 0.0
        %2928 = vmatpush1.msra.mxu0 0.0
        %2929 = vmatprep.subr.mxu0 0.0
        %2930 = vmatpush1.msra.mxu0 0.0
        %2931 = vmatprep.subr.mxu0 0.0
        %2932 = vmatpush1.msra.mxu0 0.0
        %2933 = vmatprep.subr.mxu0 0.0
        %2934 = vmatpush1.msra.mxu0 0.0
        %2935 = vmatprep.subr.mxu0 0.0
        %2936 = vmatpush1.msra.mxu0 0.0
        %2937 = vmatprep.subr.mxu0 0.0
        %2938 = vmatpush1.msra.mxu0 0.0
        %2939 = vmatprep.subr.mxu0 0.0
        %2940 = vmatpush1.msra.mxu0 0.0
        %2941 = vmatprep.subr.mxu0 0.0
        %2942 = vmatpush1.msra.mxu0 0.0
        %2943 = vmatprep.subr.mxu0 0.0
        %2944 = vmatpush1.msra.mxu0 0.0
        %2945 = vmatprep.subr.mxu0 0.0
        %2946 = vmatpush1.msra.mxu0 0.0
        %2947 = vmatprep.subr.mxu0 0.0
        %2948 = vmatpush1.msra.mxu0 0.0
        %2949 = vmatprep.subr.mxu0 0.0
        %2950 = vmatpush1.msra.mxu0 0.0
        %2951 = vmatprep.subr.mxu0 0.0
        %2952 = vmatpush1.msra.mxu0 0.0
        %2953 = vmatprep.subr.mxu0 0.0
        %2954 = vmatpush1.msra.mxu0 0.0
        %2955 = vmatprep.subr.mxu0 0.0
        %2956 = vmatpush1.msra.mxu0 0.0
        %2957 = vmatprep.subr.mxu0 0.0
        %2958 = vmatpush1.msra.mxu0 0.0
        %2959 = vmatprep.mubr.f32.mxu0 0.0
        %2960 = vmatmul.mubr.f32.gmra.mrb[0].mxu0 %v2893
        %v2961 = vpop.f32.mrb[0].mxu0
        %v2962 = vadd.f32 0.0, %v2961
        %v2963 = vpop.f32.mrb[0].mxu0
        %2964 = vdwg.mxu0
        %v2965 = vadd.f32 %v2887, %v2962
        %v2966 = vld [vmem:[%s3 + $0x1a0] sm:$0xff]
        %v2967 = vld [vmem:[%s3 + $0x1a8] sm:$0xff]
        %v2968 = vld [vmem:[%s3 + $0x1b0] sm:$0xff]
        %v2969 = vld [vmem:[%s3 + $0x1b8] sm:$0xff]
        %v2971 = vsel %vm481, %v1949, 0
        %2973 = vmatprep.subr.mxu0 0.0
        %2974 = vmatpush1.msra.mxu0 %v2966
        %2975 = vmatprep.subr.mxu0 0.0
        %2976 = vmatpush1.msra.mxu0 %v2967
        %2977 = vmatprep.subr.mxu0 0.0
        %2978 = vmatpush1.msra.mxu0 %v2968
        %2979 = vmatprep.subr.mxu0 0.0
        %2980 = vmatpush1.msra.mxu0 %v2969
        %2981 = vmatprep.subr.mxu0 0.0
        %2982 = vmatpush1.msra.mxu0 0.0
        %2983 = vmatprep.subr.mxu0 0.0
        %2984 = vmatpush1.msra.mxu0 0.0
        %2985 = vmatprep.subr.mxu0 0.0
        %2986 = vmatpush1.msra.mxu0 0.0
        %2987 = vmatprep.subr.mxu0 0.0
        %2988 = vmatpush1.msra.mxu0 0.0
        %2989 = vmatprep.subr.mxu0 0.0
        %2990 = vmatpush1.msra.mxu0 0.0
        %2991 = vmatprep.subr.mxu0 0.0
        %2992 = vmatpush1.msra.mxu0 0.0
        %2993 = vmatprep.subr.mxu0 0.0
        %2994 = vmatpush1.msra.mxu0 0.0
        %2995 = vmatprep.subr.mxu0 0.0
        %2996 = vmatpush1.msra.mxu0 0.0
        %2997 = vmatprep.subr.mxu0 0.0
        %2998 = vmatpush1.msra.mxu0 0.0
        %2999 = vmatprep.subr.mxu0 0.0
        %3000 = vmatpush1.msra.mxu0 0.0
        %3001 = vmatprep.subr.mxu0 0.0
        %3002 = vmatpush1.msra.mxu0 0.0
        %3003 = vmatprep.subr.mxu0 0.0
        %3004 = vmatpush1.msra.mxu0 0.0
        %3005 = vmatprep.subr.mxu0 0.0
        %3006 = vmatpush1.msra.mxu0 0.0
        %3007 = vmatprep.subr.mxu0 0.0
        %3008 = vmatpush1.msra.mxu0 0.0
        %3009 = vmatprep.subr.mxu0 0.0
        %3010 = vmatpush1.msra.mxu0 0.0
        %3011 = vmatprep.subr.mxu0 0.0
        %3012 = vmatpush1.msra.mxu0 0.0
        %3013 = vmatprep.subr.mxu0 0.0
        %3014 = vmatpush1.msra.mxu0 0.0
        %3015 = vmatprep.subr.mxu0 0.0
        %3016 = vmatpush1.msra.mxu0 0.0
        %3017 = vmatprep.subr.mxu0 0.0
        %3018 = vmatpush1.msra.mxu0 0.0
        %3019 = vmatprep.subr.mxu0 0.0
        %3020 = vmatpush1.msra.mxu0 0.0
        %3021 = vmatprep.subr.mxu0 0.0
        %3022 = vmatpush1.msra.mxu0 0.0
        %3023 = vmatprep.subr.mxu0 0.0
        %3024 = vmatpush1.msra.mxu0 0.0
        %3025 = vmatprep.subr.mxu0 0.0
        %3026 = vmatpush1.msra.mxu0 0.0
        %3027 = vmatprep.subr.mxu0 0.0
        %3028 = vmatpush1.msra.mxu0 0.0
        %3029 = vmatprep.subr.mxu0 0.0
        %3030 = vmatpush1.msra.mxu0 0.0
        %3031 = vmatprep.subr.mxu0 0.0
        %3032 = vmatpush1.msra.mxu0 0.0
        %3033 = vmatprep.subr.mxu0 0.0
        %3034 = vmatpush1.msra.mxu0 0.0
        %3035 = vmatprep.subr.mxu0 0.0
        %3036 = vmatpush1.msra.mxu0 0.0
        %3037 = vmatprep.mubr.f32.mxu0 0.0
        %3038 = vmatmul.mubr.f32.gmra.mrb[0].mxu0 %v2971
        %v3039 = vpop.f32.mrb[0].mxu0
        %v3040 = vadd.f32 0.0, %v3039
        %v3041 = vpop.f32.mrb[0].mxu0
        %3042 = vdwg.mxu0
        %v3043 = vadd.f32 %v2965, %v3040
        %v3044 = vld [vmem:[%s3 + $0x1c0] sm:$0xff]
        %v3045 = vld [vmem:[%s3 + $0x1c8] sm:$0xff]
        %v3046 = vld [vmem:[%s3 + $0x1d0] sm:$0xff]
        %v3047 = vld [vmem:[%s3 + $0x1d8] sm:$0xff]
        %v3049 = vsel %vm481, %v1951, 0
        %3051 = vmatprep.subr.mxu0 0.0
        %3052 = vmatpush1.msra.mxu0 %v3044
        %3053 = vmatprep.subr.mxu0 0.0
        %3054 = vmatpush1.msra.mxu0 %v3045
        %3055 = vmatprep.subr.mxu0 0.0
        %3056 = vmatpush1.msra.mxu0 %v3046
        %3057 = vmatprep.subr.mxu0 0.0
        %3058 = vmatpush1.msra.mxu0 %v3047
        %3059 = vmatprep.subr.mxu0 0.0
        %3060 = vmatpush1.msra.mxu0 0.0
        %3061 = vmatprep.subr.mxu0 0.0
        %3062 = vmatpush1.msra.mxu0 0.0
        %3063 = vmatprep.subr.mxu0 0.0
        %3064 = vmatpush1.msra.mxu0 0.0
        %3065 = vmatprep.subr.mxu0 0.0
        %3066 = vmatpush1.msra.mxu0 0.0
        %3067 = vmatprep.subr.mxu0 0.0
        %3068 = vmatpush1.msra.mxu0 0.0
        %3069 = vmatprep.subr.mxu0 0.0
        %3070 = vmatpush1.msra.mxu0 0.0
        %3071 = vmatprep.subr.mxu0 0.0
        %3072 = vmatpush1.msra.mxu0 0.0
        %3073 = vmatprep.subr.mxu0 0.0
        %3074 = vmatpush1.msra.mxu0 0.0
        %3075 = vmatprep.subr.mxu0 0.0
        %3076 = vmatpush1.msra.mxu0 0.0
        %3077 = vmatprep.subr.mxu0 0.0
        %3078 = vmatpush1.msra.mxu0 0.0
        %3079 = vmatprep.subr.mxu0 0.0
        %3080 = vmatpush1.msra.mxu0 0.0
        %3081 = vmatprep.subr.mxu0 0.0
        %3082 = vmatpush1.msra.mxu0 0.0
        %3083 = vmatprep.subr.mxu0 0.0
        %3084 = vmatpush1.msra.mxu0 0.0
        %3085 = vmatprep.subr.mxu0 0.0
        %3086 = vmatpush1.msra.mxu0 0.0
        %3087 = vmatprep.subr.mxu0 0.0
        %3088 = vmatpush1.msra.mxu0 0.0
        %3089 = vmatprep.subr.mxu0 0.0
        %3090 = vmatpush1.msra.mxu0 0.0
        %3091 = vmatprep.subr.mxu0 0.0
        %3092 = vmatpush1.msra.mxu0 0.0
        %3093 = vmatprep.subr.mxu0 0.0
        %3094 = vmatpush1.msra.mxu0 0.0
        %3095 = vmatprep.subr.mxu0 0.0
        %3096 = vmatpush1.msra.mxu0 0.0
        %3097 = vmatprep.subr.mxu0 0.0
        %3098 = vmatpush1.msra.mxu0 0.0
        %3099 = vmatprep.subr.mxu0 0.0
        %3100 = vmatpush1.msra.mxu0 0.0
        %3101 = vmatprep.subr.mxu0 0.0
        %3102 = vmatpush1.msra.mxu0 0.0
        %3103 = vmatprep.subr.mxu0 0.0
        %3104 = vmatpush1.msra.mxu0 0.0
        %3105 = vmatprep.subr.mxu0 0.0
        %3106 = vmatpush1.msra.mxu0 0.0
        %3107 = vmatprep.subr.mxu0 0.0
        %3108 = vmatpush1.msra.mxu0 0.0
        %3109 = vmatprep.subr.mxu0 0.0
        %3110 = vmatpush1.msra.mxu0 0.0
        %3111 = vmatprep.subr.mxu0 0.0
        %3112 = vmatpush1.msra.mxu0 0.0
        %3113 = vmatprep.subr.mxu0 0.0
        %3114 = vmatpush1.msra.mxu0 0.0
        %3115 = vmatprep.mubr.f32.mxu0 0.0
        %3116 = vmatmul.mubr.f32.gmra.mrb[0].mxu0 %v3049
        %v3117 = vpop.f32.mrb[0].mxu0
        %v3118 = vadd.f32 0.0, %v3117
        %v3119 = vpop.f32.mrb[0].mxu0
        %3120 = vdwg.mxu0
        %v3121 = vadd.f32 %v3043, %v3118
        %v3122 = vld [vmem:[%s3 + $0x1e0] sm:$0xff]
        %v3123 = vld [vmem:[%s3 + $0x1e8] sm:$0xff]
        %v3124 = vld [vmem:[%s3 + $0x1f0] sm:$0xff]
        %v3125 = vld [vmem:[%s3 + $0x1f8] sm:$0xff]
        %v3127 = vsel %vm481, %v1953, 0
        %3129 = vmatprep.subr.mxu0 0.0
        %3130 = vmatpush1.msra.mxu0 %v3122
        %3131 = vmatprep.subr.mxu0 0.0
        %3132 = vmatpush1.msra.mxu0 %v3123
        %3133 = vmatprep.subr.mxu0 0.0
        %3134 = vmatpush1.msra.mxu0 %v3124
        %3135 = vmatprep.subr.mxu0 0.0
        %3136 = vmatpush1.msra.mxu0 %v3125
        %3137 = vmatprep.subr.mxu0 0.0
        %3138 = vmatpush1.msra.mxu0 0.0
        %3139 = vmatprep.subr.mxu0 0.0
        %3140 = vmatpush1.msra.mxu0 0.0
        %3141 = vmatprep.subr.mxu0 0.0
        %3142 = vmatpush1.msra.mxu0 0.0
        %3143 = vmatprep.subr.mxu0 0.0
        %3144 = vmatpush1.msra.mxu0 0.0
        %3145 = vmatprep.subr.mxu0 0.0
        %3146 = vmatpush1.msra.mxu0 0.0
        %3147 = vmatprep.subr.mxu0 0.0
        %3148 = vmatpush1.msra.mxu0 0.0
        %3149 = vmatprep.subr.mxu0 0.0
        %3150 = vmatpush1.msra.mxu0 0.0
        %3151 = vmatprep.subr.mxu0 0.0
        %3152 = vmatpush1.msra.mxu0 0.0
        %3153 = vmatprep.subr.mxu0 0.0
        %3154 = vmatpush1.msra.mxu0 0.0
        %3155 = vmatprep.subr.mxu0 0.0
        %3156 = vmatpush1.msra.mxu0 0.0
        %3157 = vmatprep.subr.mxu0 0.0
        %3158 = vmatpush1.msra.mxu0 0.0
        %3159 = vmatprep.subr.mxu0 0.0
        %3160 = vmatpush1.msra.mxu0 0.0
        %3161 = vmatprep.subr.mxu0 0.0
        %3162 = vmatpush1.msra.mxu0 0.0
        %3163 = vmatprep.subr.mxu0 0.0
        %3164 = vmatpush1.msra.mxu0 0.0
        %3165 = vmatprep.subr.mxu0 0.0
        %3166 = vmatpush1.msra.mxu0 0.0
        %3167 = vmatprep.subr.mxu0 0.0
        %3168 = vmatpush1.msra.mxu0 0.0
        %3169 = vmatprep.subr.mxu0 0.0
        %3170 = vmatpush1.msra.mxu0 0.0
        %3171 = vmatprep.subr.mxu0 0.0
        %3172 = vmatpush1.msra.mxu0 0.0
        %3173 = vmatprep.subr.mxu0 0.0
        %3174 = vmatpush1.msra.mxu0 0.0
        %3175 = vmatprep.subr.mxu0 0.0
        %3176 = vmatpush1.msra.mxu0 0.0
        %3177 = vmatprep.subr.mxu0 0.0
        %3178 = vmatpush1.msra.mxu0 0.0
        %3179 = vmatprep.subr.mxu0 0.0
        %3180 = vmatpush1.msra.mxu0 0.0
        %3181 = vmatprep.subr.mxu0 0.0
        %3182 = vmatpush1.msra.mxu0 0.0
        %3183 = vmatprep.subr.mxu0 0.0
        %3184 = vmatpush1.msra.mxu0 0.0
        %3185 = vmatprep.subr.mxu0 0.0
        %3186 = vmatpush1.msra.mxu0 0.0
        %3187 = vmatprep.subr.mxu0 0.0
        %3188 = vmatpush1.msra.mxu0 0.0
        %3189 = vmatprep.subr.mxu0 0.0
        %3190 = vmatpush1.msra.mxu0 0.0
        %3191 = vmatprep.subr.mxu0 0.0
        %3192 = vmatpush1.msra.mxu0 0.0
        %3193 = vmatprep.mubr.f32.mxu0 0.0
        %3194 = vmatmul.mubr.f32.gmra.mrb[0].mxu0 %v3127
        %v3195 = vpop.f32.mrb[0].mxu0
        %v3196 = vadd.f32 0.0, %v3195
        %v3197 = vpop.f32.mrb[0].mxu0
        %3198 = vdwg.mxu0
        %v3199 = vadd.f32 %v3121, %v3196
        %v3200 = vld [vmem:[%s4] sm:$0x1]
        %v3202 = vlaneseq
        %v3203 = vshrl.u32 %v3202, 7
        %v3204 = vsub.s32 0, %v3203
        %v3205 = vrot.slane %v3200, %v3204
        %v3207 = vadd.f32 %v3199, %v3205
        %v3208 = vmax.f32 %v3207, 0.0
        %v3211 = vunpack.c.l.s4 1983009808
        %v3212 = vunpack.c.0.s8 %v3211
        %v3213 = vlaneseq
        %v3214 = vshrl.u32 %v3213, 7
        %v3215 = vsub.s32 %v3212, %v3214
        %v3216 = vrot.slane %v3208, %v3215
        %3217 = vrot.lane.b32.xlu0 %v3216, 64
        %v3218 = vpop.permute.xlu0 %3217
        %vm3220 = vcmask 1041920
        %3221 = vst.msk [vmem:[#allocation3] sm:$0x3] %vm3220, %v3218
        %v3222 = vld [vmem:[%s657] ss:$49 sm:$0x3]
        %v3223 = vld [vmem:[%s659] ss:$49 sm:$0x3]
        %v3224 = vld [vmem:[%s661] ss:$49 sm:$0x3]
        %v3225 = vld [vmem:[%s663] ss:$49 sm:$0x3]
        %v3226 = vld [vmem:[%s665] ss:$49 sm:$0x3]
        %v3227 = vld [vmem:[%s667] ss:$49 sm:$0x3]
        %v3228 = vld [vmem:[%s669] ss:$49 sm:$0x3]
        %v3229 = vld [vmem:[%s671] ss:$49 sm:$0x3]
        %s3230 = scalar_lea.vmem [#allocation2], 28
        %v3231 = vld [vmem:[%s3230] ss:$49 sm:$0x3]
        %s3232 = scalar_lea.vmem [#allocation2], 29
        %v3233 = vld [vmem:[%s3232] ss:$49 sm:$0x3]
        %s3234 = scalar_lea.vmem [#allocation2], 30
        %v3235 = vld [vmem:[%s3234] ss:$49 sm:$0x3]
        %s3236 = scalar_lea.vmem [#allocation2], 31
        %v3237 = vld [vmem:[%s3236] ss:$49 sm:$0x3]
        %s3238 = scalar_lea.vmem [#allocation2], 35
        %v3239 = vld [vmem:[%s3238] ss:$49 sm:$0x3]
        %s3240 = scalar_lea.vmem [#allocation2], 36
        %v3241 = vld [vmem:[%s3240] ss:$49 sm:$0x3]
        %s3242 = scalar_lea.vmem [#allocation2], 37
        %v3243 = vld [vmem:[%s3242] ss:$49 sm:$0x3]
        %s3244 = scalar_lea.vmem [#allocation2], 38
        %v3245 = vld [vmem:[%s3244] ss:$49 sm:$0x3]
        %v3246 = vld [vmem:[%s3] sm:$0xff]
        %v3247 = vld [vmem:[%s3 + $0x8] sm:$0xff]
        %v3248 = vld [vmem:[%s3 + $0x10] sm:$0xff]
        %v3249 = vld [vmem:[%s3 + $0x18] sm:$0xff]
        %v3250 = vld [vmem:[%s3 + $0x20] sm:$0xff]
        %v3251 = vld [vmem:[%s3 + $0x28] sm:$0xff]
        %v3252 = vld [vmem:[%s3 + $0x30] sm:$0xff]
        %v3253 = vld [vmem:[%s3 + $0x38] sm:$0xff]
        %v3255 = vsel %vm481, %v3223, 0
        %3257 = vmatprep.subr.mxu0 0.0
        %3258 = vmatpush1.msra.mxu0 %v3250
        %3259 = vmatprep.subr.mxu0 0.0
        %3260 = vmatpush1.msra.mxu0 %v3251
        %3261 = vmatprep.subr.mxu0 0.0
        %3262 = vmatpush1.msra.mxu0 %v3252
        %3263 = vmatprep.subr.mxu0 0.0
        %3264 = vmatpush1.msra.mxu0 %v3253
        %3265 = vmatprep.subr.mxu0 0.0
        %3266 = vmatpush1.msra.mxu0 0.0
        %3267 = vmatprep.subr.mxu0 0.0
        %3268 = vmatpush1.msra.mxu0 0.0
        %3269 = vmatprep.subr.mxu0 0.0
        %3270 = vmatpush1.msra.mxu0 0.0
        %3271 = vmatprep.subr.mxu0 0.0
        %3272 = vmatpush1.msra.mxu0 0.0
        %3273 = vmatprep.subr.mxu0 0.0
        %3274 = vmatpush1.msra.mxu0 0.0
        %3275 = vmatprep.subr.mxu0 0.0
        %3276 = vmatpush1.msra.mxu0 0.0
        %3277 = vmatprep.subr.mxu0 0.0
        %3278 = vmatpush1.msra.mxu0 0.0
        %3279 = vmatprep.subr.mxu0 0.0
        %3280 = vmatpush1.msra.mxu0 0.0
        %3281 = vmatprep.subr.mxu0 0.0
        %3282 = vmatpush1.msra.mxu0 0.0
        %3283 = vmatprep.subr.mxu0 0.0
        %3284 = vmatpush1.msra.mxu0 0.0
        %3285 = vmatprep.subr.mxu0 0.0
        %3286 = vmatpush1.msra.mxu0 0.0
        %3287 = vmatprep.subr.mxu0 0.0
        %3288 = vmatpush1.msra.mxu0 0.0
        %3289 = vmatprep.subr.mxu0 0.0
        %3290 = vmatpush1.msra.mxu0 0.0
        %3291 = vmatprep.subr.mxu0 0.0
        %3292 = vmatpush1.msra.mxu0 0.0
        %3293 = vmatprep.subr.mxu0 0.0
        %3294 = vmatpush1.msra.mxu0 0.0
        %3295 = vmatprep.subr.mxu0 0.0
        %3296 = vmatpush1.msra.mxu0 0.0
        %3297 = vmatprep.subr.mxu0 0.0
        %3298 = vmatpush1.msra.mxu0 0.0
        %3299 = vmatprep.subr.mxu0 0.0
        %3300 = vmatpush1.msra.mxu0 0.0
        %3301 = vmatprep.subr.mxu0 0.0
        %3302 = vmatpush1.msra.mxu0 0.0
        %3303 = vmatprep.subr.mxu0 0.0
        %3304 = vmatpush1.msra.mxu0 0.0
        %3305 = vmatprep.subr.mxu0 0.0
        %3306 = vmatpush1.msra.mxu0 0.0
        %3307 = vmatprep.subr.mxu0 0.0
        %3308 = vmatpush1.msra.mxu0 0.0
        %3309 = vmatprep.subr.mxu0 0.0
        %3310 = vmatpush1.msra.mxu0 0.0
        %3311 = vmatprep.subr.mxu0 0.0
        %3312 = vmatpush1.msra.mxu0 0.0
        %3313 = vmatprep.subr.mxu0 0.0
        %3314 = vmatpush1.msra.mxu0 0.0
        %3315 = vmatprep.subr.mxu0 0.0
        %3316 = vmatpush1.msra.mxu0 0.0
        %3317 = vmatprep.subr.mxu0 0.0
        %3318 = vmatpush1.msra.mxu0 0.0
        %3319 = vmatprep.subr.mxu0 0.0
        %3320 = vmatpush1.msra.mxu0 0.0
        %3321 = vmatprep.mubr.f32.mxu0 0.0
        %3322 = vmatmul.mubr.f32.gmra.mrb[0].mxu0 %v3255
        %v3323 = vpop.f32.mrb[0].mxu0
        %v3324 = vadd.f32 0.0, %v3323
        %v3325 = vpop.f32.mrb[0].mxu0
        %3326 = vdwg.mxu0
        %v3328 = vsel %vm481, %v3222, 0
        %3330 = vmatprep.subr.mxu0 0.0
        %3331 = vmatpush1.msra.mxu0 %v3246
        %3332 = vmatprep.subr.mxu0 0.0
        %3333 = vmatpush1.msra.mxu0 %v3247
        %3334 = vmatprep.subr.mxu0 0.0
        %3335 = vmatpush1.msra.mxu0 %v3248
        %3336 = vmatprep.subr.mxu0 0.0
        %3337 = vmatpush1.msra.mxu0 %v3249
        %3338 = vmatprep.subr.mxu0 0.0
        %3339 = vmatpush1.msra.mxu0 0.0
        %3340 = vmatprep.subr.mxu0 0.0
        %3341 = vmatpush1.msra.mxu0 0.0
        %3342 = vmatprep.subr.mxu0 0.0
        %3343 = vmatpush1.msra.mxu0 0.0
        %3344 = vmatprep.subr.mxu0 0.0
        %3345 = vmatpush1.msra.mxu0 0.0
        %3346 = vmatprep.subr.mxu0 0.0
        %3347 = vmatpush1.msra.mxu0 0.0
        %3348 = vmatprep.subr.mxu0 0.0
        %3349 = vmatpush1.msra.mxu0 0.0
        %3350 = vmatprep.subr.mxu0 0.0
        %3351 = vmatpush1.msra.mxu0 0.0
        %3352 = vmatprep.subr.mxu0 0.0
        %3353 = vmatpush1.msra.mxu0 0.0
        %3354 = vmatprep.subr.mxu0 0.0
        %3355 = vmatpush1.msra.mxu0 0.0
        %3356 = vmatprep.subr.mxu0 0.0
        %3357 = vmatpush1.msra.mxu0 0.0
        %3358 = vmatprep.subr.mxu0 0.0
        %3359 = vmatpush1.msra.mxu0 0.0
        %3360 = vmatprep.subr.mxu0 0.0
        %3361 = vmatpush1.msra.mxu0 0.0
        %3362 = vmatprep.subr.mxu0 0.0
        %3363 = vmatpush1.msra.mxu0 0.0
        %3364 = vmatprep.subr.mxu0 0.0
        %3365 = vmatpush1.msra.mxu0 0.0
        %3366 = vmatprep.subr.mxu0 0.0
        %3367 = vmatpush1.msra.mxu0 0.0
        %3368 = vmatprep.subr.mxu0 0.0
        %3369 = vmatpush1.msra.mxu0 0.0
        %3370 = vmatprep.subr.mxu0 0.0
        %3371 = vmatpush1.msra.mxu0 0.0
        %3372 = vmatprep.subr.mxu0 0.0
        %3373 = vmatpush1.msra.mxu0 0.0
        %3374 = vmatprep.subr.mxu0 0.0
        %3375 = vmatpush1.msra.mxu0 0.0
        %3376 = vmatprep.subr.mxu0 0.0
        %3377 = vmatpush1.msra.mxu0 0.0
        %3378 = vmatprep.subr.mxu0 0.0
        %3379 = vmatpush1.msra.mxu0 0.0
        %3380 = vmatprep.subr.mxu0 0.0
        %3381 = vmatpush1.msra.mxu0 0.0
        %3382 = vmatprep.subr.mxu0 0.0
        %3383 = vmatpush1.msra.mxu0 0.0
        %3384 = vmatprep.subr.mxu0 0.0
        %3385 = vmatpush1.msra.mxu0 0.0
        %3386 = vmatprep.subr.mxu0 0.0
        %3387 = vmatpush1.msra.mxu0 0.0
        %3388 = vmatprep.subr.mxu0 0.0
        %3389 = vmatpush1.msra.mxu0 0.0
        %3390 = vmatprep.subr.mxu0 0.0
        %3391 = vmatpush1.msra.mxu0 0.0
        %3392 = vmatprep.subr.mxu0 0.0
        %3393 = vmatpush1.msra.mxu0 0.0
        %3394 = vmatprep.mubr.f32.mxu0 0.0
        %3395 = vmatmul.mubr.f32.gmra.mrb[0].mxu0 %v3328
        %v3396 = vpop.f32.mrb[0].mxu0
        %v3397 = vadd.f32 %v3324, %v3396
        %v3398 = vpop.f32.mrb[0].mxu0
        %3399 = vdwg.mxu0
        %v3400 = vld [vmem:[%s3 + $0x40] sm:$0xff]
        %v3401 = vld [vmem:[%s3 + $0x48] sm:$0xff]
        %v3402 = vld [vmem:[%s3 + $0x50] sm:$0xff]
        %v3403 = vld [vmem:[%s3 + $0x58] sm:$0xff]
        %v3405 = vsel %vm481, %v3224, 0
        %3407 = vmatprep.subr.mxu0 0.0
        %3408 = vmatpush1.msra.mxu0 %v3400
        %3409 = vmatprep.subr.mxu0 0.0
        %3410 = vmatpush1.msra.mxu0 %v3401
        %3411 = vmatprep.subr.mxu0 0.0
        %3412 = vmatpush1.msra.mxu0 %v3402
        %3413 = vmatprep.subr.mxu0 0.0
        %3414 = vmatpush1.msra.mxu0 %v3403
        %3415 = vmatprep.subr.mxu0 0.0
        %3416 = vmatpush1.msra.mxu0 0.0
        %3417 = vmatprep.subr.mxu0 0.0
        %3418 = vmatpush1.msra.mxu0 0.0
        %3419 = vmatprep.subr.mxu0 0.0
        %3420 = vmatpush1.msra.mxu0 0.0
        %3421 = vmatprep.subr.mxu0 0.0
        %3422 = vmatpush1.msra.mxu0 0.0
        %3423 = vmatprep.subr.mxu0 0.0
        %3424 = vmatpush1.msra.mxu0 0.0
        %3425 = vmatprep.subr.mxu0 0.0
        %3426 = vmatpush1.msra.mxu0 0.0
        %3427 = vmatprep.subr.mxu0 0.0
        %3428 = vmatpush1.msra.mxu0 0.0
        %3429 = vmatprep.subr.mxu0 0.0
        %3430 = vmatpush1.msra.mxu0 0.0
        %3431 = vmatprep.subr.mxu0 0.0
        %3432 = vmatpush1.msra.mxu0 0.0
        %3433 = vmatprep.subr.mxu0 0.0
        %3434 = vmatpush1.msra.mxu0 0.0
        %3435 = vmatprep.subr.mxu0 0.0
        %3436 = vmatpush1.msra.mxu0 0.0
        %3437 = vmatprep.subr.mxu0 0.0
        %3438 = vmatpush1.msra.mxu0 0.0
        %3439 = vmatprep.subr.mxu0 0.0
        %3440 = vmatpush1.msra.mxu0 0.0
        %3441 = vmatprep.subr.mxu0 0.0
        %3442 = vmatpush1.msra.mxu0 0.0
        %3443 = vmatprep.subr.mxu0 0.0
        %3444 = vmatpush1.msra.mxu0 0.0
        %3445 = vmatprep.subr.mxu0 0.0
        %3446 = vmatpush1.msra.mxu0 0.0
        %3447 = vmatprep.subr.mxu0 0.0
        %3448 = vmatpush1.msra.mxu0 0.0
        %3449 = vmatprep.subr.mxu0 0.0
        %3450 = vmatpush1.msra.mxu0 0.0
        %3451 = vmatprep.subr.mxu0 0.0
        %3452 = vmatpush1.msra.mxu0 0.0
        %3453 = vmatprep.subr.mxu0 0.0
        %3454 = vmatpush1.msra.mxu0 0.0
        %3455 = vmatprep.subr.mxu0 0.0
        %3456 = vmatpush1.msra.mxu0 0.0
        %3457 = vmatprep.subr.mxu0 0.0
        %3458 = vmatpush1.msra.mxu0 0.0
        %3459 = vmatprep.subr.mxu0 0.0
        %3460 = vmatpush1.msra.mxu0 0.0
        %3461 = vmatprep.subr.mxu0 0.0
        %3462 = vmatpush1.msra.mxu0 0.0
        %3463 = vmatprep.subr.mxu0 0.0
        %3464 = vmatpush1.msra.mxu0 0.0
        %3465 = vmatprep.subr.mxu0 0.0
        %3466 = vmatpush1.msra.mxu0 0.0
        %3467 = vmatprep.subr.mxu0 0.0
        %3468 = vmatpush1.msra.mxu0 0.0
        %3469 = vmatprep.subr.mxu0 0.0
        %3470 = vmatpush1.msra.mxu0 0.0
        %3471 = vmatprep.mubr.f32.mxu0 0.0
        %3472 = vmatmul.mubr.f32.gmra.mrb[0].mxu0 %v3405
        %v3473 = vpop.f32.mrb[0].mxu0
        %v3474 = vadd.f32 0.0, %v3473
        %v3475 = vpop.f32.mrb[0].mxu0
        %3476 = vdwg.mxu0
        %v3477 = vadd.f32 %v3397, %v3474
        %v3478 = vld [vmem:[%s3 + $0x60] sm:$0xff]
        %v3479 = vld [vmem:[%s3 + $0x68] sm:$0xff]
        %v3480 = vld [vmem:[%s3 + $0x70] sm:$0xff]
        %v3481 = vld [vmem:[%s3 + $0x78] sm:$0xff]
        %v3483 = vsel %vm481, %v3225, 0
        %3485 = vmatprep.subr.mxu0 0.0
        %3486 = vmatpush1.msra.mxu0 %v3478
        %3487 = vmatprep.subr.mxu0 0.0
        %3488 = vmatpush1.msra.mxu0 %v3479
        %3489 = vmatprep.subr.mxu0 0.0
        %3490 = vmatpush1.msra.mxu0 %v3480
        %3491 = vmatprep.subr.mxu0 0.0
        %3492 = vmatpush1.msra.mxu0 %v3481
        %3493 = vmatprep.subr.mxu0 0.0
        %3494 = vmatpush1.msra.mxu0 0.0
        %3495 = vmatprep.subr.mxu0 0.0
        %3496 = vmatpush1.msra.mxu0 0.0
        %3497 = vmatprep.subr.mxu0 0.0
        %3498 = vmatpush1.msra.mxu0 0.0
        %3499 = vmatprep.subr.mxu0 0.0
        %3500 = vmatpush1.msra.mxu0 0.0
        %3501 = vmatprep.subr.mxu0 0.0
        %3502 = vmatpush1.msra.mxu0 0.0
        %3503 = vmatprep.subr.mxu0 0.0
        %3504 = vmatpush1.msra.mxu0 0.0
        %3505 = vmatprep.subr.mxu0 0.0
        %3506 = vmatpush1.msra.mxu0 0.0
        %3507 = vmatprep.subr.mxu0 0.0
        %3508 = vmatpush1.msra.mxu0 0.0
        %3509 = vmatprep.subr.mxu0 0.0
        %3510 = vmatpush1.msra.mxu0 0.0
        %3511 = vmatprep.subr.mxu0 0.0
        %3512 = vmatpush1.msra.mxu0 0.0
        %3513 = vmatprep.subr.mxu0 0.0
        %3514 = vmatpush1.msra.mxu0 0.0
        %3515 = vmatprep.subr.mxu0 0.0
        %3516 = vmatpush1.msra.mxu0 0.0
        %3517 = vmatprep.subr.mxu0 0.0
        %3518 = vmatpush1.msra.mxu0 0.0
        %3519 = vmatprep.subr.mxu0 0.0
        %3520 = vmatpush1.msra.mxu0 0.0
        %3521 = vmatprep.subr.mxu0 0.0
        %3522 = vmatpush1.msra.mxu0 0.0
        %3523 = vmatprep.subr.mxu0 0.0
        %3524 = vmatpush1.msra.mxu0 0.0
        %3525 = vmatprep.subr.mxu0 0.0
        %3526 = vmatpush1.msra.mxu0 0.0
        %3527 = vmatprep.subr.mxu0 0.0
        %3528 = vmatpush1.msra.mxu0 0.0
        %3529 = vmatprep.subr.mxu0 0.0
        %3530 = vmatpush1.msra.mxu0 0.0
        %3531 = vmatprep.subr.mxu0 0.0
        %3532 = vmatpush1.msra.mxu0 0.0
        %3533 = vmatprep.subr.mxu0 0.0
        %3534 = vmatpush1.msra.mxu0 0.0
        %3535 = vmatprep.subr.mxu0 0.0
        %3536 = vmatpush1.msra.mxu0 0.0
        %3537 = vmatprep.subr.mxu0 0.0
        %3538 = vmatpush1.msra.mxu0 0.0
        %3539 = vmatprep.subr.mxu0 0.0
        %3540 = vmatpush1.msra.mxu0 0.0
        %3541 = vmatprep.subr.mxu0 0.0
        %3542 = vmatpush1.msra.mxu0 0.0
        %3543 = vmatprep.subr.mxu0 0.0
        %3544 = vmatpush1.msra.mxu0 0.0
        %3545 = vmatprep.subr.mxu0 0.0
        %3546 = vmatpush1.msra.mxu0 0.0
        %3547 = vmatprep.subr.mxu0 0.0
        %3548 = vmatpush1.msra.mxu0 0.0
        %3549 = vmatprep.mubr.f32.mxu0 0.0
        %3550 = vmatmul.mubr.f32.gmra.mrb[0].mxu0 %v3483
        %v3551 = vpop.f32.mrb[0].mxu0
        %v3552 = vadd.f32 0.0, %v3551
        %v3553 = vpop.f32.mrb[0].mxu0
        %3554 = vdwg.mxu0
        %v3555 = vadd.f32 %v3477, %v3552
        %v3556 = vld [vmem:[%s3 + $0x80] sm:$0xff]
        %v3557 = vld [vmem:[%s3 + $0x88] sm:$0xff]
        %v3558 = vld [vmem:[%s3 + $0x90] sm:$0xff]
        %v3559 = vld [vmem:[%s3 + $0x98] sm:$0xff]
        %v3561 = vsel %vm481, %v3226, 0
        %3563 = vmatprep.subr.mxu0 0.0
        %3564 = vmatpush1.msra.mxu0 %v3556
        %3565 = vmatprep.subr.mxu0 0.0
        %3566 = vmatpush1.msra.mxu0 %v3557
        %3567 = vmatprep.subr.mxu0 0.0
        %3568 = vmatpush1.msra.mxu0 %v3558
        %3569 = vmatprep.subr.mxu0 0.0
        %3570 = vmatpush1.msra.mxu0 %v3559
        %3571 = vmatprep.subr.mxu0 0.0
        %3572 = vmatpush1.msra.mxu0 0.0
        %3573 = vmatprep.subr.mxu0 0.0
        %3574 = vmatpush1.msra.mxu0 0.0
        %3575 = vmatprep.subr.mxu0 0.0
        %3576 = vmatpush1.msra.mxu0 0.0
        %3577 = vmatprep.subr.mxu0 0.0
        %3578 = vmatpush1.msra.mxu0 0.0
        %3579 = vmatprep.subr.mxu0 0.0
        %3580 = vmatpush1.msra.mxu0 0.0
        %3581 = vmatprep.subr.mxu0 0.0
        %3582 = vmatpush1.msra.mxu0 0.0
        %3583 = vmatprep.subr.mxu0 0.0
        %3584 = vmatpush1.msra.mxu0 0.0
        %3585 = vmatprep.subr.mxu0 0.0
        %3586 = vmatpush1.msra.mxu0 0.0
        %3587 = vmatprep.subr.mxu0 0.0
        %3588 = vmatpush1.msra.mxu0 0.0
        %3589 = vmatprep.subr.mxu0 0.0
        %3590 = vmatpush1.msra.mxu0 0.0
        %3591 = vmatprep.subr.mxu0 0.0
        %3592 = vmatpush1.msra.mxu0 0.0
        %3593 = vmatprep.subr.mxu0 0.0
        %3594 = vmatpush1.msra.mxu0 0.0
        %3595 = vmatprep.subr.mxu0 0.0
        %3596 = vmatpush1.msra.mxu0 0.0
        %3597 = vmatprep.subr.mxu0 0.0
        %3598 = vmatpush1.msra.mxu0 0.0
        %3599 = vmatprep.subr.mxu0 0.0
        %3600 = vmatpush1.msra.mxu0 0.0
        %3601 = vmatprep.subr.mxu0 0.0
        %3602 = vmatpush1.msra.mxu0 0.0
        %3603 = vmatprep.subr.mxu0 0.0
        %3604 = vmatpush1.msra.mxu0 0.0
        %3605 = vmatprep.subr.mxu0 0.0
        %3606 = vmatpush1.msra.mxu0 0.0
        %3607 = vmatprep.subr.mxu0 0.0
        %3608 = vmatpush1.msra.mxu0 0.0
        %3609 = vmatprep.subr.mxu0 0.0
        %3610 = vmatpush1.msra.mxu0 0.0
        %3611 = vmatprep.subr.mxu0 0.0
        %3612 = vmatpush1.msra.mxu0 0.0
        %3613 = vmatprep.subr.mxu0 0.0
        %3614 = vmatpush1.msra.mxu0 0.0
        %3615 = vmatprep.subr.mxu0 0.0
        %3616 = vmatpush1.msra.mxu0 0.0
        %3617 = vmatprep.subr.mxu0 0.0
        %3618 = vmatpush1.msra.mxu0 0.0
        %3619 = vmatprep.subr.mxu0 0.0
        %3620 = vmatpush1.msra.mxu0 0.0
        %3621 = vmatprep.subr.mxu0 0.0
        %3622 = vmatpush1.msra.mxu0 0.0
        %3623 = vmatprep.subr.mxu0 0.0
        %3624 = vmatpush1.msra.mxu0 0.0
        %3625 = vmatprep.subr.mxu0 0.0
        %3626 = vmatpush1.msra.mxu0 0.0
        %3627 = vmatprep.mubr.f32.mxu0 0.0
        %3628 = vmatmul.mubr.f32.gmra.mrb[0].mxu0 %v3561
        %v3629 = vpop.f32.mrb[0].mxu0
        %v3630 = vadd.f32 0.0, %v3629
        %v3631 = vpop.f32.mrb[0].mxu0
        %3632 = vdwg.mxu0
        %v3633 = vadd.f32 %v3555, %v3630
        %v3634 = vld [vmem:[%s3 + $0xa0] sm:$0xff]
        %v3635 = vld [vmem:[%s3 + $0xa8] sm:$0xff]
        %v3636 = vld [vmem:[%s3 + $0xb0] sm:$0xff]
        %v3637 = vld [vmem:[%s3 + $0xb8] sm:$0xff]
        %v3639 = vsel %vm481, %v3227, 0
        %3641 = vmatprep.subr.mxu0 0.0
        %3642 = vmatpush1.msra.mxu0 %v3634
        %3643 = vmatprep.subr.mxu0 0.0
        %3644 = vmatpush1.msra.mxu0 %v3635
        %3645 = vmatprep.subr.mxu0 0.0
        %3646 = vmatpush1.msra.mxu0 %v3636
        %3647 = vmatprep.subr.mxu0 0.0
        %3648 = vmatpush1.msra.mxu0 %v3637
        %3649 = vmatprep.subr.mxu0 0.0
        %3650 = vmatpush1.msra.mxu0 0.0
        %3651 = vmatprep.subr.mxu0 0.0
        %3652 = vmatpush1.msra.mxu0 0.0
        %3653 = vmatprep.subr.mxu0 0.0
        %3654 = vmatpush1.msra.mxu0 0.0
        %3655 = vmatprep.subr.mxu0 0.0
        %3656 = vmatpush1.msra.mxu0 0.0
        %3657 = vmatprep.subr.mxu0 0.0
        %3658 = vmatpush1.msra.mxu0 0.0
        %3659 = vmatprep.subr.mxu0 0.0
        %3660 = vmatpush1.msra.mxu0 0.0
        %3661 = vmatprep.subr.mxu0 0.0
        %3662 = vmatpush1.msra.mxu0 0.0
        %3663 = vmatprep.subr.mxu0 0.0
        %3664 = vmatpush1.msra.mxu0 0.0
        %3665 = vmatprep.subr.mxu0 0.0
        %3666 = vmatpush1.msra.mxu0 0.0
        %3667 = vmatprep.subr.mxu0 0.0
        %3668 = vmatpush1.msra.mxu0 0.0
        %3669 = vmatprep.subr.mxu0 0.0
        %3670 = vmatpush1.msra.mxu0 0.0
        %3671 = vmatprep.subr.mxu0 0.0
        %3672 = vmatpush1.msra.mxu0 0.0
        %3673 = vmatprep.subr.mxu0 0.0
        %3674 = vmatpush1.msra.mxu0 0.0
        %3675 = vmatprep.subr.mxu0 0.0
        %3676 = vmatpush1.msra.mxu0 0.0
        %3677 = vmatprep.subr.mxu0 0.0
        %3678 = vmatpush1.msra.mxu0 0.0
        %3679 = vmatprep.subr.mxu0 0.0
        %3680 = vmatpush1.msra.mxu0 0.0
        %3681 = vmatprep.subr.mxu0 0.0
        %3682 = vmatpush1.msra.mxu0 0.0
        %3683 = vmatprep.subr.mxu0 0.0
        %3684 = vmatpush1.msra.mxu0 0.0
        %3685 = vmatprep.subr.mxu0 0.0
        %3686 = vmatpush1.msra.mxu0 0.0
        %3687 = vmatprep.subr.mxu0 0.0
        %3688 = vmatpush1.msra.mxu0 0.0
        %3689 = vmatprep.subr.mxu0 0.0
        %3690 = vmatpush1.msra.mxu0 0.0
        %3691 = vmatprep.subr.mxu0 0.0
        %3692 = vmatpush1.msra.mxu0 0.0
        %3693 = vmatprep.subr.mxu0 0.0
        %3694 = vmatpush1.msra.mxu0 0.0
        %3695 = vmatprep.subr.mxu0 0.0
        %3696 = vmatpush1.msra.mxu0 0.0
        %3697 = vmatprep.subr.mxu0 0.0
        %3698 = vmatpush1.msra.mxu0 0.0
        %3699 = vmatprep.subr.mxu0 0.0
        %3700 = vmatpush1.msra.mxu0 0.0
        %3701 = vmatprep.subr.mxu0 0.0
        %3702 = vmatpush1.msra.mxu0 0.0
        %3703 = vmatprep.subr.mxu0 0.0
        %3704 = vmatpush1.msra.mxu0 0.0
        %3705 = vmatprep.mubr.f32.mxu0 0.0
        %3706 = vmatmul.mubr.f32.gmra.mrb[0].mxu0 %v3639
        %v3707 = vpop.f32.mrb[0].mxu0
        %v3708 = vadd.f32 0.0, %v3707
        %v3709 = vpop.f32.mrb[0].mxu0
        %3710 = vdwg.mxu0
        %v3711 = vadd.f32 %v3633, %v3708
        %v3712 = vld [vmem:[%s3 + $0xc0] sm:$0xff]
        %v3713 = vld [vmem:[%s3 + $0xc8] sm:$0xff]
        %v3714 = vld [vmem:[%s3 + $0xd0] sm:$0xff]
        %v3715 = vld [vmem:[%s3 + $0xd8] sm:$0xff]
        %v3717 = vsel %vm481, %v3228, 0
        %3719 = vmatprep.subr.mxu0 0.0
        %3720 = vmatpush1.msra.mxu0 %v3712
        %3721 = vmatprep.subr.mxu0 0.0
        %3722 = vmatpush1.msra.mxu0 %v3713
        %3723 = vmatprep.subr.mxu0 0.0
        %3724 = vmatpush1.msra.mxu0 %v3714
        %3725 = vmatprep.subr.mxu0 0.0
        %3726 = vmatpush1.msra.mxu0 %v3715
        %3727 = vmatprep.subr.mxu0 0.0
        %3728 = vmatpush1.msra.mxu0 0.0
        %3729 = vmatprep.subr.mxu0 0.0
        %3730 = vmatpush1.msra.mxu0 0.0
        %3731 = vmatprep.subr.mxu0 0.0
        %3732 = vmatpush1.msra.mxu0 0.0
        %3733 = vmatprep.subr.mxu0 0.0
        %3734 = vmatpush1.msra.mxu0 0.0
        %3735 = vmatprep.subr.mxu0 0.0
        %3736 = vmatpush1.msra.mxu0 0.0
        %3737 = vmatprep.subr.mxu0 0.0
        %3738 = vmatpush1.msra.mxu0 0.0
        %3739 = vmatprep.subr.mxu0 0.0
        %3740 = vmatpush1.msra.mxu0 0.0
        %3741 = vmatprep.subr.mxu0 0.0
        %3742 = vmatpush1.msra.mxu0 0.0
        %3743 = vmatprep.subr.mxu0 0.0
        %3744 = vmatpush1.msra.mxu0 0.0
        %3745 = vmatprep.subr.mxu0 0.0
        %3746 = vmatpush1.msra.mxu0 0.0
        %3747 = vmatprep.subr.mxu0 0.0
        %3748 = vmatpush1.msra.mxu0 0.0
        %3749 = vmatprep.subr.mxu0 0.0
        %3750 = vmatpush1.msra.mxu0 0.0
        %3751 = vmatprep.subr.mxu0 0.0
        %3752 = vmatpush1.msra.mxu0 0.0
        %3753 = vmatprep.subr.mxu0 0.0
        %3754 = vmatpush1.msra.mxu0 0.0
        %3755 = vmatprep.subr.mxu0 0.0
        %3756 = vmatpush1.msra.mxu0 0.0
        %3757 = vmatprep.subr.mxu0 0.0
        %3758 = vmatpush1.msra.mxu0 0.0
        %3759 = vmatprep.subr.mxu0 0.0
        %3760 = vmatpush1.msra.mxu0 0.0
        %3761 = vmatprep.subr.mxu0 0.0
        %3762 = vmatpush1.msra.mxu0 0.0
        %3763 = vmatprep.subr.mxu0 0.0
        %3764 = vmatpush1.msra.mxu0 0.0
        %3765 = vmatprep.subr.mxu0 0.0
        %3766 = vmatpush1.msra.mxu0 0.0
        %3767 = vmatprep.subr.mxu0 0.0
        %3768 = vmatpush1.msra.mxu0 0.0
        %3769 = vmatprep.subr.mxu0 0.0
        %3770 = vmatpush1.msra.mxu0 0.0
        %3771 = vmatprep.subr.mxu0 0.0
        %3772 = vmatpush1.msra.mxu0 0.0
        %3773 = vmatprep.subr.mxu0 0.0
        %3774 = vmatpush1.msra.mxu0 0.0
        %3775 = vmatprep.subr.mxu0 0.0
        %3776 = vmatpush1.msra.mxu0 0.0
        %3777 = vmatprep.subr.mxu0 0.0
        %3778 = vmatpush1.msra.mxu0 0.0
        %3779 = vmatprep.subr.mxu0 0.0
        %3780 = vmatpush1.msra.mxu0 0.0
        %3781 = vmatprep.subr.mxu0 0.0
        %3782 = vmatpush1.msra.mxu0 0.0
        %3783 = vmatprep.mubr.f32.mxu0 0.0
        %3784 = vmatmul.mubr.f32.gmra.mrb[0].mxu0 %v3717
        %v3785 = vpop.f32.mrb[0].mxu0
        %v3786 = vadd.f32 0.0, %v3785
        %v3787 = vpop.f32.mrb[0].mxu0
        %3788 = vdwg.mxu0
        %v3789 = vadd.f32 %v3711, %v3786
        %v3790 = vld [vmem:[%s3 + $0xe0] sm:$0xff]
        %v3791 = vld [vmem:[%s3 + $0xe8] sm:$0xff]
        %v3792 = vld [vmem:[%s3 + $0xf0] sm:$0xff]
        %v3793 = vld [vmem:[%s3 + $0xf8] sm:$0xff]
        %v3795 = vsel %vm481, %v3229, 0
        %3797 = vmatprep.subr.mxu0 0.0
        %3798 = vmatpush1.msra.mxu0 %v3790
        %3799 = vmatprep.subr.mxu0 0.0
        %3800 = vmatpush1.msra.mxu0 %v3791
        %3801 = vmatprep.subr.mxu0 0.0
        %3802 = vmatpush1.msra.mxu0 %v3792
        %3803 = vmatprep.subr.mxu0 0.0
        %3804 = vmatpush1.msra.mxu0 %v3793
        %3805 = vmatprep.subr.mxu0 0.0
        %3806 = vmatpush1.msra.mxu0 0.0
        %3807 = vmatprep.subr.mxu0 0.0
        %3808 = vmatpush1.msra.mxu0 0.0
        %3809 = vmatprep.subr.mxu0 0.0
        %3810 = vmatpush1.msra.mxu0 0.0
        %3811 = vmatprep.subr.mxu0 0.0
        %3812 = vmatpush1.msra.mxu0 0.0
        %3813 = vmatprep.subr.mxu0 0.0
        %3814 = vmatpush1.msra.mxu0 0.0
        %3815 = vmatprep.subr.mxu0 0.0
        %3816 = vmatpush1.msra.mxu0 0.0
        %3817 = vmatprep.subr.mxu0 0.0
        %3818 = vmatpush1.msra.mxu0 0.0
        %3819 = vmatprep.subr.mxu0 0.0
        %3820 = vmatpush1.msra.mxu0 0.0
        %3821 = vmatprep.subr.mxu0 0.0
        %3822 = vmatpush1.msra.mxu0 0.0
        %3823 = vmatprep.subr.mxu0 0.0
        %3824 = vmatpush1.msra.mxu0 0.0
        %3825 = vmatprep.subr.mxu0 0.0
        %3826 = vmatpush1.msra.mxu0 0.0
        %3827 = vmatprep.subr.mxu0 0.0
        %3828 = vmatpush1.msra.mxu0 0.0
        %3829 = vmatprep.subr.mxu0 0.0
        %3830 = vmatpush1.msra.mxu0 0.0
        %3831 = vmatprep.subr.mxu0 0.0
        %3832 = vmatpush1.msra.mxu0 0.0
        %3833 = vmatprep.subr.mxu0 0.0
        %3834 = vmatpush1.msra.mxu0 0.0
        %3835 = vmatprep.subr.mxu0 0.0
        %3836 = vmatpush1.msra.mxu0 0.0
        %3837 = vmatprep.subr.mxu0 0.0
        %3838 = vmatpush1.msra.mxu0 0.0
        %3839 = vmatprep.subr.mxu0 0.0
        %3840 = vmatpush1.msra.mxu0 0.0
        %3841 = vmatprep.subr.mxu0 0.0
        %3842 = vmatpush1.msra.mxu0 0.0
        %3843 = vmatprep.subr.mxu0 0.0
        %3844 = vmatpush1.msra.mxu0 0.0
        %3845 = vmatprep.subr.mxu0 0.0
        %3846 = vmatpush1.msra.mxu0 0.0
        %3847 = vmatprep.subr.mxu0 0.0
        %3848 = vmatpush1.msra.mxu0 0.0
        %3849 = vmatprep.subr.mxu0 0.0
        %3850 = vmatpush1.msra.mxu0 0.0
        %3851 = vmatprep.subr.mxu0 0.0
        %3852 = vmatpush1.msra.mxu0 0.0
        %3853 = vmatprep.subr.mxu0 0.0
        %3854 = vmatpush1.msra.mxu0 0.0
        %3855 = vmatprep.subr.mxu0 0.0
        %3856 = vmatpush1.msra.mxu0 0.0
        %3857 = vmatprep.subr.mxu0 0.0
        %3858 = vmatpush1.msra.mxu0 0.0
        %3859 = vmatprep.subr.mxu0 0.0
        %3860 = vmatpush1.msra.mxu0 0.0
        %3861 = vmatprep.mubr.f32.mxu0 0.0
        %3862 = vmatmul.mubr.f32.gmra.mrb[0].mxu0 %v3795
        %v3863 = vpop.f32.mrb[0].mxu0
        %v3864 = vadd.f32 0.0, %v3863
        %v3865 = vpop.f32.mrb[0].mxu0
        %3866 = vdwg.mxu0
        %v3867 = vadd.f32 %v3789, %v3864
        %v3868 = vld [vmem:[%s3 + $0x100] sm:$0xff]
        %v3869 = vld [vmem:[%s3 + $0x108] sm:$0xff]
        %v3870 = vld [vmem:[%s3 + $0x110] sm:$0xff]
        %v3871 = vld [vmem:[%s3 + $0x118] sm:$0xff]
        %v3873 = vsel %vm481, %v3231, 0
        %3875 = vmatprep.subr.mxu0 0.0
        %3876 = vmatpush1.msra.mxu0 %v3868
        %3877 = vmatprep.subr.mxu0 0.0
        %3878 = vmatpush1.msra.mxu0 %v3869
        %3879 = vmatprep.subr.mxu0 0.0
        %3880 = vmatpush1.msra.mxu0 %v3870
        %3881 = vmatprep.subr.mxu0 0.0
        %3882 = vmatpush1.msra.mxu0 %v3871
        %3883 = vmatprep.subr.mxu0 0.0
        %3884 = vmatpush1.msra.mxu0 0.0
        %3885 = vmatprep.subr.mxu0 0.0
        %3886 = vmatpush1.msra.mxu0 0.0
        %3887 = vmatprep.subr.mxu0 0.0
        %3888 = vmatpush1.msra.mxu0 0.0
        %3889 = vmatprep.subr.mxu0 0.0
        %3890 = vmatpush1.msra.mxu0 0.0
        %3891 = vmatprep.subr.mxu0 0.0
        %3892 = vmatpush1.msra.mxu0 0.0
        %3893 = vmatprep.subr.mxu0 0.0
        %3894 = vmatpush1.msra.mxu0 0.0
        %3895 = vmatprep.subr.mxu0 0.0
        %3896 = vmatpush1.msra.mxu0 0.0
        %3897 = vmatprep.subr.mxu0 0.0
        %3898 = vmatpush1.msra.mxu0 0.0
        %3899 = vmatprep.subr.mxu0 0.0
        %3900 = vmatpush1.msra.mxu0 0.0
        %3901 = vmatprep.subr.mxu0 0.0
        %3902 = vmatpush1.msra.mxu0 0.0
        %3903 = vmatprep.subr.mxu0 0.0
        %3904 = vmatpush1.msra.mxu0 0.0
        %3905 = vmatprep.subr.mxu0 0.0
        %3906 = vmatpush1.msra.mxu0 0.0
        %3907 = vmatprep.subr.mxu0 0.0
        %3908 = vmatpush1.msra.mxu0 0.0
        %3909 = vmatprep.subr.mxu0 0.0
        %3910 = vmatpush1.msra.mxu0 0.0
        %3911 = vmatprep.subr.mxu0 0.0
        %3912 = vmatpush1.msra.mxu0 0.0
        %3913 = vmatprep.subr.mxu0 0.0
        %3914 = vmatpush1.msra.mxu0 0.0
        %3915 = vmatprep.subr.mxu0 0.0
        %3916 = vmatpush1.msra.mxu0 0.0
        %3917 = vmatprep.subr.mxu0 0.0
        %3918 = vmatpush1.msra.mxu0 0.0
        %3919 = vmatprep.subr.mxu0 0.0
        %3920 = vmatpush1.msra.mxu0 0.0
        %3921 = vmatprep.subr.mxu0 0.0
        %3922 = vmatpush1.msra.mxu0 0.0
        %3923 = vmatprep.subr.mxu0 0.0
        %3924 = vmatpush1.msra.mxu0 0.0
        %3925 = vmatprep.subr.mxu0 0.0
        %3926 = vmatpush1.msra.mxu0 0.0
        %3927 = vmatprep.subr.mxu0 0.0
        %3928 = vmatpush1.msra.mxu0 0.0
        %3929 = vmatprep.subr.mxu0 0.0
        %3930 = vmatpush1.msra.mxu0 0.0
        %3931 = vmatprep.subr.mxu0 0.0
        %3932 = vmatpush1.msra.mxu0 0.0
        %3933 = vmatprep.subr.mxu0 0.0
        %3934 = vmatpush1.msra.mxu0 0.0
        %3935 = vmatprep.subr.mxu0 0.0
        %3936 = vmatpush1.msra.mxu0 0.0
        %3937 = vmatprep.subr.mxu0 0.0
        %3938 = vmatpush1.msra.mxu0 0.0
        %3939 = vmatprep.mubr.f32.mxu0 0.0
        %3940 = vmatmul.mubr.f32.gmra.mrb[0].mxu0 %v3873
        %v3941 = vpop.f32.mrb[0].mxu0
        %v3942 = vadd.f32 0.0, %v3941
        %v3943 = vpop.f32.mrb[0].mxu0
        %3944 = vdwg.mxu0
        %v3945 = vadd.f32 %v3867, %v3942
        %v3946 = vld [vmem:[%s3 + $0x120] sm:$0xff]
        %v3947 = vld [vmem:[%s3 + $0x128] sm:$0xff]
        %v3948 = vld [vmem:[%s3 + $0x130] sm:$0xff]
        %v3949 = vld [vmem:[%s3 + $0x138] sm:$0xff]
        %v3951 = vsel %vm481, %v3233, 0
        %3953 = vmatprep.subr.mxu0 0.0
        %3954 = vmatpush1.msra.mxu0 %v3946
        %3955 = vmatprep.subr.mxu0 0.0
        %3956 = vmatpush1.msra.mxu0 %v3947
        %3957 = vmatprep.subr.mxu0 0.0
        %3958 = vmatpush1.msra.mxu0 %v3948
        %3959 = vmatprep.subr.mxu0 0.0
        %3960 = vmatpush1.msra.mxu0 %v3949
        %3961 = vmatprep.subr.mxu0 0.0
        %3962 = vmatpush1.msra.mxu0 0.0
        %3963 = vmatprep.subr.mxu0 0.0
        %3964 = vmatpush1.msra.mxu0 0.0
        %3965 = vmatprep.subr.mxu0 0.0
        %3966 = vmatpush1.msra.mxu0 0.0
        %3967 = vmatprep.subr.mxu0 0.0
        %3968 = vmatpush1.msra.mxu0 0.0
        %3969 = vmatprep.subr.mxu0 0.0
        %3970 = vmatpush1.msra.mxu0 0.0
        %3971 = vmatprep.subr.mxu0 0.0
        %3972 = vmatpush1.msra.mxu0 0.0
        %3973 = vmatprep.subr.mxu0 0.0
        %3974 = vmatpush1.msra.mxu0 0.0
        %3975 = vmatprep.subr.mxu0 0.0
        %3976 = vmatpush1.msra.mxu0 0.0
        %3977 = vmatprep.subr.mxu0 0.0
        %3978 = vmatpush1.msra.mxu0 0.0
        %3979 = vmatprep.subr.mxu0 0.0
        %3980 = vmatpush1.msra.mxu0 0.0
        %3981 = vmatprep.subr.mxu0 0.0
        %3982 = vmatpush1.msra.mxu0 0.0
        %3983 = vmatprep.subr.mxu0 0.0
        %3984 = vmatpush1.msra.mxu0 0.0
        %3985 = vmatprep.subr.mxu0 0.0
        %3986 = vmatpush1.msra.mxu0 0.0
        %3987 = vmatprep.subr.mxu0 0.0
        %3988 = vmatpush1.msra.mxu0 0.0
        %3989 = vmatprep.subr.mxu0 0.0
        %3990 = vmatpush1.msra.mxu0 0.0
        %3991 = vmatprep.subr.mxu0 0.0
        %3992 = vmatpush1.msra.mxu0 0.0
        %3993 = vmatprep.subr.mxu0 0.0
        %3994 = vmatpush1.msra.mxu0 0.0
        %3995 = vmatprep.subr.mxu0 0.0
        %3996 = vmatpush1.msra.mxu0 0.0
        %3997 = vmatprep.subr.mxu0 0.0
        %3998 = vmatpush1.msra.mxu0 0.0
        %3999 = vmatprep.subr.mxu0 0.0
        %4000 = vmatpush1.msra.mxu0 0.0
        %4001 = vmatprep.subr.mxu0 0.0
        %4002 = vmatpush1.msra.mxu0 0.0
        %4003 = vmatprep.subr.mxu0 0.0
        %4004 = vmatpush1.msra.mxu0 0.0
        %4005 = vmatprep.subr.mxu0 0.0
        %4006 = vmatpush1.msra.mxu0 0.0
        %4007 = vmatprep.subr.mxu0 0.0
        %4008 = vmatpush1.msra.mxu0 0.0
        %4009 = vmatprep.subr.mxu0 0.0
        %4010 = vmatpush1.msra.mxu0 0.0
        %4011 = vmatprep.subr.mxu0 0.0
        %4012 = vmatpush1.msra.mxu0 0.0
        %4013 = vmatprep.subr.mxu0 0.0
        %4014 = vmatpush1.msra.mxu0 0.0
        %4015 = vmatprep.subr.mxu0 0.0
        %4016 = vmatpush1.msra.mxu0 0.0
        %4017 = vmatprep.mubr.f32.mxu0 0.0
        %4018 = vmatmul.mubr.f32.gmra.mrb[0].mxu0 %v3951
        %v4019 = vpop.f32.mrb[0].mxu0
        %v4020 = vadd.f32 0.0, %v4019
        %v4021 = vpop.f32.mrb[0].mxu0
        %4022 = vdwg.mxu0
        %v4023 = vadd.f32 %v3945, %v4020
        %v4024 = vld [vmem:[%s3 + $0x140] sm:$0xff]
        %v4025 = vld [vmem:[%s3 + $0x148] sm:$0xff]
        %v4026 = vld [vmem:[%s3 + $0x150] sm:$0xff]
        %v4027 = vld [vmem:[%s3 + $0x158] sm:$0xff]
        %v4029 = vsel %vm481, %v3235, 0
        %4031 = vmatprep.subr.mxu0 0.0
        %4032 = vmatpush1.msra.mxu0 %v4024
        %4033 = vmatprep.subr.mxu0 0.0
        %4034 = vmatpush1.msra.mxu0 %v4025
        %4035 = vmatprep.subr.mxu0 0.0
        %4036 = vmatpush1.msra.mxu0 %v4026
        %4037 = vmatprep.subr.mxu0 0.0
        %4038 = vmatpush1.msra.mxu0 %v4027
        %4039 = vmatprep.subr.mxu0 0.0
        %4040 = vmatpush1.msra.mxu0 0.0
        %4041 = vmatprep.subr.mxu0 0.0
        %4042 = vmatpush1.msra.mxu0 0.0
        %4043 = vmatprep.subr.mxu0 0.0
        %4044 = vmatpush1.msra.mxu0 0.0
        %4045 = vmatprep.subr.mxu0 0.0
        %4046 = vmatpush1.msra.mxu0 0.0
        %4047 = vmatprep.subr.mxu0 0.0
        %4048 = vmatpush1.msra.mxu0 0.0
        %4049 = vmatprep.subr.mxu0 0.0
        %4050 = vmatpush1.msra.mxu0 0.0
        %4051 = vmatprep.subr.mxu0 0.0
        %4052 = vmatpush1.msra.mxu0 0.0
        %4053 = vmatprep.subr.mxu0 0.0
        %4054 = vmatpush1.msra.mxu0 0.0
        %4055 = vmatprep.subr.mxu0 0.0
        %4056 = vmatpush1.msra.mxu0 0.0
        %4057 = vmatprep.subr.mxu0 0.0
        %4058 = vmatpush1.msra.mxu0 0.0
        %4059 = vmatprep.subr.mxu0 0.0
        %4060 = vmatpush1.msra.mxu0 0.0
        %4061 = vmatprep.subr.mxu0 0.0
        %4062 = vmatpush1.msra.mxu0 0.0
        %4063 = vmatprep.subr.mxu0 0.0
        %4064 = vmatpush1.msra.mxu0 0.0
        %4065 = vmatprep.subr.mxu0 0.0
        %4066 = vmatpush1.msra.mxu0 0.0
        %4067 = vmatprep.subr.mxu0 0.0
        %4068 = vmatpush1.msra.mxu0 0.0
        %4069 = vmatprep.subr.mxu0 0.0
        %4070 = vmatpush1.msra.mxu0 0.0
        %4071 = vmatprep.subr.mxu0 0.0
        %4072 = vmatpush1.msra.mxu0 0.0
        %4073 = vmatprep.subr.mxu0 0.0
        %4074 = vmatpush1.msra.mxu0 0.0
        %4075 = vmatprep.subr.mxu0 0.0
        %4076 = vmatpush1.msra.mxu0 0.0
        %4077 = vmatprep.subr.mxu0 0.0
        %4078 = vmatpush1.msra.mxu0 0.0
        %4079 = vmatprep.subr.mxu0 0.0
        %4080 = vmatpush1.msra.mxu0 0.0
        %4081 = vmatprep.subr.mxu0 0.0
        %4082 = vmatpush1.msra.mxu0 0.0
        %4083 = vmatprep.subr.mxu0 0.0
        %4084 = vmatpush1.msra.mxu0 0.0
        %4085 = vmatprep.subr.mxu0 0.0
        %4086 = vmatpush1.msra.mxu0 0.0
        %4087 = vmatprep.subr.mxu0 0.0
        %4088 = vmatpush1.msra.mxu0 0.0
        %4089 = vmatprep.subr.mxu0 0.0
        %4090 = vmatpush1.msra.mxu0 0.0
        %4091 = vmatprep.subr.mxu0 0.0
        %4092 = vmatpush1.msra.mxu0 0.0
        %4093 = vmatprep.subr.mxu0 0.0
        %4094 = vmatpush1.msra.mxu0 0.0
        %4095 = vmatprep.mubr.f32.mxu0 0.0
        %4096 = vmatmul.mubr.f32.gmra.mrb[0].mxu0 %v4029
        %v4097 = vpop.f32.mrb[0].mxu0
        %v4098 = vadd.f32 0.0, %v4097
        %v4099 = vpop.f32.mrb[0].mxu0
        %4100 = vdwg.mxu0
        %v4101 = vadd.f32 %v4023, %v4098
        %v4102 = vld [vmem:[%s3 + $0x160] sm:$0xff]
        %v4103 = vld [vmem:[%s3 + $0x168] sm:$0xff]
        %v4104 = vld [vmem:[%s3 + $0x170] sm:$0xff]
        %v4105 = vld [vmem:[%s3 + $0x178] sm:$0xff]
        %v4107 = vsel %vm481, %v3237, 0
        %4109 = vmatprep.subr.mxu0 0.0
        %4110 = vmatpush1.msra.mxu0 %v4102
        %4111 = vmatprep.subr.mxu0 0.0
        %4112 = vmatpush1.msra.mxu0 %v4103
        %4113 = vmatprep.subr.mxu0 0.0
        %4114 = vmatpush1.msra.mxu0 %v4104
        %4115 = vmatprep.subr.mxu0 0.0
        %4116 = vmatpush1.msra.mxu0 %v4105
        %4117 = vmatprep.subr.mxu0 0.0
        %4118 = vmatpush1.msra.mxu0 0.0
        %4119 = vmatprep.subr.mxu0 0.0
        %4120 = vmatpush1.msra.mxu0 0.0
        %4121 = vmatprep.subr.mxu0 0.0
        %4122 = vmatpush1.msra.mxu0 0.0
        %4123 = vmatprep.subr.mxu0 0.0
        %4124 = vmatpush1.msra.mxu0 0.0
        %4125 = vmatprep.subr.mxu0 0.0
        %4126 = vmatpush1.msra.mxu0 0.0
        %4127 = vmatprep.subr.mxu0 0.0
        %4128 = vmatpush1.msra.mxu0 0.0
        %4129 = vmatprep.subr.mxu0 0.0
        %4130 = vmatpush1.msra.mxu0 0.0
        %4131 = vmatprep.subr.mxu0 0.0
        %4132 = vmatpush1.msra.mxu0 0.0
        %4133 = vmatprep.subr.mxu0 0.0
        %4134 = vmatpush1.msra.mxu0 0.0
        %4135 = vmatprep.subr.mxu0 0.0
        %4136 = vmatpush1.msra.mxu0 0.0
        %4137 = vmatprep.subr.mxu0 0.0
        %4138 = vmatpush1.msra.mxu0 0.0
        %4139 = vmatprep.subr.mxu0 0.0
        %4140 = vmatpush1.msra.mxu0 0.0
        %4141 = vmatprep.subr.mxu0 0.0
        %4142 = vmatpush1.msra.mxu0 0.0
        %4143 = vmatprep.subr.mxu0 0.0
        %4144 = vmatpush1.msra.mxu0 0.0
        %4145 = vmatprep.subr.mxu0 0.0
        %4146 = vmatpush1.msra.mxu0 0.0
        %4147 = vmatprep.subr.mxu0 0.0
        %4148 = vmatpush1.msra.mxu0 0.0
        %4149 = vmatprep.subr.mxu0 0.0
        %4150 = vmatpush1.msra.mxu0 0.0
        %4151 = vmatprep.subr.mxu0 0.0
        %4152 = vmatpush1.msra.mxu0 0.0
        %4153 = vmatprep.subr.mxu0 0.0
        %4154 = vmatpush1.msra.mxu0 0.0
        %4155 = vmatprep.subr.mxu0 0.0
        %4156 = vmatpush1.msra.mxu0 0.0
        %4157 = vmatprep.subr.mxu0 0.0
        %4158 = vmatpush1.msra.mxu0 0.0
        %4159 = vmatprep.subr.mxu0 0.0
        %4160 = vmatpush1.msra.mxu0 0.0
        %4161 = vmatprep.subr.mxu0 0.0
        %4162 = vmatpush1.msra.mxu0 0.0
        %4163 = vmatprep.subr.mxu0 0.0
        %4164 = vmatpush1.msra.mxu0 0.0
        %4165 = vmatprep.subr.mxu0 0.0
        %4166 = vmatpush1.msra.mxu0 0.0
        %4167 = vmatprep.subr.mxu0 0.0
        %4168 = vmatpush1.msra.mxu0 0.0
        %4169 = vmatprep.subr.mxu0 0.0
        %4170 = vmatpush1.msra.mxu0 0.0
        %4171 = vmatprep.subr.mxu0 0.0
        %4172 = vmatpush1.msra.mxu0 0.0
        %4173 = vmatprep.mubr.f32.mxu0 0.0
        %4174 = vmatmul.mubr.f32.gmra.mrb[0].mxu0 %v4107
        %v4175 = vpop.f32.mrb[0].mxu0
        %v4176 = vadd.f32 0.0, %v4175
        %v4177 = vpop.f32.mrb[0].mxu0
        %4178 = vdwg.mxu0
        %v4179 = vadd.f32 %v4101, %v4176
        %v4180 = vld [vmem:[%s3 + $0x180] sm:$0xff]
        %v4181 = vld [vmem:[%s3 + $0x188] sm:$0xff]
        %v4182 = vld [vmem:[%s3 + $0x190] sm:$0xff]
        %v4183 = vld [vmem:[%s3 + $0x198] sm:$0xff]
        %v4185 = vsel %vm481, %v3239, 0
        %4187 = vmatprep.subr.mxu0 0.0
        %4188 = vmatpush1.msra.mxu0 %v4180
        %4189 = vmatprep.subr.mxu0 0.0
        %4190 = vmatpush1.msra.mxu0 %v4181
        %4191 = vmatprep.subr.mxu0 0.0
        %4192 = vmatpush1.msra.mxu0 %v4182
        %4193 = vmatprep.subr.mxu0 0.0
        %4194 = vmatpush1.msra.mxu0 %v4183
        %4195 = vmatprep.subr.mxu0 0.0
        %4196 = vmatpush1.msra.mxu0 0.0
        %4197 = vmatprep.subr.mxu0 0.0
        %4198 = vmatpush1.msra.mxu0 0.0
        %4199 = vmatprep.subr.mxu0 0.0
        %4200 = vmatpush1.msra.mxu0 0.0
        %4201 = vmatprep.subr.mxu0 0.0
        %4202 = vmatpush1.msra.mxu0 0.0
        %4203 = vmatprep.subr.mxu0 0.0
        %4204 = vmatpush1.msra.mxu0 0.0
        %4205 = vmatprep.subr.mxu0 0.0
        %4206 = vmatpush1.msra.mxu0 0.0
        %4207 = vmatprep.subr.mxu0 0.0
        %4208 = vmatpush1.msra.mxu0 0.0
        %4209 = vmatprep.subr.mxu0 0.0
        %4210 = vmatpush1.msra.mxu0 0.0
        %4211 = vmatprep.subr.mxu0 0.0
        %4212 = vmatpush1.msra.mxu0 0.0
        %4213 = vmatprep.subr.mxu0 0.0
        %4214 = vmatpush1.msra.mxu0 0.0
        %4215 = vmatprep.subr.mxu0 0.0
        %4216 = vmatpush1.msra.mxu0 0.0
        %4217 = vmatprep.subr.mxu0 0.0
        %4218 = vmatpush1.msra.mxu0 0.0
        %4219 = vmatprep.subr.mxu0 0.0
        %4220 = vmatpush1.msra.mxu0 0.0
        %4221 = vmatprep.subr.mxu0 0.0
        %4222 = vmatpush1.msra.mxu0 0.0
        %4223 = vmatprep.subr.mxu0 0.0
        %4224 = vmatpush1.msra.mxu0 0.0
        %4225 = vmatprep.subr.mxu0 0.0
        %4226 = vmatpush1.msra.mxu0 0.0
        %4227 = vmatprep.subr.mxu0 0.0
        %4228 = vmatpush1.msra.mxu0 0.0
        %4229 = vmatprep.subr.mxu0 0.0
        %4230 = vmatpush1.msra.mxu0 0.0
        %4231 = vmatprep.subr.mxu0 0.0
        %4232 = vmatpush1.msra.mxu0 0.0
        %4233 = vmatprep.subr.mxu0 0.0
        %4234 = vmatpush1.msra.mxu0 0.0
        %4235 = vmatprep.subr.mxu0 0.0
        %4236 = vmatpush1.msra.mxu0 0.0
        %4237 = vmatprep.subr.mxu0 0.0
        %4238 = vmatpush1.msra.mxu0 0.0
        %4239 = vmatprep.subr.mxu0 0.0
        %4240 = vmatpush1.msra.mxu0 0.0
        %4241 = vmatprep.subr.mxu0 0.0
        %4242 = vmatpush1.msra.mxu0 0.0
        %4243 = vmatprep.subr.mxu0 0.0
        %4244 = vmatpush1.msra.mxu0 0.0
        %4245 = vmatprep.subr.mxu0 0.0
        %4246 = vmatpush1.msra.mxu0 0.0
        %4247 = vmatprep.subr.mxu0 0.0
        %4248 = vmatpush1.msra.mxu0 0.0
        %4249 = vmatprep.subr.mxu0 0.0
        %4250 = vmatpush1.msra.mxu0 0.0
        %4251 = vmatprep.mubr.f32.mxu0 0.0
        %4252 = vmatmul.mubr.f32.gmra.mrb[0].mxu0 %v4185
        %v4253 = vpop.f32.mrb[0].mxu0
        %v4254 = vadd.f32 0.0, %v4253
        %v4255 = vpop.f32.mrb[0].mxu0
        %4256 = vdwg.mxu0
        %v4257 = vadd.f32 %v4179, %v4254
        %v4258 = vld [vmem:[%s3 + $0x1a0] sm:$0xff]
        %v4259 = vld [vmem:[%s3 + $0x1a8] sm:$0xff]
        %v4260 = vld [vmem:[%s3 + $0x1b0] sm:$0xff]
        %v4261 = vld [vmem:[%s3 + $0x1b8] sm:$0xff]
        %v4263 = vsel %vm481, %v3241, 0
        %4265 = vmatprep.subr.mxu0 0.0
        %4266 = vmatpush1.msra.mxu0 %v4258
        %4267 = vmatprep.subr.mxu0 0.0
        %4268 = vmatpush1.msra.mxu0 %v4259
        %4269 = vmatprep.subr.mxu0 0.0
        %4270 = vmatpush1.msra.mxu0 %v4260
        %4271 = vmatprep.subr.mxu0 0.0
        %4272 = vmatpush1.msra.mxu0 %v4261
        %4273 = vmatprep.subr.mxu0 0.0
        %4274 = vmatpush1.msra.mxu0 0.0
        %4275 = vmatprep.subr.mxu0 0.0
        %4276 = vmatpush1.msra.mxu0 0.0
        %4277 = vmatprep.subr.mxu0 0.0
        %4278 = vmatpush1.msra.mxu0 0.0
        %4279 = vmatprep.subr.mxu0 0.0
        %4280 = vmatpush1.msra.mxu0 0.0
        %4281 = vmatprep.subr.mxu0 0.0
        %4282 = vmatpush1.msra.mxu0 0.0
        %4283 = vmatprep.subr.mxu0 0.0
        %4284 = vmatpush1.msra.mxu0 0.0
        %4285 = vmatprep.subr.mxu0 0.0
        %4286 = vmatpush1.msra.mxu0 0.0
        %4287 = vmatprep.subr.mxu0 0.0
        %4288 = vmatpush1.msra.mxu0 0.0
        %4289 = vmatprep.subr.mxu0 0.0
        %4290 = vmatpush1.msra.mxu0 0.0
        %4291 = vmatprep.subr.mxu0 0.0
        %4292 = vmatpush1.msra.mxu0 0.0
        %4293 = vmatprep.subr.mxu0 0.0
        %4294 = vmatpush1.msra.mxu0 0.0
        %4295 = vmatprep.subr.mxu0 0.0
        %4296 = vmatpush1.msra.mxu0 0.0
        %4297 = vmatprep.subr.mxu0 0.0
        %4298 = vmatpush1.msra.mxu0 0.0
        %4299 = vmatprep.subr.mxu0 0.0
        %4300 = vmatpush1.msra.mxu0 0.0
        %4301 = vmatprep.subr.mxu0 0.0
        %4302 = vmatpush1.msra.mxu0 0.0
        %4303 = vmatprep.subr.mxu0 0.0
        %4304 = vmatpush1.msra.mxu0 0.0
        %4305 = vmatprep.subr.mxu0 0.0
        %4306 = vmatpush1.msra.mxu0 0.0
        %4307 = vmatprep.subr.mxu0 0.0
        %4308 = vmatpush1.msra.mxu0 0.0
        %4309 = vmatprep.subr.mxu0 0.0
        %4310 = vmatpush1.msra.mxu0 0.0
        %4311 = vmatprep.subr.mxu0 0.0
        %4312 = vmatpush1.msra.mxu0 0.0
        %4313 = vmatprep.subr.mxu0 0.0
        %4314 = vmatpush1.msra.mxu0 0.0
        %4315 = vmatprep.subr.mxu0 0.0
        %4316 = vmatpush1.msra.mxu0 0.0
        %4317 = vmatprep.subr.mxu0 0.0
        %4318 = vmatpush1.msra.mxu0 0.0
        %4319 = vmatprep.subr.mxu0 0.0
        %4320 = vmatpush1.msra.mxu0 0.0
        %4321 = vmatprep.subr.mxu0 0.0
        %4322 = vmatpush1.msra.mxu0 0.0
        %4323 = vmatprep.subr.mxu0 0.0
        %4324 = vmatpush1.msra.mxu0 0.0
        %4325 = vmatprep.subr.mxu0 0.0
        %4326 = vmatpush1.msra.mxu0 0.0
        %4327 = vmatprep.subr.mxu0 0.0
        %4328 = vmatpush1.msra.mxu0 0.0
        %4329 = vmatprep.mubr.f32.mxu0 0.0
        %4330 = vmatmul.mubr.f32.gmra.mrb[0].mxu0 %v4263
        %v4331 = vpop.f32.mrb[0].mxu0
        %v4332 = vadd.f32 0.0, %v4331
        %v4333 = vpop.f32.mrb[0].mxu0
        %4334 = vdwg.mxu0
        %v4335 = vadd.f32 %v4257, %v4332
        %v4336 = vld [vmem:[%s3 + $0x1c0] sm:$0xff]
        %v4337 = vld [vmem:[%s3 + $0x1c8] sm:$0xff]
        %v4338 = vld [vmem:[%s3 + $0x1d0] sm:$0xff]
        %v4339 = vld [vmem:[%s3 + $0x1d8] sm:$0xff]
        %v4341 = vsel %vm481, %v3243, 0
        %4343 = vmatprep.subr.mxu0 0.0
        %4344 = vmatpush1.msra.mxu0 %v4336
        %4345 = vmatprep.subr.mxu0 0.0
        %4346 = vmatpush1.msra.mxu0 %v4337
        %4347 = vmatprep.subr.mxu0 0.0
        %4348 = vmatpush1.msra.mxu0 %v4338
        %4349 = vmatprep.subr.mxu0 0.0
        %4350 = vmatpush1.msra.mxu0 %v4339
        %4351 = vmatprep.subr.mxu0 0.0
        %4352 = vmatpush1.msra.mxu0 0.0
        %4353 = vmatprep.subr.mxu0 0.0
        %4354 = vmatpush1.msra.mxu0 0.0
        %4355 = vmatprep.subr.mxu0 0.0
        %4356 = vmatpush1.msra.mxu0 0.0
        %4357 = vmatprep.subr.mxu0 0.0
        %4358 = vmatpush1.msra.mxu0 0.0
        %4359 = vmatprep.subr.mxu0 0.0
        %4360 = vmatpush1.msra.mxu0 0.0
        %4361 = vmatprep.subr.mxu0 0.0
        %4362 = vmatpush1.msra.mxu0 0.0
        %4363 = vmatprep.subr.mxu0 0.0
        %4364 = vmatpush1.msra.mxu0 0.0
        %4365 = vmatprep.subr.mxu0 0.0
        %4366 = vmatpush1.msra.mxu0 0.0
        %4367 = vmatprep.subr.mxu0 0.0
        %4368 = vmatpush1.msra.mxu0 0.0
        %4369 = vmatprep.subr.mxu0 0.0
        %4370 = vmatpush1.msra.mxu0 0.0
        %4371 = vmatprep.subr.mxu0 0.0
        %4372 = vmatpush1.msra.mxu0 0.0
        %4373 = vmatprep.subr.mxu0 0.0
        %4374 = vmatpush1.msra.mxu0 0.0
        %4375 = vmatprep.subr.mxu0 0.0
        %4376 = vmatpush1.msra.mxu0 0.0
        %4377 = vmatprep.subr.mxu0 0.0
        %4378 = vmatpush1.msra.mxu0 0.0
        %4379 = vmatprep.subr.mxu0 0.0
        %4380 = vmatpush1.msra.mxu0 0.0
        %4381 = vmatprep.subr.mxu0 0.0
        %4382 = vmatpush1.msra.mxu0 0.0
        %4383 = vmatprep.subr.mxu0 0.0
        %4384 = vmatpush1.msra.mxu0 0.0
        %4385 = vmatprep.subr.mxu0 0.0
        %4386 = vmatpush1.msra.mxu0 0.0
        %4387 = vmatprep.subr.mxu0 0.0
        %4388 = vmatpush1.msra.mxu0 0.0
        %4389 = vmatprep.subr.mxu0 0.0
        %4390 = vmatpush1.msra.mxu0 0.0
        %4391 = vmatprep.subr.mxu0 0.0
        %4392 = vmatpush1.msra.mxu0 0.0
        %4393 = vmatprep.subr.mxu0 0.0
        %4394 = vmatpush1.msra.mxu0 0.0
        %4395 = vmatprep.subr.mxu0 0.0
        %4396 = vmatpush1.msra.mxu0 0.0
        %4397 = vmatprep.subr.mxu0 0.0
        %4398 = vmatpush1.msra.mxu0 0.0
        %4399 = vmatprep.subr.mxu0 0.0
        %4400 = vmatpush1.msra.mxu0 0.0
        %4401 = vmatprep.subr.mxu0 0.0
        %4402 = vmatpush1.msra.mxu0 0.0
        %4403 = vmatprep.subr.mxu0 0.0
        %4404 = vmatpush1.msra.mxu0 0.0
        %4405 = vmatprep.subr.mxu0 0.0
        %4406 = vmatpush1.msra.mxu0 0.0
        %4407 = vmatprep.mubr.f32.mxu0 0.0
        %4408 = vmatmul.mubr.f32.gmra.mrb[0].mxu0 %v4341
        %v4409 = vpop.f32.mrb[0].mxu0
        %v4410 = vadd.f32 0.0, %v4409
        %v4411 = vpop.f32.mrb[0].mxu0
        %4412 = vdwg.mxu0
        %v4413 = vadd.f32 %v4335, %v4410
        %v4414 = vld [vmem:[%s3 + $0x1e0] sm:$0xff]
        %v4415 = vld [vmem:[%s3 + $0x1e8] sm:$0xff]
        %v4416 = vld [vmem:[%s3 + $0x1f0] sm:$0xff]
        %v4417 = vld [vmem:[%s3 + $0x1f8] sm:$0xff]
        %v4419 = vsel %vm481, %v3245, 0
        %4421 = vmatprep.subr.mxu0 0.0
        %4422 = vmatpush1.msra.mxu0 %v4414
        %4423 = vmatprep.subr.mxu0 0.0
        %4424 = vmatpush1.msra.mxu0 %v4415
        %4425 = vmatprep.subr.mxu0 0.0
        %4426 = vmatpush1.msra.mxu0 %v4416
        %4427 = vmatprep.subr.mxu0 0.0
        %4428 = vmatpush1.msra.mxu0 %v4417
        %4429 = vmatprep.subr.mxu0 0.0
        %4430 = vmatpush1.msra.mxu0 0.0
        %4431 = vmatprep.subr.mxu0 0.0
        %4432 = vmatpush1.msra.mxu0 0.0
        %4433 = vmatprep.subr.mxu0 0.0
        %4434 = vmatpush1.msra.mxu0 0.0
        %4435 = vmatprep.subr.mxu0 0.0
        %4436 = vmatpush1.msra.mxu0 0.0
        %4437 = vmatprep.subr.mxu0 0.0
        %4438 = vmatpush1.msra.mxu0 0.0
        %4439 = vmatprep.subr.mxu0 0.0
        %4440 = vmatpush1.msra.mxu0 0.0
        %4441 = vmatprep.subr.mxu0 0.0
        %4442 = vmatpush1.msra.mxu0 0.0
        %4443 = vmatprep.subr.mxu0 0.0
        %4444 = vmatpush1.msra.mxu0 0.0
        %4445 = vmatprep.subr.mxu0 0.0
        %4446 = vmatpush1.msra.mxu0 0.0
        %4447 = vmatprep.subr.mxu0 0.0
        %4448 = vmatpush1.msra.mxu0 0.0
        %4449 = vmatprep.subr.mxu0 0.0
        %4450 = vmatpush1.msra.mxu0 0.0
        %4451 = vmatprep.subr.mxu0 0.0
        %4452 = vmatpush1.msra.mxu0 0.0
        %4453 = vmatprep.subr.mxu0 0.0
        %4454 = vmatpush1.msra.mxu0 0.0
        %4455 = vmatprep.subr.mxu0 0.0
        %4456 = vmatpush1.msra.mxu0 0.0
        %4457 = vmatprep.subr.mxu0 0.0
        %4458 = vmatpush1.msra.mxu0 0.0
        %4459 = vmatprep.subr.mxu0 0.0
        %4460 = vmatpush1.msra.mxu0 0.0
        %4461 = vmatprep.subr.mxu0 0.0
        %4462 = vmatpush1.msra.mxu0 0.0
        %4463 = vmatprep.subr.mxu0 0.0
        %4464 = vmatpush1.msra.mxu0 0.0
        %4465 = vmatprep.subr.mxu0 0.0
        %4466 = vmatpush1.msra.mxu0 0.0
        %4467 = vmatprep.subr.mxu0 0.0
        %4468 = vmatpush1.msra.mxu0 0.0
        %4469 = vmatprep.subr.mxu0 0.0
        %4470 = vmatpush1.msra.mxu0 0.0
        %4471 = vmatprep.subr.mxu0 0.0
        %4472 = vmatpush1.msra.mxu0 0.0
        %4473 = vmatprep.subr.mxu0 0.0
        %4474 = vmatpush1.msra.mxu0 0.0
        %4475 = vmatprep.subr.mxu0 0.0
        %4476 = vmatpush1.msra.mxu0 0.0
        %4477 = vmatprep.subr.mxu0 0.0
        %4478 = vmatpush1.msra.mxu0 0.0
        %4479 = vmatprep.subr.mxu0 0.0
        %4480 = vmatpush1.msra.mxu0 0.0
        %4481 = vmatprep.subr.mxu0 0.0
        %4482 = vmatpush1.msra.mxu0 0.0
        %4483 = vmatprep.subr.mxu0 0.0
        %4484 = vmatpush1.msra.mxu0 0.0
        %4485 = vmatprep.mubr.f32.mxu0 0.0
        %4486 = vmatmul.mubr.f32.gmra.mrb[0].mxu0 %v4419
        %v4487 = vpop.f32.mrb[0].mxu0
        %v4488 = vadd.f32 0.0, %v4487
        %v4489 = vpop.f32.mrb[0].mxu0
        %4490 = vdwg.mxu0
        %v4491 = vadd.f32 %v4413, %v4488
        %v4492 = vld [vmem:[%s4] sm:$0x1]
        %v4494 = vlaneseq
        %v4495 = vshrl.u32 %v4494, 7
        %v4496 = vsub.s32 0, %v4495
        %v4497 = vrot.slane %v4492, %v4496
        %v4499 = vadd.f32 %v4491, %v4497
        %v4500 = vmax.f32 %v4499, 0.0
        %4501 = vst.msk [vmem:[#allocation3 + $0x2] sm:$0x3] %vm1928, %v4500
        %v4502 = vld [vmem:[%s661] ss:$49 sm:$0x3]
        %v4503 = vld [vmem:[%s663] ss:$49 sm:$0x3]
        %v4504 = vld [vmem:[%s1944] ss:$49 sm:$0x3]
        %v4505 = vld [vmem:[%s1946] ss:$49 sm:$0x3]
        %v4506 = vld [vmem:[%s669] ss:$49 sm:$0x3]
        %v4507 = vld [vmem:[%s671] ss:$49 sm:$0x3]
        %v4508 = vld [vmem:[%s1950] ss:$49 sm:$0x3]
        %v4509 = vld [vmem:[%s1952] ss:$49 sm:$0x3]
        %v4510 = vld [vmem:[%s3234] ss:$49 sm:$0x3]
        %v4511 = vld [vmem:[%s3236] ss:$49 sm:$0x3]
        %s4512 = scalar_lea.vmem [#allocation2], 32
        %v4513 = vld [vmem:[%s4512] ss:$49 sm:$0x3]
        %s4514 = scalar_lea.vmem [#allocation2], 33
        %v4515 = vld [vmem:[%s4514] ss:$49 sm:$0x3]
        %v4516 = vld [vmem:[%s3242] ss:$49 sm:$0x3]
        %v4517 = vld [vmem:[%s3244] ss:$49 sm:$0x3]
        %s4518 = scalar_lea.vmem [#allocation2], 39
        %v4519 = vld [vmem:[%s4518] ss:$49 sm:$0x3]
        %s4520 = scalar_lea.vmem [#allocation2], 40
        %v4521 = vld [vmem:[%s4520] ss:$49 sm:$0x3]
        %v4522 = vld [vmem:[%s3] sm:$0xff]
        %v4523 = vld [vmem:[%s3 + $0x8] sm:$0xff]
        %v4524 = vld [vmem:[%s3 + $0x10] sm:$0xff]
        %v4525 = vld [vmem:[%s3 + $0x18] sm:$0xff]
        %v4526 = vld [vmem:[%s3 + $0x20] sm:$0xff]
        %v4527 = vld [vmem:[%s3 + $0x28] sm:$0xff]
        %v4528 = vld [vmem:[%s3 + $0x30] sm:$0xff]
        %v4529 = vld [vmem:[%s3 + $0x38] sm:$0xff]
        %v4531 = vsel %vm481, %v4503, 0
        %4533 = vmatprep.subr.mxu0 0.0
        %4534 = vmatpush1.msra.mxu0 %v4526
        %4535 = vmatprep.subr.mxu0 0.0
        %4536 = vmatpush1.msra.mxu0 %v4527
        %4537 = vmatprep.subr.mxu0 0.0
        %4538 = vmatpush1.msra.mxu0 %v4528
        %4539 = vmatprep.subr.mxu0 0.0
        %4540 = vmatpush1.msra.mxu0 %v4529
        %4541 = vmatprep.subr.mxu0 0.0
        %4542 = vmatpush1.msra.mxu0 0.0
        %4543 = vmatprep.subr.mxu0 0.0
        %4544 = vmatpush1.msra.mxu0 0.0
        %4545 = vmatprep.subr.mxu0 0.0
        %4546 = vmatpush1.msra.mxu0 0.0
        %4547 = vmatprep.subr.mxu0 0.0
        %4548 = vmatpush1.msra.mxu0 0.0
        %4549 = vmatprep.subr.mxu0 0.0
        %4550 = vmatpush1.msra.mxu0 0.0
        %4551 = vmatprep.subr.mxu0 0.0
        %4552 = vmatpush1.msra.mxu0 0.0
        %4553 = vmatprep.subr.mxu0 0.0
        %4554 = vmatpush1.msra.mxu0 0.0
        %4555 = vmatprep.subr.mxu0 0.0
        %4556 = vmatpush1.msra.mxu0 0.0
        %4557 = vmatprep.subr.mxu0 0.0
        %4558 = vmatpush1.msra.mxu0 0.0
        %4559 = vmatprep.subr.mxu0 0.0
        %4560 = vmatpush1.msra.mxu0 0.0
        %4561 = vmatprep.subr.mxu0 0.0
        %4562 = vmatpush1.msra.mxu0 0.0
        %4563 = vmatprep.subr.mxu0 0.0
        %4564 = vmatpush1.msra.mxu0 0.0
        %4565 = vmatprep.subr.mxu0 0.0
        %4566 = vmatpush1.msra.mxu0 0.0
        %4567 = vmatprep.subr.mxu0 0.0
        %4568 = vmatpush1.msra.mxu0 0.0
        %4569 = vmatprep.subr.mxu0 0.0
        %4570 = vmatpush1.msra.mxu0 0.0
        %4571 = vmatprep.subr.mxu0 0.0
        %4572 = vmatpush1.msra.mxu0 0.0
        %4573 = vmatprep.subr.mxu0 0.0
        %4574 = vmatpush1.msra.mxu0 0.0
        %4575 = vmatprep.subr.mxu0 0.0
        %4576 = vmatpush1.msra.mxu0 0.0
        %4577 = vmatprep.subr.mxu0 0.0
        %4578 = vmatpush1.msra.mxu0 0.0
        %4579 = vmatprep.subr.mxu0 0.0
        %4580 = vmatpush1.msra.mxu0 0.0
        %4581 = vmatprep.subr.mxu0 0.0
        %4582 = vmatpush1.msra.mxu0 0.0
        %4583 = vmatprep.subr.mxu0 0.0
        %4584 = vmatpush1.msra.mxu0 0.0
        %4585 = vmatprep.subr.mxu0 0.0
        %4586 = vmatpush1.msra.mxu0 0.0
        %4587 = vmatprep.subr.mxu0 0.0
        %4588 = vmatpush1.msra.mxu0 0.0
        %4589 = vmatprep.subr.mxu0 0.0
        %4590 = vmatpush1.msra.mxu0 0.0
        %4591 = vmatprep.subr.mxu0 0.0
        %4592 = vmatpush1.msra.mxu0 0.0
        %4593 = vmatprep.subr.mxu0 0.0
        %4594 = vmatpush1.msra.mxu0 0.0
        %4595 = vmatprep.subr.mxu0 0.0
        %4596 = vmatpush1.msra.mxu0 0.0
        %4597 = vmatprep.mubr.f32.mxu0 0.0
        %4598 = vmatmul.mubr.f32.gmra.mrb[0].mxu0 %v4531
        %v4599 = vpop.f32.mrb[0].mxu0
        %v4600 = vadd.f32 0.0, %v4599
        %v4601 = vpop.f32.mrb[0].mxu0
        %4602 = vdwg.mxu0
        %v4604 = vsel %vm481, %v4502, 0
        %4606 = vmatprep.subr.mxu0 0.0
        %4607 = vmatpush1.msra.mxu0 %v4522
        %4608 = vmatprep.subr.mxu0 0.0
        %4609 = vmatpush1.msra.mxu0 %v4523
        %4610 = vmatprep.subr.mxu0 0.0
        %4611 = vmatpush1.msra.mxu0 %v4524
        %4612 = vmatprep.subr.mxu0 0.0
        %4613 = vmatpush1.msra.mxu0 %v4525
        %4614 = vmatprep.subr.mxu0 0.0
        %4615 = vmatpush1.msra.mxu0 0.0
        %4616 = vmatprep.subr.mxu0 0.0
        %4617 = vmatpush1.msra.mxu0 0.0
        %4618 = vmatprep.subr.mxu0 0.0
        %4619 = vmatpush1.msra.mxu0 0.0
        %4620 = vmatprep.subr.mxu0 0.0
        %4621 = vmatpush1.msra.mxu0 0.0
        %4622 = vmatprep.subr.mxu0 0.0
        %4623 = vmatpush1.msra.mxu0 0.0
        %4624 = vmatprep.subr.mxu0 0.0
        %4625 = vmatpush1.msra.mxu0 0.0
        %4626 = vmatprep.subr.mxu0 0.0
        %4627 = vmatpush1.msra.mxu0 0.0
        %4628 = vmatprep.subr.mxu0 0.0
        %4629 = vmatpush1.msra.mxu0 0.0
        %4630 = vmatprep.subr.mxu0 0.0
        %4631 = vmatpush1.msra.mxu0 0.0
        %4632 = vmatprep.subr.mxu0 0.0
        %4633 = vmatpush1.msra.mxu0 0.0
        %4634 = vmatprep.subr.mxu0 0.0
        %4635 = vmatpush1.msra.mxu0 0.0
        %4636 = vmatprep.subr.mxu0 0.0
        %4637 = vmatpush1.msra.mxu0 0.0
        %4638 = vmatprep.subr.mxu0 0.0
        %4639 = vmatpush1.msra.mxu0 0.0
        %4640 = vmatprep.subr.mxu0 0.0
        %4641 = vmatpush1.msra.mxu0 0.0
        %4642 = vmatprep.subr.mxu0 0.0
        %4643 = vmatpush1.msra.mxu0 0.0
        %4644 = vmatprep.subr.mxu0 0.0
        %4645 = vmatpush1.msra.mxu0 0.0
        %4646 = vmatprep.subr.mxu0 0.0
        %4647 = vmatpush1.msra.mxu0 0.0
        %4648 = vmatprep.subr.mxu0 0.0
        %4649 = vmatpush1.msra.mxu0 0.0
        %4650 = vmatprep.subr.mxu0 0.0
        %4651 = vmatpush1.msra.mxu0 0.0
        %4652 = vmatprep.subr.mxu0 0.0
        %4653 = vmatpush1.msra.mxu0 0.0
        %4654 = vmatprep.subr.mxu0 0.0
        %4655 = vmatpush1.msra.mxu0 0.0
        %4656 = vmatprep.subr.mxu0 0.0
        %4657 = vmatpush1.msra.mxu0 0.0
        %4658 = vmatprep.subr.mxu0 0.0
        %4659 = vmatpush1.msra.mxu0 0.0
        %4660 = vmatprep.subr.mxu0 0.0
        %4661 = vmatpush1.msra.mxu0 0.0
        %4662 = vmatprep.subr.mxu0 0.0
        %4663 = vmatpush1.msra.mxu0 0.0
        %4664 = vmatprep.subr.mxu0 0.0
        %4665 = vmatpush1.msra.mxu0 0.0
        %4666 = vmatprep.subr.mxu0 0.0
        %4667 = vmatpush1.msra.mxu0 0.0
        %4668 = vmatprep.subr.mxu0 0.0
        %4669 = vmatpush1.msra.mxu0 0.0
        %4670 = vmatprep.mubr.f32.mxu0 0.0
        %4671 = vmatmul.mubr.f32.gmra.mrb[0].mxu0 %v4604
        %v4672 = vpop.f32.mrb[0].mxu0
        %v4673 = vadd.f32 %v4600, %v4672
        %v4674 = vpop.f32.mrb[0].mxu0
        %4675 = vdwg.mxu0
        %v4676 = vld [vmem:[%s3 + $0x40] sm:$0xff]
        %v4677 = vld [vmem:[%s3 + $0x48] sm:$0xff]
        %v4678 = vld [vmem:[%s3 + $0x50] sm:$0xff]
        %v4679 = vld [vmem:[%s3 + $0x58] sm:$0xff]
        %v4681 = vsel %vm481, %v4504, 0
        %4683 = vmatprep.subr.mxu0 0.0
        %4684 = vmatpush1.msra.mxu0 %v4676
        %4685 = vmatprep.subr.mxu0 0.0
        %4686 = vmatpush1.msra.mxu0 %v4677
        %4687 = vmatprep.subr.mxu0 0.0
        %4688 = vmatpush1.msra.mxu0 %v4678
        %4689 = vmatprep.subr.mxu0 0.0
        %4690 = vmatpush1.msra.mxu0 %v4679
        %4691 = vmatprep.subr.mxu0 0.0
        %4692 = vmatpush1.msra.mxu0 0.0
        %4693 = vmatprep.subr.mxu0 0.0
        %4694 = vmatpush1.msra.mxu0 0.0
        %4695 = vmatprep.subr.mxu0 0.0
        %4696 = vmatpush1.msra.mxu0 0.0
        %4697 = vmatprep.subr.mxu0 0.0
        %4698 = vmatpush1.msra.mxu0 0.0
        %4699 = vmatprep.subr.mxu0 0.0
        %4700 = vmatpush1.msra.mxu0 0.0
        %4701 = vmatprep.subr.mxu0 0.0
        %4702 = vmatpush1.msra.mxu0 0.0
        %4703 = vmatprep.subr.mxu0 0.0
        %4704 = vmatpush1.msra.mxu0 0.0
        %4705 = vmatprep.subr.mxu0 0.0
        %4706 = vmatpush1.msra.mxu0 0.0
        %4707 = vmatprep.subr.mxu0 0.0
        %4708 = vmatpush1.msra.mxu0 0.0
        %4709 = vmatprep.subr.mxu0 0.0
        %4710 = vmatpush1.msra.mxu0 0.0
        %4711 = vmatprep.subr.mxu0 0.0
        %4712 = vmatpush1.msra.mxu0 0.0
        %4713 = vmatprep.subr.mxu0 0.0
        %4714 = vmatpush1.msra.mxu0 0.0
        %4715 = vmatprep.subr.mxu0 0.0
        %4716 = vmatpush1.msra.mxu0 0.0
        %4717 = vmatprep.subr.mxu0 0.0
        %4718 = vmatpush1.msra.mxu0 0.0
        %4719 = vmatprep.subr.mxu0 0.0
        %4720 = vmatpush1.msra.mxu0 0.0
        %4721 = vmatprep.subr.mxu0 0.0
        %4722 = vmatpush1.msra.mxu0 0.0
        %4723 = vmatprep.subr.mxu0 0.0
        %4724 = vmatpush1.msra.mxu0 0.0
        %4725 = vmatprep.subr.mxu0 0.0
        %4726 = vmatpush1.msra.mxu0 0.0
        %4727 = vmatprep.subr.mxu0 0.0
        %4728 = vmatpush1.msra.mxu0 0.0
        %4729 = vmatprep.subr.mxu0 0.0
        %4730 = vmatpush1.msra.mxu0 0.0
        %4731 = vmatprep.subr.mxu0 0.0
        %4732 = vmatpush1.msra.mxu0 0.0
        %4733 = vmatprep.subr.mxu0 0.0
        %4734 = vmatpush1.msra.mxu0 0.0
        %4735 = vmatprep.subr.mxu0 0.0
        %4736 = vmatpush1.msra.mxu0 0.0
        %4737 = vmatprep.subr.mxu0 0.0
        %4738 = vmatpush1.msra.mxu0 0.0
        %4739 = vmatprep.subr.mxu0 0.0
        %4740 = vmatpush1.msra.mxu0 0.0
        %4741 = vmatprep.subr.mxu0 0.0
        %4742 = vmatpush1.msra.mxu0 0.0
        %4743 = vmatprep.subr.mxu0 0.0
        %4744 = vmatpush1.msra.mxu0 0.0
        %4745 = vmatprep.subr.mxu0 0.0
        %4746 = vmatpush1.msra.mxu0 0.0
        %4747 = vmatprep.mubr.f32.mxu0 0.0
        %4748 = vmatmul.mubr.f32.gmra.mrb[0].mxu0 %v4681
        %v4749 = vpop.f32.mrb[0].mxu0
        %v4750 = vadd.f32 0.0, %v4749
        %v4751 = vpop.f32.mrb[0].mxu0
        %4752 = vdwg.mxu0
        %v4753 = vadd.f32 %v4673, %v4750
        %v4754 = vld [vmem:[%s3 + $0x60] sm:$0xff]
        %v4755 = vld [vmem:[%s3 + $0x68] sm:$0xff]
        %v4756 = vld [vmem:[%s3 + $0x70] sm:$0xff]
        %v4757 = vld [vmem:[%s3 + $0x78] sm:$0xff]
        %v4759 = vsel %vm481, %v4505, 0
        %4761 = vmatprep.subr.mxu0 0.0
        %4762 = vmatpush1.msra.mxu0 %v4754
        %4763 = vmatprep.subr.mxu0 0.0
        %4764 = vmatpush1.msra.mxu0 %v4755
        %4765 = vmatprep.subr.mxu0 0.0
        %4766 = vmatpush1.msra.mxu0 %v4756
        %4767 = vmatprep.subr.mxu0 0.0
        %4768 = vmatpush1.msra.mxu0 %v4757
        %4769 = vmatprep.subr.mxu0 0.0
        %4770 = vmatpush1.msra.mxu0 0.0
        %4771 = vmatprep.subr.mxu0 0.0
        %4772 = vmatpush1.msra.mxu0 0.0
        %4773 = vmatprep.subr.mxu0 0.0
        %4774 = vmatpush1.msra.mxu0 0.0
        %4775 = vmatprep.subr.mxu0 0.0
        %4776 = vmatpush1.msra.mxu0 0.0
        %4777 = vmatprep.subr.mxu0 0.0
        %4778 = vmatpush1.msra.mxu0 0.0
        %4779 = vmatprep.subr.mxu0 0.0
        %4780 = vmatpush1.msra.mxu0 0.0
        %4781 = vmatprep.subr.mxu0 0.0
        %4782 = vmatpush1.msra.mxu0 0.0
        %4783 = vmatprep.subr.mxu0 0.0
        %4784 = vmatpush1.msra.mxu0 0.0
        %4785 = vmatprep.subr.mxu0 0.0
        %4786 = vmatpush1.msra.mxu0 0.0
        %4787 = vmatprep.subr.mxu0 0.0
        %4788 = vmatpush1.msra.mxu0 0.0
        %4789 = vmatprep.subr.mxu0 0.0
        %4790 = vmatpush1.msra.mxu0 0.0
        %4791 = vmatprep.subr.mxu0 0.0
        %4792 = vmatpush1.msra.mxu0 0.0
        %4793 = vmatprep.subr.mxu0 0.0
        %4794 = vmatpush1.msra.mxu0 0.0
        %4795 = vmatprep.subr.mxu0 0.0
        %4796 = vmatpush1.msra.mxu0 0.0
        %4797 = vmatprep.subr.mxu0 0.0
        %4798 = vmatpush1.msra.mxu0 0.0
        %4799 = vmatprep.subr.mxu0 0.0
        %4800 = vmatpush1.msra.mxu0 0.0
        %4801 = vmatprep.subr.mxu0 0.0
        %4802 = vmatpush1.msra.mxu0 0.0
        %4803 = vmatprep.subr.mxu0 0.0
        %4804 = vmatpush1.msra.mxu0 0.0
        %4805 = vmatprep.subr.mxu0 0.0
        %4806 = vmatpush1.msra.mxu0 0.0
        %4807 = vmatprep.subr.mxu0 0.0
        %4808 = vmatpush1.msra.mxu0 0.0
        %4809 = vmatprep.subr.mxu0 0.0
        %4810 = vmatpush1.msra.mxu0 0.0
        %4811 = vmatprep.subr.mxu0 0.0
        %4812 = vmatpush1.msra.mxu0 0.0
        %4813 = vmatprep.subr.mxu0 0.0
        %4814 = vmatpush1.msra.mxu0 0.0
        %4815 = vmatprep.subr.mxu0 0.0
        %4816 = vmatpush1.msra.mxu0 0.0
        %4817 = vmatprep.subr.mxu0 0.0
        %4818 = vmatpush1.msra.mxu0 0.0
        %4819 = vmatprep.subr.mxu0 0.0
        %4820 = vmatpush1.msra.mxu0 0.0
        %4821 = vmatprep.subr.mxu0 0.0
        %4822 = vmatpush1.msra.mxu0 0.0
        %4823 = vmatprep.subr.mxu0 0.0
        %4824 = vmatpush1.msra.mxu0 0.0
        %4825 = vmatprep.mubr.f32.mxu0 0.0
        %4826 = vmatmul.mubr.f32.gmra.mrb[0].mxu0 %v4759
        %v4827 = vpop.f32.mrb[0].mxu0
        %v4828 = vadd.f32 0.0, %v4827
        %v4829 = vpop.f32.mrb[0].mxu0
        %4830 = vdwg.mxu0
        %v4831 = vadd.f32 %v4753, %v4828
        %v4832 = vld [vmem:[%s3 + $0x80] sm:$0xff]
        %v4833 = vld [vmem:[%s3 + $0x88] sm:$0xff]
        %v4834 = vld [vmem:[%s3 + $0x90] sm:$0xff]
        %v4835 = vld [vmem:[%s3 + $0x98] sm:$0xff]
        %v4837 = vsel %vm481, %v4506, 0
        %4839 = vmatprep.subr.mxu0 0.0
        %4840 = vmatpush1.msra.mxu0 %v4832
        %4841 = vmatprep.subr.mxu0 0.0
        %4842 = vmatpush1.msra.mxu0 %v4833
        %4843 = vmatprep.subr.mxu0 0.0
        %4844 = vmatpush1.msra.mxu0 %v4834
        %4845 = vmatprep.subr.mxu0 0.0
        %4846 = vmatpush1.msra.mxu0 %v4835
        %4847 = vmatprep.subr.mxu0 0.0
        %4848 = vmatpush1.msra.mxu0 0.0
        %4849 = vmatprep.subr.mxu0 0.0
        %4850 = vmatpush1.msra.mxu0 0.0
        %4851 = vmatprep.subr.mxu0 0.0
        %4852 = vmatpush1.msra.mxu0 0.0
        %4853 = vmatprep.subr.mxu0 0.0
        %4854 = vmatpush1.msra.mxu0 0.0
        %4855 = vmatprep.subr.mxu0 0.0
        %4856 = vmatpush1.msra.mxu0 0.0
        %4857 = vmatprep.subr.mxu0 0.0
        %4858 = vmatpush1.msra.mxu0 0.0
        %4859 = vmatprep.subr.mxu0 0.0
        %4860 = vmatpush1.msra.mxu0 0.0
        %4861 = vmatprep.subr.mxu0 0.0
        %4862 = vmatpush1.msra.mxu0 0.0
        %4863 = vmatprep.subr.mxu0 0.0
        %4864 = vmatpush1.msra.mxu0 0.0
        %4865 = vmatprep.subr.mxu0 0.0
        %4866 = vmatpush1.msra.mxu0 0.0
        %4867 = vmatprep.subr.mxu0 0.0
        %4868 = vmatpush1.msra.mxu0 0.0
        %4869 = vmatprep.subr.mxu0 0.0
        %4870 = vmatpush1.msra.mxu0 0.0
        %4871 = vmatprep.subr.mxu0 0.0
        %4872 = vmatpush1.msra.mxu0 0.0
        %4873 = vmatprep.subr.mxu0 0.0
        %4874 = vmatpush1.msra.mxu0 0.0
        %4875 = vmatprep.subr.mxu0 0.0
        %4876 = vmatpush1.msra.mxu0 0.0
        %4877 = vmatprep.subr.mxu0 0.0
        %4878 = vmatpush1.msra.mxu0 0.0
        %4879 = vmatprep.subr.mxu0 0.0
        %4880 = vmatpush1.msra.mxu0 0.0
        %4881 = vmatprep.subr.mxu0 0.0
        %4882 = vmatpush1.msra.mxu0 0.0
        %4883 = vmatprep.subr.mxu0 0.0
        %4884 = vmatpush1.msra.mxu0 0.0
        %4885 = vmatprep.subr.mxu0 0.0
        %4886 = vmatpush1.msra.mxu0 0.0
        %4887 = vmatprep.subr.mxu0 0.0
        %4888 = vmatpush1.msra.mxu0 0.0
        %4889 = vmatprep.subr.mxu0 0.0
        %4890 = vmatpush1.msra.mxu0 0.0
        %4891 = vmatprep.subr.mxu0 0.0
        %4892 = vmatpush1.msra.mxu0 0.0
        %4893 = vmatprep.subr.mxu0 0.0
        %4894 = vmatpush1.msra.mxu0 0.0
        %4895 = vmatprep.subr.mxu0 0.0
        %4896 = vmatpush1.msra.mxu0 0.0
        %4897 = vmatprep.subr.mxu0 0.0
        %4898 = vmatpush1.msra.mxu0 0.0
        %4899 = vmatprep.subr.mxu0 0.0
        %4900 = vmatpush1.msra.mxu0 0.0
        %4901 = vmatprep.subr.mxu0 0.0
        %4902 = vmatpush1.msra.mxu0 0.0
        %4903 = vmatprep.mubr.f32.mxu0 0.0
        %4904 = vmatmul.mubr.f32.gmra.mrb[0].mxu0 %v4837
        %v4905 = vpop.f32.mrb[0].mxu0
        %v4906 = vadd.f32 0.0, %v4905
        %v4907 = vpop.f32.mrb[0].mxu0
        %4908 = vdwg.mxu0
        %v4909 = vadd.f32 %v4831, %v4906
        %v4910 = vld [vmem:[%s3 + $0xa0] sm:$0xff]
        %v4911 = vld [vmem:[%s3 + $0xa8] sm:$0xff]
        %v4912 = vld [vmem:[%s3 + $0xb0] sm:$0xff]
        %v4913 = vld [vmem:[%s3 + $0xb8] sm:$0xff]
        %v4915 = vsel %vm481, %v4507, 0
        %4917 = vmatprep.subr.mxu0 0.0
        %4918 = vmatpush1.msra.mxu0 %v4910
        %4919 = vmatprep.subr.mxu0 0.0
        %4920 = vmatpush1.msra.mxu0 %v4911
        %4921 = vmatprep.subr.mxu0 0.0
        %4922 = vmatpush1.msra.mxu0 %v4912
        %4923 = vmatprep.subr.mxu0 0.0
        %4924 = vmatpush1.msra.mxu0 %v4913
        %4925 = vmatprep.subr.mxu0 0.0
        %4926 = vmatpush1.msra.mxu0 0.0
        %4927 = vmatprep.subr.mxu0 0.0
        %4928 = vmatpush1.msra.mxu0 0.0
        %4929 = vmatprep.subr.mxu0 0.0
        %4930 = vmatpush1.msra.mxu0 0.0
        %4931 = vmatprep.subr.mxu0 0.0
        %4932 = vmatpush1.msra.mxu0 0.0
        %4933 = vmatprep.subr.mxu0 0.0
        %4934 = vmatpush1.msra.mxu0 0.0
        %4935 = vmatprep.subr.mxu0 0.0
        %4936 = vmatpush1.msra.mxu0 0.0
        %4937 = vmatprep.subr.mxu0 0.0
        %4938 = vmatpush1.msra.mxu0 0.0
        %4939 = vmatprep.subr.mxu0 0.0
        %4940 = vmatpush1.msra.mxu0 0.0
        %4941 = vmatprep.subr.mxu0 0.0
        %4942 = vmatpush1.msra.mxu0 0.0
        %4943 = vmatprep.subr.mxu0 0.0
        %4944 = vmatpush1.msra.mxu0 0.0
        %4945 = vmatprep.subr.mxu0 0.0
        %4946 = vmatpush1.msra.mxu0 0.0
        %4947 = vmatprep.subr.mxu0 0.0
        %4948 = vmatpush1.msra.mxu0 0.0
        %4949 = vmatprep.subr.mxu0 0.0
        %4950 = vmatpush1.msra.mxu0 0.0
        %4951 = vmatprep.subr.mxu0 0.0
        %4952 = vmatpush1.msra.mxu0 0.0
        %4953 = vmatprep.subr.mxu0 0.0
        %4954 = vmatpush1.msra.mxu0 0.0
        %4955 = vmatprep.subr.mxu0 0.0
        %4956 = vmatpush1.msra.mxu0 0.0
        %4957 = vmatprep.subr.mxu0 0.0
        %4958 = vmatpush1.msra.mxu0 0.0
        %4959 = vmatprep.subr.mxu0 0.0
        %4960 = vmatpush1.msra.mxu0 0.0
        %4961 = vmatprep.subr.mxu0 0.0
        %4962 = vmatpush1.msra.mxu0 0.0
        %4963 = vmatprep.subr.mxu0 0.0
        %4964 = vmatpush1.msra.mxu0 0.0
        %4965 = vmatprep.subr.mxu0 0.0
        %4966 = vmatpush1.msra.mxu0 0.0
        %4967 = vmatprep.subr.mxu0 0.0
        %4968 = vmatpush1.msra.mxu0 0.0
        %4969 = vmatprep.subr.mxu0 0.0
        %4970 = vmatpush1.msra.mxu0 0.0
        %4971 = vmatprep.subr.mxu0 0.0
        %4972 = vmatpush1.msra.mxu0 0.0
        %4973 = vmatprep.subr.mxu0 0.0
        %4974 = vmatpush1.msra.mxu0 0.0
        %4975 = vmatprep.subr.mxu0 0.0
        %4976 = vmatpush1.msra.mxu0 0.0
        %4977 = vmatprep.subr.mxu0 0.0
        %4978 = vmatpush1.msra.mxu0 0.0
        %4979 = vmatprep.subr.mxu0 0.0
        %4980 = vmatpush1.msra.mxu0 0.0
        %4981 = vmatprep.mubr.f32.mxu0 0.0
        %4982 = vmatmul.mubr.f32.gmra.mrb[0].mxu0 %v4915
        %v4983 = vpop.f32.mrb[0].mxu0
        %v4984 = vadd.f32 0.0, %v4983
        %v4985 = vpop.f32.mrb[0].mxu0
        %4986 = vdwg.mxu0
        %v4987 = vadd.f32 %v4909, %v4984
        %v4988 = vld [vmem:[%s3 + $0xc0] sm:$0xff]
        %v4989 = vld [vmem:[%s3 + $0xc8] sm:$0xff]
        %v4990 = vld [vmem:[%s3 + $0xd0] sm:$0xff]
        %v4991 = vld [vmem:[%s3 + $0xd8] sm:$0xff]
        %v4993 = vsel %vm481, %v4508, 0
        %4995 = vmatprep.subr.mxu0 0.0
        %4996 = vmatpush1.msra.mxu0 %v4988
        %4997 = vmatprep.subr.mxu0 0.0
        %4998 = vmatpush1.msra.mxu0 %v4989
        %4999 = vmatprep.subr.mxu0 0.0
        %5000 = vmatpush1.msra.mxu0 %v4990
        %5001 = vmatprep.subr.mxu0 0.0
        %5002 = vmatpush1.msra.mxu0 %v4991
        %5003 = vmatprep.subr.mxu0 0.0
        %5004 = vmatpush1.msra.mxu0 0.0
        %5005 = vmatprep.subr.mxu0 0.0
        %5006 = vmatpush1.msra.mxu0 0.0
        %5007 = vmatprep.subr.mxu0 0.0
        %5008 = vmatpush1.msra.mxu0 0.0
        %5009 = vmatprep.subr.mxu0 0.0
        %5010 = vmatpush1.msra.mxu0 0.0
        %5011 = vmatprep.subr.mxu0 0.0
        %5012 = vmatpush1.msra.mxu0 0.0
        %5013 = vmatprep.subr.mxu0 0.0
        %5014 = vmatpush1.msra.mxu0 0.0
        %5015 = vmatprep.subr.mxu0 0.0
        %5016 = vmatpush1.msra.mxu0 0.0
        %5017 = vmatprep.subr.mxu0 0.0
        %5018 = vmatpush1.msra.mxu0 0.0
        %5019 = vmatprep.subr.mxu0 0.0
        %5020 = vmatpush1.msra.mxu0 0.0
        %5021 = vmatprep.subr.mxu0 0.0
        %5022 = vmatpush1.msra.mxu0 0.0
        %5023 = vmatprep.subr.mxu0 0.0
        %5024 = vmatpush1.msra.mxu0 0.0
        %5025 = vmatprep.subr.mxu0 0.0
        %5026 = vmatpush1.msra.mxu0 0.0
        %5027 = vmatprep.subr.mxu0 0.0
        %5028 = vmatpush1.msra.mxu0 0.0
        %5029 = vmatprep.subr.mxu0 0.0
        %5030 = vmatpush1.msra.mxu0 0.0
        %5031 = vmatprep.subr.mxu0 0.0
        %5032 = vmatpush1.msra.mxu0 0.0
        %5033 = vmatprep.subr.mxu0 0.0
        %5034 = vmatpush1.msra.mxu0 0.0
        %5035 = vmatprep.subr.mxu0 0.0
        %5036 = vmatpush1.msra.mxu0 0.0
        %5037 = vmatprep.subr.mxu0 0.0
        %5038 = vmatpush1.msra.mxu0 0.0
        %5039 = vmatprep.subr.mxu0 0.0
        %5040 = vmatpush1.msra.mxu0 0.0
        %5041 = vmatprep.subr.mxu0 0.0
        %5042 = vmatpush1.msra.mxu0 0.0
        %5043 = vmatprep.subr.mxu0 0.0
        %5044 = vmatpush1.msra.mxu0 0.0
        %5045 = vmatprep.subr.mxu0 0.0
        %5046 = vmatpush1.msra.mxu0 0.0
        %5047 = vmatprep.subr.mxu0 0.0
        %5048 = vmatpush1.msra.mxu0 0.0
        %5049 = vmatprep.subr.mxu0 0.0
        %5050 = vmatpush1.msra.mxu0 0.0
        %5051 = vmatprep.subr.mxu0 0.0
        %5052 = vmatpush1.msra.mxu0 0.0
        %5053 = vmatprep.subr.mxu0 0.0
        %5054 = vmatpush1.msra.mxu0 0.0
        %5055 = vmatprep.subr.mxu0 0.0
        %5056 = vmatpush1.msra.mxu0 0.0
        %5057 = vmatprep.subr.mxu0 0.0
        %5058 = vmatpush1.msra.mxu0 0.0
        %5059 = vmatprep.mubr.f32.mxu0 0.0
        %5060 = vmatmul.mubr.f32.gmra.mrb[0].mxu0 %v4993
        %v5061 = vpop.f32.mrb[0].mxu0
        %v5062 = vadd.f32 0.0, %v5061
        %v5063 = vpop.f32.mrb[0].mxu0
        %5064 = vdwg.mxu0
        %v5065 = vadd.f32 %v4987, %v5062
        %v5066 = vld [vmem:[%s3 + $0xe0] sm:$0xff]
        %v5067 = vld [vmem:[%s3 + $0xe8] sm:$0xff]
        %v5068 = vld [vmem:[%s3 + $0xf0] sm:$0xff]
        %v5069 = vld [vmem:[%s3 + $0xf8] sm:$0xff]
        %v5071 = vsel %vm481, %v4509, 0
        %5073 = vmatprep.subr.mxu0 0.0
        %5074 = vmatpush1.msra.mxu0 %v5066
        %5075 = vmatprep.subr.mxu0 0.0
        %5076 = vmatpush1.msra.mxu0 %v5067
        %5077 = vmatprep.subr.mxu0 0.0
        %5078 = vmatpush1.msra.mxu0 %v5068
        %5079 = vmatprep.subr.mxu0 0.0
        %5080 = vmatpush1.msra.mxu0 %v5069
        %5081 = vmatprep.subr.mxu0 0.0
        %5082 = vmatpush1.msra.mxu0 0.0
        %5083 = vmatprep.subr.mxu0 0.0
        %5084 = vmatpush1.msra.mxu0 0.0
        %5085 = vmatprep.subr.mxu0 0.0
        %5086 = vmatpush1.msra.mxu0 0.0
        %5087 = vmatprep.subr.mxu0 0.0
        %5088 = vmatpush1.msra.mxu0 0.0
        %5089 = vmatprep.subr.mxu0 0.0
        %5090 = vmatpush1.msra.mxu0 0.0
        %5091 = vmatprep.subr.mxu0 0.0
        %5092 = vmatpush1.msra.mxu0 0.0
        %5093 = vmatprep.subr.mxu0 0.0
        %5094 = vmatpush1.msra.mxu0 0.0
        %5095 = vmatprep.subr.mxu0 0.0
        %5096 = vmatpush1.msra.mxu0 0.0
        %5097 = vmatprep.subr.mxu0 0.0
        %5098 = vmatpush1.msra.mxu0 0.0
        %5099 = vmatprep.subr.mxu0 0.0
        %5100 = vmatpush1.msra.mxu0 0.0
        %5101 = vmatprep.subr.mxu0 0.0
        %5102 = vmatpush1.msra.mxu0 0.0
        %5103 = vmatprep.subr.mxu0 0.0
        %5104 = vmatpush1.msra.mxu0 0.0
        %5105 = vmatprep.subr.mxu0 0.0
        %5106 = vmatpush1.msra.mxu0 0.0
        %5107 = vmatprep.subr.mxu0 0.0
        %5108 = vmatpush1.msra.mxu0 0.0
        %5109 = vmatprep.subr.mxu0 0.0
        %5110 = vmatpush1.msra.mxu0 0.0
        %5111 = vmatprep.subr.mxu0 0.0
        %5112 = vmatpush1.msra.mxu0 0.0
        %5113 = vmatprep.subr.mxu0 0.0
        %5114 = vmatpush1.msra.mxu0 0.0
        %5115 = vmatprep.subr.mxu0 0.0
        %5116 = vmatpush1.msra.mxu0 0.0
        %5117 = vmatprep.subr.mxu0 0.0
        %5118 = vmatpush1.msra.mxu0 0.0
        %5119 = vmatprep.subr.mxu0 0.0
        %5120 = vmatpush1.msra.mxu0 0.0
        %5121 = vmatprep.subr.mxu0 0.0
        %5122 = vmatpush1.msra.mxu0 0.0
        %5123 = vmatprep.subr.mxu0 0.0
        %5124 = vmatpush1.msra.mxu0 0.0
        %5125 = vmatprep.subr.mxu0 0.0
        %5126 = vmatpush1.msra.mxu0 0.0
        %5127 = vmatprep.subr.mxu0 0.0
        %5128 = vmatpush1.msra.mxu0 0.0
        %5129 = vmatprep.subr.mxu0 0.0
        %5130 = vmatpush1.msra.mxu0 0.0
        %5131 = vmatprep.subr.mxu0 0.0
        %5132 = vmatpush1.msra.mxu0 0.0
        %5133 = vmatprep.subr.mxu0 0.0
        %5134 = vmatpush1.msra.mxu0 0.0
        %5135 = vmatprep.subr.mxu0 0.0
        %5136 = vmatpush1.msra.mxu0 0.0
        %5137 = vmatprep.mubr.f32.mxu0 0.0
        %5138 = vmatmul.mubr.f32.gmra.mrb[0].mxu0 %v5071
        %v5139 = vpop.f32.mrb[0].mxu0
        %v5140 = vadd.f32 0.0, %v5139
        %v5141 = vpop.f32.mrb[0].mxu0
        %5142 = vdwg.mxu0
        %v5143 = vadd.f32 %v5065, %v5140
        %v5144 = vld [vmem:[%s3 + $0x100] sm:$0xff]
        %v5145 = vld [vmem:[%s3 + $0x108] sm:$0xff]
        %v5146 = vld [vmem:[%s3 + $0x110] sm:$0xff]
        %v5147 = vld [vmem:[%s3 + $0x118] sm:$0xff]
        %v5149 = vsel %vm481, %v4510, 0
        %5151 = vmatprep.subr.mxu0 0.0
        %5152 = vmatpush1.msra.mxu0 %v5144
        %5153 = vmatprep.subr.mxu0 0.0
        %5154 = vmatpush1.msra.mxu0 %v5145
        %5155 = vmatprep.subr.mxu0 0.0
        %5156 = vmatpush1.msra.mxu0 %v5146
        %5157 = vmatprep.subr.mxu0 0.0
        %5158 = vmatpush1.msra.mxu0 %v5147
        %5159 = vmatprep.subr.mxu0 0.0
        %5160 = vmatpush1.msra.mxu0 0.0
        %5161 = vmatprep.subr.mxu0 0.0
        %5162 = vmatpush1.msra.mxu0 0.0
        %5163 = vmatprep.subr.mxu0 0.0
        %5164 = vmatpush1.msra.mxu0 0.0
        %5165 = vmatprep.subr.mxu0 0.0
        %5166 = vmatpush1.msra.mxu0 0.0
        %5167 = vmatprep.subr.mxu0 0.0
        %5168 = vmatpush1.msra.mxu0 0.0
        %5169 = vmatprep.subr.mxu0 0.0
        %5170 = vmatpush1.msra.mxu0 0.0
        %5171 = vmatprep.subr.mxu0 0.0
        %5172 = vmatpush1.msra.mxu0 0.0
        %5173 = vmatprep.subr.mxu0 0.0
        %5174 = vmatpush1.msra.mxu0 0.0
        %5175 = vmatprep.subr.mxu0 0.0
        %5176 = vmatpush1.msra.mxu0 0.0
        %5177 = vmatprep.subr.mxu0 0.0
        %5178 = vmatpush1.msra.mxu0 0.0
        %5179 = vmatprep.subr.mxu0 0.0
        %5180 = vmatpush1.msra.mxu0 0.0
        %5181 = vmatprep.subr.mxu0 0.0
        %5182 = vmatpush1.msra.mxu0 0.0
        %5183 = vmatprep.subr.mxu0 0.0
        %5184 = vmatpush1.msra.mxu0 0.0
        %5185 = vmatprep.subr.mxu0 0.0
        %5186 = vmatpush1.msra.mxu0 0.0
        %5187 = vmatprep.subr.mxu0 0.0
        %5188 = vmatpush1.msra.mxu0 0.0
        %5189 = vmatprep.subr.mxu0 0.0
        %5190 = vmatpush1.msra.mxu0 0.0
        %5191 = vmatprep.subr.mxu0 0.0
        %5192 = vmatpush1.msra.mxu0 0.0
        %5193 = vmatprep.subr.mxu0 0.0
        %5194 = vmatpush1.msra.mxu0 0.0
        %5195 = vmatprep.subr.mxu0 0.0
        %5196 = vmatpush1.msra.mxu0 0.0
        %5197 = vmatprep.subr.mxu0 0.0
        %5198 = vmatpush1.msra.mxu0 0.0
        %5199 = vmatprep.subr.mxu0 0.0
        %5200 = vmatpush1.msra.mxu0 0.0
        %5201 = vmatprep.subr.mxu0 0.0
        %5202 = vmatpush1.msra.mxu0 0.0
        %5203 = vmatprep.subr.mxu0 0.0
        %5204 = vmatpush1.msra.mxu0 0.0
        %5205 = vmatprep.subr.mxu0 0.0
        %5206 = vmatpush1.msra.mxu0 0.0
        %5207 = vmatprep.subr.mxu0 0.0
        %5208 = vmatpush1.msra.mxu0 0.0
        %5209 = vmatprep.subr.mxu0 0.0
        %5210 = vmatpush1.msra.mxu0 0.0
        %5211 = vmatprep.subr.mxu0 0.0
        %5212 = vmatpush1.msra.mxu0 0.0
        %5213 = vmatprep.subr.mxu0 0.0
        %5214 = vmatpush1.msra.mxu0 0.0
        %5215 = vmatprep.mubr.f32.mxu0 0.0
        %5216 = vmatmul.mubr.f32.gmra.mrb[0].mxu0 %v5149
        %v5217 = vpop.f32.mrb[0].mxu0
        %v5218 = vadd.f32 0.0, %v5217
        %v5219 = vpop.f32.mrb[0].mxu0
        %5220 = vdwg.mxu0
        %v5221 = vadd.f32 %v5143, %v5218
        %v5222 = vld [vmem:[%s3 + $0x120] sm:$0xff]
        %v5223 = vld [vmem:[%s3 + $0x128] sm:$0xff]
        %v5224 = vld [vmem:[%s3 + $0x130] sm:$0xff]
        %v5225 = vld [vmem:[%s3 + $0x138] sm:$0xff]
        %v5227 = vsel %vm481, %v4511, 0
        %5229 = vmatprep.subr.mxu0 0.0
        %5230 = vmatpush1.msra.mxu0 %v5222
        %5231 = vmatprep.subr.mxu0 0.0
        %5232 = vmatpush1.msra.mxu0 %v5223
        %5233 = vmatprep.subr.mxu0 0.0
        %5234 = vmatpush1.msra.mxu0 %v5224
        %5235 = vmatprep.subr.mxu0 0.0
        %5236 = vmatpush1.msra.mxu0 %v5225
        %5237 = vmatprep.subr.mxu0 0.0
        %5238 = vmatpush1.msra.mxu0 0.0
        %5239 = vmatprep.subr.mxu0 0.0
        %5240 = vmatpush1.msra.mxu0 0.0
        %5241 = vmatprep.subr.mxu0 0.0
        %5242 = vmatpush1.msra.mxu0 0.0
        %5243 = vmatprep.subr.mxu0 0.0
        %5244 = vmatpush1.msra.mxu0 0.0
        %5245 = vmatprep.subr.mxu0 0.0
        %5246 = vmatpush1.msra.mxu0 0.0
        %5247 = vmatprep.subr.mxu0 0.0
        %5248 = vmatpush1.msra.mxu0 0.0
        %5249 = vmatprep.subr.mxu0 0.0
        %5250 = vmatpush1.msra.mxu0 0.0
        %5251 = vmatprep.subr.mxu0 0.0
        %5252 = vmatpush1.msra.mxu0 0.0
        %5253 = vmatprep.subr.mxu0 0.0
        %5254 = vmatpush1.msra.mxu0 0.0
        %5255 = vmatprep.subr.mxu0 0.0
        %5256 = vmatpush1.msra.mxu0 0.0
        %5257 = vmatprep.subr.mxu0 0.0
        %5258 = vmatpush1.msra.mxu0 0.0
        %5259 = vmatprep.subr.mxu0 0.0
        %5260 = vmatpush1.msra.mxu0 0.0
        %5261 = vmatprep.subr.mxu0 0.0
        %5262 = vmatpush1.msra.mxu0 0.0
        %5263 = vmatprep.subr.mxu0 0.0
        %5264 = vmatpush1.msra.mxu0 0.0
        %5265 = vmatprep.subr.mxu0 0.0
        %5266 = vmatpush1.msra.mxu0 0.0
        %5267 = vmatprep.subr.mxu0 0.0
        %5268 = vmatpush1.msra.mxu0 0.0
        %5269 = vmatprep.subr.mxu0 0.0
        %5270 = vmatpush1.msra.mxu0 0.0
        %5271 = vmatprep.subr.mxu0 0.0
        %5272 = vmatpush1.msra.mxu0 0.0
        %5273 = vmatprep.subr.mxu0 0.0
        %5274 = vmatpush1.msra.mxu0 0.0
        %5275 = vmatprep.subr.mxu0 0.0
        %5276 = vmatpush1.msra.mxu0 0.0
        %5277 = vmatprep.subr.mxu0 0.0
        %5278 = vmatpush1.msra.mxu0 0.0
        %5279 = vmatprep.subr.mxu0 0.0
        %5280 = vmatpush1.msra.mxu0 0.0
        %5281 = vmatprep.subr.mxu0 0.0
        %5282 = vmatpush1.msra.mxu0 0.0
        %5283 = vmatprep.subr.mxu0 0.0
        %5284 = vmatpush1.msra.mxu0 0.0
        %5285 = vmatprep.subr.mxu0 0.0
        %5286 = vmatpush1.msra.mxu0 0.0
        %5287 = vmatprep.subr.mxu0 0.0
        %5288 = vmatpush1.msra.mxu0 0.0
        %5289 = vmatprep.subr.mxu0 0.0
        %5290 = vmatpush1.msra.mxu0 0.0
        %5291 = vmatprep.subr.mxu0 0.0
        %5292 = vmatpush1.msra.mxu0 0.0
        %5293 = vmatprep.mubr.f32.mxu0 0.0
        %5294 = vmatmul.mubr.f32.gmra.mrb[0].mxu0 %v5227
        %v5295 = vpop.f32.mrb[0].mxu0
        %v5296 = vadd.f32 0.0, %v5295
        %v5297 = vpop.f32.mrb[0].mxu0
        %5298 = vdwg.mxu0
        %v5299 = vadd.f32 %v5221, %v5296
        %v5300 = vld [vmem:[%s3 + $0x140] sm:$0xff]
        %v5301 = vld [vmem:[%s3 + $0x148] sm:$0xff]
        %v5302 = vld [vmem:[%s3 + $0x150] sm:$0xff]
        %v5303 = vld [vmem:[%s3 + $0x158] sm:$0xff]
        %v5305 = vsel %vm481, %v4513, 0
        %5307 = vmatprep.subr.mxu0 0.0
        %5308 = vmatpush1.msra.mxu0 %v5300
        %5309 = vmatprep.subr.mxu0 0.0
        %5310 = vmatpush1.msra.mxu0 %v5301
        %5311 = vmatprep.subr.mxu0 0.0
        %5312 = vmatpush1.msra.mxu0 %v5302
        %5313 = vmatprep.subr.mxu0 0.0
        %5314 = vmatpush1.msra.mxu0 %v5303
        %5315 = vmatprep.subr.mxu0 0.0
        %5316 = vmatpush1.msra.mxu0 0.0
        %5317 = vmatprep.subr.mxu0 0.0
        %5318 = vmatpush1.msra.mxu0 0.0
        %5319 = vmatprep.subr.mxu0 0.0
        %5320 = vmatpush1.msra.mxu0 0.0
        %5321 = vmatprep.subr.mxu0 0.0
        %5322 = vmatpush1.msra.mxu0 0.0
        %5323 = vmatprep.subr.mxu0 0.0
        %5324 = vmatpush1.msra.mxu0 0.0
        %5325 = vmatprep.subr.mxu0 0.0
        %5326 = vmatpush1.msra.mxu0 0.0
        %5327 = vmatprep.subr.mxu0 0.0
        %5328 = vmatpush1.msra.mxu0 0.0
        %5329 = vmatprep.subr.mxu0 0.0
        %5330 = vmatpush1.msra.mxu0 0.0
        %5331 = vmatprep.subr.mxu0 0.0
        %5332 = vmatpush1.msra.mxu0 0.0
        %5333 = vmatprep.subr.mxu0 0.0
        %5334 = vmatpush1.msra.mxu0 0.0
        %5335 = vmatprep.subr.mxu0 0.0
        %5336 = vmatpush1.msra.mxu0 0.0
        %5337 = vmatprep.subr.mxu0 0.0
        %5338 = vmatpush1.msra.mxu0 0.0
        %5339 = vmatprep.subr.mxu0 0.0
        %5340 = vmatpush1.msra.mxu0 0.0
        %5341 = vmatprep.subr.mxu0 0.0
        %5342 = vmatpush1.msra.mxu0 0.0
        %5343 = vmatprep.subr.mxu0 0.0
        %5344 = vmatpush1.msra.mxu0 0.0
        %5345 = vmatprep.subr.mxu0 0.0
        %5346 = vmatpush1.msra.mxu0 0.0
        %5347 = vmatprep.subr.mxu0 0.0
        %5348 = vmatpush1.msra.mxu0 0.0
        %5349 = vmatprep.subr.mxu0 0.0
        %5350 = vmatpush1.msra.mxu0 0.0
        %5351 = vmatprep.subr.mxu0 0.0
        %5352 = vmatpush1.msra.mxu0 0.0
        %5353 = vmatprep.subr.mxu0 0.0
        %5354 = vmatpush1.msra.mxu0 0.0
        %5355 = vmatprep.subr.mxu0 0.0
        %5356 = vmatpush1.msra.mxu0 0.0
        %5357 = vmatprep.subr.mxu0 0.0
        %5358 = vmatpush1.msra.mxu0 0.0
        %5359 = vmatprep.subr.mxu0 0.0
        %5360 = vmatpush1.msra.mxu0 0.0
        %5361 = vmatprep.subr.mxu0 0.0
        %5362 = vmatpush1.msra.mxu0 0.0
        %5363 = vmatprep.subr.mxu0 0.0
        %5364 = vmatpush1.msra.mxu0 0.0
        %5365 = vmatprep.subr.mxu0 0.0
        %5366 = vmatpush1.msra.mxu0 0.0
        %5367 = vmatprep.subr.mxu0 0.0
        %5368 = vmatpush1.msra.mxu0 0.0
        %5369 = vmatprep.subr.mxu0 0.0
        %5370 = vmatpush1.msra.mxu0 0.0
        %5371 = vmatprep.mubr.f32.mxu0 0.0
        %5372 = vmatmul.mubr.f32.gmra.mrb[0].mxu0 %v5305
        %v5373 = vpop.f32.mrb[0].mxu0
        %v5374 = vadd.f32 0.0, %v5373
        %v5375 = vpop.f32.mrb[0].mxu0
        %5376 = vdwg.mxu0
        %v5377 = vadd.f32 %v5299, %v5374
        %v5378 = vld [vmem:[%s3 + $0x160] sm:$0xff]
        %v5379 = vld [vmem:[%s3 + $0x168] sm:$0xff]
        %v5380 = vld [vmem:[%s3 + $0x170] sm:$0xff]
        %v5381 = vld [vmem:[%s3 + $0x178] sm:$0xff]
        %v5383 = vsel %vm481, %v4515, 0
        %5385 = vmatprep.subr.mxu0 0.0
        %5386 = vmatpush1.msra.mxu0 %v5378
        %5387 = vmatprep.subr.mxu0 0.0
        %5388 = vmatpush1.msra.mxu0 %v5379
        %5389 = vmatprep.subr.mxu0 0.0
        %5390 = vmatpush1.msra.mxu0 %v5380
        %5391 = vmatprep.subr.mxu0 0.0
        %5392 = vmatpush1.msra.mxu0 %v5381
        %5393 = vmatprep.subr.mxu0 0.0
        %5394 = vmatpush1.msra.mxu0 0.0
        %5395 = vmatprep.subr.mxu0 0.0
        %5396 = vmatpush1.msra.mxu0 0.0
        %5397 = vmatprep.subr.mxu0 0.0
        %5398 = vmatpush1.msra.mxu0 0.0
        %5399 = vmatprep.subr.mxu0 0.0
        %5400 = vmatpush1.msra.mxu0 0.0
        %5401 = vmatprep.subr.mxu0 0.0
        %5402 = vmatpush1.msra.mxu0 0.0
        %5403 = vmatprep.subr.mxu0 0.0
        %5404 = vmatpush1.msra.mxu0 0.0
        %5405 = vmatprep.subr.mxu0 0.0
        %5406 = vmatpush1.msra.mxu0 0.0
        %5407 = vmatprep.subr.mxu0 0.0
        %5408 = vmatpush1.msra.mxu0 0.0
        %5409 = vmatprep.subr.mxu0 0.0
        %5410 = vmatpush1.msra.mxu0 0.0
        %5411 = vmatprep.subr.mxu0 0.0
        %5412 = vmatpush1.msra.mxu0 0.0
        %5413 = vmatprep.subr.mxu0 0.0
        %5414 = vmatpush1.msra.mxu0 0.0
        %5415 = vmatprep.subr.mxu0 0.0
        %5416 = vmatpush1.msra.mxu0 0.0
        %5417 = vmatprep.subr.mxu0 0.0
        %5418 = vmatpush1.msra.mxu0 0.0
        %5419 = vmatprep.subr.mxu0 0.0
        %5420 = vmatpush1.msra.mxu0 0.0
        %5421 = vmatprep.subr.mxu0 0.0
        %5422 = vmatpush1.msra.mxu0 0.0
        %5423 = vmatprep.subr.mxu0 0.0
        %5424 = vmatpush1.msra.mxu0 0.0
        %5425 = vmatprep.subr.mxu0 0.0
        %5426 = vmatpush1.msra.mxu0 0.0
        %5427 = vmatprep.subr.mxu0 0.0
        %5428 = vmatpush1.msra.mxu0 0.0
        %5429 = vmatprep.subr.mxu0 0.0
        %5430 = vmatpush1.msra.mxu0 0.0
        %5431 = vmatprep.subr.mxu0 0.0
        %5432 = vmatpush1.msra.mxu0 0.0
        %5433 = vmatprep.subr.mxu0 0.0
        %5434 = vmatpush1.msra.mxu0 0.0
        %5435 = vmatprep.subr.mxu0 0.0
        %5436 = vmatpush1.msra.mxu0 0.0
        %5437 = vmatprep.subr.mxu0 0.0
        %5438 = vmatpush1.msra.mxu0 0.0
        %5439 = vmatprep.subr.mxu0 0.0
        %5440 = vmatpush1.msra.mxu0 0.0
        %5441 = vmatprep.subr.mxu0 0.0
        %5442 = vmatpush1.msra.mxu0 0.0
        %5443 = vmatprep.subr.mxu0 0.0
        %5444 = vmatpush1.msra.mxu0 0.0
        %5445 = vmatprep.subr.mxu0 0.0
        %5446 = vmatpush1.msra.mxu0 0.0
        %5447 = vmatprep.subr.mxu0 0.0
        %5448 = vmatpush1.msra.mxu0 0.0
        %5449 = vmatprep.mubr.f32.mxu0 0.0
        %5450 = vmatmul.mubr.f32.gmra.mrb[0].mxu0 %v5383
        %v5451 = vpop.f32.mrb[0].mxu0
        %v5452 = vadd.f32 0.0, %v5451
        %v5453 = vpop.f32.mrb[0].mxu0
        %5454 = vdwg.mxu0
        %v5455 = vadd.f32 %v5377, %v5452
        %v5456 = vld [vmem:[%s3 + $0x180] sm:$0xff]
        %v5457 = vld [vmem:[%s3 + $0x188] sm:$0xff]
        %v5458 = vld [vmem:[%s3 + $0x190] sm:$0xff]
        %v5459 = vld [vmem:[%s3 + $0x198] sm:$0xff]
        %v5461 = vsel %vm481, %v4516, 0
        %5463 = vmatprep.subr.mxu0 0.0
        %5464 = vmatpush1.msra.mxu0 %v5456
        %5465 = vmatprep.subr.mxu0 0.0
        %5466 = vmatpush1.msra.mxu0 %v5457
        %5467 = vmatprep.subr.mxu0 0.0
        %5468 = vmatpush1.msra.mxu0 %v5458
        %5469 = vmatprep.subr.mxu0 0.0
        %5470 = vmatpush1.msra.mxu0 %v5459
        %5471 = vmatprep.subr.mxu0 0.0
        %5472 = vmatpush1.msra.mxu0 0.0
        %5473 = vmatprep.subr.mxu0 0.0
        %5474 = vmatpush1.msra.mxu0 0.0
        %5475 = vmatprep.subr.mxu0 0.0
        %5476 = vmatpush1.msra.mxu0 0.0
        %5477 = vmatprep.subr.mxu0 0.0
        %5478 = vmatpush1.msra.mxu0 0.0
        %5479 = vmatprep.subr.mxu0 0.0
        %5480 = vmatpush1.msra.mxu0 0.0
        %5481 = vmatprep.subr.mxu0 0.0
        %5482 = vmatpush1.msra.mxu0 0.0
        %5483 = vmatprep.subr.mxu0 0.0
        %5484 = vmatpush1.msra.mxu0 0.0
        %5485 = vmatprep.subr.mxu0 0.0
        %5486 = vmatpush1.msra.mxu0 0.0
        %5487 = vmatprep.subr.mxu0 0.0
        %5488 = vmatpush1.msra.mxu0 0.0
        %5489 = vmatprep.subr.mxu0 0.0
        %5490 = vmatpush1.msra.mxu0 0.0
        %5491 = vmatprep.subr.mxu0 0.0
        %5492 = vmatpush1.msra.mxu0 0.0
        %5493 = vmatprep.subr.mxu0 0.0
        %5494 = vmatpush1.msra.mxu0 0.0
        %5495 = vmatprep.subr.mxu0 0.0
        %5496 = vmatpush1.msra.mxu0 0.0
        %5497 = vmatprep.subr.mxu0 0.0
        %5498 = vmatpush1.msra.mxu0 0.0
        %5499 = vmatprep.subr.mxu0 0.0
        %5500 = vmatpush1.msra.mxu0 0.0
        %5501 = vmatprep.subr.mxu0 0.0
        %5502 = vmatpush1.msra.mxu0 0.0
        %5503 = vmatprep.subr.mxu0 0.0
        %5504 = vmatpush1.msra.mxu0 0.0
        %5505 = vmatprep.subr.mxu0 0.0
        %5506 = vmatpush1.msra.mxu0 0.0
        %5507 = vmatprep.subr.mxu0 0.0
        %5508 = vmatpush1.msra.mxu0 0.0
        %5509 = vmatprep.subr.mxu0 0.0
        %5510 = vmatpush1.msra.mxu0 0.0
        %5511 = vmatprep.subr.mxu0 0.0
        %5512 = vmatpush1.msra.mxu0 0.0
        %5513 = vmatprep.subr.mxu0 0.0
        %5514 = vmatpush1.msra.mxu0 0.0
        %5515 = vmatprep.subr.mxu0 0.0
        %5516 = vmatpush1.msra.mxu0 0.0
        %5517 = vmatprep.subr.mxu0 0.0
        %5518 = vmatpush1.msra.mxu0 0.0
        %5519 = vmatprep.subr.mxu0 0.0
        %5520 = vmatpush1.msra.mxu0 0.0
        %5521 = vmatprep.subr.mxu0 0.0
        %5522 = vmatpush1.msra.mxu0 0.0
        %5523 = vmatprep.subr.mxu0 0.0
        %5524 = vmatpush1.msra.mxu0 0.0
        %5525 = vmatprep.subr.mxu0 0.0
        %5526 = vmatpush1.msra.mxu0 0.0
        %5527 = vmatprep.mubr.f32.mxu0 0.0
        %5528 = vmatmul.mubr.f32.gmra.mrb[0].mxu0 %v5461
        %v5529 = vpop.f32.mrb[0].mxu0
        %v5530 = vadd.f32 0.0, %v5529
        %v5531 = vpop.f32.mrb[0].mxu0
        %5532 = vdwg.mxu0
        %v5533 = vadd.f32 %v5455, %v5530
        %v5534 = vld [vmem:[%s3 + $0x1a0] sm:$0xff]
        %v5535 = vld [vmem:[%s3 + $0x1a8] sm:$0xff]
        %v5536 = vld [vmem:[%s3 + $0x1b0] sm:$0xff]
        %v5537 = vld [vmem:[%s3 + $0x1b8] sm:$0xff]
        %v5539 = vsel %vm481, %v4517, 0
        %5541 = vmatprep.subr.mxu0 0.0
        %5542 = vmatpush1.msra.mxu0 %v5534
        %5543 = vmatprep.subr.mxu0 0.0
        %5544 = vmatpush1.msra.mxu0 %v5535
        %5545 = vmatprep.subr.mxu0 0.0
        %5546 = vmatpush1.msra.mxu0 %v5536
        %5547 = vmatprep.subr.mxu0 0.0
        %5548 = vmatpush1.msra.mxu0 %v5537
        %5549 = vmatprep.subr.mxu0 0.0
        %5550 = vmatpush1.msra.mxu0 0.0
        %5551 = vmatprep.subr.mxu0 0.0
        %5552 = vmatpush1.msra.mxu0 0.0
        %5553 = vmatprep.subr.mxu0 0.0
        %5554 = vmatpush1.msra.mxu0 0.0
        %5555 = vmatprep.subr.mxu0 0.0
        %5556 = vmatpush1.msra.mxu0 0.0
        %5557 = vmatprep.subr.mxu0 0.0
        %5558 = vmatpush1.msra.mxu0 0.0
        %5559 = vmatprep.subr.mxu0 0.0
        %5560 = vmatpush1.msra.mxu0 0.0
        %5561 = vmatprep.subr.mxu0 0.0
        %5562 = vmatpush1.msra.mxu0 0.0
        %5563 = vmatprep.subr.mxu0 0.0
        %5564 = vmatpush1.msra.mxu0 0.0
        %5565 = vmatprep.subr.mxu0 0.0
        %5566 = vmatpush1.msra.mxu0 0.0
        %5567 = vmatprep.subr.mxu0 0.0
        %5568 = vmatpush1.msra.mxu0 0.0
        %5569 = vmatprep.subr.mxu0 0.0
        %5570 = vmatpush1.msra.mxu0 0.0
        %5571 = vmatprep.subr.mxu0 0.0
        %5572 = vmatpush1.msra.mxu0 0.0
        %5573 = vmatprep.subr.mxu0 0.0
        %5574 = vmatpush1.msra.mxu0 0.0
        %5575 = vmatprep.subr.mxu0 0.0
        %5576 = vmatpush1.msra.mxu0 0.0
        %5577 = vmatprep.subr.mxu0 0.0
        %5578 = vmatpush1.msra.mxu0 0.0
        %5579 = vmatprep.subr.mxu0 0.0
        %5580 = vmatpush1.msra.mxu0 0.0
        %5581 = vmatprep.subr.mxu0 0.0
        %5582 = vmatpush1.msra.mxu0 0.0
        %5583 = vmatprep.subr.mxu0 0.0
        %5584 = vmatpush1.msra.mxu0 0.0
        %5585 = vmatprep.subr.mxu0 0.0
        %5586 = vmatpush1.msra.mxu0 0.0
        %5587 = vmatprep.subr.mxu0 0.0
        %5588 = vmatpush1.msra.mxu0 0.0
        %5589 = vmatprep.subr.mxu0 0.0
        %5590 = vmatpush1.msra.mxu0 0.0
        %5591 = vmatprep.subr.mxu0 0.0
        %5592 = vmatpush1.msra.mxu0 0.0
        %5593 = vmatprep.subr.mxu0 0.0
        %5594 = vmatpush1.msra.mxu0 0.0
        %5595 = vmatprep.subr.mxu0 0.0
        %5596 = vmatpush1.msra.mxu0 0.0
        %5597 = vmatprep.subr.mxu0 0.0
        %5598 = vmatpush1.msra.mxu0 0.0
        %5599 = vmatprep.subr.mxu0 0.0
        %5600 = vmatpush1.msra.mxu0 0.0
        %5601 = vmatprep.subr.mxu0 0.0
        %5602 = vmatpush1.msra.mxu0 0.0
        %5603 = vmatprep.subr.mxu0 0.0
        %5604 = vmatpush1.msra.mxu0 0.0
        %5605 = vmatprep.mubr.f32.mxu0 0.0
        %5606 = vmatmul.mubr.f32.gmra.mrb[0].mxu0 %v5539
        %v5607 = vpop.f32.mrb[0].mxu0
        %v5608 = vadd.f32 0.0, %v5607
        %v5609 = vpop.f32.mrb[0].mxu0
        %5610 = vdwg.mxu0
        %v5611 = vadd.f32 %v5533, %v5608
        %v5612 = vld [vmem:[%s3 + $0x1c0] sm:$0xff]
        %v5613 = vld [vmem:[%s3 + $0x1c8] sm:$0xff]
        %v5614 = vld [vmem:[%s3 + $0x1d0] sm:$0xff]
        %v5615 = vld [vmem:[%s3 + $0x1d8] sm:$0xff]
        %v5617 = vsel %vm481, %v4519, 0
        %5619 = vmatprep.subr.mxu0 0.0
        %5620 = vmatpush1.msra.mxu0 %v5612
        %5621 = vmatprep.subr.mxu0 0.0
        %5622 = vmatpush1.msra.mxu0 %v5613
        %5623 = vmatprep.subr.mxu0 0.0
        %5624 = vmatpush1.msra.mxu0 %v5614
        %5625 = vmatprep.subr.mxu0 0.0
        %5626 = vmatpush1.msra.mxu0 %v5615
        %5627 = vmatprep.subr.mxu0 0.0
        %5628 = vmatpush1.msra.mxu0 0.0
        %5629 = vmatprep.subr.mxu0 0.0
        %5630 = vmatpush1.msra.mxu0 0.0
        %5631 = vmatprep.subr.mxu0 0.0
        %5632 = vmatpush1.msra.mxu0 0.0
        %5633 = vmatprep.subr.mxu0 0.0
        %5634 = vmatpush1.msra.mxu0 0.0
        %5635 = vmatprep.subr.mxu0 0.0
        %5636 = vmatpush1.msra.mxu0 0.0
        %5637 = vmatprep.subr.mxu0 0.0
        %5638 = vmatpush1.msra.mxu0 0.0
        %5639 = vmatprep.subr.mxu0 0.0
        %5640 = vmatpush1.msra.mxu0 0.0
        %5641 = vmatprep.subr.mxu0 0.0
        %5642 = vmatpush1.msra.mxu0 0.0
        %5643 = vmatprep.subr.mxu0 0.0
        %5644 = vmatpush1.msra.mxu0 0.0
        %5645 = vmatprep.subr.mxu0 0.0
        %5646 = vmatpush1.msra.mxu0 0.0
        %5647 = vmatprep.subr.mxu0 0.0
        %5648 = vmatpush1.msra.mxu0 0.0
        %5649 = vmatprep.subr.mxu0 0.0
        %5650 = vmatpush1.msra.mxu0 0.0
        %5651 = vmatprep.subr.mxu0 0.0
        %5652 = vmatpush1.msra.mxu0 0.0
        %5653 = vmatprep.subr.mxu0 0.0
        %5654 = vmatpush1.msra.mxu0 0.0
        %5655 = vmatprep.subr.mxu0 0.0
        %5656 = vmatpush1.msra.mxu0 0.0
        %5657 = vmatprep.subr.mxu0 0.0
        %5658 = vmatpush1.msra.mxu0 0.0
        %5659 = vmatprep.subr.mxu0 0.0
        %5660 = vmatpush1.msra.mxu0 0.0
        %5661 = vmatprep.subr.mxu0 0.0
        %5662 = vmatpush1.msra.mxu0 0.0
        %5663 = vmatprep.subr.mxu0 0.0
        %5664 = vmatpush1.msra.mxu0 0.0
        %5665 = vmatprep.subr.mxu0 0.0
        %5666 = vmatpush1.msra.mxu0 0.0
        %5667 = vmatprep.subr.mxu0 0.0
        %5668 = vmatpush1.msra.mxu0 0.0
        %5669 = vmatprep.subr.mxu0 0.0
        %5670 = vmatpush1.msra.mxu0 0.0
        %5671 = vmatprep.subr.mxu0 0.0
        %5672 = vmatpush1.msra.mxu0 0.0
        %5673 = vmatprep.subr.mxu0 0.0
        %5674 = vmatpush1.msra.mxu0 0.0
        %5675 = vmatprep.subr.mxu0 0.0
        %5676 = vmatpush1.msra.mxu0 0.0
        %5677 = vmatprep.subr.mxu0 0.0
        %5678 = vmatpush1.msra.mxu0 0.0
        %5679 = vmatprep.subr.mxu0 0.0
        %5680 = vmatpush1.msra.mxu0 0.0
        %5681 = vmatprep.subr.mxu0 0.0
        %5682 = vmatpush1.msra.mxu0 0.0
        %5683 = vmatprep.mubr.f32.mxu0 0.0
        %5684 = vmatmul.mubr.f32.gmra.mrb[0].mxu0 %v5617
        %v5685 = vpop.f32.mrb[0].mxu0
        %v5686 = vadd.f32 0.0, %v5685
        %v5687 = vpop.f32.mrb[0].mxu0
        %5688 = vdwg.mxu0
        %v5689 = vadd.f32 %v5611, %v5686
        %v5690 = vld [vmem:[%s3 + $0x1e0] sm:$0xff]
        %v5691 = vld [vmem:[%s3 + $0x1e8] sm:$0xff]
        %v5692 = vld [vmem:[%s3 + $0x1f0] sm:$0xff]
        %v5693 = vld [vmem:[%s3 + $0x1f8] sm:$0xff]
        %v5695 = vsel %vm481, %v4521, 0
        %5697 = vmatprep.subr.mxu0 0.0
        %5698 = vmatpush1.msra.mxu0 %v5690
        %5699 = vmatprep.subr.mxu0 0.0
        %5700 = vmatpush1.msra.mxu0 %v5691
        %5701 = vmatprep.subr.mxu0 0.0
        %5702 = vmatpush1.msra.mxu0 %v5692
        %5703 = vmatprep.subr.mxu0 0.0
        %5704 = vmatpush1.msra.mxu0 %v5693
        %5705 = vmatprep.subr.mxu0 0.0
        %5706 = vmatpush1.msra.mxu0 0.0
        %5707 = vmatprep.subr.mxu0 0.0
        %5708 = vmatpush1.msra.mxu0 0.0
        %5709 = vmatprep.subr.mxu0 0.0
        %5710 = vmatpush1.msra.mxu0 0.0
        %5711 = vmatprep.subr.mxu0 0.0
        %5712 = vmatpush1.msra.mxu0 0.0
        %5713 = vmatprep.subr.mxu0 0.0
        %5714 = vmatpush1.msra.mxu0 0.0
        %5715 = vmatprep.subr.mxu0 0.0
        %5716 = vmatpush1.msra.mxu0 0.0
        %5717 = vmatprep.subr.mxu0 0.0
        %5718 = vmatpush1.msra.mxu0 0.0
        %5719 = vmatprep.subr.mxu0 0.0
        %5720 = vmatpush1.msra.mxu0 0.0
        %5721 = vmatprep.subr.mxu0 0.0
        %5722 = vmatpush1.msra.mxu0 0.0
        %5723 = vmatprep.subr.mxu0 0.0
        %5724 = vmatpush1.msra.mxu0 0.0
        %5725 = vmatprep.subr.mxu0 0.0
        %5726 = vmatpush1.msra.mxu0 0.0
        %5727 = vmatprep.subr.mxu0 0.0
        %5728 = vmatpush1.msra.mxu0 0.0
        %5729 = vmatprep.subr.mxu0 0.0
        %5730 = vmatpush1.msra.mxu0 0.0
        %5731 = vmatprep.subr.mxu0 0.0
        %5732 = vmatpush1.msra.mxu0 0.0
        %5733 = vmatprep.subr.mxu0 0.0
        %5734 = vmatpush1.msra.mxu0 0.0
        %5735 = vmatprep.subr.mxu0 0.0
        %5736 = vmatpush1.msra.mxu0 0.0
        %5737 = vmatprep.subr.mxu0 0.0
        %5738 = vmatpush1.msra.mxu0 0.0
        %5739 = vmatprep.subr.mxu0 0.0
        %5740 = vmatpush1.msra.mxu0 0.0
        %5741 = vmatprep.subr.mxu0 0.0
        %5742 = vmatpush1.msra.mxu0 0.0
        %5743 = vmatprep.subr.mxu0 0.0
        %5744 = vmatpush1.msra.mxu0 0.0
        %5745 = vmatprep.subr.mxu0 0.0
        %5746 = vmatpush1.msra.mxu0 0.0
        %5747 = vmatprep.subr.mxu0 0.0
        %5748 = vmatpush1.msra.mxu0 0.0
        %5749 = vmatprep.subr.mxu0 0.0
        %5750 = vmatpush1.msra.mxu0 0.0
        %5751 = vmatprep.subr.mxu0 0.0
        %5752 = vmatpush1.msra.mxu0 0.0
        %5753 = vmatprep.subr.mxu0 0.0
        %5754 = vmatpush1.msra.mxu0 0.0
        %5755 = vmatprep.subr.mxu0 0.0
        %5756 = vmatpush1.msra.mxu0 0.0
        %5757 = vmatprep.subr.mxu0 0.0
        %5758 = vmatpush1.msra.mxu0 0.0
        %5759 = vmatprep.subr.mxu0 0.0
        %5760 = vmatpush1.msra.mxu0 0.0
        %5761 = vmatprep.mubr.f32.mxu0 0.0
        %5762 = vmatmul.mubr.f32.gmra.mrb[0].mxu0 %v5695
        %v5763 = vpop.f32.mrb[0].mxu0
        %v5764 = vadd.f32 0.0, %v5763
        %v5765 = vpop.f32.mrb[0].mxu0
        %5766 = vdwg.mxu0
        %v5767 = vadd.f32 %v5689, %v5764
        %v5768 = vld [vmem:[%s4] sm:$0x1]
        %v5770 = vlaneseq
        %v5771 = vshrl.u32 %v5770, 7
        %v5772 = vsub.s32 0, %v5771
        %v5773 = vrot.slane %v5768, %v5772
        %v5775 = vadd.f32 %v5767, %v5773
        %v5776 = vmax.f32 %v5775, 0.0
        %v5779 = vunpack.c.l.s4 1983009808
        %v5780 = vunpack.c.0.s8 %v5779
        %v5781 = vlaneseq
        %v5782 = vshrl.u32 %v5781, 7
        %v5783 = vsub.s32 %v5780, %v5782
        %v5784 = vrot.slane %v5776, %v5783
        %5785 = vrot.lane.b32.xlu0 %v5784, 64
        %v5786 = vpop.permute.xlu0 %5785
        %5788 = vst.msk [vmem:[#allocation3 + $0x2] sm:$0x3] %vm3220, %v5786
        %v5789 = vld [vmem:[#allocation3] sm:$0xf]
        %v5790 = vld [vmem:[%s5] sm:$0xff]
        %v5791 = vld [vmem:[%s5 + $0x8] sm:$0xff]
        %v5792 = vld [vmem:[%s5 + $0x10] sm:$0xff]
        %v5793 = vld [vmem:[%s5 + $0x18] sm:$0xff]
        %v5794 = vld [vmem:[%s5 + $0x20] sm:$0xff]
        %v5795 = vld [vmem:[%s5 + $0x28] sm:$0xff]
        %v5796 = vld [vmem:[%s5 + $0x30] sm:$0xff]
        %v5797 = vld [vmem:[%s5 + $0x38] sm:$0xff]
        %v5798 = vld [vmem:[%s5 + $0x40] sm:$0xff]
        %v5799 = vld [vmem:[%s5 + $0x48] sm:$0xff]
        %v5800 = vld [vmem:[%s5 + $0x50] sm:$0xff]
        %v5801 = vld [vmem:[%s5 + $0x58] sm:$0xff]
        %v5802 = vld [vmem:[%s5 + $0x60] sm:$0xff]
        %v5803 = vld [vmem:[%s5 + $0x68] sm:$0xff]
        %v5804 = vld [vmem:[%s5 + $0x70] sm:$0xff]
        %v5805 = vld [vmem:[%s5 + $0x78] sm:$0xff]
        %v5806 = vld [vmem:[%s5 + $0x80] sm:$0xff]
        %v5807 = vld [vmem:[%s5 + $0x88] sm:$0xff]
        %v5808 = vld [vmem:[%s5 + $0x90] sm:$0xff]
        %v5809 = vld [vmem:[%s5 + $0x98] sm:$0xff]
        %v5810 = vld [vmem:[%s5 + $0xa0] sm:$0xff]
        %v5811 = vld [vmem:[%s5 + $0xa8] sm:$0xff]
        %v5812 = vld [vmem:[%s5 + $0xb0] sm:$0xff]
        %v5813 = vld [vmem:[%s5 + $0xb8] sm:$0xff]
        %v5814 = vld [vmem:[%s5 + $0xc0] sm:$0xff]
        %v5815 = vld [vmem:[%s5 + $0xc8] sm:$0xff]
        %v5816 = vld [vmem:[%s5 + $0xd0] sm:$0xff]
        %v5817 = vld [vmem:[%s5 + $0xd8] sm:$0xff]
        %v5818 = vld [vmem:[%s5 + $0xe0] sm:$0xff]
        %v5819 = vld [vmem:[%s5 + $0xe8] sm:$0xff]
        %v5820 = vld [vmem:[%s5 + $0xf0] sm:$0xff]
        %v5821 = vld [vmem:[%s5 + $0xf8] sm:$0xff]
        %v5822 = vld [vmem:[%s5 + $0x100] sm:$0xff]
        %v5823 = vld [vmem:[%s5 + $0x108] sm:$0xff]
        %v5824 = vld [vmem:[%s5 + $0x110] sm:$0xff]
        %v5825 = vld [vmem:[%s5 + $0x118] sm:$0xff]
        %v5826 = vld [vmem:[%s5 + $0x120] sm:$0xff]
        %v5827 = vld [vmem:[%s5 + $0x128] sm:$0xff]
        %v5828 = vld [vmem:[%s5 + $0x130] sm:$0xff]
        %v5829 = vld [vmem:[%s5 + $0x138] sm:$0xff]
        %v5830 = vld [vmem:[%s5 + $0x140] sm:$0xff]
        %v5831 = vld [vmem:[%s5 + $0x148] sm:$0xff]
        %v5832 = vld [vmem:[%s5 + $0x150] sm:$0xff]
        %v5833 = vld [vmem:[%s5 + $0x158] sm:$0xff]
        %v5834 = vld [vmem:[%s5 + $0x160] sm:$0xff]
        %v5835 = vld [vmem:[%s5 + $0x168] sm:$0xff]
        %v5836 = vld [vmem:[%s5 + $0x170] sm:$0xff]
        %v5837 = vld [vmem:[%s5 + $0x178] sm:$0xff]
        %v5838 = vld [vmem:[%s5 + $0x180] sm:$0xff]
        %v5839 = vld [vmem:[%s5 + $0x188] sm:$0xff]
        %v5840 = vld [vmem:[%s5 + $0x190] sm:$0xff]
        %v5841 = vld [vmem:[%s5 + $0x198] sm:$0xff]
        %v5842 = vld [vmem:[%s5 + $0x1a0] sm:$0xff]
        %v5843 = vld [vmem:[%s5 + $0x1a8] sm:$0xff]
        %v5844 = vld [vmem:[%s5 + $0x1b0] sm:$0xff]
        %v5845 = vld [vmem:[%s5 + $0x1b8] sm:$0xff]
        %v5846 = vld [vmem:[%s5 + $0x1c0] sm:$0xff]
        %v5847 = vld [vmem:[%s5 + $0x1c8] sm:$0xff]
        %v5848 = vld [vmem:[%s5 + $0x1d0] sm:$0xff]
        %v5849 = vld [vmem:[%s5 + $0x1d8] sm:$0xff]
        %v5850 = vld [vmem:[%s5 + $0x1e0] sm:$0xff]
        %v5851 = vld [vmem:[%s5 + $0x1e8] sm:$0xff]
        %v5852 = vld [vmem:[%s5 + $0x1f0] sm:$0xff]
        %v5853 = vld [vmem:[%s5 + $0x1f8] sm:$0xff]
        %v5854 = vld [vmem:[%s6] sm:$0x3]
        %v5856 = vlaneseq
        %v5857 = vshrl.u32 %v5856, 7
        %v5858 = vsub.s32 0, %v5857
        %v5859 = vrot.slane %v5854, %v5858
        %v5860 = vlaneseq
        %v5861 = vshrl.u32 %v5860, 7
        %v5862 = vsub.s32 1, %v5861
        %v5863 = vrot.slane %v5854, %v5862
        %v5868 = vunpack.c.l.s4 1983009808
        %v5869 = vunpack.c.0.s8 %v5868
        %v5870 = vlaneseq
        %v5871 = vshrl.u32 %v5870, 7
        %v5872 = vsub.s32 %v5869, %v5871
        %v5873 = vrot.slane %v5789, %v5872
        %v5874 = vcombine.high %v5873, %v5873
        %5877 = vmatprep.subr.mxu0 %v5791
        %5878 = vmatpush1.msra.mxu0 %v5790
        %5879 = vmatprep.subr.mxu0 %v5793
        %5880 = vmatpush1.msra.mxu0 %v5792
        %5881 = vmatprep.subr.mxu0 %v5795
        %5882 = vmatpush1.msra.mxu0 %v5794
        %5883 = vmatprep.subr.mxu0 %v5797
        %5884 = vmatpush1.msra.mxu0 %v5796
        %5885 = vmatprep.subr.mxu0 %v5799
        %5886 = vmatpush1.msra.mxu0 %v5798
        %5887 = vmatprep.subr.mxu0 %v5801
        %5888 = vmatpush1.msra.mxu0 %v5800
        %5889 = vmatprep.subr.mxu0 %v5803
        %5890 = vmatpush1.msra.mxu0 %v5802
        %5891 = vmatprep.subr.mxu0 %v5805
        %5892 = vmatpush1.msra.mxu0 %v5804
        %5893 = vmatprep.subr.mxu0 %v5807
        %5894 = vmatpush1.msra.mxu0 %v5806
        %5895 = vmatprep.subr.mxu0 %v5809
        %5896 = vmatpush1.msra.mxu0 %v5808
        %5897 = vmatprep.subr.mxu0 %v5811
        %5898 = vmatpush1.msra.mxu0 %v5810
        %5899 = vmatprep.subr.mxu0 %v5813
        %5900 = vmatpush1.msra.mxu0 %v5812
        %5901 = vmatprep.subr.mxu0 %v5815
        %5902 = vmatpush1.msra.mxu0 %v5814
        %5903 = vmatprep.subr.mxu0 %v5817
        %5904 = vmatpush1.msra.mxu0 %v5816
        %5905 = vmatprep.subr.mxu0 %v5819
        %5906 = vmatpush1.msra.mxu0 %v5818
        %5907 = vmatprep.subr.mxu0 %v5821
        %5908 = vmatpush1.msra.mxu0 %v5820
        %5909 = vmatprep.subr.mxu0 %v5823
        %5910 = vmatpush1.msra.mxu0 %v5822
        %5911 = vmatprep.subr.mxu0 %v5825
        %5912 = vmatpush1.msra.mxu0 %v5824
        %5913 = vmatprep.subr.mxu0 %v5827
        %5914 = vmatpush1.msra.mxu0 %v5826
        %5915 = vmatprep.subr.mxu0 %v5829
        %5916 = vmatpush1.msra.mxu0 %v5828
        %5917 = vmatprep.subr.mxu0 %v5831
        %5918 = vmatpush1.msra.mxu0 %v5830
        %5919 = vmatprep.subr.mxu0 %v5833
        %5920 = vmatpush1.msra.mxu0 %v5832
        %5921 = vmatprep.subr.mxu0 %v5835
        %5922 = vmatpush1.msra.mxu0 %v5834
        %5923 = vmatprep.subr.mxu0 %v5837
        %5924 = vmatpush1.msra.mxu0 %v5836
        %5925 = vmatprep.subr.mxu0 %v5839
        %5926 = vmatpush1.msra.mxu0 %v5838
        %5927 = vmatprep.subr.mxu0 %v5841
        %5928 = vmatpush1.msra.mxu0 %v5840
        %5929 = vmatprep.subr.mxu0 %v5843
        %5930 = vmatpush1.msra.mxu0 %v5842
        %5931 = vmatprep.subr.mxu0 %v5845
        %5932 = vmatpush1.msra.mxu0 %v5844
        %5933 = vmatprep.subr.mxu0 %v5847
        %5934 = vmatpush1.msra.mxu0 %v5846
        %5935 = vmatprep.subr.mxu0 %v5849
        %5936 = vmatpush1.msra.mxu0 %v5848
        %5937 = vmatprep.subr.mxu0 %v5851
        %5938 = vmatpush1.msra.mxu0 %v5850
        %5939 = vmatprep.subr.mxu0 %v5853
        %5940 = vmatpush1.msra.mxu0 %v5852
        %5941 = vmatprep.mubr.f32.mxu0 %v5874
        %5942 = vmatmul.mubr.f32.gmra.mrb[0].mxu0 %v5873
        %v5943 = vpop.f32.mrb[0].mxu0
        %v5944 = vadd.f32 %v5859, %v5943
        %v5945 = vpop.f32.mrb[0].mxu0
        %v5946 = vadd.f32 %v5863, %v5945
        %5947 = vdwg.mxu0
        %v5948 = vmax.f32 %v5944, 0.0
        %v5949 = vmax.f32 %v5946, 0.0
        %v5950 = vld [vmem:[%s7] sm:$0xff]
        %v5951 = vld [vmem:[%s7 + $0x8] sm:$0xff]
        %v5952 = vld [vmem:[%s7 + $0x10] sm:$0xff]
        %v5953 = vld [vmem:[%s7 + $0x18] sm:$0xff]
        %v5954 = vld [vmem:[%s7 + $0x20] sm:$0xff]
        %v5955 = vld [vmem:[%s7 + $0x28] sm:$0xff]
        %v5956 = vld [vmem:[%s7 + $0x30] sm:$0xff]
        %v5957 = vld [vmem:[%s7 + $0x38] sm:$0xff]
        %v5958 = vld [vmem:[%s7 + $0x40] sm:$0xff]
        %v5959 = vld [vmem:[%s7 + $0x48] sm:$0xff]
        %v5960 = vld [vmem:[%s7 + $0x50] sm:$0xff]
        %v5961 = vld [vmem:[%s7 + $0x58] sm:$0xff]
        %v5962 = vld [vmem:[%s7 + $0x60] sm:$0xff]
        %v5963 = vld [vmem:[%s7 + $0x68] sm:$0xff]
        %v5964 = vld [vmem:[%s7 + $0x70] sm:$0xff]
        %v5965 = vld [vmem:[%s7 + $0x78] sm:$0xff]
        %v5966 = vld [vmem:[%s7 + $0x80] sm:$0xff]
        %v5967 = vld [vmem:[%s7 + $0x88] sm:$0xff]
        %v5968 = vld [vmem:[%s7 + $0x90] sm:$0xff]
        %v5969 = vld [vmem:[%s7 + $0x98] sm:$0xff]
        %v5970 = vld [vmem:[%s7 + $0xa0] sm:$0xff]
        %v5971 = vld [vmem:[%s7 + $0xa8] sm:$0xff]
        %v5972 = vld [vmem:[%s7 + $0xb0] sm:$0xff]
        %v5973 = vld [vmem:[%s7 + $0xb8] sm:$0xff]
        %v5974 = vld [vmem:[%s7 + $0xc0] sm:$0xff]
        %v5975 = vld [vmem:[%s7 + $0xc8] sm:$0xff]
        %v5976 = vld [vmem:[%s7 + $0xd0] sm:$0xff]
        %v5977 = vld [vmem:[%s7 + $0xd8] sm:$0xff]
        %v5978 = vld [vmem:[%s7 + $0xe0] sm:$0xff]
        %v5979 = vld [vmem:[%s7 + $0xe8] sm:$0xff]
        %v5980 = vld [vmem:[%s7 + $0xf0] sm:$0xff]
        %v5981 = vld [vmem:[%s7 + $0xf8] sm:$0xff]
        %v5982 = vld [vmem:[%s8] sm:$0x1]
        %v5984 = vlaneseq
        %v5985 = vshrl.u32 %v5984, 7
        %v5986 = vsub.s32 0, %v5985
        %v5987 = vrot.slane %v5982, %v5986
        %5989 = vmatprep.subr.mxu0 0.0
        %5990 = vmatpush1.msra.mxu0 %v5950
        %5991 = vmatprep.subr.mxu0 0.0
        %5992 = vmatpush1.msra.mxu0 %v5951
        %5993 = vmatprep.subr.mxu0 0.0
        %5994 = vmatpush1.msra.mxu0 %v5952
        %5995 = vmatprep.subr.mxu0 0.0
        %5996 = vmatpush1.msra.mxu0 %v5953
        %5997 = vmatprep.subr.mxu0 0.0
        %5998 = vmatpush1.msra.mxu0 %v5954
        %5999 = vmatprep.subr.mxu0 0.0
        %6000 = vmatpush1.msra.mxu0 %v5955
        %6001 = vmatprep.subr.mxu0 0.0
        %6002 = vmatpush1.msra.mxu0 %v5956
        %6003 = vmatprep.subr.mxu0 0.0
        %6004 = vmatpush1.msra.mxu0 %v5957
        %6005 = vmatprep.subr.mxu0 0.0
        %6006 = vmatpush1.msra.mxu0 %v5958
        %6007 = vmatprep.subr.mxu0 0.0
        %6008 = vmatpush1.msra.mxu0 %v5959
        %6009 = vmatprep.subr.mxu0 0.0
        %6010 = vmatpush1.msra.mxu0 %v5960
        %6011 = vmatprep.subr.mxu0 0.0
        %6012 = vmatpush1.msra.mxu0 %v5961
        %6013 = vmatprep.subr.mxu0 0.0
        %6014 = vmatpush1.msra.mxu0 %v5962
        %6015 = vmatprep.subr.mxu0 0.0
        %6016 = vmatpush1.msra.mxu0 %v5963
        %6017 = vmatprep.subr.mxu0 0.0
        %6018 = vmatpush1.msra.mxu0 %v5964
        %6019 = vmatprep.subr.mxu0 0.0
        %6020 = vmatpush1.msra.mxu0 %v5965
        %6021 = vmatprep.subr.mxu0 0.0
        %6022 = vmatpush1.msra.mxu0 %v5966
        %6023 = vmatprep.subr.mxu0 0.0
        %6024 = vmatpush1.msra.mxu0 %v5967
        %6025 = vmatprep.subr.mxu0 0.0
        %6026 = vmatpush1.msra.mxu0 %v5968
        %6027 = vmatprep.subr.mxu0 0.0
        %6028 = vmatpush1.msra.mxu0 %v5969
        %6029 = vmatprep.subr.mxu0 0.0
        %6030 = vmatpush1.msra.mxu0 %v5970
        %6031 = vmatprep.subr.mxu0 0.0
        %6032 = vmatpush1.msra.mxu0 %v5971
        %6033 = vmatprep.subr.mxu0 0.0
        %6034 = vmatpush1.msra.mxu0 %v5972
        %6035 = vmatprep.subr.mxu0 0.0
        %6036 = vmatpush1.msra.mxu0 %v5973
        %6037 = vmatprep.subr.mxu0 0.0
        %6038 = vmatpush1.msra.mxu0 %v5974
        %6039 = vmatprep.subr.mxu0 0.0
        %6040 = vmatpush1.msra.mxu0 %v5975
        %6041 = vmatprep.subr.mxu0 0.0
        %6042 = vmatpush1.msra.mxu0 %v5976
        %6043 = vmatprep.subr.mxu0 0.0
        %6044 = vmatpush1.msra.mxu0 %v5977
        %6045 = vmatprep.subr.mxu0 0.0
        %6046 = vmatpush1.msra.mxu0 %v5978
        %6047 = vmatprep.subr.mxu0 0.0
        %6048 = vmatpush1.msra.mxu0 %v5979
        %6049 = vmatprep.subr.mxu0 0.0
        %6050 = vmatpush1.msra.mxu0 %v5980
        %6051 = vmatprep.subr.mxu0 0.0
        %6052 = vmatpush1.msra.mxu0 %v5981
        %6053 = vmatprep.mubr.f32.mxu0 %v5949
        %6054 = vmatmul.mubr.f32.gmra.mrb[0].mxu0 %v5948
        %v6055 = vpop.f32.mrb[0].mxu0
        %v6056 = vadd.f32 %v5987, %v6055
        %v6057 = vpop.f32.mrb[0].mxu0
        %6058 = vdwg.mxu0
        %6059 = vst [vmem:[%s328] sm:$0x3] %v6056
        %s6060 = sand.u32 %s225, 1
        %s6061 = scalar_lea.sflag [#allocation5], %s6060
        %s6062 = sand.u32 %s225, 1
        %s6063 = smul.addr %s6062, 2
        %s6064 = scalar_lea.vmem [#allocation4], %s6063
        // Predicated region
        $region57: #{dqn_forward.1} parent=55 // pred_check
          %p6065 = pneg %p235
        $region58: #{dqn_forward.1} parent=55 // pred_check_branch
          %6067 = sbr.rel (%p6065) target = $region60
        $region59: #{dqn_forward.1} parent=55 // pred_region
          %s6069 = ssub.s32 32, 32
          %6070 = vsyncadd %s6061, %s6069
          %s6071 = smul.addr %s23, 32
          %s6072 = scalar_lea.hbm %s9, %s6071
          %s6074 = sshll.u32 %s6064, 4
          %s6075 = int_to_ptr.vmem [resolvable:$true] %s6074
          %6077 = dma.vmem_to_hbm [thread:$0]  %s6075, 32, %s6072, %s6061
        $region60: #{dqn_forward.1} parent=55 // pred_fallthru
          _
      $region56: #{dqn_forward.1} parent=5 // pred_fallthru
        _
      %p6078 = scmp.le.s32.totalorder 2, %s18
      // Predicated region
      $region61: #{dqn_forward.1} parent=5 // pred_check
        %p6079 = pneg %p6078
      $region62: #{dqn_forward.1} parent=5 // pred_check_branch
        %6081 = sbr.rel (%p6079) target = $region64
      $region63: #{dqn_forward.1} parent=5 // pred_region
        %s6082 = ssub.s32 %s18, 2
        // Predicated region
        $region65: #{dqn_forward.1} parent=63 // pred_check
          %p6083 = pneg %p241
        $region66: #{dqn_forward.1} parent=63 // pred_check_branch
          %6085 = sbr.rel (%p6083) target = $region68
        $region67: #{dqn_forward.1} parent=63 // pred_region
          %s6086 = sand.u32 %s226, 1
          %s6087 = scalar_lea.sflag [#allocation5], %s6086
          %s6088 = sand.u32 %s226, 1
          %s6089 = smul.addr %s6088, 2
          %s6090 = scalar_lea.vmem [#allocation4], %s6089
          %6091 = dma.done %s6087, 32
        $region68: #{dqn_forward.1} parent=63 // pred_fallthru
          _
      $region64: #{dqn_forward.1} parent=5 // pred_fallthru
        _
    $region6: #{dqn_forward.1} parent=1 // loop_footer
      %s22 = sadd.s32 1, %s18
    $region7: #{dqn_forward.1} parent=1 // loop_footer_branch
      %17 = sbr.rel target = $region3
    $region8: #{dqn_forward.1} parent=1 // loop_exit
      _
    %6092 = vsyncpa [#allocation5], 1
    %s6093 = scalar_lea.sflag [#allocation5], 1
    %6094 = vsyncpa %s6093, 1

</llo_original>
